<compile_context>
chip_gen: v5e
topology: v5e:2x2
jax: 0.10.0
libtpu: 0.0.40
codegen_flags: <defaults>
</compile_context>

<pallas_src>
import numpy as np
import jax
import jax.numpy as jnp
from jax.experimental import pallas as pl
from jax.experimental.pallas import tpu as pltpu

_EPS = 1e-5


def _round_up(x, m):
    return (x + m - 1) // m * m


def _tile_weight(w, ck_p, cn_p, tk, tn):
    """HWIO (3,3,Ck,Cn) -> panel-contiguous (Kt, Nt, 9, tk, tn) bf16."""
    ck, cn = w.shape[2], w.shape[3]
    wp = jnp.pad(w, ((0, 0), (0, 0), (0, ck_p - ck), (0, cn_p - cn)))
    kt, nt = ck_p // tk, cn_p // tn
    wp = wp.reshape(3, 3, kt, tk, nt, tn)
    wp = jnp.transpose(wp, (2, 4, 0, 1, 3, 5)).reshape(kt, nt, 9, tk, tn)
    return wp.astype(jnp.bfloat16)


def prepare_params(raw, *, tile_cin=256, tile_cmid=256):
    """One-time parameter prep: fold BN(+bias) into scale/shift, pad channels
    to tile multiples, pre-tile weights into contiguous bf16 panels.

    tile_cin is the Cin tile (conv1 K tile == conv2 N tile); tile_cmid is the
    Cmid tile (conv1 N tile == conv2 K tile).  Use 256 on v6e/v7x, 128 on v5e.
    """
    assert tile_cin % 128 == 0 and tile_cmid % 128 == 0
    cin, cmid = raw["w1"].shape[2], raw["w1"].shape[3]
    cin_p = _round_up(cin, tile_cin)
    cmid_p = _round_up(cmid, tile_cmid)

    s1 = raw["g1"] / jnp.sqrt(raw["v1"] + _EPS)
    sh1 = raw["be1"] - raw["m1"] * s1 + raw["b1"] * s1
    s2 = raw["g2"] / jnp.sqrt(raw["v2"] + _EPS)
    sh2 = raw["be2"] - raw["m2"] * s2 + raw["b2"] * s2

    def padc(v, c_p):
        v = v.reshape(1, -1)
        return jnp.pad(v, ((0, 0), (0, c_p - v.shape[-1])))

    return dict(
        w1t=_tile_weight(raw["w1"], cin_p, cmid_p, tile_cin, tile_cmid),
        w2t=_tile_weight(raw["w2"], cmid_p, cin_p, tile_cmid, tile_cin),
        scale1=padc(s1, cmid_p), shift1=padc(sh1, cmid_p),
        scale2=padc(s2, cin_p), shift2=padc(sh2, cin_p),
        fcw=jnp.pad(raw["fcw"], ((0, cin_p - cin), (0, 0))),
        fcb=raw["fcb"],
    )


def scenet_forward(x_nhwc, prep, *, mb=None):
    """x_nhwc: (B, H, W, Cin) float32, prep: output of prepare_params.
    Returns logits (B, 2).  mb = batch elements per grid step; keep mb == B so
    weight panels are streamed exactly once per forward."""
    B, H, W, Cin = x_nhwc.shape
    Kt1, Nt1, _, tk1, tn1 = prep["w1t"].shape
    Kt2, Nt2, _, tk2, tn2 = prep["w2t"].shape
    Cin_p, Cmid_p = Kt1 * tk1, Nt1 * tn1
    assert Kt2 * tk2 == Cmid_p and Nt2 * tn2 == Cin_p
    assert Cin <= Cin_p

    mb = B if mb is None else mb
    assert B % mb == 0 and (mb == B or mb % 8 == 0), \
        "mb must equal B or be a multiple of 8 that divides B"

    f32, bf16 = jnp.float32, jnp.bfloat16

    S = (H + 2) * (W + 2)                  # padded (halo=1) spatial, flattened
    S_pad = _round_up(S, 8)                # sublane-aligned flat spatial length
    rows = mb * S_pad

    # --- per-call activation prep (tiny vs. weights) -------------------------
    x_pad = jnp.pad(x_nhwc, ((0, 0), (1, 1), (1, 1), (0, Cin_p - Cin)))
    x_flat = x_pad.reshape(B, S, Cin_p)
    x_flat = jnp.pad(x_flat, ((0, 0), (0, S_pad - S), (0, 0)))   # f32 shortcut
    x_in = x_flat.astype(bf16)                                   # conv1 operand

    # Interior mask over the flattened padded grid (1 inside HxW, 0 on the halo
    # ring and the S_pad tail).  Static-shape constant, passed as a tiny input.
    sp = np.arange(S_pad)
    r_, c_ = sp // (W + 2), sp % (W + 2)
    interior = (r_ >= 1) & (r_ <= H) & (c_ >= 1) & (c_ <= W)
    mask = jnp.asarray(interior.astype(np.float32).reshape(S_pad, 1))

    # --- shared conv inner loop: 9 taps = 9 full-slab matmuls + output rolls --
    def conv_taps(xs, w_ref):
        contrib = None
        for kh in range(3):
            for kw in range(3):
                z = jnp.dot(xs, w_ref[0, 0, kh * 3 + kw],
                            preferred_element_type=f32)
                delta = (kh - 1) * (W + 2) + (kw - 1)
                if delta != 0:
                    z = pltpu.roll(z, shift=(-delta) % rows, axis=0)
                contrib = z if contrib is None else contrib + z
        return contrib

    # --- kernel 1: conv1 + BN1 + ReLU -> flattened padded bf16 hidden --------
    def conv1_kernel(x_ref, w_ref, s_ref, b_ref, m_ref, o_ref, acc_ref):
        k = pl.program_id(2)
        xs = x_ref[...].reshape(rows, tk1)          # sublane-aligned merge
        contrib = conv_taps(xs, w_ref)

        @pl.when(k == 0)
        def _():
            acc_ref[...] = contrib

        @pl.when(k > 0)
        def _():
            acc_ref[...] = acc_ref[...] + contrib

        @pl.when(k == pl.num_programs(2) - 1)
        def _():
            y = acc_ref[...] * s_ref[...] + b_ref[...]      # folded BN (f32)
            y = jnp.maximum(y, 0.0).reshape(mb, S_pad, tn1)
            y = y * m_ref[...].reshape(1, S_pad, 1)         # zero halo for conv2
            o_ref[...] = y.astype(o_ref.dtype)              # single dense store

    # --- kernel 2: conv2 + BN2 + residual + ReLU + global avg pool -----------
    def conv2_kernel(h_ref, w_ref, s_ref, b_ref, sc_ref, m_ref, o_ref, acc_ref):
        k = pl.program_id(2)
        xs = h_ref[...].reshape(rows, tk2)
        contrib = conv_taps(xs, w_ref)

        @pl.when(k == 0)
        def _():
            acc_ref[...] = contrib

        @pl.when(k > 0)
        def _():
            acc_ref[...] = acc_ref[...] + contrib

        @pl.when(k == pl.num_programs(2) - 1)
        def _():
            y = acc_ref[...] * s_ref[...] + b_ref[...]          # BN2 (f32)
            y = y + sc_ref[...].reshape(rows, tn2)              # residual add
            y = jnp.maximum(y, 0.0).reshape(mb, S_pad, tn2)     # ReLU
            y = y * m_ref[...].reshape(1, S_pad, 1)             # keep interior
            o_ref[...] = jnp.sum(y, axis=1) * (1.0 / (H * W))   # GAP (1,1)

    def _vmem_limit(est):
        return int(min(64 * 2 ** 20, max(32 * 2 ** 20, 2 * est)))

    # ---- pallas_call 1 -------------------------------------------------------
    est1 = (2 * rows * tk1 * 2 + 3 * 9 * tk1 * tn1 * 2
            + 2 * rows * tn1 * 2 + rows * tn1 * 4)
    cost1 = pl.CostEstimate(
        flops=2 * 9 * B * S_pad * Cin_p * Cmid_p,
        transcendentals=0,
        bytes_accessed=int(prep["w1t"].size) * 2 * (B // mb)
                       + B * S_pad * Cin_p * 2 * Nt1
                       + B * S_pad * Cmid_p * 2)

    hidden = pl.pallas_call(
        conv1_kernel,
        out_shape=jax.ShapeDtypeStruct((B, S_pad, Cmid_p), bf16),
        grid=(Nt1, B // mb, Kt1),        # Cout tiles leading -> cores split weights
        in_specs=[
            pl.BlockSpec((mb, S_pad, tk1), lambda n, b, k: (b, 0, k)),
            pl.BlockSpec((1, 1, 9, tk1, tn1), lambda n, b, k: (k, n, 0, 0, 0)),
            pl.BlockSpec((1, tn1), lambda n, b, k: (0, n)),
            pl.BlockSpec((1, tn1), lambda n, b, k: (0, n)),
            pl.BlockSpec((S_pad, 1), lambda n, b, k: (0, 0)),
        ],
        out_specs=pl.BlockSpec((mb, S_pad, tn1), lambda n, b, k: (b, 0, n)),
        scratch_shapes=[pltpu.VMEM((rows, tn1), f32)],
        compiler_params=pltpu.CompilerParams(
            dimension_semantics=("parallel", "parallel", "arbitrary"),
            vmem_limit_bytes=_vmem_limit(est1)),
        cost_estimate=cost1,
    )(x_in, prep["w1t"], prep["scale1"], prep["shift1"], mask)

    # ---- pallas_call 2 -------------------------------------------------------
    est2 = (2 * rows * tk2 * 2 + 3 * 9 * tk2 * tn2 * 2
            + 2 * rows * tn2 * 4 + 2 * mb * tn2 * 4 + rows * tn2 * 4)
    cost2 = pl.CostEstimate(
        flops=2 * 9 * B * S_pad * Cmid_p * Cin_p,
        transcendentals=0,
        bytes_accessed=int(prep["w2t"].size) * 2 * (B // mb)
                       + B * S_pad * Cmid_p * 2 * Nt2
                       + B * S_pad * Cin_p * 4 + B * Cin_p * 4)

    pooled = pl.pallas_call(
        conv2_kernel,
        out_shape=jax.ShapeDtypeStruct((B, Cin_p), f32),
        grid=(Nt2, B // mb, Kt2),
        in_specs=[
            pl.BlockSpec((mb, S_pad, tk2), lambda n, b, k: (b, 0, k)),
            pl.BlockSpec((1, 1, 9, tk2, tn2), lambda n, b, k: (k, n, 0, 0, 0)),
            pl.BlockSpec((1, tn2), lambda n, b, k: (0, n)),
            pl.BlockSpec((1, tn2), lambda n, b, k: (0, n)),
            pl.BlockSpec((mb, S_pad, tn2), lambda n, b, k: (b, 0, n)),
            pl.BlockSpec((S_pad, 1), lambda n, b, k: (0, 0)),
        ],
        out_specs=pl.BlockSpec((mb, tn2), lambda n, b, k: (b, n)),
        scratch_shapes=[pltpu.VMEM((rows, tn2), f32)],
        compiler_params=pltpu.CompilerParams(
            dimension_semantics=("parallel", "parallel", "arbitrary"),
            vmem_limit_bytes=_vmem_limit(est2)),
        cost_estimate=cost2,
    )(hidden, prep["w2t"], prep["scale2"], prep["shift2"], x_flat, mask)

    # Tiny FC (Cin -> 2): negligible FLOPs, lane-hostile output — leave to XLA.
    return pooled @ prep["fcw"] + prep["fcb"]


def make_params(key, cin, cmid):
    """Deterministic synthetic raw parameters (shapes mirror the nn.Module)."""
    ks = jax.random.split(key, 12)
    w1 = 0.05 * jax.random.normal(ks[0], (3, 3, cin, cmid), jnp.float32)
    b1 = 0.05 * jax.random.normal(ks[1], (cmid,), jnp.float32)
    w2 = 0.05 * jax.random.normal(ks[2], (3, 3, cmid, cin), jnp.float32)
    b2 = 0.05 * jax.random.normal(ks[3], (cin,), jnp.float32)
    g1 = 1.0 + 0.1 * jax.random.normal(ks[4], (cmid,), jnp.float32)
    be1 = 0.1 * jax.random.normal(ks[5], (cmid,), jnp.float32)
    m1 = 0.05 * jax.random.normal(ks[6], (cmid,), jnp.float32)
    v1 = 0.5 + jax.random.uniform(ks[7], (cmid,), jnp.float32)
    g2 = 1.0 + 0.1 * jax.random.normal(ks[8], (cin,), jnp.float32)
    be2 = 0.1 * jax.random.normal(ks[9], (cin,), jnp.float32)
    m2 = 0.05 * jax.random.normal(ks[10], (cin,), jnp.float32)
    v2 = 0.5 + jax.random.uniform(ks[11], (cin,), jnp.float32)
    fcw = 0.05 * jax.random.normal(jax.random.fold_in(key, 99), (cin, 2), jnp.float32)
    fcb = 0.05 * jax.random.normal(jax.random.fold_in(key, 100), (1, 2), jnp.float32)
    return dict(w1=w1, b1=b1, w2=w2, b2=b2, g1=g1, be1=be1, m1=m1, v1=v1,
                g2=g2, be2=be2, m2=m2, v2=v2, fcw=fcw, fcb=fcb)


def scenet_reference(x_nhwc, raw):
    """Pure-JAX reference mirroring the PyTorch forward (BN in eval mode).
    Conv operands are cast to bf16 (f32 accumulation) to match the kernels'
    mixed-precision policy; everything else stays f32."""
    bf16 = jnp.bfloat16

    def conv(x, w, b):
        y = jax.lax.conv_general_dilated(
            x.astype(bf16), w.astype(bf16), window_strides=(1, 1),
            padding="SAME", dimension_numbers=("NHWC", "HWIO", "NHWC"),
            preferred_element_type=jnp.float32)
        return y + b

    z = conv(x_nhwc, raw["w1"], raw["b1"])
    z = (z - raw["m1"]) / jnp.sqrt(raw["v1"] + _EPS) * raw["g1"] + raw["be1"]
    z = jnp.maximum(z, 0.0)
    z = conv(z, raw["w2"], raw["b2"])
    z = (z - raw["m2"]) / jnp.sqrt(raw["v2"] + _EPS) * raw["g2"] + raw["be2"]
    z = z + x_nhwc
    z = jnp.maximum(z, 0.0)
    pooled = jnp.mean(z, axis=(1, 2))
    return pooled @ raw["fcw"] + raw["fcb"]


if __name__ == "__main__":
    # Small demo shapes (real SCENet: Cin=4419, Cmid=2210; kernels are shape
    # generic — weights are streamed as (k, n) panels, so real sizes just mean
    # more grid steps).  tile=128 here makes N and K grids multi-tile
    # (Cin_p = Cmid_p = 256 -> 2 tiles each); use tile=256 at the real sizes
    # on v6e/v7x, tile=128 on v5e.
    B, CIN, CMID, H, W = 2, 200, 160, 8, 8
    key = jax.random.PRNGKey(0)
    kx, kp = jax.random.split(key)

    x_nchw = jax.random.normal(kx, (B, CIN, H, W), jnp.float32)   # PyTorch NCHW
    x_nhwc = jnp.transpose(x_nchw, (0, 2, 3, 1))                  # kernel layout

    raw = make_params(kp, CIN, CMID)
    prep = prepare_params(raw, tile_cin=128, tile_cmid=128)       # one-time prep

    out = jax.jit(scenet_forward)(x_nhwc, prep)
    out = jax.block_until_ready(out)

    ref = scenet_reference(x_nhwc, raw)
    np.testing.assert_allclose(np.asarray(out), np.asarray(ref),
                               rtol=2e-3, atol=2e-3)
    print("KERNEL_OK")
</pallas_src>

<mosaic_0001>
module attributes {stable_mosaic.version = 11 : i64} {
  func.func @conv1_kernel(%arg0: i32, %arg1: i32, %arg2: i32, %arg3: memref<2x104x128xbf16, #tpu.memory_space<vmem>>, %arg4: memref<1x1x9x128x128xbf16, #tpu.memory_space<vmem>>, %arg5: memref<1x128xf32, #tpu.memory_space<vmem>>, %arg6: memref<1x128xf32, #tpu.memory_space<vmem>>, %arg7: memref<104x1xf32, #tpu.memory_space<vmem>>, %arg8: memref<2x104x128xbf16, #tpu.memory_space<vmem>>, %arg9: memref<208x128xf32, #tpu.memory_space<vmem>>) attributes {dimension_semantics = [#tpu.dimension_semantics<parallel>, #tpu.dimension_semantics<parallel>, #tpu.dimension_semantics<arbitrary>], iteration_bounds = array<i64: 2, 1, 2>, scalar_prefetch = 0 : i64, scratch_operands = 1 : i64, tpu.core_type = #tpu.core_type<tc>, window_params = [{transform_indices = @transform_0, window_bounds = array<i64: 2, 104, 128>}, {transform_indices = @transform_1, window_bounds = array<i64: 1, 1, 9, 128, 128>}, {transform_indices = @transform_2, window_bounds = array<i64: 1, 128>}, {transform_indices = @transform_3, window_bounds = array<i64: 1, 128>}, {pipeline_mode = #tpu.pipeline_mode<synchronous>, transform_indices = @transform_4, window_bounds = array<i64: 104, 1>}, {transform_indices = @transform_5, window_bounds = array<i64: 2, 104, 128>}]} {
    %c0 = arith.constant 0 : index
    %c0_0 = arith.constant 0 : index
    %c0_1 = arith.constant 0 : index
    %0 = vector.load %arg3[%c0, %c0_0, %c0_1] : memref<2x104x128xbf16, #tpu.memory_space<vmem>>, vector<2x104x128xbf16>
    %1 = vector.shape_cast %0 : vector<2x104x128xbf16> to vector<208x128xbf16>
    %c0_2 = arith.constant 0 : index
    %c0_3 = arith.constant 0 : index
    %c0_4 = arith.constant 0 : index
    %c0_5 = arith.constant 0 : index
    %c0_6 = arith.constant 0 : index
    %2 = vector.load %arg4[%c0_2, %c0_3, %c0_4, %c0_5, %c0_6] : memref<1x1x9x128x128xbf16, #tpu.memory_space<vmem>>, vector<1x1x1x128x128xbf16>
    %3 = vector.shape_cast %2 : vector<1x1x1x128x128xbf16> to vector<128x128xbf16>
    %cst = arith.constant dense<0.000000e+00> : vector<208x128xf32>
    %4 = tpu.matmul %1, %3, %cst {dimension_numbers = #tpu.dot_dimension_numbers<[1], [0], [0], [1], [0, 0, 1, 1], [], []>} : vector<208x128xbf16>, vector<128x128xbf16>, vector<208x128xf32> -> vector<208x128xf32>
    %c11_i32 = arith.constant 11 : i32
    %5 = tpu.dynamic_rotate %4 by %c11_i32 dim 0 : vector<208x128xf32>, i32 -> vector<208x128xf32>
    %c0_7 = arith.constant 0 : index
    %c0_8 = arith.constant 0 : index
    %c1 = arith.constant 1 : index
    %c0_9 = arith.constant 0 : index
    %c0_10 = arith.constant 0 : index
    %6 = vector.load %arg4[%c0_7, %c0_8, %c1, %c0_9, %c0_10] : memref<1x1x9x128x128xbf16, #tpu.memory_space<vmem>>, vector<1x1x1x128x128xbf16>
    %7 = vector.shape_cast %6 : vector<1x1x1x128x128xbf16> to vector<128x128xbf16>
    %cst_11 = arith.constant dense<0.000000e+00> : vector<208x128xf32>
    %8 = tpu.matmul %1, %7, %cst_11 {dimension_numbers = #tpu.dot_dimension_numbers<[1], [0], [0], [1], [0, 0, 1, 1], [], []>} : vector<208x128xbf16>, vector<128x128xbf16>, vector<208x128xf32> -> vector<208x128xf32>
    %c10_i32 = arith.constant 10 : i32
    %9 = tpu.dynamic_rotate %8 by %c10_i32 dim 0 : vector<208x128xf32>, i32 -> vector<208x128xf32>
    %10 = arith.addf %5, %9 : vector<208x128xf32>
    %c0_12 = arith.constant 0 : index
    %c0_13 = arith.constant 0 : index
    %c2 = arith.constant 2 : index
    %c0_14 = arith.constant 0 : index
    %c0_15 = arith.constant 0 : index
    %11 = vector.load %arg4[%c0_12, %c0_13, %c2, %c0_14, %c0_15] : memref<1x1x9x128x128xbf16, #tpu.memory_space<vmem>>, vector<1x1x1x128x128xbf16>
    %12 = vector.shape_cast %11 : vector<1x1x1x128x128xbf16> to vector<128x128xbf16>
    %cst_16 = arith.constant dense<0.000000e+00> : vector<208x128xf32>
    %13 = tpu.matmul %1, %12, %cst_16 {dimension_numbers = #tpu.dot_dimension_numbers<[1], [0], [0], [1], [0, 0, 1, 1], [], []>} : vector<208x128xbf16>, vector<128x128xbf16>, vector<208x128xf32> -> vector<208x128xf32>
    %c9_i32 = arith.constant 9 : i32
    %14 = tpu.dynamic_rotate %13 by %c9_i32 dim 0 : vector<208x128xf32>, i32 -> vector<208x128xf32>
    %15 = arith.addf %10, %14 : vector<208x128xf32>
    %c0_17 = arith.constant 0 : index
    %c0_18 = arith.constant 0 : index
    %c3 = arith.constant 3 : index
    %c0_19 = arith.constant 0 : index
    %c0_20 = arith.constant 0 : index
    %16 = vector.load %arg4[%c0_17, %c0_18, %c3, %c0_19, %c0_20] : memref<1x1x9x128x128xbf16, #tpu.memory_space<vmem>>, vector<1x1x1x128x128xbf16>
    %17 = vector.shape_cast %16 : vector<1x1x1x128x128xbf16> to vector<128x128xbf16>
    %cst_21 = arith.constant dense<0.000000e+00> : vector<208x128xf32>
    %18 = tpu.matmul %1, %17, %cst_21 {dimension_numbers = #tpu.dot_dimension_numbers<[1], [0], [0], [1], [0, 0, 1, 1], [], []>} : vector<208x128xbf16>, vector<128x128xbf16>, vector<208x128xf32> -> vector<208x128xf32>
    %c1_i32 = arith.constant 1 : i32
    %19 = tpu.dynamic_rotate %18 by %c1_i32 dim 0 : vector<208x128xf32>, i32 -> vector<208x128xf32>
    %20 = arith.addf %15, %19 : vector<208x128xf32>
    %c0_22 = arith.constant 0 : index
    %c0_23 = arith.constant 0 : index
    %c4 = arith.constant 4 : index
    %c0_24 = arith.constant 0 : index
    %c0_25 = arith.constant 0 : index
    %21 = vector.load %arg4[%c0_22, %c0_23, %c4, %c0_24, %c0_25] : memref<1x1x9x128x128xbf16, #tpu.memory_space<vmem>>, vector<1x1x1x128x128xbf16>
    %22 = vector.shape_cast %21 : vector<1x1x1x128x128xbf16> to vector<128x128xbf16>
    %cst_26 = arith.constant dense<0.000000e+00> : vector<208x128xf32>
    %23 = tpu.matmul %1, %22, %cst_26 {dimension_numbers = #tpu.dot_dimension_numbers<[1], [0], [0], [1], [0, 0, 1, 1], [], []>} : vector<208x128xbf16>, vector<128x128xbf16>, vector<208x128xf32> -> vector<208x128xf32>
    %24 = arith.addf %20, %23 : vector<208x128xf32>
    %c0_27 = arith.constant 0 : index
    %c0_28 = arith.constant 0 : index
    %c5 = arith.constant 5 : index
    %c0_29 = arith.constant 0 : index
    %c0_30 = arith.constant 0 : index
    %25 = vector.load %arg4[%c0_27, %c0_28, %c5, %c0_29, %c0_30] : memref<1x1x9x128x128xbf16, #tpu.memory_space<vmem>>, vector<1x1x1x128x128xbf16>
    %26 = vector.shape_cast %25 : vector<1x1x1x128x128xbf16> to vector<128x128xbf16>
    %cst_31 = arith.constant dense<0.000000e+00> : vector<208x128xf32>
    %27 = tpu.matmul %1, %26, %cst_31 {dimension_numbers = #tpu.dot_dimension_numbers<[1], [0], [0], [1], [0, 0, 1, 1], [], []>} : vector<208x128xbf16>, vector<128x128xbf16>, vector<208x128xf32> -> vector<208x128xf32>
    %c207_i32 = arith.constant 207 : i32
    %28 = tpu.dynamic_rotate %27 by %c207_i32 dim 0 : vector<208x128xf32>, i32 -> vector<208x128xf32>
    %29 = arith.addf %24, %28 : vector<208x128xf32>
    %c0_32 = arith.constant 0 : index
    %c0_33 = arith.constant 0 : index
    %c6 = arith.constant 6 : index
    %c0_34 = arith.constant 0 : index
    %c0_35 = arith.constant 0 : index
    %30 = vector.load %arg4[%c0_32, %c0_33, %c6, %c0_34, %c0_35] : memref<1x1x9x128x128xbf16, #tpu.memory_space<vmem>>, vector<1x1x1x128x128xbf16>
    %31 = vector.shape_cast %30 : vector<1x1x1x128x128xbf16> to vector<128x128xbf16>
    %cst_36 = arith.constant dense<0.000000e+00> : vector<208x128xf32>
    %32 = tpu.matmul %1, %31, %cst_36 {dimension_numbers = #tpu.dot_dimension_numbers<[1], [0], [0], [1], [0, 0, 1, 1], [], []>} : vector<208x128xbf16>, vector<128x128xbf16>, vector<208x128xf32> -> vector<208x128xf32>
    %c199_i32 = arith.constant 199 : i32
    %33 = tpu.dynamic_rotate %32 by %c199_i32 dim 0 : vector<208x128xf32>, i32 -> vector<208x128xf32>
    %34 = arith.addf %29, %33 : vector<208x128xf32>
    %c0_37 = arith.constant 0 : index
    %c0_38 = arith.constant 0 : index
    %c7 = arith.constant 7 : index
    %c0_39 = arith.constant 0 : index
    %c0_40 = arith.constant 0 : index
    %35 = vector.load %arg4[%c0_37, %c0_38, %c7, %c0_39, %c0_40] : memref<1x1x9x128x128xbf16, #tpu.memory_space<vmem>>, vector<1x1x1x128x128xbf16>
    %36 = vector.shape_cast %35 : vector<1x1x1x128x128xbf16> to vector<128x128xbf16>
    %cst_41 = arith.constant dense<0.000000e+00> : vector<208x128xf32>
    %37 = tpu.matmul %1, %36, %cst_41 {dimension_numbers = #tpu.dot_dimension_numbers<[1], [0], [0], [1], [0, 0, 1, 1], [], []>} : vector<208x128xbf16>, vector<128x128xbf16>, vector<208x128xf32> -> vector<208x128xf32>
    %c198_i32 = arith.constant 198 : i32
    %38 = tpu.dynamic_rotate %37 by %c198_i32 dim 0 : vector<208x128xf32>, i32 -> vector<208x128xf32>
    %39 = arith.addf %34, %38 : vector<208x128xf32>
    %c0_42 = arith.constant 0 : index
    %c0_43 = arith.constant 0 : index
    %c8 = arith.constant 8 : index
    %c0_44 = arith.constant 0 : index
    %c0_45 = arith.constant 0 : index
    %40 = vector.load %arg4[%c0_42, %c0_43, %c8, %c0_44, %c0_45] : memref<1x1x9x128x128xbf16, #tpu.memory_space<vmem>>, vector<1x1x1x128x128xbf16>
    %41 = vector.shape_cast %40 : vector<1x1x1x128x128xbf16> to vector<128x128xbf16>
    %cst_46 = arith.constant dense<0.000000e+00> : vector<208x128xf32>
    %42 = tpu.matmul %1, %41, %cst_46 {dimension_numbers = #tpu.dot_dimension_numbers<[1], [0], [0], [1], [0, 0, 1, 1], [], []>} : vector<208x128xbf16>, vector<128x128xbf16>, vector<208x128xf32> -> vector<208x128xf32>
    %c197_i32 = arith.constant 197 : i32
    %43 = tpu.dynamic_rotate %42 by %c197_i32 dim 0 : vector<208x128xf32>, i32 -> vector<208x128xf32>
    %44 = arith.addf %39, %43 : vector<208x128xf32>
    %c0_i32 = arith.constant 0 : i32
    %45 = arith.cmpi eq, %arg2, %c0_i32 : i32
    %46 = arith.extui %45 : i1 to i32
    %c0_i32_47 = arith.constant 0 : i32
    %47 = arith.cmpi ne, %46, %c0_i32_47 : i32
    scf.if %47 {
      %c0_52 = arith.constant 0 : index
      %c0_53 = arith.constant 0 : index
      %54 = vector.load %arg9[%c0_52, %c0_53] : memref<208x128xf32, #tpu.memory_space<vmem>>, vector<208x128xf32>
      tpu.vector_store %arg9[%c0_52, %c0_53], %44 {strides = array<i32>} : memref<208x128xf32, #tpu.memory_space<vmem>>, vector<208x128xf32>,
    } else {
    }
    %c0_i32_48 = arith.constant 0 : i32
    %48 = arith.cmpi sgt, %arg2, %c0_i32_48 : i32
    %49 = arith.extui %48 : i1 to i32
    %c0_i32_49 = arith.constant 0 : i32
    %50 = arith.cmpi ne, %49, %c0_i32_49 : i32
    scf.if %50 {
      %c0_52 = arith.constant 0 : index
      %c0_53 = arith.constant 0 : index
      %54 = vector.load %arg9[%c0_52, %c0_53] : memref<208x128xf32, #tpu.memory_space<vmem>>, vector<208x128xf32>
      %55 = arith.addf %54, %44 : vector<208x128xf32>
      %c0_54 = arith.constant 0 : index
      %c0_55 = arith.constant 0 : index
      %56 = vector.load %arg9[%c0_54, %c0_55] : memref<208x128xf32, #tpu.memory_space<vmem>>, vector<208x128xf32>
      tpu.vector_store %arg9[%c0_54, %c0_55], %55 {strides = array<i32>} : memref<208x128xf32, #tpu.memory_space<vmem>>, vector<208x128xf32>,
    } else {
    }
    %c1_i32_50 = arith.constant 1 : i32
    %51 = arith.cmpi eq, %arg2, %c1_i32_50 : i32
    %52 = arith.extui %51 : i1 to i32
    %c0_i32_51 = arith.constant 0 : i32
    %53 = arith.cmpi ne, %52, %c0_i32_51 : i32
    scf.if %53 {
      %c0_52 = arith.constant 0 : index
      %c0_53 = arith.constant 0 : index
      %54 = vector.load %arg9[%c0_52, %c0_53] : memref<208x128xf32, #tpu.memory_space<vmem>>, vector<208x128xf32>
      %c0_54 = arith.constant 0 : index
      %c0_55 = arith.constant 0 : index
      %55 = vector.load %arg5[%c0_54, %c0_55] : memref<1x128xf32, #tpu.memory_space<vmem>>, vector<1x128xf32>
      %56 = vector.broadcast %55 : vector<1x128xf32> to vector<208x128xf32>
      %57 = arith.mulf %54, %56 : vector<208x128xf32>
      %c0_56 = arith.constant 0 : index
      %c0_57 = arith.constant 0 : index
      %58 = vector.load %arg6[%c0_56, %c0_57] : memref<1x128xf32, #tpu.memory_space<vmem>>, vector<1x128xf32>
      %59 = vector.broadcast %58 : vector<1x128xf32> to vector<208x128xf32>
      %60 = arith.addf %57, %59 : vector<208x128xf32>
      %cst_58 = arith.constant 0.000000e+00 : f32
      %61 = vector.broadcast %cst_58 : f32 to vector<208x128xf32>
      %62 = arith.maximumf %60, %61 : vector<208x128xf32>
      %63 = vector.shape_cast %62 : vector<208x128xf32> to vector<2x104x128xf32>
      %c0_59 = arith.constant 0 : index
      %c0_60 = arith.constant 0 : index
      %64 = vector.load %arg7[%c0_59, %c0_60] : memref<104x1xf32, #tpu.memory_space<vmem>>, vector<104x1xf32>
      %65 = vector.shape_cast %64 : vector<104x1xf32> to vector<1x104x1xf32>
      %66 = vector.broadcast %65 : vector<1x104x1xf32> to vector<2x104x128xf32>
      %67 = arith.mulf %63, %66 : vector<2x104x128xf32>
      %68 = arith.truncf %67 : vector<2x104x128xf32> to vector<2x104x128xbf16>
      %c0_61 = arith.constant 0 : index
      %c0_62 = arith.constant 0 : index
      %c0_63 = arith.constant 0 : index
      %69 = vector.load %arg8[%c0_61, %c0_62, %c0_63] : memref<2x104x128xbf16, #tpu.memory_space<vmem>>, vector<2x104x128xbf16>
      tpu.vector_store %arg8[%c0_61, %c0_62, %c0_63], %68 {strides = array<i32>} : memref<2x104x128xbf16, #tpu.memory_space<vmem>>, vector<2x104x128xbf16>,
    } else {
    }
    return
  }
  func.func @transform_0(%arg0: i32, %arg1: i32, %arg2: i32) -> (i32, i32, i32) {
    %c0_i32 = arith.constant 0 : i32
    %c0_i32_0 = arith.constant 0 : i32
    return %arg1, %c0_i32, %arg2 : i32, i32, i32
  }
  func.func @transform_1(%arg0: i32, %arg1: i32, %arg2: i32) -> (i32, i32, i32, i32, i32) {
    %c0_i32 = arith.constant 0 : i32
    %c0_i32_0 = arith.constant 0 : i32
    %c0_i32_1 = arith.constant 0 : i32
    %c0_i32_2 = arith.constant 0 : i32
    return %arg2, %arg0, %c0_i32, %c0_i32_0, %c0_i32_1 : i32, i32, i32, i32, i32
  }
  func.func @transform_2(%arg0: i32, %arg1: i32, %arg2: i32) -> (i32, i32) {
    %c0_i32 = arith.constant 0 : i32
    %c0_i32_0 = arith.constant 0 : i32
    return %c0_i32, %arg0 : i32, i32
  }
  func.func @transform_3(%arg0: i32, %arg1: i32, %arg2: i32) -> (i32, i32) {
    %c0_i32 = arith.constant 0 : i32
    %c0_i32_0 = arith.constant 0 : i32
    return %c0_i32, %arg0 : i32, i32
  }
  func.func @transform_4(%arg0: i32, %arg1: i32, %arg2: i32) -> (i32, i32) {
    %c0_i32 = arith.constant 0 : i32
    %c0_i32_0 = arith.constant 0 : i32
    %c0_i32_1 = arith.constant 0 : i32
    return %c0_i32, %c0_i32_0 : i32, i32
  }
  func.func @transform_5(%arg0: i32, %arg1: i32, %arg2: i32) -> (i32, i32, i32) {
    %c0_i32 = arith.constant 0 : i32
    %c0_i32_0 = arith.constant 0 : i32
    return %arg1, %c0_i32, %arg0 : i32, i32, i32
  }
}

module attributes {stable_mosaic.version = 11 : i64} {
  func.func @conv2_kernel(%arg0: i32, %arg1: i32, %arg2: i32, %arg3: memref<2x104x128xbf16, #tpu.memory_space<vmem>>, %arg4: memref<1x1x9x128x128xbf16, #tpu.memory_space<vmem>>, %arg5: memref<1x128xf32, #tpu.memory_space<vmem>>, %arg6: memref<1x128xf32, #tpu.memory_space<vmem>>, %arg7: memref<2x104x128xf32, #tpu.memory_space<vmem>>, %arg8: memref<104x1xf32, #tpu.memory_space<vmem>>, %arg9: memref<2x128xf32, #tpu.memory_space<vmem>>, %arg10: memref<208x128xf32, #tpu.memory_space<vmem>>) attributes {dimension_semantics = [#tpu.dimension_semantics<parallel>, #tpu.dimension_semantics<parallel>, #tpu.dimension_semantics<arbitrary>], iteration_bounds = array<i64: 2, 1, 2>, scalar_prefetch = 0 : i64, scratch_operands = 1 : i64, tpu.core_type = #tpu.core_type<tc>, window_params = [{transform_indices = @transform_0, window_bounds = array<i64: 2, 104, 128>}, {transform_indices = @transform_1, window_bounds = array<i64: 1, 1, 9, 128, 128>}, {transform_indices = @transform_2, window_bounds = array<i64: 1, 128>}, {transform_indices = @transform_3, window_bounds = array<i64: 1, 128>}, {transform_indices = @transform_4, window_bounds = array<i64: 2, 104, 128>}, {pipeline_mode = #tpu.pipeline_mode<synchronous>, transform_indices = @transform_5, window_bounds = array<i64: 104, 1>}, {transform_indices = @transform_6, window_bounds = array<i64: 2, 128>}]} {
    %c0 = arith.constant 0 : index
    %c0_0 = arith.constant 0 : index
    %c0_1 = arith.constant 0 : index
    %0 = vector.load %arg3[%c0, %c0_0, %c0_1] : memref<2x104x128xbf16, #tpu.memory_space<vmem>>, vector<2x104x128xbf16>
    %1 = vector.shape_cast %0 : vector<2x104x128xbf16> to vector<208x128xbf16>
    %c0_2 = arith.constant 0 : index
    %c0_3 = arith.constant 0 : index
    %c0_4 = arith.constant 0 : index
    %c0_5 = arith.constant 0 : index
    %c0_6 = arith.constant 0 : index
    %2 = vector.load %arg4[%c0_2, %c0_3, %c0_4, %c0_5, %c0_6] : memref<1x1x9x128x128xbf16, #tpu.memory_space<vmem>>, vector<1x1x1x128x128xbf16>
    %3 = vector.shape_cast %2 : vector<1x1x1x128x128xbf16> to vector<128x128xbf16>
    %cst = arith.constant dense<0.000000e+00> : vector<208x128xf32>
    %4 = tpu.matmul %1, %3, %cst {dimension_numbers = #tpu.dot_dimension_numbers<[1], [0], [0], [1], [0, 0, 1, 1], [], []>} : vector<208x128xbf16>, vector<128x128xbf16>, vector<208x128xf32> -> vector<208x128xf32>
    %c11_i32 = arith.constant 11 : i32
    %5 = tpu.dynamic_rotate %4 by %c11_i32 dim 0 : vector<208x128xf32>, i32 -> vector<208x128xf32>
    %c0_7 = arith.constant 0 : index
    %c0_8 = arith.constant 0 : index
    %c1 = arith.constant 1 : index
    %c0_9 = arith.constant 0 : index
    %c0_10 = arith.constant 0 : index
    %6 = vector.load %arg4[%c0_7, %c0_8, %c1, %c0_9, %c0_10] : memref<1x1x9x128x128xbf16, #tpu.memory_space<vmem>>, vector<1x1x1x128x128xbf16>
    %7 = vector.shape_cast %6 : vector<1x1x1x128x128xbf16> to vector<128x128xbf16>
    %cst_11 = arith.constant dense<0.000000e+00> : vector<208x128xf32>
    %8 = tpu.matmul %1, %7, %cst_11 {dimension_numbers = #tpu.dot_dimension_numbers<[1], [0], [0], [1], [0, 0, 1, 1], [], []>} : vector<208x128xbf16>, vector<128x128xbf16>, vector<208x128xf32> -> vector<208x128xf32>
    %c10_i32 = arith.constant 10 : i32
    %9 = tpu.dynamic_rotate %8 by %c10_i32 dim 0 : vector<208x128xf32>, i32 -> vector<208x128xf32>
    %10 = arith.addf %5, %9 : vector<208x128xf32>
    %c0_12 = arith.constant 0 : index
    %c0_13 = arith.constant 0 : index
    %c2 = arith.constant 2 : index
    %c0_14 = arith.constant 0 : index
    %c0_15 = arith.constant 0 : index
    %11 = vector.load %arg4[%c0_12, %c0_13, %c2, %c0_14, %c0_15] : memref<1x1x9x128x128xbf16, #tpu.memory_space<vmem>>, vector<1x1x1x128x128xbf16>
    %12 = vector.shape_cast %11 : vector<1x1x1x128x128xbf16> to vector<128x128xbf16>
    %cst_16 = arith.constant dense<0.000000e+00> : vector<208x128xf32>
    %13 = tpu.matmul %1, %12, %cst_16 {dimension_numbers = #tpu.dot_dimension_numbers<[1], [0], [0], [1], [0, 0, 1, 1], [], []>} : vector<208x128xbf16>, vector<128x128xbf16>, vector<208x128xf32> -> vector<208x128xf32>
    %c9_i32 = arith.constant 9 : i32
    %14 = tpu.dynamic_rotate %13 by %c9_i32 dim 0 : vector<208x128xf32>, i32 -> vector<208x128xf32>
    %15 = arith.addf %10, %14 : vector<208x128xf32>
    %c0_17 = arith.constant 0 : index
    %c0_18 = arith.constant 0 : index
    %c3 = arith.constant 3 : index
    %c0_19 = arith.constant 0 : index
    %c0_20 = arith.constant 0 : index
    %16 = vector.load %arg4[%c0_17, %c0_18, %c3, %c0_19, %c0_20] : memref<1x1x9x128x128xbf16, #tpu.memory_space<vmem>>, vector<1x1x1x128x128xbf16>
    %17 = vector.shape_cast %16 : vector<1x1x1x128x128xbf16> to vector<128x128xbf16>
    %cst_21 = arith.constant dense<0.000000e+00> : vector<208x128xf32>
    %18 = tpu.matmul %1, %17, %cst_21 {dimension_numbers = #tpu.dot_dimension_numbers<[1], [0], [0], [1], [0, 0, 1, 1], [], []>} : vector<208x128xbf16>, vector<128x128xbf16>, vector<208x128xf32> -> vector<208x128xf32>
    %c1_i32 = arith.constant 1 : i32
    %19 = tpu.dynamic_rotate %18 by %c1_i32 dim 0 : vector<208x128xf32>, i32 -> vector<208x128xf32>
    %20 = arith.addf %15, %19 : vector<208x128xf32>
    %c0_22 = arith.constant 0 : index
    %c0_23 = arith.constant 0 : index
    %c4 = arith.constant 4 : index
    %c0_24 = arith.constant 0 : index
    %c0_25 = arith.constant 0 : index
    %21 = vector.load %arg4[%c0_22, %c0_23, %c4, %c0_24, %c0_25] : memref<1x1x9x128x128xbf16, #tpu.memory_space<vmem>>, vector<1x1x1x128x128xbf16>
    %22 = vector.shape_cast %21 : vector<1x1x1x128x128xbf16> to vector<128x128xbf16>
    %cst_26 = arith.constant dense<0.000000e+00> : vector<208x128xf32>
    %23 = tpu.matmul %1, %22, %cst_26 {dimension_numbers = #tpu.dot_dimension_numbers<[1], [0], [0], [1], [0, 0, 1, 1], [], []>} : vector<208x128xbf16>, vector<128x128xbf16>, vector<208x128xf32> -> vector<208x128xf32>
    %24 = arith.addf %20, %23 : vector<208x128xf32>
    %c0_27 = arith.constant 0 : index
    %c0_28 = arith.constant 0 : index
    %c5 = arith.constant 5 : index
    %c0_29 = arith.constant 0 : index
    %c0_30 = arith.constant 0 : index
    %25 = vector.load %arg4[%c0_27, %c0_28, %c5, %c0_29, %c0_30] : memref<1x1x9x128x128xbf16, #tpu.memory_space<vmem>>, vector<1x1x1x128x128xbf16>
    %26 = vector.shape_cast %25 : vector<1x1x1x128x128xbf16> to vector<128x128xbf16>
    %cst_31 = arith.constant dense<0.000000e+00> : vector<208x128xf32>
    %27 = tpu.matmul %1, %26, %cst_31 {dimension_numbers = #tpu.dot_dimension_numbers<[1], [0], [0], [1], [0, 0, 1, 1], [], []>} : vector<208x128xbf16>, vector<128x128xbf16>, vector<208x128xf32> -> vector<208x128xf32>
    %c207_i32 = arith.constant 207 : i32
    %28 = tpu.dynamic_rotate %27 by %c207_i32 dim 0 : vector<208x128xf32>, i32 -> vector<208x128xf32>
    %29 = arith.addf %24, %28 : vector<208x128xf32>
    %c0_32 = arith.constant 0 : index
    %c0_33 = arith.constant 0 : index
    %c6 = arith.constant 6 : index
    %c0_34 = arith.constant 0 : index
    %c0_35 = arith.constant 0 : index
    %30 = vector.load %arg4[%c0_32, %c0_33, %c6, %c0_34, %c0_35] : memref<1x1x9x128x128xbf16, #tpu.memory_space<vmem>>, vector<1x1x1x128x128xbf16>
    %31 = vector.shape_cast %30 : vector<1x1x1x128x128xbf16> to vector<128x128xbf16>
    %cst_36 = arith.constant dense<0.000000e+00> : vector<208x128xf32>
    %32 = tpu.matmul %1, %31, %cst_36 {dimension_numbers = #tpu.dot_dimension_numbers<[1], [0], [0], [1], [0, 0, 1, 1], [], []>} : vector<208x128xbf16>, vector<128x128xbf16>, vector<208x128xf32> -> vector<208x128xf32>
    %c199_i32 = arith.constant 199 : i32
    %33 = tpu.dynamic_rotate %32 by %c199_i32 dim 0 : vector<208x128xf32>, i32 -> vector<208x128xf32>
    %34 = arith.addf %29, %33 : vector<208x128xf32>
    %c0_37 = arith.constant 0 : index
    %c0_38 = arith.constant 0 : index
    %c7 = arith.constant 7 : index
    %c0_39 = arith.constant 0 : index
    %c0_40 = arith.constant 0 : index
    %35 = vector.load %arg4[%c0_37, %c0_38, %c7, %c0_39, %c0_40] : memref<1x1x9x128x128xbf16, #tpu.memory_space<vmem>>, vector<1x1x1x128x128xbf16>
    %36 = vector.shape_cast %35 : vector<1x1x1x128x128xbf16> to vector<128x128xbf16>
    %cst_41 = arith.constant dense<0.000000e+00> : vector<208x128xf32>
    %37 = tpu.matmul %1, %36, %cst_41 {dimension_numbers = #tpu.dot_dimension_numbers<[1], [0], [0], [1], [0, 0, 1, 1], [], []>} : vector<208x128xbf16>, vector<128x128xbf16>, vector<208x128xf32> -> vector<208x128xf32>
    %c198_i32 = arith.constant 198 : i32
    %38 = tpu.dynamic_rotate %37 by %c198_i32 dim 0 : vector<208x128xf32>, i32 -> vector<208x128xf32>
    %39 = arith.addf %34, %38 : vector<208x128xf32>
    %c0_42 = arith.constant 0 : index
    %c0_43 = arith.constant 0 : index
    %c8 = arith.constant 8 : index
    %c0_44 = arith.constant 0 : index
    %c0_45 = arith.constant 0 : index
    %40 = vector.load %arg4[%c0_42, %c0_43, %c8, %c0_44, %c0_45] : memref<1x1x9x128x128xbf16, #tpu.memory_space<vmem>>, vector<1x1x1x128x128xbf16>
    %41 = vector.shape_cast %40 : vector<1x1x1x128x128xbf16> to vector<128x128xbf16>
    %cst_46 = arith.constant dense<0.000000e+00> : vector<208x128xf32>
    %42 = tpu.matmul %1, %41, %cst_46 {dimension_numbers = #tpu.dot_dimension_numbers<[1], [0], [0], [1], [0, 0, 1, 1], [], []>} : vector<208x128xbf16>, vector<128x128xbf16>, vector<208x128xf32> -> vector<208x128xf32>
    %c197_i32 = arith.constant 197 : i32
    %43 = tpu.dynamic_rotate %42 by %c197_i32 dim 0 : vector<208x128xf32>, i32 -> vector<208x128xf32>
    %44 = arith.addf %39, %43 : vector<208x128xf32>
    %c0_i32 = arith.constant 0 : i32
    %45 = arith.cmpi eq, %arg2, %c0_i32 : i32
    %46 = arith.extui %45 : i1 to i32
    %c0_i32_47 = arith.constant 0 : i32
    %47 = arith.cmpi ne, %46, %c0_i32_47 : i32
    scf.if %47 {
      %c0_52 = arith.constant 0 : index
      %c0_53 = arith.constant 0 : index
      %54 = vector.load %arg10[%c0_52, %c0_53] : memref<208x128xf32, #tpu.memory_space<vmem>>, vector<208x128xf32>
      tpu.vector_store %arg10[%c0_52, %c0_53], %44 {strides = array<i32>} : memref<208x128xf32, #tpu.memory_space<vmem>>, vector<208x128xf32>,
    } else {
    }
    %c0_i32_48 = arith.constant 0 : i32
    %48 = arith.cmpi sgt, %arg2, %c0_i32_48 : i32
    %49 = arith.extui %48 : i1 to i32
    %c0_i32_49 = arith.constant 0 : i32
    %50 = arith.cmpi ne, %49, %c0_i32_49 : i32
    scf.if %50 {
      %c0_52 = arith.constant 0 : index
      %c0_53 = arith.constant 0 : index
      %54 = vector.load %arg10[%c0_52, %c0_53] : memref<208x128xf32, #tpu.memory_space<vmem>>, vector<208x128xf32>
      %55 = arith.addf %54, %44 : vector<208x128xf32>
      %c0_54 = arith.constant 0 : index
      %c0_55 = arith.constant 0 : index
      %56 = vector.load %arg10[%c0_54, %c0_55] : memref<208x128xf32, #tpu.memory_space<vmem>>, vector<208x128xf32>
      tpu.vector_store %arg10[%c0_54, %c0_55], %55 {strides = array<i32>} : memref<208x128xf32, #tpu.memory_space<vmem>>, vector<208x128xf32>,
    } else {
    }
    %c1_i32_50 = arith.constant 1 : i32
    %51 = arith.cmpi eq, %arg2, %c1_i32_50 : i32
    %52 = arith.extui %51 : i1 to i32
    %c0_i32_51 = arith.constant 0 : i32
    %53 = arith.cmpi ne, %52, %c0_i32_51 : i32
    scf.if %53 {
      %c0_52 = arith.constant 0 : index
      %c0_53 = arith.constant 0 : index
      %54 = vector.load %arg10[%c0_52, %c0_53] : memref<208x128xf32, #tpu.memory_space<vmem>>, vector<208x128xf32>
      %c0_54 = arith.constant 0 : index
      %c0_55 = arith.constant 0 : index
      %55 = vector.load %arg5[%c0_54, %c0_55] : memref<1x128xf32, #tpu.memory_space<vmem>>, vector<1x128xf32>
      %56 = vector.broadcast %55 : vector<1x128xf32> to vector<208x128xf32>
      %57 = arith.mulf %54, %56 : vector<208x128xf32>
      %c0_56 = arith.constant 0 : index
      %c0_57 = arith.constant 0 : index
      %58 = vector.load %arg6[%c0_56, %c0_57] : memref<1x128xf32, #tpu.memory_space<vmem>>, vector<1x128xf32>
      %59 = vector.broadcast %58 : vector<1x128xf32> to vector<208x128xf32>
      %60 = arith.addf %57, %59 : vector<208x128xf32>
      %c0_58 = arith.constant 0 : index
      %c0_59 = arith.constant 0 : index
      %c0_60 = arith.constant 0 : index
      %61 = vector.load %arg7[%c0_58, %c0_59, %c0_60] : memref<2x104x128xf32, #tpu.memory_space<vmem>>, vector<2x104x128xf32>
      %62 = vector.shape_cast %61 : vector<2x104x128xf32> to vector<208x128xf32>
      %63 = arith.addf %60, %62 : vector<208x128xf32>
      %cst_61 = arith.constant 0.000000e+00 : f32
      %64 = vector.broadcast %cst_61 : f32 to vector<208x128xf32>
      %65 = arith.maximumf %63, %64 : vector<208x128xf32>
      %66 = vector.shape_cast %65 : vector<208x128xf32> to vector<2x104x128xf32>
      %c0_62 = arith.constant 0 : index
      %c0_63 = arith.constant 0 : index
      %67 = vector.load %arg8[%c0_62, %c0_63] : memref<104x1xf32, #tpu.memory_space<vmem>>, vector<104x1xf32>
      %68 = vector.shape_cast %67 : vector<104x1xf32> to vector<1x104x1xf32>
      %69 = vector.broadcast %68 : vector<1x104x1xf32> to vector<2x104x128xf32>
      %70 = arith.mulf %66, %69 : vector<2x104x128xf32>
      %cst_64 = arith.constant dense<0.000000e+00> : vector<2x128xf32>
      %71 = vector.multi_reduction <add>, %70, %cst_64 [1] : vector<2x104x128xf32> to vector<2x128xf32>
      %cst_65 = arith.constant 1.562500e-02 : f32
      %72 = vector.broadcast %cst_65 : f32 to vector<2x128xf32>
      %73 = arith.mulf %71, %72 : vector<2x128xf32>
      %c0_66 = arith.constant 0 : index
      %c0_67 = arith.constant 0 : index
      %74 = vector.load %arg9[%c0_66, %c0_67] : memref<2x128xf32, #tpu.memory_space<vmem>>, vector<2x128xf32>
      tpu.vector_store %arg9[%c0_66, %c0_67], %73 {strides = array<i32>} : memref<2x128xf32, #tpu.memory_space<vmem>>, vector<2x128xf32>,
    } else {
    }
    return
  }
  func.func @transform_0(%arg0: i32, %arg1: i32, %arg2: i32) -> (i32, i32, i32) {
    %c0_i32 = arith.constant 0 : i32
    %c0_i32_0 = arith.constant 0 : i32
    return %arg1, %c0_i32, %arg2 : i32, i32, i32
  }
  func.func @transform_1(%arg0: i32, %arg1: i32, %arg2: i32) -> (i32, i32, i32, i32, i32) {
    %c0_i32 = arith.constant 0 : i32
    %c0_i32_0 = arith.constant 0 : i32
    %c0_i32_1 = arith.constant 0 : i32
    %c0_i32_2 = arith.constant 0 : i32
    return %arg2, %arg0, %c0_i32, %c0_i32_0, %c0_i32_1 : i32, i32, i32, i32, i32
  }
  func.func @transform_2(%arg0: i32, %arg1: i32, %arg2: i32) -> (i32, i32) {
    %c0_i32 = arith.constant 0 : i32
    %c0_i32_0 = arith.constant 0 : i32
    return %c0_i32, %arg0 : i32, i32
  }
  func.func @transform_3(%arg0: i32, %arg1: i32, %arg2: i32) -> (i32, i32) {
    %c0_i32 = arith.constant 0 : i32
    %c0_i32_0 = arith.constant 0 : i32
    return %c0_i32, %arg0 : i32, i32
  }
  func.func @transform_4(%arg0: i32, %arg1: i32, %arg2: i32) -> (i32, i32, i32) {
    %c0_i32 = arith.constant 0 : i32
    %c0_i32_0 = arith.constant 0 : i32
    return %arg1, %c0_i32, %arg0 : i32, i32, i32
  }
  func.func @transform_5(%arg0: i32, %arg1: i32, %arg2: i32) -> (i32, i32) {
    %c0_i32 = arith.constant 0 : i32
    %c0_i32_0 = arith.constant 0 : i32
    %c0_i32_1 = arith.constant 0 : i32
    return %c0_i32, %c0_i32_0 : i32, i32
  }
  func.func @transform_6(%arg0: i32, %arg1: i32, %arg2: i32) -> (i32, i32) {
    %c0_i32 = arith.constant 0 : i32
    return %arg1, %arg0 : i32, i32
  }
}

</mosaic_0001>

<llo_original>
// kernel: scenet_forward.2
$region0: #{scenet_forward.2}
  #allocation0 [shape = 'u32[]', space=smem, size = 0x4, offset = 0x4, fixed_abs, tag = 'smem constant byte address 0x4 - core index']
  #allocation1 [shape = 'u32[72,128]{1,0:T(1,128)}', space=vmem, size = 0x9000, scoped, tag = 'internal scratch']
  #allocation2 [shape = 'f32[208,128]{1,0:T(8,128)}', space=vmem, size = 0x1a000, scoped, tag = 'scratch operand']
  %s0 = inlined_call_operand.vmem [shape: bf16[2,104,256], index: 0, kind: input, shape index: {}]
  %s1 = inlined_call_operand.vmem [shape: bf16[2,2,9,128,128], index: 1, kind: input, shape index: {}]
  %s2 = inlined_call_operand.vmem [shape: f32[1,256], index: 2, kind: input, shape index: {}]
  %s3 = inlined_call_operand.vmem [shape: f32[1,256], index: 3, kind: input, shape index: {}]
  %s4 = inlined_call_operand.vmem [shape: f32[104,1], index: 4, kind: input, shape index: {}]
  %s5 = inlined_call_operand.vmem [shape: bf16[2,104,256], index: 5, kind: output, shape index: {}]
  %s6 = sld [smem:[#allocation0]]
  $region143: #{scenet_forward.2} parent=0
    _
  %s8 = ssub.s32 1, %s6
  %s9 = scalar_select 0, %s8, %s6
  $region1: #{scenet_forward.2} parent=0
    #allocation3 [shape = 'u8[106496]{0}', space=vmem, size = 0x1a000, scoped, tag = 'input window, operand 0']
    #allocation4 [shape = 'u8[106496]{0}', space=vmem, size = 0x1a000, scoped, tag = 'output window, operand 0']
    loop: start=0, step=1, limit=6
    $region2: #{scenet_forward.2} parent=1 // loop_pre_header
      _
    $region3: #{scenet_forward.2} parent=1 // loop_header
      %s11 = sphi 0, %s15
      %p12 = scmp.ge.s32.totalorder %s11, 6
      %s18 = sphi 0, %s37
      %s19 = sphi 0, %s33
      %s20 = sphi 0, %s29
      %s21 = sphi 0, %s18
      %s22 = sphi 0, %s19
      %s23 = sphi 0, %s20
      %s24 = sphi 0, %s21
      %s25 = sphi 0, %s22
      %s26 = sphi 0, %s23
      %s42 = sphi 0, %s44
      %s45 = sphi 0, %s42
      %s46 = sphi 0, %s45
      %s62 = sphi 0, %s46
      %s70 = sphi 0, %s72
      %s73 = sphi 0, %s70
      %s74 = sphi 0, %s73
      %s90 = sphi 0, %s74
      %s96 = sphi 0, %s98
      %s99 = sphi 0, %s96
      %s100 = sphi 0, %s99
      %s116 = sphi 0, %s100
      %s122 = sphi 0, %s124
      %s125 = sphi 0, %s122
      %s126 = sphi 0, %s125
      %s142 = sphi 0, %s126
      %s146 = sphi 0, %s146
      %s148 = sphi 0, %s146
      %s149 = sphi 0, %s148
      %s163 = sphi 0, %s149
      %s171 = sphi 0, %s173
      %s174 = sphi 0, %s171
      %s175 = sphi 0, %s174
      %s191 = sphi 0, %s175
    $region4: #{scenet_forward.2} parent=1 // loop_header_branch
      %14 = sbr.rel (%p12) target = $region8
    $region5: #{scenet_forward.2} parent=1 // loop_body
      %s16 = ssub.s32 %s11, 1
      %s17 = ssub.s32 %s11, 2
      %s27 = sadd.s32 1, %s20
      %p28 = scmp.ge.s32.totalorder %s27, 2
      %s29 = scalar_select %p28, 0, %s27
      %s30 = sadd.s32 1, %s19
      %s31 = scalar_select %p28, %s30, %s19
      %p32 = scmp.ge.s32.totalorder %s31, 1
      %s33 = scalar_select %p32, 0, %s31
      %s34 = sadd.s32 1, %s18
      %s35 = scalar_select %p32, %s34, %s18
      %p36 = scmp.ge.s32.totalorder %s35, 2
      %s37 = scalar_select %p36, 0, %s35
      %s38 = ssub.s32 %s19, %s33
      %s39 = ssub.s32 %s20, %s29
      %s40 = sor.u32 %s38, %s39
      %p41 = scmp.eq.s32.totalorder %s40, 0
      %s43 = sadd.s32 %s42, 1
      %s44 = scalar_select %p41, %s42, %s43
      %p47 = pneg %p41
      %p48 = scmp.eq.s32.totalorder %s11, 3
      %p49 = por %p47, %p48
      %p50 = scmp.ne.s32.totalorder %s42, %s45
      %p51 = scmp.eq.s32.totalorder %s11, 0
      %p52 = por %p50, %p51
      %p53 = scmp.ne.s32.totalorder %s42, %s45
      %p54 = scmp.eq.s32.totalorder %s16, 3
      %p55 = por %p53, %p54
      %p56 = scmp.ne.s32.totalorder %s45, %s46
      %p57 = scmp.eq.s32.totalorder %s16, 0
      %p58 = por %p56, %p57
      %p59 = scmp.ne.s32.totalorder %s45, %s46
      %p60 = scmp.eq.s32.totalorder %s17, 3
      %p61 = por %p59, %p60
      %p63 = scmp.ne.s32.totalorder %s46, %s62
      %p64 = scmp.eq.s32.totalorder %s17, 0
      %p65 = por %p63, %p64
      %s66 = ssub.s32 %s20, %s29
      %s67 = ssub.s32 %s18, %s37
      %s68 = sor.u32 %s66, %s67
      %p69 = scmp.eq.s32.totalorder %s68, 0
      %s71 = sadd.s32 %s70, 1
      %s72 = scalar_select %p69, %s70, %s71
      %p75 = pneg %p69
      %p76 = scmp.eq.s32.totalorder %s11, 3
      %p77 = por %p75, %p76
      %p78 = scmp.ne.s32.totalorder %s70, %s73
      %p79 = scmp.eq.s32.totalorder %s11, 0
      %p80 = por %p78, %p79
      %p81 = scmp.ne.s32.totalorder %s70, %s73
      %p82 = scmp.eq.s32.totalorder %s16, 3
      %p83 = por %p81, %p82
      %p84 = scmp.ne.s32.totalorder %s73, %s74
      %p85 = scmp.eq.s32.totalorder %s16, 0
      %p86 = por %p84, %p85
      %p87 = scmp.ne.s32.totalorder %s73, %s74
      %p88 = scmp.eq.s32.totalorder %s17, 3
      %p89 = por %p87, %p88
      %p91 = scmp.ne.s32.totalorder %s74, %s90
      %p92 = scmp.eq.s32.totalorder %s17, 0
      %p93 = por %p91, %p92
      %s94 = ssub.s32 %s18, %s37
      %p95 = scmp.eq.s32.totalorder %s94, 0
      %s97 = sadd.s32 %s96, 1
      %s98 = scalar_select %p95, %s96, %s97
      %p101 = pneg %p95
      %p102 = scmp.eq.s32.totalorder %s11, 3
      %p103 = por %p101, %p102
      %p104 = scmp.ne.s32.totalorder %s96, %s99
      %p105 = scmp.eq.s32.totalorder %s11, 0
      %p106 = por %p104, %p105
      %p107 = scmp.ne.s32.totalorder %s96, %s99
      %p108 = scmp.eq.s32.totalorder %s16, 3
      %p109 = por %p107, %p108
      %p110 = scmp.ne.s32.totalorder %s99, %s100
      %p111 = scmp.eq.s32.totalorder %s16, 0
      %p112 = por %p110, %p111
      %p113 = scmp.ne.s32.totalorder %s99, %s100
      %p114 = scmp.eq.s32.totalorder %s17, 3
      %p115 = por %p113, %p114
      %p117 = scmp.ne.s32.totalorder %s100, %s116
      %p118 = scmp.eq.s32.totalorder %s17, 0
      %p119 = por %p117, %p118
      %s120 = ssub.s32 %s18, %s37
      %p121 = scmp.eq.s32.totalorder %s120, 0
      %s123 = sadd.s32 %s122, 1
      %s124 = scalar_select %p121, %s122, %s123
      %p127 = pneg %p121
      %p128 = scmp.eq.s32.totalorder %s11, 3
      %p129 = por %p127, %p128
      %p130 = scmp.ne.s32.totalorder %s122, %s125
      %p131 = scmp.eq.s32.totalorder %s11, 0
      %p132 = por %p130, %p131
      %p133 = scmp.ne.s32.totalorder %s122, %s125
      %p134 = scmp.eq.s32.totalorder %s16, 3
      %p135 = por %p133, %p134
      %p136 = scmp.ne.s32.totalorder %s125, %s126
      %p137 = scmp.eq.s32.totalorder %s16, 0
      %p138 = por %p136, %p137
      %p139 = scmp.ne.s32.totalorder %s125, %s126
      %p140 = scmp.eq.s32.totalorder %s17, 3
      %p141 = por %p139, %p140
      %p143 = scmp.ne.s32.totalorder %s126, %s142
      %p144 = scmp.eq.s32.totalorder %s17, 0
      %p145 = por %p143, %p144
      %s147 = sadd.s32 %s146, 1
      %p150 = scmp.eq.s32.totalorder %s11, 3
      %p151 = scmp.ne.s32.totalorder %s146, %s148
      %p152 = scmp.eq.s32.totalorder %s11, 0
      %p153 = por %p151, %p152
      %p154 = scmp.ne.s32.totalorder %s146, %s148
      %p155 = scmp.eq.s32.totalorder %s16, 3
      %p156 = por %p154, %p155
      %p157 = scmp.ne.s32.totalorder %s148, %s149
      %p158 = scmp.eq.s32.totalorder %s16, 0
      %p159 = por %p157, %p158
      %p160 = scmp.ne.s32.totalorder %s148, %s149
      %p161 = scmp.eq.s32.totalorder %s17, 3
      %p162 = por %p160, %p161
      %p164 = scmp.ne.s32.totalorder %s149, %s163
      %p165 = scmp.eq.s32.totalorder %s17, 0
      %p166 = por %p164, %p165
      %s167 = ssub.s32 %s19, %s33
      %s168 = ssub.s32 %s18, %s37
      %s169 = sor.u32 %s167, %s168
      %p170 = scmp.eq.s32.totalorder %s169, 0
      %s172 = sadd.s32 %s171, 1
      %s173 = scalar_select %p170, %s171, %s172
      %p176 = pneg %p170
      %p177 = scmp.eq.s32.totalorder %s11, 3
      %p178 = por %p176, %p177
      %p179 = scmp.ne.s32.totalorder %s171, %s174
      %p180 = scmp.eq.s32.totalorder %s11, 0
      %p181 = por %p179, %p180
      %p182 = scmp.ne.s32.totalorder %s171, %s174
      %p183 = scmp.eq.s32.totalorder %s16, 3
      %p184 = por %p182, %p183
      %p185 = scmp.ne.s32.totalorder %s174, %s175
      %p186 = scmp.eq.s32.totalorder %s16, 0
      %p187 = por %p185, %p186
      %p188 = scmp.ne.s32.totalorder %s174, %s175
      %p189 = scmp.eq.s32.totalorder %s17, 3
      %p190 = por %p188, %p189
      %p192 = scmp.ne.s32.totalorder %s175, %s191
      %p193 = scmp.eq.s32.totalorder %s17, 0
      %p194 = por %p192, %p193
      %p195 = scmp.le.s32.totalorder 1, %s11
      %p196 = scmp.lt.s32.totalorder %s11, 5
      %p197 = pnand %p195, %p196
      %p198 = pneg %p197
      // Predicated region
      $region9: #{scenet_forward.2} parent=5 // pred_check
        _
      $region10: #{scenet_forward.2} parent=5 // pred_check_branch
        %200 = sbr.rel (%p197) target = $region12
      $region11: #{scenet_forward.2} parent=5 // pred_region
        %s201 = ssub.s32 %s11, 1
        // Predicated region
        $region13: #{scenet_forward.2} parent=11 // pred_check
          %p202 = pneg %p159
        $region14: #{scenet_forward.2} parent=11 // pred_check_branch
          %204 = sbr.rel (%p202) target = $region16
        $region15: #{scenet_forward.2} parent=11 // pred_region
          _
        $region16: #{scenet_forward.2} parent=11 // pred_fallthru
          _
      $region12: #{scenet_forward.2} parent=5 // pred_fallthru
        _
      %p205 = scmp.lt.s32.totalorder %s11, 4
      // Predicated region
      $region17: #{scenet_forward.2} parent=5 // pred_check
        %p206 = pneg %p205
      $region18: #{scenet_forward.2} parent=5 // pred_check_branch
        %208 = sbr.rel (%p206) target = $region20
      $region19: #{scenet_forward.2} parent=5 // pred_region
        // Predicated region
        $region21: #{scenet_forward.2} parent=19 // pred_check
          %p209 = pneg %p52
        $region22: #{scenet_forward.2} parent=19 // pred_check_branch
          %211 = sbr.rel (%p209) target = $region24
        $region23: #{scenet_forward.2} parent=19 // pred_region
          %s212 = sand.u32 %s42, 1
          %s213 = sand.u32 %s42, 1
          %s214 = smul.addr %s213, 104
          %s215 = scalar_lea.vmem [#allocation3], %s214
          %s216 = smul.u32 2, %s19
          %s217 = smul.addr %s216, 26
          %s218 = sadd.s32 %s20, %s217
          %s219 = smul.addr %s218, 4
          %s220 = scalar_lea.vmem %s0, %s219
          // Predicated region
          $region25: #{scenet_forward.2} parent=23 // pred_check
            _
          $region26: #{scenet_forward.2} parent=23 // pred_check_branch
            %222 = sbr.rel (0) target = $region28
          $region27: #{scenet_forward.2} parent=23 // pred_region
            // Predicated region
            $region29: #{scenet_forward.2} parent=27 // pred_check
              _
            $region30: #{scenet_forward.2} parent=27 // pred_check_branch
              %224 = sbr.rel target = $region32
            $region31: #{scenet_forward.2} parent=27 // pred_region
              // Predicated region
              $region44: #{scenet_forward.2} parent=31 // pred_check
                _
              $region45: #{scenet_forward.2} parent=31 // pred_check_branch
                %290 = sbr.rel (0) target = $region47
              $region46: #{scenet_forward.2} parent=31 // pred_region
                loop: start=0, step=1, limit=1
                $region48: #{scenet_forward.2} parent=46 // loop_pre_header
                  _
                $region49: #{scenet_forward.2} parent=46 // loop_header
                  %s292 = sphi 0, %s296
                  %p293 = scmp.ge.s32.totalorder %s292, 1
                  %s297 = sphi %s220, %s220
                  %s298 = sphi %s215, %s215
                $region50: #{scenet_forward.2} parent=46 // loop_header_branch
                  %295 = sbr.rel (%p293) target = $region54
                $region51: #{scenet_forward.2} parent=46 // loop_body
                  _
                $region52: #{scenet_forward.2} parent=46 // loop_footer
                  %s296 = sadd.s32 1, %s292
                $region53: #{scenet_forward.2} parent=46 // loop_footer_branch
                  %291 = sbr.rel target = $region49
                $region54: #{scenet_forward.2} parent=46 // loop_exit
                  _
                %s300 = ssub.s32 16, 1
                loop: start=0, step=1, limit=1
                $region55: #{scenet_forward.2} parent=46 // loop_pre_header
                  _
                $region56: #{scenet_forward.2} parent=46 // loop_header
                  %s302 = sphi 0, %s306
                  %p303 = scmp.ge.s32.totalorder %s302, 1
                  %s307 = sphi %s220, %s220
                  %s308 = sphi %s215, %s215
                $region57: #{scenet_forward.2} parent=46 // loop_header_branch
                  %305 = sbr.rel (%p303) target = $region61
                $region58: #{scenet_forward.2} parent=46 // loop_body
                  %v309 = vld [vmem:[%s307] sm:%s300]
                  %310 = vst [vmem:[%s308] sm:%s300] %v309
                  %v311 = vld [vmem:[%s307 + $0x8] sm:%s300]
                  %312 = vst [vmem:[%s308 + $0x4] sm:%s300] %v311
                  %v313 = vld [vmem:[%s307 + $0x10] sm:%s300]
                  %314 = vst [vmem:[%s308 + $0x8] sm:%s300] %v313
                  %v315 = vld [vmem:[%s307 + $0x18] sm:%s300]
                  %316 = vst [vmem:[%s308 + $0xc] sm:%s300] %v315
                  %v317 = vld [vmem:[%s307 + $0x20] sm:%s300]
                  %318 = vst [vmem:[%s308 + $0x10] sm:%s300] %v317
                  %v319 = vld [vmem:[%s307 + $0x28] sm:%s300]
                  %320 = vst [vmem:[%s308 + $0x14] sm:%s300] %v319
                  %v321 = vld [vmem:[%s307 + $0x30] sm:%s300]
                  %322 = vst [vmem:[%s308 + $0x18] sm:%s300] %v321
                  %v323 = vld [vmem:[%s307 + $0x38] sm:%s300]
                  %324 = vst [vmem:[%s308 + $0x1c] sm:%s300] %v323
                  %v325 = vld [vmem:[%s307 + $0x40] sm:%s300]
                  %326 = vst [vmem:[%s308 + $0x20] sm:%s300] %v325
                  %v327 = vld [vmem:[%s307 + $0x48] sm:%s300]
                  %328 = vst [vmem:[%s308 + $0x24] sm:%s300] %v327
                  %v329 = vld [vmem:[%s307 + $0x50] sm:%s300]
                  %330 = vst [vmem:[%s308 + $0x28] sm:%s300] %v329
                  %v331 = vld [vmem:[%s307 + $0x58] sm:%s300]
                  %332 = vst [vmem:[%s308 + $0x2c] sm:%s300] %v331
                  %v333 = vld [vmem:[%s307 + $0x60] sm:%s300]
                  %334 = vst [vmem:[%s308 + $0x30] sm:%s300] %v333
                  %v335 = vld [vmem:[%s307 + $0x68] sm:%s300]
                  %336 = vst [vmem:[%s308 + $0x34] sm:%s300] %v335
                  %v337 = vld [vmem:[%s307 + $0x70] sm:%s300]
                  %338 = vst [vmem:[%s308 + $0x38] sm:%s300] %v337
                  %v339 = vld [vmem:[%s307 + $0x78] sm:%s300]
                  %340 = vst [vmem:[%s308 + $0x3c] sm:%s300] %v339
                  %v341 = vld [vmem:[%s307 + $0x80] sm:%s300]
                  %342 = vst [vmem:[%s308 + $0x40] sm:%s300] %v341
                  %v343 = vld [vmem:[%s307 + $0x88] sm:%s300]
                  %344 = vst [vmem:[%s308 + $0x44] sm:%s300] %v343
                  %v345 = vld [vmem:[%s307 + $0x90] sm:%s300]
                  %346 = vst [vmem:[%s308 + $0x48] sm:%s300] %v345
                  %v347 = vld [vmem:[%s307 + $0x98] sm:%s300]
                  %348 = vst [vmem:[%s308 + $0x4c] sm:%s300] %v347
                  %v349 = vld [vmem:[%s307 + $0xa0] sm:%s300]
                  %350 = vst [vmem:[%s308 + $0x50] sm:%s300] %v349
                  %v351 = vld [vmem:[%s307 + $0xa8] sm:%s300]
                  %352 = vst [vmem:[%s308 + $0x54] sm:%s300] %v351
                  %v353 = vld [vmem:[%s307 + $0xb0] sm:%s300]
                  %354 = vst [vmem:[%s308 + $0x58] sm:%s300] %v353
                  %v355 = vld [vmem:[%s307 + $0xb8] sm:%s300]
                  %356 = vst [vmem:[%s308 + $0x5c] sm:%s300] %v355
                  %v357 = vld [vmem:[%s307 + $0xc0] sm:%s300]
                  %358 = vst [vmem:[%s308 + $0x60] sm:%s300] %v357
                  %v359 = vld [vmem:[%s307 + $0xc8] sm:%s300]
                  %360 = vst [vmem:[%s308 + $0x64] sm:%s300] %v359
                $region59: #{scenet_forward.2} parent=46 // loop_footer
                  %s306 = sadd.s32 1, %s302
                $region60: #{scenet_forward.2} parent=46 // loop_footer_branch
                  %301 = sbr.rel target = $region56
                $region61: #{scenet_forward.2} parent=46 // loop_exit
                  _
              $region47: #{scenet_forward.2} parent=31 // pred_fallthru
                _
            $region32: #{scenet_forward.2} parent=27 // pred_fallthru
              _
            // Predicated region
            $region33: #{scenet_forward.2} parent=27 // pred_check
              _
            $region34: #{scenet_forward.2} parent=27 // pred_check_branch
              %226 = sbr.rel (0) target = $region36
            $region35: #{scenet_forward.2} parent=27 // pred_region
              %s228 = ssub.s32 16, 1
              loop: start=0, step=1, limit=1
              $region37: #{scenet_forward.2} parent=35 // loop_pre_header
                _
              $region38: #{scenet_forward.2} parent=35 // loop_header
                %s230 = sphi 0, %s234
                %p231 = scmp.ge.s32.totalorder %s230, 1
                %s235 = sphi %s220, %s220
                %s236 = sphi %s215, %s215
              $region39: #{scenet_forward.2} parent=35 // loop_header_branch
                %233 = sbr.rel (%p231) target = $region43
              $region40: #{scenet_forward.2} parent=35 // loop_body
                %v237 = vld [vmem:[%s235] sm:%s228]
                %238 = vst [vmem:[%s236] sm:%s228] %v237
                %v239 = vld [vmem:[%s235 + $0x8] sm:%s228]
                %240 = vst [vmem:[%s236 + $0x4] sm:%s228] %v239
                %v241 = vld [vmem:[%s235 + $0x10] sm:%s228]
                %242 = vst [vmem:[%s236 + $0x8] sm:%s228] %v241
                %v243 = vld [vmem:[%s235 + $0x18] sm:%s228]
                %244 = vst [vmem:[%s236 + $0xc] sm:%s228] %v243
                %v245 = vld [vmem:[%s235 + $0x20] sm:%s228]
                %246 = vst [vmem:[%s236 + $0x10] sm:%s228] %v245
                %v247 = vld [vmem:[%s235 + $0x28] sm:%s228]
                %248 = vst [vmem:[%s236 + $0x14] sm:%s228] %v247
                %v249 = vld [vmem:[%s235 + $0x30] sm:%s228]
                %250 = vst [vmem:[%s236 + $0x18] sm:%s228] %v249
                %v251 = vld [vmem:[%s235 + $0x38] sm:%s228]
                %252 = vst [vmem:[%s236 + $0x1c] sm:%s228] %v251
                %v253 = vld [vmem:[%s235 + $0x40] sm:%s228]
                %254 = vst [vmem:[%s236 + $0x20] sm:%s228] %v253
                %v255 = vld [vmem:[%s235 + $0x48] sm:%s228]
                %256 = vst [vmem:[%s236 + $0x24] sm:%s228] %v255
                %v257 = vld [vmem:[%s235 + $0x50] sm:%s228]
                %258 = vst [vmem:[%s236 + $0x28] sm:%s228] %v257
                %v259 = vld [vmem:[%s235 + $0x58] sm:%s228]
                %260 = vst [vmem:[%s236 + $0x2c] sm:%s228] %v259
                %v261 = vld [vmem:[%s235 + $0x60] sm:%s228]
                %262 = vst [vmem:[%s236 + $0x30] sm:%s228] %v261
                %v263 = vld [vmem:[%s235 + $0x68] sm:%s228]
                %264 = vst [vmem:[%s236 + $0x34] sm:%s228] %v263
                %v265 = vld [vmem:[%s235 + $0x70] sm:%s228]
                %266 = vst [vmem:[%s236 + $0x38] sm:%s228] %v265
                %v267 = vld [vmem:[%s235 + $0x78] sm:%s228]
                %268 = vst [vmem:[%s236 + $0x3c] sm:%s228] %v267
                %v269 = vld [vmem:[%s235 + $0x80] sm:%s228]
                %270 = vst [vmem:[%s236 + $0x40] sm:%s228] %v269
                %v271 = vld [vmem:[%s235 + $0x88] sm:%s228]
                %272 = vst [vmem:[%s236 + $0x44] sm:%s228] %v271
                %v273 = vld [vmem:[%s235 + $0x90] sm:%s228]
                %274 = vst [vmem:[%s236 + $0x48] sm:%s228] %v273
                %v275 = vld [vmem:[%s235 + $0x98] sm:%s228]
                %276 = vst [vmem:[%s236 + $0x4c] sm:%s228] %v275
                %v277 = vld [vmem:[%s235 + $0xa0] sm:%s228]
                %278 = vst [vmem:[%s236 + $0x50] sm:%s228] %v277
                %v279 = vld [vmem:[%s235 + $0xa8] sm:%s228]
                %280 = vst [vmem:[%s236 + $0x54] sm:%s228] %v279
                %v281 = vld [vmem:[%s235 + $0xb0] sm:%s228]
                %282 = vst [vmem:[%s236 + $0x58] sm:%s228] %v281
                %v283 = vld [vmem:[%s235 + $0xb8] sm:%s228]
                %284 = vst [vmem:[%s236 + $0x5c] sm:%s228] %v283
                %v285 = vld [vmem:[%s235 + $0xc0] sm:%s228]
                %286 = vst [vmem:[%s236 + $0x60] sm:%s228] %v285
                %v287 = vld [vmem:[%s235 + $0xc8] sm:%s228]
                %288 = vst [vmem:[%s236 + $0x64] sm:%s228] %v287
              $region41: #{scenet_forward.2} parent=35 // loop_footer
                %s234 = sadd.s32 1, %s230
              $region42: #{scenet_forward.2} parent=35 // loop_footer_branch
                %229 = sbr.rel target = $region38
              $region43: #{scenet_forward.2} parent=35 // loop_exit
                _
            $region36: #{scenet_forward.2} parent=27 // pred_fallthru
              _
          $region28: #{scenet_forward.2} parent=23 // pred_fallthru
            _
          %361 = vnop
        $region24: #{scenet_forward.2} parent=19 // pred_fallthru
          _
        // Predicated region
        $region62: #{scenet_forward.2} parent=19 // pred_check
          %p362 = pneg %p80
        $region63: #{scenet_forward.2} parent=19 // pred_check_branch
          %364 = sbr.rel (%p362) target = $region65
        $region64: #{scenet_forward.2} parent=19 // pred_region
          %p365 = scmp.lt.s32.totalorder %s20, 1
          %s366 = scalar_select %p365, %s20, 1
          %p367 = scmp.lt.s32.totalorder %s18, 1
          %s368 = scalar_select %p367, %s18, 1
          %s369 = smul.addr %s368, 144
          %s370 = smul.addr %s366, 288
          %s371 = sadd.s32 %s369, %s370
          %s372 = smul.addr %s371, 4
          %s373 = scalar_lea.vmem %s1, %s372
        $region65: #{scenet_forward.2} parent=19 // pred_fallthru
          _
        // Predicated region
        $region66: #{scenet_forward.2} parent=19 // pred_check
          %p374 = pneg %p106
        $region67: #{scenet_forward.2} parent=19 // pred_check_branch
          %376 = sbr.rel (%p374) target = $region69
        $region68: #{scenet_forward.2} parent=19 // pred_region
          %p377 = scmp.lt.s32.totalorder %s18, 1
          %s378 = scalar_select %p377, %s18, 1
          %s379 = scalar_lea.vmem %s2, %s378
        $region69: #{scenet_forward.2} parent=19 // pred_fallthru
          _
        // Predicated region
        $region70: #{scenet_forward.2} parent=19 // pred_check
          %p380 = pneg %p132
        $region71: #{scenet_forward.2} parent=19 // pred_check_branch
          %382 = sbr.rel (%p380) target = $region73
        $region72: #{scenet_forward.2} parent=19 // pred_region
          %p383 = scmp.lt.s32.totalorder %s18, 1
          %s384 = scalar_select %p383, %s18, 1
          %s385 = scalar_lea.vmem %s3, %s384
        $region73: #{scenet_forward.2} parent=19 // pred_fallthru
          _
      $region20: #{scenet_forward.2} parent=5 // pred_fallthru
        _
      %p386 = scmp.le.s32.totalorder 1, %s11
      %p387 = scmp.lt.s32.totalorder %s11, 5
      %p388 = pnand %p386, %p387
      %p389 = pneg %p388
      // Predicated region
      $region74: #{scenet_forward.2} parent=5 // pred_check
        _
      $region75: #{scenet_forward.2} parent=5 // pred_check_branch
        %391 = sbr.rel (%p388) target = $region77
      $region76: #{scenet_forward.2} parent=5 // pred_region
        %s392 = ssub.s32 %s11, 1
        %s393 = sand.u32 %s45, 1
        %s394 = sand.u32 %s45, 1
        %s395 = smul.addr %s394, 104
        %s396 = scalar_lea.vmem [#allocation3], %s395
        // Predicated region
        $region78: #{scenet_forward.2} parent=76 // pred_check
          %p397 = pneg %p58
        $region79: #{scenet_forward.2} parent=76 // pred_check_branch
          %399 = sbr.rel (%p397) target = $region81
        $region80: #{scenet_forward.2} parent=76 // pred_region
          _
        $region81: #{scenet_forward.2} parent=76 // pred_fallthru
          _
        %s400 = sand.u32 %s45, 1
        %s401 = sand.u32 %s45, 1
        %s402 = smul.addr %s401, 104
        %s403 = scalar_lea.vmem [#allocation3], %s402
        %p404 = pneg %p58
        %p405 = pneg %p55
        %p406 = scmp.lt.s32.totalorder %s23, 1
        %s407 = scalar_select %p406, %s23, 1
        %p408 = scmp.lt.s32.totalorder %s21, 1
        %s409 = scalar_select %p408, %s21, 1
        %s410 = smul.addr %s409, 144
        %s411 = smul.addr %s407, 288
        %s412 = sadd.s32 %s410, %s411
        %s413 = smul.addr %s412, 4
        %s414 = scalar_lea.vmem %s1, %s413
        %p415 = pneg %p86
        %p416 = pneg %p83
        %p417 = scmp.lt.s32.totalorder %s21, 1
        %s418 = scalar_select %p417, %s21, 1
        %s419 = scalar_lea.vmem %s2, %s418
        %p420 = pneg %p112
        %p421 = pneg %p109
        %p422 = scmp.lt.s32.totalorder %s21, 1
        %s423 = scalar_select %p422, %s21, 1
        %s424 = scalar_lea.vmem %s3, %s423
        %p425 = pneg %p138
        %p426 = pneg %p135
        %p427 = pneg %p159
        %p428 = pneg %p156
        %p429 = pneg %p187
        %p430 = pneg %p184
        %s431 = sand.u32 %s174, 1
        %s432 = sand.u32 %s174, 1
        %s433 = smul.addr %s432, 104
        %s434 = scalar_lea.vmem [#allocation4], %s433
        %s435 = smul.u32 2, %s22
        %p436 = scmp.lt.s32.totalorder %s23, 1
        %s437 = scalar_select %p436, %s23, 1
        %p438 = scmp.lt.s32.totalorder %s21, 1
        %s439 = scalar_select %p438, %s21, 1
        %s440 = smul.addr %s439, 144
        %s441 = smul.addr %s437, 288
        %s442 = sadd.s32 %s440, %s441
        %s443 = smul.addr %s442, 4
        %s444 = scalar_lea.vmem %s1, %s443
        %p445 = scmp.lt.s32.totalorder %s21, 1
        %s446 = scalar_select %p445, %s21, 1
        %s447 = scalar_lea.vmem %s2, %s446
        %p448 = scmp.lt.s32.totalorder %s21, 1
        %s449 = scalar_select %p448, %s21, 1
        %s450 = scalar_lea.vmem %s3, %s449
        %s451 = smul.u32 2, %s22
        %v452 = vld [vmem:[%s396] sm:$0xf]
        %v453 = vld [vmem:[%s396 + $0x4] sm:$0xf]
        %v454 = vld [vmem:[%s396 + $0x8] sm:$0xf]
        %v455 = vld [vmem:[%s396 + $0xc] sm:$0xf]
        %v456 = vld [vmem:[%s396 + $0x10] sm:$0xf]
        %v457 = vld [vmem:[%s396 + $0x14] sm:$0xf]
        %v458 = vld [vmem:[%s396 + $0x18] sm:$0xf]
        %v459 = vld [vmem:[%s396 + $0x1c] sm:$0xf]
        %v460 = vld [vmem:[%s396 + $0x20] sm:$0xf]
        %v461 = vld [vmem:[%s396 + $0x24] sm:$0xf]
        %v462 = vld [vmem:[%s396 + $0x28] sm:$0xf]
        %v463 = vld [vmem:[%s396 + $0x2c] sm:$0xf]
        %v464 = vld [vmem:[%s396 + $0x30] sm:$0xf]
        %v465 = vld [vmem:[%s396 + $0x34] sm:$0xf]
        %v466 = vld [vmem:[%s396 + $0x38] sm:$0xf]
        %v467 = vld [vmem:[%s396 + $0x3c] sm:$0xf]
        %v468 = vld [vmem:[%s396 + $0x40] sm:$0xf]
        %v469 = vld [vmem:[%s396 + $0x44] sm:$0xf]
        %v470 = vld [vmem:[%s396 + $0x48] sm:$0xf]
        %v471 = vld [vmem:[%s396 + $0x4c] sm:$0xf]
        %v472 = vld [vmem:[%s396 + $0x50] sm:$0xf]
        %v473 = vld [vmem:[%s396 + $0x54] sm:$0xf]
        %v474 = vld [vmem:[%s396 + $0x58] sm:$0xf]
        %v475 = vld [vmem:[%s396 + $0x5c] sm:$0xf]
        %v476 = vld [vmem:[%s396 + $0x60] sm:$0xf]
        %v477 = vld [vmem:[%s396 + $0x64] sm:$0xf]
        %v478 = vld [vmem:[%s444] sm:$0xf]
        %v479 = vld [vmem:[%s444 + $0x4] sm:$0xf]
        %v480 = vld [vmem:[%s444 + $0x8] sm:$0xf]
        %v481 = vld [vmem:[%s444 + $0xc] sm:$0xf]
        %v482 = vld [vmem:[%s444 + $0x10] sm:$0xf]
        %v483 = vld [vmem:[%s444 + $0x14] sm:$0xf]
        %v484 = vld [vmem:[%s444 + $0x18] sm:$0xf]
        %v485 = vld [vmem:[%s444 + $0x1c] sm:$0xf]
        %v486 = vld [vmem:[%s444 + $0x20] sm:$0xf]
        %v487 = vld [vmem:[%s444 + $0x24] sm:$0xf]
        %v488 = vld [vmem:[%s444 + $0x28] sm:$0xf]
        %v489 = vld [vmem:[%s444 + $0x2c] sm:$0xf]
        %v490 = vld [vmem:[%s444 + $0x30] sm:$0xf]
        %v491 = vld [vmem:[%s444 + $0x34] sm:$0xf]
        %v492 = vld [vmem:[%s444 + $0x38] sm:$0xf]
        %v493 = vld [vmem:[%s444 + $0x3c] sm:$0xf]
        %v520 = vunpack.c.l.b16 %v452
        %v521 = vunpack.c.l.b16 %v453
        %v522 = vunpack.c.l.b16 %v454
        %v523 = vunpack.c.l.b16 %v455
        %v524 = vunpack.c.l.b16 %v456
        %v525 = vunpack.c.l.b16 %v457
        %v526 = vunpack.c.l.b16 %v458
        %v527 = vunpack.c.l.b16 %v459
        %v528 = vunpack.c.l.b16 %v460
        %v529 = vunpack.c.l.b16 %v461
        %v530 = vunpack.c.l.b16 %v462
        %v531 = vunpack.c.l.b16 %v463
        %v532 = vunpack.c.l.b16 %v464
        %v533 = vunpack.c.l.b16 %v465
        %v534 = vunpack.c.l.b16 %v466
        %v535 = vunpack.c.l.b16 %v467
        %v536 = vunpack.c.l.b16 %v468
        %v537 = vunpack.c.l.b16 %v469
        %v538 = vunpack.c.l.b16 %v470
        %v539 = vunpack.c.l.b16 %v471
        %v540 = vunpack.c.l.b16 %v472
        %v541 = vunpack.c.l.b16 %v473
        %v542 = vunpack.c.l.b16 %v474
        %v543 = vunpack.c.l.b16 %v475
        %v544 = vunpack.c.l.b16 %v476
        %v545 = vunpack.c.l.b16 %v477
        %v546 = vpack.c.b16 %v521, %v520
        %v547 = vpack.c.b16 %v523, %v522
        %v548 = vpack.c.b16 %v525, %v524
        %v549 = vpack.c.b16 %v527, %v526
        %v550 = vpack.c.b16 %v529, %v528
        %v551 = vpack.c.b16 %v531, %v530
        %v552 = vpack.c.b16 %v533, %v532
        %v553 = vpack.c.b16 %v535, %v534
        %v554 = vpack.c.b16 %v537, %v536
        %v555 = vpack.c.b16 %v539, %v538
        %v556 = vpack.c.b16 %v541, %v540
        %v557 = vpack.c.b16 %v543, %v542
        %v558 = vpack.c.b16 %v545, %v544
        %v588 = vunpack.c.l.b16 %v478
        %v589 = vunpack.c.l.b16 %v479
        %v590 = vunpack.c.l.b16 %v480
        %v591 = vunpack.c.l.b16 %v481
        %v592 = vunpack.c.l.b16 %v482
        %v593 = vunpack.c.l.b16 %v483
        %v594 = vunpack.c.l.b16 %v484
        %v595 = vunpack.c.l.b16 %v485
        %v596 = vunpack.c.l.b16 %v486
        %v597 = vunpack.c.l.b16 %v487
        %v598 = vunpack.c.l.b16 %v488
        %v599 = vunpack.c.l.b16 %v489
        %v600 = vunpack.c.l.b16 %v490
        %v601 = vunpack.c.l.b16 %v491
        %v602 = vunpack.c.l.b16 %v492
        %v603 = vunpack.c.l.b16 %v493
        %v604 = vpack.c.b16 %v589, %v588
        %v605 = vpack.c.b16 %v591, %v590
        %v606 = vpack.c.b16 %v593, %v592
        %v607 = vpack.c.b16 %v595, %v594
        %v608 = vpack.c.b16 %v597, %v596
        %v609 = vpack.c.b16 %v599, %v598
        %v610 = vpack.c.b16 %v601, %v600
        %v611 = vpack.c.b16 %v603, %v602
        %620 = vmatpush.bf16.msra.mxu0 %v611
        %621 = vmatpush.bf16.msra.mxu0 %v610
        %622 = vmatpush.bf16.msra.mxu0 %v609
        %623 = vmatpush.bf16.msra.mxu0 %v608
        %624 = vmatpush.bf16.msra.mxu0 %v607
        %625 = vmatpush.bf16.msra.mxu0 %v606
        %626 = vmatpush.bf16.msra.mxu0 %v605
        %627 = vmatpush.bf16.msra.mxu0 %v604
        %628 = vmatmul.bf16.gmra.mxu0 %v546
        %v629 = vpop.f32.mrf.mxu0
        %v630 = vadd.f32 0.0, %v629
        %v631 = vpop.f32.mrf.mxu0
        %v632 = vadd.f32 0.0, %v631
        %633 = vmatmul.bf16.gmra.mxu0 %v547
        %v634 = vpop.f32.mrf.mxu0
        %v635 = vadd.f32 0.0, %v634
        %v636 = vpop.f32.mrf.mxu0
        %v637 = vadd.f32 0.0, %v636
        %638 = vmatmul.bf16.gmra.mxu0 %v548
        %v639 = vpop.f32.mrf.mxu0
        %v640 = vadd.f32 0.0, %v639
        %v641 = vpop.f32.mrf.mxu0
        %v642 = vadd.f32 0.0, %v641
        %643 = vmatmul.bf16.gmra.mxu0 %v549
        %v644 = vpop.f32.mrf.mxu0
        %v645 = vadd.f32 0.0, %v644
        %v646 = vpop.f32.mrf.mxu0
        %v647 = vadd.f32 0.0, %v646
        %648 = vmatmul.bf16.gmra.mxu0 %v550
        %v649 = vpop.f32.mrf.mxu0
        %v650 = vadd.f32 0.0, %v649
        %v651 = vpop.f32.mrf.mxu0
        %v652 = vadd.f32 0.0, %v651
        %653 = vmatmul.bf16.gmra.mxu0 %v551
        %v654 = vpop.f32.mrf.mxu0
        %v655 = vadd.f32 0.0, %v654
        %v656 = vpop.f32.mrf.mxu0
        %v657 = vadd.f32 0.0, %v656
        %658 = vmatmul.bf16.gmra.mxu0 %v552
        %v659 = vpop.f32.mrf.mxu0
        %v660 = vadd.f32 0.0, %v659
        %v661 = vpop.f32.mrf.mxu0
        %v662 = vadd.f32 0.0, %v661
        %663 = vmatmul.bf16.gmra.mxu0 %v553
        %v664 = vpop.f32.mrf.mxu0
        %v665 = vadd.f32 0.0, %v664
        %v666 = vpop.f32.mrf.mxu0
        %v667 = vadd.f32 0.0, %v666
        %668 = vmatmul.bf16.gmra.mxu0 %v554
        %v669 = vpop.f32.mrf.mxu0
        %v670 = vadd.f32 0.0, %v669
        %v671 = vpop.f32.mrf.mxu0
        %v672 = vadd.f32 0.0, %v671
        %673 = vmatmul.bf16.gmra.mxu0 %v555
        %v674 = vpop.f32.mrf.mxu0
        %v675 = vadd.f32 0.0, %v674
        %v676 = vpop.f32.mrf.mxu0
        %v677 = vadd.f32 0.0, %v676
        %678 = vmatmul.bf16.gmra.mxu0 %v556
        %v679 = vpop.f32.mrf.mxu0
        %v680 = vadd.f32 0.0, %v679
        %v681 = vpop.f32.mrf.mxu0
        %v682 = vadd.f32 0.0, %v681
        %683 = vmatmul.bf16.gmra.mxu0 %v557
        %v684 = vpop.f32.mrf.mxu0
        %v685 = vadd.f32 0.0, %v684
        %v686 = vpop.f32.mrf.mxu0
        %v687 = vadd.f32 0.0, %v686
        %688 = vmatmul.bf16.gmra.mxu0 %v558
        %v689 = vpop.f32.mrf.mxu0
        %v690 = vadd.f32 0.0, %v689
        %v691 = vpop.f32.mrf.mxu0
        %v692 = vadd.f32 0.0, %v691
        %693 = vdwg.mxu0
        %v694 = vrot.slane %v630, 5
        %v695 = vrot.slane %v632, 5
        %v696 = vrot.slane %v635, 5
        %v697 = vrot.slane %v637, 5
        %v698 = vrot.slane %v640, 5
        %v699 = vrot.slane %v642, 5
        %v700 = vrot.slane %v645, 5
        %v701 = vrot.slane %v647, 5
        %v702 = vrot.slane %v650, 5
        %v703 = vrot.slane %v652, 5
        %v704 = vrot.slane %v655, 5
        %v705 = vrot.slane %v657, 5
        %v706 = vrot.slane %v660, 5
        %v707 = vrot.slane %v662, 5
        %v708 = vrot.slane %v665, 5
        %v709 = vrot.slane %v667, 5
        %v710 = vrot.slane %v670, 5
        %v711 = vrot.slane %v672, 5
        %v712 = vrot.slane %v675, 5
        %v713 = vrot.slane %v677, 5
        %v714 = vrot.slane %v680, 5
        %v715 = vrot.slane %v682, 5
        %v716 = vrot.slane %v685, 5
        %v717 = vrot.slane %v687, 5
        %v718 = vrot.slane %v690, 5
        %v719 = vrot.slane %v692, 5
        %v720 = vlaneseq
        %v721 = vshrl.u32 %v720, 7
        %vm722 = vcmp.lt.s32.totalorder %v721, 3
        %v723 = vsel %vm722, %v718, %v719
        %v724 = vsel %vm722, %v717, %v718
        %v725 = vsel %vm722, %v716, %v717
        %v726 = vsel %vm722, %v715, %v716
        %v727 = vsel %vm722, %v714, %v715
        %v728 = vsel %vm722, %v713, %v714
        %v729 = vsel %vm722, %v712, %v713
        %v730 = vsel %vm722, %v711, %v712
        %v731 = vsel %vm722, %v710, %v711
        %v732 = vsel %vm722, %v709, %v710
        %v733 = vsel %vm722, %v708, %v709
        %v734 = vsel %vm722, %v707, %v708
        %v735 = vsel %vm722, %v706, %v707
        %v736 = vsel %vm722, %v705, %v706
        %v737 = vsel %vm722, %v704, %v705
        %v738 = vsel %vm722, %v703, %v704
        %v739 = vsel %vm722, %v702, %v703
        %v740 = vsel %vm722, %v701, %v702
        %v741 = vsel %vm722, %v700, %v701
        %v742 = vsel %vm722, %v699, %v700
        %v743 = vsel %vm722, %v698, %v699
        %v744 = vsel %vm722, %v697, %v698
        %v745 = vsel %vm722, %v696, %v697
        %v746 = vsel %vm722, %v695, %v696
        %v747 = vsel %vm722, %v694, %v695
        %v748 = vsel %vm722, %v719, %v694
        %s749 = scalar_lea.vmem %s444, 64
        %v750 = vld [vmem:[%s749] sm:$0xf]
        %v751 = vld [vmem:[%s749 + $0x4] sm:$0xf]
        %v752 = vld [vmem:[%s749 + $0x8] sm:$0xf]
        %v753 = vld [vmem:[%s749 + $0xc] sm:$0xf]
        %v754 = vld [vmem:[%s749 + $0x10] sm:$0xf]
        %v755 = vld [vmem:[%s749 + $0x14] sm:$0xf]
        %v756 = vld [vmem:[%s749 + $0x18] sm:$0xf]
        %v757 = vld [vmem:[%s749 + $0x1c] sm:$0xf]
        %v758 = vld [vmem:[%s749 + $0x20] sm:$0xf]
        %v759 = vld [vmem:[%s749 + $0x24] sm:$0xf]
        %v760 = vld [vmem:[%s749 + $0x28] sm:$0xf]
        %v761 = vld [vmem:[%s749 + $0x2c] sm:$0xf]
        %v762 = vld [vmem:[%s749 + $0x30] sm:$0xf]
        %v763 = vld [vmem:[%s749 + $0x34] sm:$0xf]
        %v764 = vld [vmem:[%s749 + $0x38] sm:$0xf]
        %v765 = vld [vmem:[%s749 + $0x3c] sm:$0xf]
        %v782 = vunpack.c.l.b16 %v750
        %v783 = vunpack.c.l.b16 %v751
        %v784 = vunpack.c.l.b16 %v752
        %v785 = vunpack.c.l.b16 %v753
        %v786 = vunpack.c.l.b16 %v754
        %v787 = vunpack.c.l.b16 %v755
        %v788 = vunpack.c.l.b16 %v756
        %v789 = vunpack.c.l.b16 %v757
        %v790 = vunpack.c.l.b16 %v758
        %v791 = vunpack.c.l.b16 %v759
        %v792 = vunpack.c.l.b16 %v760
        %v793 = vunpack.c.l.b16 %v761
        %v794 = vunpack.c.l.b16 %v762
        %v795 = vunpack.c.l.b16 %v763
        %v796 = vunpack.c.l.b16 %v764
        %v797 = vunpack.c.l.b16 %v765
        %v798 = vpack.c.b16 %v783, %v782
        %v799 = vpack.c.b16 %v785, %v784
        %v800 = vpack.c.b16 %v787, %v786
        %v801 = vpack.c.b16 %v789, %v788
        %v802 = vpack.c.b16 %v791, %v790
        %v803 = vpack.c.b16 %v793, %v792
        %v804 = vpack.c.b16 %v795, %v794
        %v805 = vpack.c.b16 %v797, %v796
        %814 = vmatpush.bf16.msra.mxu0 %v805
        %815 = vmatpush.bf16.msra.mxu0 %v804
        %816 = vmatpush.bf16.msra.mxu0 %v803
        %817 = vmatpush.bf16.msra.mxu0 %v802
        %818 = vmatpush.bf16.msra.mxu0 %v801
        %819 = vmatpush.bf16.msra.mxu0 %v800
        %820 = vmatpush.bf16.msra.mxu0 %v799
        %821 = vmatpush.bf16.msra.mxu0 %v798
        %822 = vmatmul.bf16.gmra.mxu0 %v546
        %v823 = vpop.f32.mrf.mxu0
        %v824 = vadd.f32 0.0, %v823
        %v825 = vpop.f32.mrf.mxu0
        %v826 = vadd.f32 0.0, %v825
        %827 = vmatmul.bf16.gmra.mxu0 %v547
        %v828 = vpop.f32.mrf.mxu0
        %v829 = vadd.f32 0.0, %v828
        %v830 = vpop.f32.mrf.mxu0
        %v831 = vadd.f32 0.0, %v830
        %832 = vmatmul.bf16.gmra.mxu0 %v548
        %v833 = vpop.f32.mrf.mxu0
        %v834 = vadd.f32 0.0, %v833
        %v835 = vpop.f32.mrf.mxu0
        %v836 = vadd.f32 0.0, %v835
        %837 = vmatmul.bf16.gmra.mxu0 %v549
        %v838 = vpop.f32.mrf.mxu0
        %v839 = vadd.f32 0.0, %v838
        %v840 = vpop.f32.mrf.mxu0
        %v841 = vadd.f32 0.0, %v840
        %842 = vmatmul.bf16.gmra.mxu0 %v550
        %v843 = vpop.f32.mrf.mxu0
        %v844 = vadd.f32 0.0, %v843
        %v845 = vpop.f32.mrf.mxu0
        %v846 = vadd.f32 0.0, %v845
        %847 = vmatmul.bf16.gmra.mxu0 %v551
        %v848 = vpop.f32.mrf.mxu0
        %v849 = vadd.f32 0.0, %v848
        %v850 = vpop.f32.mrf.mxu0
        %v851 = vadd.f32 0.0, %v850
        %852 = vmatmul.bf16.gmra.mxu0 %v552
        %v853 = vpop.f32.mrf.mxu0
        %v854 = vadd.f32 0.0, %v853
        %v855 = vpop.f32.mrf.mxu0
        %v856 = vadd.f32 0.0, %v855
        %857 = vmatmul.bf16.gmra.mxu0 %v553
        %v858 = vpop.f32.mrf.mxu0
        %v859 = vadd.f32 0.0, %v858
        %v860 = vpop.f32.mrf.mxu0
        %v861 = vadd.f32 0.0, %v860
        %862 = vmatmul.bf16.gmra.mxu0 %v554
        %v863 = vpop.f32.mrf.mxu0
        %v864 = vadd.f32 0.0, %v863
        %v865 = vpop.f32.mrf.mxu0
        %v866 = vadd.f32 0.0, %v865
        %867 = vmatmul.bf16.gmra.mxu0 %v555
        %v868 = vpop.f32.mrf.mxu0
        %v869 = vadd.f32 0.0, %v868
        %v870 = vpop.f32.mrf.mxu0
        %v871 = vadd.f32 0.0, %v870
        %872 = vmatmul.bf16.gmra.mxu0 %v556
        %v873 = vpop.f32.mrf.mxu0
        %v874 = vadd.f32 0.0, %v873
        %v875 = vpop.f32.mrf.mxu0
        %v876 = vadd.f32 0.0, %v875
        %877 = vmatmul.bf16.gmra.mxu0 %v557
        %v878 = vpop.f32.mrf.mxu0
        %v879 = vadd.f32 0.0, %v878
        %v880 = vpop.f32.mrf.mxu0
        %v881 = vadd.f32 0.0, %v880
        %882 = vmatmul.bf16.gmra.mxu0 %v558
        %v883 = vpop.f32.mrf.mxu0
        %v884 = vadd.f32 0.0, %v883
        %v885 = vpop.f32.mrf.mxu0
        %v886 = vadd.f32 0.0, %v885
        %887 = vdwg.mxu0
        %v888 = vrot.slane %v824, 6
        %v889 = vrot.slane %v826, 6
        %v890 = vrot.slane %v829, 6
        %v891 = vrot.slane %v831, 6
        %v892 = vrot.slane %v834, 6
        %v893 = vrot.slane %v836, 6
        %v894 = vrot.slane %v839, 6
        %v895 = vrot.slane %v841, 6
        %v896 = vrot.slane %v844, 6
        %v897 = vrot.slane %v846, 6
        %v898 = vrot.slane %v849, 6
        %v899 = vrot.slane %v851, 6
        %v900 = vrot.slane %v854, 6
        %v901 = vrot.slane %v856, 6
        %v902 = vrot.slane %v859, 6
        %v903 = vrot.slane %v861, 6
        %v904 = vrot.slane %v864, 6
        %v905 = vrot.slane %v866, 6
        %v906 = vrot.slane %v869, 6
        %v907 = vrot.slane %v871, 6
        %v908 = vrot.slane %v874, 6
        %v909 = vrot.slane %v876, 6
        %v910 = vrot.slane %v879, 6
        %v911 = vrot.slane %v881, 6
        %v912 = vrot.slane %v884, 6
        %v913 = vrot.slane %v886, 6
        %vm914 = vcmp.lt.s32.totalorder %v721, 2
        %v915 = vsel %vm914, %v912, %v913
        %v916 = vsel %vm914, %v911, %v912
        %v917 = vsel %vm914, %v910, %v911
        %v918 = vsel %vm914, %v909, %v910
        %v919 = vsel %vm914, %v908, %v909
        %v920 = vsel %vm914, %v907, %v908
        %v921 = vsel %vm914, %v906, %v907
        %v922 = vsel %vm914, %v905, %v906
        %v923 = vsel %vm914, %v904, %v905
        %v924 = vsel %vm914, %v903, %v904
        %v925 = vsel %vm914, %v902, %v903
        %v926 = vsel %vm914, %v901, %v902
        %v927 = vsel %vm914, %v900, %v901
        %v928 = vsel %vm914, %v899, %v900
        %v929 = vsel %vm914, %v898, %v899
        %v930 = vsel %vm914, %v897, %v898
        %v931 = vsel %vm914, %v896, %v897
        %v932 = vsel %vm914, %v895, %v896
        %v933 = vsel %vm914, %v894, %v895
        %v934 = vsel %vm914, %v893, %v894
        %v935 = vsel %vm914, %v892, %v893
        %v936 = vsel %vm914, %v891, %v892
        %v937 = vsel %vm914, %v890, %v891
        %v938 = vsel %vm914, %v889, %v890
        %v939 = vsel %vm914, %v888, %v889
        %v940 = vsel %vm914, %v913, %v888
        %v941 = vadd.f32 %v723, %v915
        %v942 = vadd.f32 %v748, %v940
        %v943 = vadd.f32 %v747, %v939
        %v944 = vadd.f32 %v746, %v938
        %v945 = vadd.f32 %v745, %v937
        %v946 = vadd.f32 %v744, %v936
        %v947 = vadd.f32 %v743, %v935
        %v948 = vadd.f32 %v742, %v934
        %v949 = vadd.f32 %v741, %v933
        %v950 = vadd.f32 %v740, %v932
        %v951 = vadd.f32 %v739, %v931
        %v952 = vadd.f32 %v738, %v930
        %v953 = vadd.f32 %v737, %v929
        %v954 = vadd.f32 %v736, %v928
        %v955 = vadd.f32 %v735, %v927
        %v956 = vadd.f32 %v734, %v926
        %v957 = vadd.f32 %v733, %v925
        %v958 = vadd.f32 %v732, %v924
        %v959 = vadd.f32 %v731, %v923
        %v960 = vadd.f32 %v730, %v922
        %v961 = vadd.f32 %v729, %v921
        %v962 = vadd.f32 %v728, %v920
        %v963 = vadd.f32 %v727, %v919
        %v964 = vadd.f32 %v726, %v918
        %v965 = vadd.f32 %v725, %v917
        %v966 = vadd.f32 %v724, %v916
        %s967 = scalar_lea.vmem %s444, 128
        %v968 = vld [vmem:[%s967] sm:$0xf]
        %v969 = vld [vmem:[%s967 + $0x4] sm:$0xf]
        %v970 = vld [vmem:[%s967 + $0x8] sm:$0xf]
        %v971 = vld [vmem:[%s967 + $0xc] sm:$0xf]
        %v972 = vld [vmem:[%s967 + $0x10] sm:$0xf]
        %v973 = vld [vmem:[%s967 + $0x14] sm:$0xf]
        %v974 = vld [vmem:[%s967 + $0x18] sm:$0xf]
        %v975 = vld [vmem:[%s967 + $0x1c] sm:$0xf]
        %v976 = vld [vmem:[%s967 + $0x20] sm:$0xf]
        %v977 = vld [vmem:[%s967 + $0x24] sm:$0xf]
        %v978 = vld [vmem:[%s967 + $0x28] sm:$0xf]
        %v979 = vld [vmem:[%s967 + $0x2c] sm:$0xf]
        %v980 = vld [vmem:[%s967 + $0x30] sm:$0xf]
        %v981 = vld [vmem:[%s967 + $0x34] sm:$0xf]
        %v982 = vld [vmem:[%s967 + $0x38] sm:$0xf]
        %v983 = vld [vmem:[%s967 + $0x3c] sm:$0xf]
        %v1000 = vunpack.c.l.b16 %v968
        %v1001 = vunpack.c.l.b16 %v969
        %v1002 = vunpack.c.l.b16 %v970
        %v1003 = vunpack.c.l.b16 %v971
        %v1004 = vunpack.c.l.b16 %v972
        %v1005 = vunpack.c.l.b16 %v973
        %v1006 = vunpack.c.l.b16 %v974
        %v1007 = vunpack.c.l.b16 %v975
        %v1008 = vunpack.c.l.b16 %v976
        %v1009 = vunpack.c.l.b16 %v977
        %v1010 = vunpack.c.l.b16 %v978
        %v1011 = vunpack.c.l.b16 %v979
        %v1012 = vunpack.c.l.b16 %v980
        %v1013 = vunpack.c.l.b16 %v981
        %v1014 = vunpack.c.l.b16 %v982
        %v1015 = vunpack.c.l.b16 %v983
        %v1016 = vpack.c.b16 %v1001, %v1000
        %v1017 = vpack.c.b16 %v1003, %v1002
        %v1018 = vpack.c.b16 %v1005, %v1004
        %v1019 = vpack.c.b16 %v1007, %v1006
        %v1020 = vpack.c.b16 %v1009, %v1008
        %v1021 = vpack.c.b16 %v1011, %v1010
        %v1022 = vpack.c.b16 %v1013, %v1012
        %v1023 = vpack.c.b16 %v1015, %v1014
        %1032 = vmatpush.bf16.msra.mxu0 %v1023
        %1033 = vmatpush.bf16.msra.mxu0 %v1022
        %1034 = vmatpush.bf16.msra.mxu0 %v1021
        %1035 = vmatpush.bf16.msra.mxu0 %v1020
        %1036 = vmatpush.bf16.msra.mxu0 %v1019
        %1037 = vmatpush.bf16.msra.mxu0 %v1018
        %1038 = vmatpush.bf16.msra.mxu0 %v1017
        %1039 = vmatpush.bf16.msra.mxu0 %v1016
        %1040 = vmatmul.bf16.gmra.mxu0 %v546
        %v1041 = vpop.f32.mrf.mxu0
        %v1042 = vadd.f32 0.0, %v1041
        %v1043 = vpop.f32.mrf.mxu0
        %v1044 = vadd.f32 0.0, %v1043
        %1045 = vmatmul.bf16.gmra.mxu0 %v547
        %v1046 = vpop.f32.mrf.mxu0
        %v1047 = vadd.f32 0.0, %v1046
        %v1048 = vpop.f32.mrf.mxu0
        %v1049 = vadd.f32 0.0, %v1048
        %1050 = vmatmul.bf16.gmra.mxu0 %v548
        %v1051 = vpop.f32.mrf.mxu0
        %v1052 = vadd.f32 0.0, %v1051
        %v1053 = vpop.f32.mrf.mxu0
        %v1054 = vadd.f32 0.0, %v1053
        %1055 = vmatmul.bf16.gmra.mxu0 %v549
        %v1056 = vpop.f32.mrf.mxu0
        %v1057 = vadd.f32 0.0, %v1056
        %v1058 = vpop.f32.mrf.mxu0
        %v1059 = vadd.f32 0.0, %v1058
        %1060 = vmatmul.bf16.gmra.mxu0 %v550
        %v1061 = vpop.f32.mrf.mxu0
        %v1062 = vadd.f32 0.0, %v1061
        %v1063 = vpop.f32.mrf.mxu0
        %v1064 = vadd.f32 0.0, %v1063
        %1065 = vmatmul.bf16.gmra.mxu0 %v551
        %v1066 = vpop.f32.mrf.mxu0
        %v1067 = vadd.f32 0.0, %v1066
        %v1068 = vpop.f32.mrf.mxu0
        %v1069 = vadd.f32 0.0, %v1068
        %1070 = vmatmul.bf16.gmra.mxu0 %v552
        %v1071 = vpop.f32.mrf.mxu0
        %v1072 = vadd.f32 0.0, %v1071
        %v1073 = vpop.f32.mrf.mxu0
        %v1074 = vadd.f32 0.0, %v1073
        %1075 = vmatmul.bf16.gmra.mxu0 %v553
        %v1076 = vpop.f32.mrf.mxu0
        %v1077 = vadd.f32 0.0, %v1076
        %v1078 = vpop.f32.mrf.mxu0
        %v1079 = vadd.f32 0.0, %v1078
        %1080 = vmatmul.bf16.gmra.mxu0 %v554
        %v1081 = vpop.f32.mrf.mxu0
        %v1082 = vadd.f32 0.0, %v1081
        %v1083 = vpop.f32.mrf.mxu0
        %v1084 = vadd.f32 0.0, %v1083
        %1085 = vmatmul.bf16.gmra.mxu0 %v555
        %v1086 = vpop.f32.mrf.mxu0
        %v1087 = vadd.f32 0.0, %v1086
        %v1088 = vpop.f32.mrf.mxu0
        %v1089 = vadd.f32 0.0, %v1088
        %1090 = vmatmul.bf16.gmra.mxu0 %v556
        %v1091 = vpop.f32.mrf.mxu0
        %v1092 = vadd.f32 0.0, %v1091
        %v1093 = vpop.f32.mrf.mxu0
        %v1094 = vadd.f32 0.0, %v1093
        %1095 = vmatmul.bf16.gmra.mxu0 %v557
        %v1096 = vpop.f32.mrf.mxu0
        %v1097 = vadd.f32 0.0, %v1096
        %v1098 = vpop.f32.mrf.mxu0
        %v1099 = vadd.f32 0.0, %v1098
        %1100 = vmatmul.bf16.gmra.mxu0 %v558
        %v1101 = vpop.f32.mrf.mxu0
        %v1102 = vadd.f32 0.0, %v1101
        %v1103 = vpop.f32.mrf.mxu0
        %v1104 = vadd.f32 0.0, %v1103
        %1105 = vdwg.mxu0
        %v1106 = vrot.slane %v1042, 7
        %v1107 = vrot.slane %v1044, 7
        %v1108 = vrot.slane %v1047, 7
        %v1109 = vrot.slane %v1049, 7
        %v1110 = vrot.slane %v1052, 7
        %v1111 = vrot.slane %v1054, 7
        %v1112 = vrot.slane %v1057, 7
        %v1113 = vrot.slane %v1059, 7
        %v1114 = vrot.slane %v1062, 7
        %v1115 = vrot.slane %v1064, 7
        %v1116 = vrot.slane %v1067, 7
        %v1117 = vrot.slane %v1069, 7
        %v1118 = vrot.slane %v1072, 7
        %v1119 = vrot.slane %v1074, 7
        %v1120 = vrot.slane %v1077, 7
        %v1121 = vrot.slane %v1079, 7
        %v1122 = vrot.slane %v1082, 7
        %v1123 = vrot.slane %v1084, 7
        %v1124 = vrot.slane %v1087, 7
        %v1125 = vrot.slane %v1089, 7
        %v1126 = vrot.slane %v1092, 7
        %v1127 = vrot.slane %v1094, 7
        %v1128 = vrot.slane %v1097, 7
        %v1129 = vrot.slane %v1099, 7
        %v1130 = vrot.slane %v1102, 7
        %v1131 = vrot.slane %v1104, 7
        %vm1132 = vcmp.lt.s32.totalorder %v721, 1
        %v1133 = vsel %vm1132, %v1130, %v1131
        %v1134 = vsel %vm1132, %v1129, %v1130
        %v1135 = vsel %vm1132, %v1128, %v1129
        %v1136 = vsel %vm1132, %v1127, %v1128
        %v1137 = vsel %vm1132, %v1126, %v1127
        %v1138 = vsel %vm1132, %v1125, %v1126
        %v1139 = vsel %vm1132, %v1124, %v1125
        %v1140 = vsel %vm1132, %v1123, %v1124
        %v1141 = vsel %vm1132, %v1122, %v1123
        %v1142 = vsel %vm1132, %v1121, %v1122
        %v1143 = vsel %vm1132, %v1120, %v1121
        %v1144 = vsel %vm1132, %v1119, %v1120
        %v1145 = vsel %vm1132, %v1118, %v1119
        %v1146 = vsel %vm1132, %v1117, %v1118
        %v1147 = vsel %vm1132, %v1116, %v1117
        %v1148 = vsel %vm1132, %v1115, %v1116
        %v1149 = vsel %vm1132, %v1114, %v1115
        %v1150 = vsel %vm1132, %v1113, %v1114
        %v1151 = vsel %vm1132, %v1112, %v1113
        %v1152 = vsel %vm1132, %v1111, %v1112
        %v1153 = vsel %vm1132, %v1110, %v1111
        %v1154 = vsel %vm1132, %v1109, %v1110
        %v1155 = vsel %vm1132, %v1108, %v1109
        %v1156 = vsel %vm1132, %v1107, %v1108
        %v1157 = vsel %vm1132, %v1106, %v1107
        %v1158 = vsel %vm1132, %v1131, %v1106
        %v1159 = vadd.f32 %v941, %v1133
        %v1160 = vadd.f32 %v942, %v1158
        %v1161 = vadd.f32 %v943, %v1157
        %v1162 = vadd.f32 %v944, %v1156
        %v1163 = vadd.f32 %v945, %v1155
        %v1164 = vadd.f32 %v946, %v1154
        %v1165 = vadd.f32 %v947, %v1153
        %v1166 = vadd.f32 %v948, %v1152
        %v1167 = vadd.f32 %v949, %v1151
        %v1168 = vadd.f32 %v950, %v1150
        %v1169 = vadd.f32 %v951, %v1149
        %v1170 = vadd.f32 %v952, %v1148
        %v1171 = vadd.f32 %v953, %v1147
        %v1172 = vadd.f32 %v954, %v1146
        %v1173 = vadd.f32 %v955, %v1145
        %v1174 = vadd.f32 %v956, %v1144
        %v1175 = vadd.f32 %v957, %v1143
        %v1176 = vadd.f32 %v958, %v1142
        %v1177 = vadd.f32 %v959, %v1141
        %v1178 = vadd.f32 %v960, %v1140
        %v1179 = vadd.f32 %v961, %v1139
        %v1180 = vadd.f32 %v962, %v1138
        %v1181 = vadd.f32 %v963, %v1137
        %v1182 = vadd.f32 %v964, %v1136
        %v1183 = vadd.f32 %v965, %v1135
        %v1184 = vadd.f32 %v966, %v1134
        %s1185 = scalar_lea.vmem %s444, 192
        %v1186 = vld [vmem:[%s1185] sm:$0xf]
        %v1187 = vld [vmem:[%s1185 + $0x4] sm:$0xf]
        %v1188 = vld [vmem:[%s1185 + $0x8] sm:$0xf]
        %v1189 = vld [vmem:[%s1185 + $0xc] sm:$0xf]
        %v1190 = vld [vmem:[%s1185 + $0x10] sm:$0xf]
        %v1191 = vld [vmem:[%s1185 + $0x14] sm:$0xf]
        %v1192 = vld [vmem:[%s1185 + $0x18] sm:$0xf]
        %v1193 = vld [vmem:[%s1185 + $0x1c] sm:$0xf]
        %v1194 = vld [vmem:[%s1185 + $0x20] sm:$0xf]
        %v1195 = vld [vmem:[%s1185 + $0x24] sm:$0xf]
        %v1196 = vld [vmem:[%s1185 + $0x28] sm:$0xf]
        %v1197 = vld [vmem:[%s1185 + $0x2c] sm:$0xf]
        %v1198 = vld [vmem:[%s1185 + $0x30] sm:$0xf]
        %v1199 = vld [vmem:[%s1185 + $0x34] sm:$0xf]
        %v1200 = vld [vmem:[%s1185 + $0x38] sm:$0xf]
        %v1201 = vld [vmem:[%s1185 + $0x3c] sm:$0xf]
        %v1218 = vunpack.c.l.b16 %v1186
        %v1219 = vunpack.c.l.b16 %v1187
        %v1220 = vunpack.c.l.b16 %v1188
        %v1221 = vunpack.c.l.b16 %v1189
        %v1222 = vunpack.c.l.b16 %v1190
        %v1223 = vunpack.c.l.b16 %v1191
        %v1224 = vunpack.c.l.b16 %v1192
        %v1225 = vunpack.c.l.b16 %v1193
        %v1226 = vunpack.c.l.b16 %v1194
        %v1227 = vunpack.c.l.b16 %v1195
        %v1228 = vunpack.c.l.b16 %v1196
        %v1229 = vunpack.c.l.b16 %v1197
        %v1230 = vunpack.c.l.b16 %v1198
        %v1231 = vunpack.c.l.b16 %v1199
        %v1232 = vunpack.c.l.b16 %v1200
        %v1233 = vunpack.c.l.b16 %v1201
        %v1234 = vpack.c.b16 %v1219, %v1218
        %v1235 = vpack.c.b16 %v1221, %v1220
        %v1236 = vpack.c.b16 %v1223, %v1222
        %v1237 = vpack.c.b16 %v1225, %v1224
        %v1238 = vpack.c.b16 %v1227, %v1226
        %v1239 = vpack.c.b16 %v1229, %v1228
        %v1240 = vpack.c.b16 %v1231, %v1230
        %v1241 = vpack.c.b16 %v1233, %v1232
        %1250 = vmatpush.bf16.msra.mxu0 %v1241
        %1251 = vmatpush.bf16.msra.mxu0 %v1240
        %1252 = vmatpush.bf16.msra.mxu0 %v1239
        %1253 = vmatpush.bf16.msra.mxu0 %v1238
        %1254 = vmatpush.bf16.msra.mxu0 %v1237
        %1255 = vmatpush.bf16.msra.mxu0 %v1236
        %1256 = vmatpush.bf16.msra.mxu0 %v1235
        %1257 = vmatpush.bf16.msra.mxu0 %v1234
        %1258 = vmatmul.bf16.gmra.mxu0 %v546
        %v1259 = vpop.f32.mrf.mxu0
        %v1260 = vadd.f32 0.0, %v1259
        %v1261 = vpop.f32.mrf.mxu0
        %v1262 = vadd.f32 0.0, %v1261
        %1263 = vmatmul.bf16.gmra.mxu0 %v547
        %v1264 = vpop.f32.mrf.mxu0
        %v1265 = vadd.f32 0.0, %v1264
        %v1266 = vpop.f32.mrf.mxu0
        %v1267 = vadd.f32 0.0, %v1266
        %1268 = vmatmul.bf16.gmra.mxu0 %v548
        %v1269 = vpop.f32.mrf.mxu0
        %v1270 = vadd.f32 0.0, %v1269
        %v1271 = vpop.f32.mrf.mxu0
        %v1272 = vadd.f32 0.0, %v1271
        %1273 = vmatmul.bf16.gmra.mxu0 %v549
        %v1274 = vpop.f32.mrf.mxu0
        %v1275 = vadd.f32 0.0, %v1274
        %v1276 = vpop.f32.mrf.mxu0
        %v1277 = vadd.f32 0.0, %v1276
        %1278 = vmatmul.bf16.gmra.mxu0 %v550
        %v1279 = vpop.f32.mrf.mxu0
        %v1280 = vadd.f32 0.0, %v1279
        %v1281 = vpop.f32.mrf.mxu0
        %v1282 = vadd.f32 0.0, %v1281
        %1283 = vmatmul.bf16.gmra.mxu0 %v551
        %v1284 = vpop.f32.mrf.mxu0
        %v1285 = vadd.f32 0.0, %v1284
        %v1286 = vpop.f32.mrf.mxu0
        %v1287 = vadd.f32 0.0, %v1286
        %1288 = vmatmul.bf16.gmra.mxu0 %v552
        %v1289 = vpop.f32.mrf.mxu0
        %v1290 = vadd.f32 0.0, %v1289
        %v1291 = vpop.f32.mrf.mxu0
        %v1292 = vadd.f32 0.0, %v1291
        %1293 = vmatmul.bf16.gmra.mxu0 %v553
        %v1294 = vpop.f32.mrf.mxu0
        %v1295 = vadd.f32 0.0, %v1294
        %v1296 = vpop.f32.mrf.mxu0
        %v1297 = vadd.f32 0.0, %v1296
        %1298 = vmatmul.bf16.gmra.mxu0 %v554
        %v1299 = vpop.f32.mrf.mxu0
        %v1300 = vadd.f32 0.0, %v1299
        %v1301 = vpop.f32.mrf.mxu0
        %v1302 = vadd.f32 0.0, %v1301
        %1303 = vmatmul.bf16.gmra.mxu0 %v555
        %v1304 = vpop.f32.mrf.mxu0
        %v1305 = vadd.f32 0.0, %v1304
        %v1306 = vpop.f32.mrf.mxu0
        %v1307 = vadd.f32 0.0, %v1306
        %1308 = vmatmul.bf16.gmra.mxu0 %v556
        %v1309 = vpop.f32.mrf.mxu0
        %v1310 = vadd.f32 0.0, %v1309
        %v1311 = vpop.f32.mrf.mxu0
        %v1312 = vadd.f32 0.0, %v1311
        %1313 = vmatmul.bf16.gmra.mxu0 %v557
        %v1314 = vpop.f32.mrf.mxu0
        %v1315 = vadd.f32 0.0, %v1314
        %v1316 = vpop.f32.mrf.mxu0
        %v1317 = vadd.f32 0.0, %v1316
        %1318 = vmatmul.bf16.gmra.mxu0 %v558
        %v1319 = vpop.f32.mrf.mxu0
        %v1320 = vadd.f32 0.0, %v1319
        %v1321 = vpop.f32.mrf.mxu0
        %v1322 = vadd.f32 0.0, %v1321
        %1323 = vdwg.mxu0
        %v1324 = vrot.slane %v1260, 7
        %v1325 = vrot.slane %v1262, 7
        %v1326 = vrot.slane %v1265, 7
        %v1327 = vrot.slane %v1267, 7
        %v1328 = vrot.slane %v1270, 7
        %v1329 = vrot.slane %v1272, 7
        %v1330 = vrot.slane %v1275, 7
        %v1331 = vrot.slane %v1277, 7
        %v1332 = vrot.slane %v1280, 7
        %v1333 = vrot.slane %v1282, 7
        %v1334 = vrot.slane %v1285, 7
        %v1335 = vrot.slane %v1287, 7
        %v1336 = vrot.slane %v1290, 7
        %v1337 = vrot.slane %v1292, 7
        %v1338 = vrot.slane %v1295, 7
        %v1339 = vrot.slane %v1297, 7
        %v1340 = vrot.slane %v1300, 7
        %v1341 = vrot.slane %v1302, 7
        %v1342 = vrot.slane %v1305, 7
        %v1343 = vrot.slane %v1307, 7
        %v1344 = vrot.slane %v1310, 7
        %v1345 = vrot.slane %v1312, 7
        %v1346 = vrot.slane %v1315, 7
        %v1347 = vrot.slane %v1317, 7
        %v1348 = vrot.slane %v1320, 7
        %v1349 = vrot.slane %v1322, 7
        %v1350 = vsel %vm1132, %v1348, %v1349
        %v1351 = vsel %vm1132, %v1347, %v1348
        %v1352 = vsel %vm1132, %v1346, %v1347
        %v1353 = vsel %vm1132, %v1345, %v1346
        %v1354 = vsel %vm1132, %v1344, %v1345
        %v1355 = vsel %vm1132, %v1343, %v1344
        %v1356 = vsel %vm1132, %v1342, %v1343
        %v1357 = vsel %vm1132, %v1341, %v1342
        %v1358 = vsel %vm1132, %v1340, %v1341
        %v1359 = vsel %vm1132, %v1339, %v1340
        %v1360 = vsel %vm1132, %v1338, %v1339
        %v1361 = vsel %vm1132, %v1337, %v1338
        %v1362 = vsel %vm1132, %v1336, %v1337
        %v1363 = vsel %vm1132, %v1335, %v1336
        %v1364 = vsel %vm1132, %v1334, %v1335
        %v1365 = vsel %vm1132, %v1333, %v1334
        %v1366 = vsel %vm1132, %v1332, %v1333
        %v1367 = vsel %vm1132, %v1331, %v1332
        %v1368 = vsel %vm1132, %v1330, %v1331
        %v1369 = vsel %vm1132, %v1329, %v1330
        %v1370 = vsel %vm1132, %v1328, %v1329
        %v1371 = vsel %vm1132, %v1327, %v1328
        %v1372 = vsel %vm1132, %v1326, %v1327
        %v1373 = vsel %vm1132, %v1325, %v1326
        %v1374 = vsel %vm1132, %v1324, %v1325
        %v1375 = vsel %vm1132, %v1349, %v1324
        %v1376 = vadd.f32 %v1159, %v1375
        %v1377 = vadd.f32 %v1160, %v1374
        %v1378 = vadd.f32 %v1161, %v1373
        %v1379 = vadd.f32 %v1162, %v1372
        %v1380 = vadd.f32 %v1163, %v1371
        %v1381 = vadd.f32 %v1164, %v1370
        %v1382 = vadd.f32 %v1165, %v1369
        %v1383 = vadd.f32 %v1166, %v1368
        %v1384 = vadd.f32 %v1167, %v1367
        %v1385 = vadd.f32 %v1168, %v1366
        %v1386 = vadd.f32 %v1169, %v1365
        %v1387 = vadd.f32 %v1170, %v1364
        %v1388 = vadd.f32 %v1171, %v1363
        %v1389 = vadd.f32 %v1172, %v1362
        %v1390 = vadd.f32 %v1173, %v1361
        %v1391 = vadd.f32 %v1174, %v1360
        %v1392 = vadd.f32 %v1175, %v1359
        %v1393 = vadd.f32 %v1176, %v1358
        %v1394 = vadd.f32 %v1177, %v1357
        %v1395 = vadd.f32 %v1178, %v1356
        %v1396 = vadd.f32 %v1179, %v1355
        %v1397 = vadd.f32 %v1180, %v1354
        %v1398 = vadd.f32 %v1181, %v1353
        %v1399 = vadd.f32 %v1182, %v1352
        %v1400 = vadd.f32 %v1183, %v1351
        %v1401 = vadd.f32 %v1184, %v1350
        %s1402 = scalar_lea.vmem %s444, 256
        %v1403 = vld [vmem:[%s1402] sm:$0xf]
        %v1404 = vld [vmem:[%s1402 + $0x4] sm:$0xf]
        %v1405 = vld [vmem:[%s1402 + $0x8] sm:$0xf]
        %v1406 = vld [vmem:[%s1402 + $0xc] sm:$0xf]
        %v1407 = vld [vmem:[%s1402 + $0x10] sm:$0xf]
        %v1408 = vld [vmem:[%s1402 + $0x14] sm:$0xf]
        %v1409 = vld [vmem:[%s1402 + $0x18] sm:$0xf]
        %v1410 = vld [vmem:[%s1402 + $0x1c] sm:$0xf]
        %v1411 = vld [vmem:[%s1402 + $0x20] sm:$0xf]
        %v1412 = vld [vmem:[%s1402 + $0x24] sm:$0xf]
        %v1413 = vld [vmem:[%s1402 + $0x28] sm:$0xf]
        %v1414 = vld [vmem:[%s1402 + $0x2c] sm:$0xf]
        %v1415 = vld [vmem:[%s1402 + $0x30] sm:$0xf]
        %v1416 = vld [vmem:[%s1402 + $0x34] sm:$0xf]
        %v1417 = vld [vmem:[%s1402 + $0x38] sm:$0xf]
        %v1418 = vld [vmem:[%s1402 + $0x3c] sm:$0xf]
        %v1435 = vunpack.c.l.b16 %v1403
        %v1436 = vunpack.c.l.b16 %v1404
        %v1437 = vunpack.c.l.b16 %v1405
        %v1438 = vunpack.c.l.b16 %v1406
        %v1439 = vunpack.c.l.b16 %v1407
        %v1440 = vunpack.c.l.b16 %v1408
        %v1441 = vunpack.c.l.b16 %v1409
        %v1442 = vunpack.c.l.b16 %v1410
        %v1443 = vunpack.c.l.b16 %v1411
        %v1444 = vunpack.c.l.b16 %v1412
        %v1445 = vunpack.c.l.b16 %v1413
        %v1446 = vunpack.c.l.b16 %v1414
        %v1447 = vunpack.c.l.b16 %v1415
        %v1448 = vunpack.c.l.b16 %v1416
        %v1449 = vunpack.c.l.b16 %v1417
        %v1450 = vunpack.c.l.b16 %v1418
        %v1451 = vpack.c.b16 %v1436, %v1435
        %v1452 = vpack.c.b16 %v1438, %v1437
        %v1453 = vpack.c.b16 %v1440, %v1439
        %v1454 = vpack.c.b16 %v1442, %v1441
        %v1455 = vpack.c.b16 %v1444, %v1443
        %v1456 = vpack.c.b16 %v1446, %v1445
        %v1457 = vpack.c.b16 %v1448, %v1447
        %v1458 = vpack.c.b16 %v1450, %v1449
        %1467 = vmatpush.bf16.msra.mxu0 %v1458
        %1468 = vmatpush.bf16.msra.mxu0 %v1457
        %1469 = vmatpush.bf16.msra.mxu0 %v1456
        %1470 = vmatpush.bf16.msra.mxu0 %v1455
        %1471 = vmatpush.bf16.msra.mxu0 %v1454
        %1472 = vmatpush.bf16.msra.mxu0 %v1453
        %1473 = vmatpush.bf16.msra.mxu0 %v1452
        %1474 = vmatpush.bf16.msra.mxu0 %v1451
        %1475 = vmatmul.bf16.gmra.mxu0 %v546
        %v1476 = vpop.f32.mrf.mxu0
        %v1477 = vadd.f32 0.0, %v1476
        %v1478 = vpop.f32.mrf.mxu0
        %v1479 = vadd.f32 0.0, %v1478
        %1480 = vmatmul.bf16.gmra.mxu0 %v547
        %v1481 = vpop.f32.mrf.mxu0
        %v1482 = vadd.f32 0.0, %v1481
        %v1483 = vpop.f32.mrf.mxu0
        %v1484 = vadd.f32 0.0, %v1483
        %1485 = vmatmul.bf16.gmra.mxu0 %v548
        %v1486 = vpop.f32.mrf.mxu0
        %v1487 = vadd.f32 0.0, %v1486
        %v1488 = vpop.f32.mrf.mxu0
        %v1489 = vadd.f32 0.0, %v1488
        %1490 = vmatmul.bf16.gmra.mxu0 %v549
        %v1491 = vpop.f32.mrf.mxu0
        %v1492 = vadd.f32 0.0, %v1491
        %v1493 = vpop.f32.mrf.mxu0
        %v1494 = vadd.f32 0.0, %v1493
        %1495 = vmatmul.bf16.gmra.mxu0 %v550
        %v1496 = vpop.f32.mrf.mxu0
        %v1497 = vadd.f32 0.0, %v1496
        %v1498 = vpop.f32.mrf.mxu0
        %v1499 = vadd.f32 0.0, %v1498
        %1500 = vmatmul.bf16.gmra.mxu0 %v551
        %v1501 = vpop.f32.mrf.mxu0
        %v1502 = vadd.f32 0.0, %v1501
        %v1503 = vpop.f32.mrf.mxu0
        %v1504 = vadd.f32 0.0, %v1503
        %1505 = vmatmul.bf16.gmra.mxu0 %v552
        %v1506 = vpop.f32.mrf.mxu0
        %v1507 = vadd.f32 0.0, %v1506
        %v1508 = vpop.f32.mrf.mxu0
        %v1509 = vadd.f32 0.0, %v1508
        %1510 = vmatmul.bf16.gmra.mxu0 %v553
        %v1511 = vpop.f32.mrf.mxu0
        %v1512 = vadd.f32 0.0, %v1511
        %v1513 = vpop.f32.mrf.mxu0
        %v1514 = vadd.f32 0.0, %v1513
        %1515 = vmatmul.bf16.gmra.mxu0 %v554
        %v1516 = vpop.f32.mrf.mxu0
        %v1517 = vadd.f32 0.0, %v1516
        %v1518 = vpop.f32.mrf.mxu0
        %v1519 = vadd.f32 0.0, %v1518
        %1520 = vmatmul.bf16.gmra.mxu0 %v555
        %v1521 = vpop.f32.mrf.mxu0
        %v1522 = vadd.f32 0.0, %v1521
        %v1523 = vpop.f32.mrf.mxu0
        %v1524 = vadd.f32 0.0, %v1523
        %1525 = vmatmul.bf16.gmra.mxu0 %v556
        %v1526 = vpop.f32.mrf.mxu0
        %v1527 = vadd.f32 0.0, %v1526
        %v1528 = vpop.f32.mrf.mxu0
        %v1529 = vadd.f32 0.0, %v1528
        %1530 = vmatmul.bf16.gmra.mxu0 %v557
        %v1531 = vpop.f32.mrf.mxu0
        %v1532 = vadd.f32 0.0, %v1531
        %v1533 = vpop.f32.mrf.mxu0
        %v1534 = vadd.f32 0.0, %v1533
        %1535 = vmatmul.bf16.gmra.mxu0 %v558
        %v1536 = vpop.f32.mrf.mxu0
        %v1537 = vadd.f32 0.0, %v1536
        %v1538 = vpop.f32.mrf.mxu0
        %v1539 = vadd.f32 0.0, %v1538
        %1540 = vdwg.mxu0
        %v1541 = vadd.f32 %v1376, %v1477
        %v1542 = vadd.f32 %v1377, %v1479
        %v1543 = vadd.f32 %v1378, %v1482
        %v1544 = vadd.f32 %v1379, %v1484
        %v1545 = vadd.f32 %v1380, %v1487
        %v1546 = vadd.f32 %v1381, %v1489
        %v1547 = vadd.f32 %v1382, %v1492
        %v1548 = vadd.f32 %v1383, %v1494
        %v1549 = vadd.f32 %v1384, %v1497
        %v1550 = vadd.f32 %v1385, %v1499
        %v1551 = vadd.f32 %v1386, %v1502
        %v1552 = vadd.f32 %v1387, %v1504
        %v1553 = vadd.f32 %v1388, %v1507
        %v1554 = vadd.f32 %v1389, %v1509
        %v1555 = vadd.f32 %v1390, %v1512
        %v1556 = vadd.f32 %v1391, %v1514
        %v1557 = vadd.f32 %v1392, %v1517
        %v1558 = vadd.f32 %v1393, %v1519
        %v1559 = vadd.f32 %v1394, %v1522
        %v1560 = vadd.f32 %v1395, %v1524
        %v1561 = vadd.f32 %v1396, %v1527
        %v1562 = vadd.f32 %v1397, %v1529
        %v1563 = vadd.f32 %v1398, %v1532
        %v1564 = vadd.f32 %v1399, %v1534
        %v1565 = vadd.f32 %v1400, %v1537
        %v1566 = vadd.f32 %v1401, %v1539
        %s1567 = scalar_lea.vmem %s444, 320
        %v1568 = vld [vmem:[%s1567] sm:$0xf]
        %v1569 = vld [vmem:[%s1567 + $0x4] sm:$0xf]
        %v1570 = vld [vmem:[%s1567 + $0x8] sm:$0xf]
        %v1571 = vld [vmem:[%s1567 + $0xc] sm:$0xf]
        %v1572 = vld [vmem:[%s1567 + $0x10] sm:$0xf]
        %v1573 = vld [vmem:[%s1567 + $0x14] sm:$0xf]
        %v1574 = vld [vmem:[%s1567 + $0x18] sm:$0xf]
        %v1575 = vld [vmem:[%s1567 + $0x1c] sm:$0xf]
        %v1576 = vld [vmem:[%s1567 + $0x20] sm:$0xf]
        %v1577 = vld [vmem:[%s1567 + $0x24] sm:$0xf]
        %v1578 = vld [vmem:[%s1567 + $0x28] sm:$0xf]
        %v1579 = vld [vmem:[%s1567 + $0x2c] sm:$0xf]
        %v1580 = vld [vmem:[%s1567 + $0x30] sm:$0xf]
        %v1581 = vld [vmem:[%s1567 + $0x34] sm:$0xf]
        %v1582 = vld [vmem:[%s1567 + $0x38] sm:$0xf]
        %v1583 = vld [vmem:[%s1567 + $0x3c] sm:$0xf]
        %v1600 = vunpack.c.l.b16 %v1568
        %v1601 = vunpack.c.l.b16 %v1569
        %v1602 = vunpack.c.l.b16 %v1570
        %v1603 = vunpack.c.l.b16 %v1571
        %v1604 = vunpack.c.l.b16 %v1572
        %v1605 = vunpack.c.l.b16 %v1573
        %v1606 = vunpack.c.l.b16 %v1574
        %v1607 = vunpack.c.l.b16 %v1575
        %v1608 = vunpack.c.l.b16 %v1576
        %v1609 = vunpack.c.l.b16 %v1577
        %v1610 = vunpack.c.l.b16 %v1578
        %v1611 = vunpack.c.l.b16 %v1579
        %v1612 = vunpack.c.l.b16 %v1580
        %v1613 = vunpack.c.l.b16 %v1581
        %v1614 = vunpack.c.l.b16 %v1582
        %v1615 = vunpack.c.l.b16 %v1583
        %v1616 = vpack.c.b16 %v1601, %v1600
        %v1617 = vpack.c.b16 %v1603, %v1602
        %v1618 = vpack.c.b16 %v1605, %v1604
        %v1619 = vpack.c.b16 %v1607, %v1606
        %v1620 = vpack.c.b16 %v1609, %v1608
        %v1621 = vpack.c.b16 %v1611, %v1610
        %v1622 = vpack.c.b16 %v1613, %v1612
        %v1623 = vpack.c.b16 %v1615, %v1614
        %1632 = vmatpush.bf16.msra.mxu0 %v1623
        %1633 = vmatpush.bf16.msra.mxu0 %v1622
        %1634 = vmatpush.bf16.msra.mxu0 %v1621
        %1635 = vmatpush.bf16.msra.mxu0 %v1620
        %1636 = vmatpush.bf16.msra.mxu0 %v1619
        %1637 = vmatpush.bf16.msra.mxu0 %v1618
        %1638 = vmatpush.bf16.msra.mxu0 %v1617
        %1639 = vmatpush.bf16.msra.mxu0 %v1616
        %1640 = vmatmul.bf16.gmra.mxu0 %v546
        %v1641 = vpop.f32.mrf.mxu0
        %v1642 = vadd.f32 0.0, %v1641
        %v1643 = vpop.f32.mrf.mxu0
        %v1644 = vadd.f32 0.0, %v1643
        %1645 = vmatmul.bf16.gmra.mxu0 %v547
        %v1646 = vpop.f32.mrf.mxu0
        %v1647 = vadd.f32 0.0, %v1646
        %v1648 = vpop.f32.mrf.mxu0
        %v1649 = vadd.f32 0.0, %v1648
        %1650 = vmatmul.bf16.gmra.mxu0 %v548
        %v1651 = vpop.f32.mrf.mxu0
        %v1652 = vadd.f32 0.0, %v1651
        %v1653 = vpop.f32.mrf.mxu0
        %v1654 = vadd.f32 0.0, %v1653
        %1655 = vmatmul.bf16.gmra.mxu0 %v549
        %v1656 = vpop.f32.mrf.mxu0
        %v1657 = vadd.f32 0.0, %v1656
        %v1658 = vpop.f32.mrf.mxu0
        %v1659 = vadd.f32 0.0, %v1658
        %1660 = vmatmul.bf16.gmra.mxu0 %v550
        %v1661 = vpop.f32.mrf.mxu0
        %v1662 = vadd.f32 0.0, %v1661
        %v1663 = vpop.f32.mrf.mxu0
        %v1664 = vadd.f32 0.0, %v1663
        %1665 = vmatmul.bf16.gmra.mxu0 %v551
        %v1666 = vpop.f32.mrf.mxu0
        %v1667 = vadd.f32 0.0, %v1666
        %v1668 = vpop.f32.mrf.mxu0
        %v1669 = vadd.f32 0.0, %v1668
        %1670 = vmatmul.bf16.gmra.mxu0 %v552
        %v1671 = vpop.f32.mrf.mxu0
        %v1672 = vadd.f32 0.0, %v1671
        %v1673 = vpop.f32.mrf.mxu0
        %v1674 = vadd.f32 0.0, %v1673
        %1675 = vmatmul.bf16.gmra.mxu0 %v553
        %v1676 = vpop.f32.mrf.mxu0
        %v1677 = vadd.f32 0.0, %v1676
        %v1678 = vpop.f32.mrf.mxu0
        %v1679 = vadd.f32 0.0, %v1678
        %1680 = vmatmul.bf16.gmra.mxu0 %v554
        %v1681 = vpop.f32.mrf.mxu0
        %v1682 = vadd.f32 0.0, %v1681
        %v1683 = vpop.f32.mrf.mxu0
        %v1684 = vadd.f32 0.0, %v1683
        %1685 = vmatmul.bf16.gmra.mxu0 %v555
        %v1686 = vpop.f32.mrf.mxu0
        %v1687 = vadd.f32 0.0, %v1686
        %v1688 = vpop.f32.mrf.mxu0
        %v1689 = vadd.f32 0.0, %v1688
        %1690 = vmatmul.bf16.gmra.mxu0 %v556
        %v1691 = vpop.f32.mrf.mxu0
        %v1692 = vadd.f32 0.0, %v1691
        %v1693 = vpop.f32.mrf.mxu0
        %v1694 = vadd.f32 0.0, %v1693
        %1695 = vmatmul.bf16.gmra.mxu0 %v557
        %v1696 = vpop.f32.mrf.mxu0
        %v1697 = vadd.f32 0.0, %v1696
        %v1698 = vpop.f32.mrf.mxu0
        %v1699 = vadd.f32 0.0, %v1698
        %1700 = vmatmul.bf16.gmra.mxu0 %v558
        %v1701 = vpop.f32.mrf.mxu0
        %v1702 = vadd.f32 0.0, %v1701
        %v1703 = vpop.f32.mrf.mxu0
        %v1704 = vadd.f32 0.0, %v1703
        %1705 = vdwg.mxu0
        %v1706 = vrot.slane %v1642, 1
        %v1707 = vrot.slane %v1644, 1
        %v1708 = vrot.slane %v1647, 1
        %v1709 = vrot.slane %v1649, 1
        %v1710 = vrot.slane %v1652, 1
        %v1711 = vrot.slane %v1654, 1
        %v1712 = vrot.slane %v1657, 1
        %v1713 = vrot.slane %v1659, 1
        %v1714 = vrot.slane %v1662, 1
        %v1715 = vrot.slane %v1664, 1
        %v1716 = vrot.slane %v1667, 1
        %v1717 = vrot.slane %v1669, 1
        %v1718 = vrot.slane %v1672, 1
        %v1719 = vrot.slane %v1674, 1
        %v1720 = vrot.slane %v1677, 1
        %v1721 = vrot.slane %v1679, 1
        %v1722 = vrot.slane %v1682, 1
        %v1723 = vrot.slane %v1684, 1
        %v1724 = vrot.slane %v1687, 1
        %v1725 = vrot.slane %v1689, 1
        %v1726 = vrot.slane %v1692, 1
        %v1727 = vrot.slane %v1694, 1
        %v1728 = vrot.slane %v1697, 1
        %v1729 = vrot.slane %v1699, 1
        %v1730 = vrot.slane %v1702, 1
        %v1731 = vrot.slane %v1704, 1
        %vm1732 = vcmp.lt.s32.totalorder %v721, 7
        %v1733 = vsel %vm1732, %v1730, %v1731
        %v1734 = vsel %vm1732, %v1729, %v1730
        %v1735 = vsel %vm1732, %v1728, %v1729
        %v1736 = vsel %vm1732, %v1727, %v1728
        %v1737 = vsel %vm1732, %v1726, %v1727
        %v1738 = vsel %vm1732, %v1725, %v1726
        %v1739 = vsel %vm1732, %v1724, %v1725
        %v1740 = vsel %vm1732, %v1723, %v1724
        %v1741 = vsel %vm1732, %v1722, %v1723
        %v1742 = vsel %vm1732, %v1721, %v1722
        %v1743 = vsel %vm1732, %v1720, %v1721
        %v1744 = vsel %vm1732, %v1719, %v1720
        %v1745 = vsel %vm1732, %v1718, %v1719
        %v1746 = vsel %vm1732, %v1717, %v1718
        %v1747 = vsel %vm1732, %v1716, %v1717
        %v1748 = vsel %vm1732, %v1715, %v1716
        %v1749 = vsel %vm1732, %v1714, %v1715
        %v1750 = vsel %vm1732, %v1713, %v1714
        %v1751 = vsel %vm1732, %v1712, %v1713
        %v1752 = vsel %vm1732, %v1711, %v1712
        %v1753 = vsel %vm1732, %v1710, %v1711
        %v1754 = vsel %vm1732, %v1709, %v1710
        %v1755 = vsel %vm1732, %v1708, %v1709
        %v1756 = vsel %vm1732, %v1707, %v1708
        %v1757 = vsel %vm1732, %v1706, %v1707
        %v1758 = vsel %vm1732, %v1731, %v1706
        %v1759 = vadd.f32 %v1541, %v1757
        %v1760 = vadd.f32 %v1542, %v1756
        %v1761 = vadd.f32 %v1543, %v1755
        %v1762 = vadd.f32 %v1544, %v1754
        %v1763 = vadd.f32 %v1545, %v1753
        %v1764 = vadd.f32 %v1546, %v1752
        %v1765 = vadd.f32 %v1547, %v1751
        %v1766 = vadd.f32 %v1548, %v1750
        %v1767 = vadd.f32 %v1549, %v1749
        %v1768 = vadd.f32 %v1550, %v1748
        %v1769 = vadd.f32 %v1551, %v1747
        %v1770 = vadd.f32 %v1552, %v1746
        %v1771 = vadd.f32 %v1553, %v1745
        %v1772 = vadd.f32 %v1554, %v1744
        %v1773 = vadd.f32 %v1555, %v1743
        %v1774 = vadd.f32 %v1556, %v1742
        %v1775 = vadd.f32 %v1557, %v1741
        %v1776 = vadd.f32 %v1558, %v1740
        %v1777 = vadd.f32 %v1559, %v1739
        %v1778 = vadd.f32 %v1560, %v1738
        %v1779 = vadd.f32 %v1561, %v1737
        %v1780 = vadd.f32 %v1562, %v1736
        %v1781 = vadd.f32 %v1563, %v1735
        %v1782 = vadd.f32 %v1564, %v1734
        %v1783 = vadd.f32 %v1565, %v1733
        %v1784 = vadd.f32 %v1566, %v1758
        %s1785 = scalar_lea.vmem %s444, 384
        %v1786 = vld [vmem:[%s1785] sm:$0xf]
        %v1787 = vld [vmem:[%s1785 + $0x4] sm:$0xf]
        %v1788 = vld [vmem:[%s1785 + $0x8] sm:$0xf]
        %v1789 = vld [vmem:[%s1785 + $0xc] sm:$0xf]
        %v1790 = vld [vmem:[%s1785 + $0x10] sm:$0xf]
        %v1791 = vld [vmem:[%s1785 + $0x14] sm:$0xf]
        %v1792 = vld [vmem:[%s1785 + $0x18] sm:$0xf]
        %v1793 = vld [vmem:[%s1785 + $0x1c] sm:$0xf]
        %v1794 = vld [vmem:[%s1785 + $0x20] sm:$0xf]
        %v1795 = vld [vmem:[%s1785 + $0x24] sm:$0xf]
        %v1796 = vld [vmem:[%s1785 + $0x28] sm:$0xf]
        %v1797 = vld [vmem:[%s1785 + $0x2c] sm:$0xf]
        %v1798 = vld [vmem:[%s1785 + $0x30] sm:$0xf]
        %v1799 = vld [vmem:[%s1785 + $0x34] sm:$0xf]
        %v1800 = vld [vmem:[%s1785 + $0x38] sm:$0xf]
        %v1801 = vld [vmem:[%s1785 + $0x3c] sm:$0xf]
        %v1818 = vunpack.c.l.b16 %v1786
        %v1819 = vunpack.c.l.b16 %v1787
        %v1820 = vunpack.c.l.b16 %v1788
        %v1821 = vunpack.c.l.b16 %v1789
        %v1822 = vunpack.c.l.b16 %v1790
        %v1823 = vunpack.c.l.b16 %v1791
        %v1824 = vunpack.c.l.b16 %v1792
        %v1825 = vunpack.c.l.b16 %v1793
        %v1826 = vunpack.c.l.b16 %v1794
        %v1827 = vunpack.c.l.b16 %v1795
        %v1828 = vunpack.c.l.b16 %v1796
        %v1829 = vunpack.c.l.b16 %v1797
        %v1830 = vunpack.c.l.b16 %v1798
        %v1831 = vunpack.c.l.b16 %v1799
        %v1832 = vunpack.c.l.b16 %v1800
        %v1833 = vunpack.c.l.b16 %v1801
        %v1834 = vpack.c.b16 %v1819, %v1818
        %v1835 = vpack.c.b16 %v1821, %v1820
        %v1836 = vpack.c.b16 %v1823, %v1822
        %v1837 = vpack.c.b16 %v1825, %v1824
        %v1838 = vpack.c.b16 %v1827, %v1826
        %v1839 = vpack.c.b16 %v1829, %v1828
        %v1840 = vpack.c.b16 %v1831, %v1830
        %v1841 = vpack.c.b16 %v1833, %v1832
        %1850 = vmatpush.bf16.msra.mxu0 %v1841
        %1851 = vmatpush.bf16.msra.mxu0 %v1840
        %1852 = vmatpush.bf16.msra.mxu0 %v1839
        %1853 = vmatpush.bf16.msra.mxu0 %v1838
        %1854 = vmatpush.bf16.msra.mxu0 %v1837
        %1855 = vmatpush.bf16.msra.mxu0 %v1836
        %1856 = vmatpush.bf16.msra.mxu0 %v1835
        %1857 = vmatpush.bf16.msra.mxu0 %v1834
        %1858 = vmatmul.bf16.gmra.mxu0 %v546
        %v1859 = vpop.f32.mrf.mxu0
        %v1860 = vadd.f32 0.0, %v1859
        %v1861 = vpop.f32.mrf.mxu0
        %v1862 = vadd.f32 0.0, %v1861
        %1863 = vmatmul.bf16.gmra.mxu0 %v547
        %v1864 = vpop.f32.mrf.mxu0
        %v1865 = vadd.f32 0.0, %v1864
        %v1866 = vpop.f32.mrf.mxu0
        %v1867 = vadd.f32 0.0, %v1866
        %1868 = vmatmul.bf16.gmra.mxu0 %v548
        %v1869 = vpop.f32.mrf.mxu0
        %v1870 = vadd.f32 0.0, %v1869
        %v1871 = vpop.f32.mrf.mxu0
        %v1872 = vadd.f32 0.0, %v1871
        %1873 = vmatmul.bf16.gmra.mxu0 %v549
        %v1874 = vpop.f32.mrf.mxu0
        %v1875 = vadd.f32 0.0, %v1874
        %v1876 = vpop.f32.mrf.mxu0
        %v1877 = vadd.f32 0.0, %v1876
        %1878 = vmatmul.bf16.gmra.mxu0 %v550
        %v1879 = vpop.f32.mrf.mxu0
        %v1880 = vadd.f32 0.0, %v1879
        %v1881 = vpop.f32.mrf.mxu0
        %v1882 = vadd.f32 0.0, %v1881
        %1883 = vmatmul.bf16.gmra.mxu0 %v551
        %v1884 = vpop.f32.mrf.mxu0
        %v1885 = vadd.f32 0.0, %v1884
        %v1886 = vpop.f32.mrf.mxu0
        %v1887 = vadd.f32 0.0, %v1886
        %1888 = vmatmul.bf16.gmra.mxu0 %v552
        %v1889 = vpop.f32.mrf.mxu0
        %v1890 = vadd.f32 0.0, %v1889
        %v1891 = vpop.f32.mrf.mxu0
        %v1892 = vadd.f32 0.0, %v1891
        %1893 = vmatmul.bf16.gmra.mxu0 %v553
        %v1894 = vpop.f32.mrf.mxu0
        %v1895 = vadd.f32 0.0, %v1894
        %v1896 = vpop.f32.mrf.mxu0
        %v1897 = vadd.f32 0.0, %v1896
        %1898 = vmatmul.bf16.gmra.mxu0 %v554
        %v1899 = vpop.f32.mrf.mxu0
        %v1900 = vadd.f32 0.0, %v1899
        %v1901 = vpop.f32.mrf.mxu0
        %v1902 = vadd.f32 0.0, %v1901
        %1903 = vmatmul.bf16.gmra.mxu0 %v555
        %v1904 = vpop.f32.mrf.mxu0
        %v1905 = vadd.f32 0.0, %v1904
        %v1906 = vpop.f32.mrf.mxu0
        %v1907 = vadd.f32 0.0, %v1906
        %1908 = vmatmul.bf16.gmra.mxu0 %v556
        %v1909 = vpop.f32.mrf.mxu0
        %v1910 = vadd.f32 0.0, %v1909
        %v1911 = vpop.f32.mrf.mxu0
        %v1912 = vadd.f32 0.0, %v1911
        %1913 = vmatmul.bf16.gmra.mxu0 %v557
        %v1914 = vpop.f32.mrf.mxu0
        %v1915 = vadd.f32 0.0, %v1914
        %v1916 = vpop.f32.mrf.mxu0
        %v1917 = vadd.f32 0.0, %v1916
        %1918 = vmatmul.bf16.gmra.mxu0 %v558
        %v1919 = vpop.f32.mrf.mxu0
        %v1920 = vadd.f32 0.0, %v1919
        %v1921 = vpop.f32.mrf.mxu0
        %v1922 = vadd.f32 0.0, %v1921
        %1923 = vdwg.mxu0
        %v1924 = vrot.slane %v1860, 1
        %v1925 = vrot.slane %v1862, 1
        %v1926 = vrot.slane %v1865, 1
        %v1927 = vrot.slane %v1867, 1
        %v1928 = vrot.slane %v1870, 1
        %v1929 = vrot.slane %v1872, 1
        %v1930 = vrot.slane %v1875, 1
        %v1931 = vrot.slane %v1877, 1
        %v1932 = vrot.slane %v1880, 1
        %v1933 = vrot.slane %v1882, 1
        %v1934 = vrot.slane %v1885, 1
        %v1935 = vrot.slane %v1887, 1
        %v1936 = vrot.slane %v1890, 1
        %v1937 = vrot.slane %v1892, 1
        %v1938 = vrot.slane %v1895, 1
        %v1939 = vrot.slane %v1897, 1
        %v1940 = vrot.slane %v1900, 1
        %v1941 = vrot.slane %v1902, 1
        %v1942 = vrot.slane %v1905, 1
        %v1943 = vrot.slane %v1907, 1
        %v1944 = vrot.slane %v1910, 1
        %v1945 = vrot.slane %v1912, 1
        %v1946 = vrot.slane %v1915, 1
        %v1947 = vrot.slane %v1917, 1
        %v1948 = vrot.slane %v1920, 1
        %v1949 = vrot.slane %v1922, 1
        %v1950 = vsel %vm1732, %v1948, %v1949
        %v1951 = vsel %vm1732, %v1947, %v1948
        %v1952 = vsel %vm1732, %v1946, %v1947
        %v1953 = vsel %vm1732, %v1945, %v1946
        %v1954 = vsel %vm1732, %v1944, %v1945
        %v1955 = vsel %vm1732, %v1943, %v1944
        %v1956 = vsel %vm1732, %v1942, %v1943
        %v1957 = vsel %vm1732, %v1941, %v1942
        %v1958 = vsel %vm1732, %v1940, %v1941
        %v1959 = vsel %vm1732, %v1939, %v1940
        %v1960 = vsel %vm1732, %v1938, %v1939
        %v1961 = vsel %vm1732, %v1937, %v1938
        %v1962 = vsel %vm1732, %v1936, %v1937
        %v1963 = vsel %vm1732, %v1935, %v1936
        %v1964 = vsel %vm1732, %v1934, %v1935
        %v1965 = vsel %vm1732, %v1933, %v1934
        %v1966 = vsel %vm1732, %v1932, %v1933
        %v1967 = vsel %vm1732, %v1931, %v1932
        %v1968 = vsel %vm1732, %v1930, %v1931
        %v1969 = vsel %vm1732, %v1929, %v1930
        %v1970 = vsel %vm1732, %v1928, %v1929
        %v1971 = vsel %vm1732, %v1927, %v1928
        %v1972 = vsel %vm1732, %v1926, %v1927
        %v1973 = vsel %vm1732, %v1925, %v1926
        %v1974 = vsel %vm1732, %v1924, %v1925
        %v1975 = vsel %vm1732, %v1949, %v1924
        %v1976 = vadd.f32 %v1759, %v1973
        %v1977 = vadd.f32 %v1760, %v1972
        %v1978 = vadd.f32 %v1761, %v1971
        %v1979 = vadd.f32 %v1762, %v1970
        %v1980 = vadd.f32 %v1763, %v1969
        %v1981 = vadd.f32 %v1764, %v1968
        %v1982 = vadd.f32 %v1765, %v1967
        %v1983 = vadd.f32 %v1766, %v1966
        %v1984 = vadd.f32 %v1767, %v1965
        %v1985 = vadd.f32 %v1768, %v1964
        %v1986 = vadd.f32 %v1769, %v1963
        %v1987 = vadd.f32 %v1770, %v1962
        %v1988 = vadd.f32 %v1771, %v1961
        %v1989 = vadd.f32 %v1772, %v1960
        %v1990 = vadd.f32 %v1773, %v1959
        %v1991 = vadd.f32 %v1774, %v1958
        %v1992 = vadd.f32 %v1775, %v1957
        %v1993 = vadd.f32 %v1776, %v1956
        %v1994 = vadd.f32 %v1777, %v1955
        %v1995 = vadd.f32 %v1778, %v1954
        %v1996 = vadd.f32 %v1779, %v1953
        %v1997 = vadd.f32 %v1780, %v1952
        %v1998 = vadd.f32 %v1781, %v1951
        %v1999 = vadd.f32 %v1782, %v1950
        %v2000 = vadd.f32 %v1783, %v1975
        %v2001 = vadd.f32 %v1784, %v1974
        %s2002 = scalar_lea.vmem %s444, 448
        %v2003 = vld [vmem:[%s2002] sm:$0xf]
        %v2004 = vld [vmem:[%s2002 + $0x4] sm:$0xf]
        %v2005 = vld [vmem:[%s2002 + $0x8] sm:$0xf]
        %v2006 = vld [vmem:[%s2002 + $0xc] sm:$0xf]
        %v2007 = vld [vmem:[%s2002 + $0x10] sm:$0xf]
        %v2008 = vld [vmem:[%s2002 + $0x14] sm:$0xf]
        %v2009 = vld [vmem:[%s2002 + $0x18] sm:$0xf]
        %v2010 = vld [vmem:[%s2002 + $0x1c] sm:$0xf]
        %v2011 = vld [vmem:[%s2002 + $0x20] sm:$0xf]
        %v2012 = vld [vmem:[%s2002 + $0x24] sm:$0xf]
        %v2013 = vld [vmem:[%s2002 + $0x28] sm:$0xf]
        %v2014 = vld [vmem:[%s2002 + $0x2c] sm:$0xf]
        %v2015 = vld [vmem:[%s2002 + $0x30] sm:$0xf]
        %v2016 = vld [vmem:[%s2002 + $0x34] sm:$0xf]
        %v2017 = vld [vmem:[%s2002 + $0x38] sm:$0xf]
        %v2018 = vld [vmem:[%s2002 + $0x3c] sm:$0xf]
        %v2035 = vunpack.c.l.b16 %v2003
        %v2036 = vunpack.c.l.b16 %v2004
        %v2037 = vunpack.c.l.b16 %v2005
        %v2038 = vunpack.c.l.b16 %v2006
        %v2039 = vunpack.c.l.b16 %v2007
        %v2040 = vunpack.c.l.b16 %v2008
        %v2041 = vunpack.c.l.b16 %v2009
        %v2042 = vunpack.c.l.b16 %v2010
        %v2043 = vunpack.c.l.b16 %v2011
        %v2044 = vunpack.c.l.b16 %v2012
        %v2045 = vunpack.c.l.b16 %v2013
        %v2046 = vunpack.c.l.b16 %v2014
        %v2047 = vunpack.c.l.b16 %v2015
        %v2048 = vunpack.c.l.b16 %v2016
        %v2049 = vunpack.c.l.b16 %v2017
        %v2050 = vunpack.c.l.b16 %v2018
        %v2051 = vpack.c.b16 %v2036, %v2035
        %v2052 = vpack.c.b16 %v2038, %v2037
        %v2053 = vpack.c.b16 %v2040, %v2039
        %v2054 = vpack.c.b16 %v2042, %v2041
        %v2055 = vpack.c.b16 %v2044, %v2043
        %v2056 = vpack.c.b16 %v2046, %v2045
        %v2057 = vpack.c.b16 %v2048, %v2047
        %v2058 = vpack.c.b16 %v2050, %v2049
        %2067 = vmatpush.bf16.msra.mxu0 %v2058
        %2068 = vmatpush.bf16.msra.mxu0 %v2057
        %2069 = vmatpush.bf16.msra.mxu0 %v2056
        %2070 = vmatpush.bf16.msra.mxu0 %v2055
        %2071 = vmatpush.bf16.msra.mxu0 %v2054
        %2072 = vmatpush.bf16.msra.mxu0 %v2053
        %2073 = vmatpush.bf16.msra.mxu0 %v2052
        %2074 = vmatpush.bf16.msra.mxu0 %v2051
        %2075 = vmatmul.bf16.gmra.mxu0 %v546
        %v2076 = vpop.f32.mrf.mxu0
        %v2077 = vadd.f32 0.0, %v2076
        %v2078 = vpop.f32.mrf.mxu0
        %v2079 = vadd.f32 0.0, %v2078
        %2080 = vmatmul.bf16.gmra.mxu0 %v547
        %v2081 = vpop.f32.mrf.mxu0
        %v2082 = vadd.f32 0.0, %v2081
        %v2083 = vpop.f32.mrf.mxu0
        %v2084 = vadd.f32 0.0, %v2083
        %2085 = vmatmul.bf16.gmra.mxu0 %v548
        %v2086 = vpop.f32.mrf.mxu0
        %v2087 = vadd.f32 0.0, %v2086
        %v2088 = vpop.f32.mrf.mxu0
        %v2089 = vadd.f32 0.0, %v2088
        %2090 = vmatmul.bf16.gmra.mxu0 %v549
        %v2091 = vpop.f32.mrf.mxu0
        %v2092 = vadd.f32 0.0, %v2091
        %v2093 = vpop.f32.mrf.mxu0
        %v2094 = vadd.f32 0.0, %v2093
        %2095 = vmatmul.bf16.gmra.mxu0 %v550
        %v2096 = vpop.f32.mrf.mxu0
        %v2097 = vadd.f32 0.0, %v2096
        %v2098 = vpop.f32.mrf.mxu0
        %v2099 = vadd.f32 0.0, %v2098
        %2100 = vmatmul.bf16.gmra.mxu0 %v551
        %v2101 = vpop.f32.mrf.mxu0
        %v2102 = vadd.f32 0.0, %v2101
        %v2103 = vpop.f32.mrf.mxu0
        %v2104 = vadd.f32 0.0, %v2103
        %2105 = vmatmul.bf16.gmra.mxu0 %v552
        %v2106 = vpop.f32.mrf.mxu0
        %v2107 = vadd.f32 0.0, %v2106
        %v2108 = vpop.f32.mrf.mxu0
        %v2109 = vadd.f32 0.0, %v2108
        %2110 = vmatmul.bf16.gmra.mxu0 %v553
        %v2111 = vpop.f32.mrf.mxu0
        %v2112 = vadd.f32 0.0, %v2111
        %v2113 = vpop.f32.mrf.mxu0
        %v2114 = vadd.f32 0.0, %v2113
        %2115 = vmatmul.bf16.gmra.mxu0 %v554
        %v2116 = vpop.f32.mrf.mxu0
        %v2117 = vadd.f32 0.0, %v2116
        %v2118 = vpop.f32.mrf.mxu0
        %v2119 = vadd.f32 0.0, %v2118
        %2120 = vmatmul.bf16.gmra.mxu0 %v555
        %v2121 = vpop.f32.mrf.mxu0
        %v2122 = vadd.f32 0.0, %v2121
        %v2123 = vpop.f32.mrf.mxu0
        %v2124 = vadd.f32 0.0, %v2123
        %2125 = vmatmul.bf16.gmra.mxu0 %v556
        %v2126 = vpop.f32.mrf.mxu0
        %v2127 = vadd.f32 0.0, %v2126
        %v2128 = vpop.f32.mrf.mxu0
        %v2129 = vadd.f32 0.0, %v2128
        %2130 = vmatmul.bf16.gmra.mxu0 %v557
        %v2131 = vpop.f32.mrf.mxu0
        %v2132 = vadd.f32 0.0, %v2131
        %v2133 = vpop.f32.mrf.mxu0
        %v2134 = vadd.f32 0.0, %v2133
        %2135 = vmatmul.bf16.gmra.mxu0 %v558
        %v2136 = vpop.f32.mrf.mxu0
        %v2137 = vadd.f32 0.0, %v2136
        %v2138 = vpop.f32.mrf.mxu0
        %v2139 = vadd.f32 0.0, %v2138
        %2140 = vdwg.mxu0
        %v2141 = vrot.slane %v2077, 2
        %v2142 = vrot.slane %v2079, 2
        %v2143 = vrot.slane %v2082, 2
        %v2144 = vrot.slane %v2084, 2
        %v2145 = vrot.slane %v2087, 2
        %v2146 = vrot.slane %v2089, 2
        %v2147 = vrot.slane %v2092, 2
        %v2148 = vrot.slane %v2094, 2
        %v2149 = vrot.slane %v2097, 2
        %v2150 = vrot.slane %v2099, 2
        %v2151 = vrot.slane %v2102, 2
        %v2152 = vrot.slane %v2104, 2
        %v2153 = vrot.slane %v2107, 2
        %v2154 = vrot.slane %v2109, 2
        %v2155 = vrot.slane %v2112, 2
        %v2156 = vrot.slane %v2114, 2
        %v2157 = vrot.slane %v2117, 2
        %v2158 = vrot.slane %v2119, 2
        %v2159 = vrot.slane %v2122, 2
        %v2160 = vrot.slane %v2124, 2
        %v2161 = vrot.slane %v2127, 2
        %v2162 = vrot.slane %v2129, 2
        %v2163 = vrot.slane %v2132, 2
        %v2164 = vrot.slane %v2134, 2
        %v2165 = vrot.slane %v2137, 2
        %v2166 = vrot.slane %v2139, 2
        %vm2167 = vcmp.lt.s32.totalorder %v721, 6
        %v2168 = vsel %vm2167, %v2165, %v2166
        %v2169 = vsel %vm2167, %v2164, %v2165
        %v2170 = vsel %vm2167, %v2163, %v2164
        %v2171 = vsel %vm2167, %v2162, %v2163
        %v2172 = vsel %vm2167, %v2161, %v2162
        %v2173 = vsel %vm2167, %v2160, %v2161
        %v2174 = vsel %vm2167, %v2159, %v2160
        %v2175 = vsel %vm2167, %v2158, %v2159
        %v2176 = vsel %vm2167, %v2157, %v2158
        %v2177 = vsel %vm2167, %v2156, %v2157
        %v2178 = vsel %vm2167, %v2155, %v2156
        %v2179 = vsel %vm2167, %v2154, %v2155
        %v2180 = vsel %vm2167, %v2153, %v2154
        %v2181 = vsel %vm2167, %v2152, %v2153
        %v2182 = vsel %vm2167, %v2151, %v2152
        %v2183 = vsel %vm2167, %v2150, %v2151
        %v2184 = vsel %vm2167, %v2149, %v2150
        %v2185 = vsel %vm2167, %v2148, %v2149
        %v2186 = vsel %vm2167, %v2147, %v2148
        %v2187 = vsel %vm2167, %v2146, %v2147
        %v2188 = vsel %vm2167, %v2145, %v2146
        %v2189 = vsel %vm2167, %v2144, %v2145
        %v2190 = vsel %vm2167, %v2143, %v2144
        %v2191 = vsel %vm2167, %v2142, %v2143
        %v2192 = vsel %vm2167, %v2141, %v2142
        %v2193 = vsel %vm2167, %v2166, %v2141
        %v2194 = vadd.f32 %v1976, %v2191
        %v2195 = vadd.f32 %v1977, %v2190
        %v2196 = vadd.f32 %v1978, %v2189
        %v2197 = vadd.f32 %v1979, %v2188
        %v2198 = vadd.f32 %v1980, %v2187
        %v2199 = vadd.f32 %v1981, %v2186
        %v2200 = vadd.f32 %v1982, %v2185
        %v2201 = vadd.f32 %v1983, %v2184
        %v2202 = vadd.f32 %v1984, %v2183
        %v2203 = vadd.f32 %v1985, %v2182
        %v2204 = vadd.f32 %v1986, %v2181
        %v2205 = vadd.f32 %v1987, %v2180
        %v2206 = vadd.f32 %v1988, %v2179
        %v2207 = vadd.f32 %v1989, %v2178
        %v2208 = vadd.f32 %v1990, %v2177
        %v2209 = vadd.f32 %v1991, %v2176
        %v2210 = vadd.f32 %v1992, %v2175
        %v2211 = vadd.f32 %v1993, %v2174
        %v2212 = vadd.f32 %v1994, %v2173
        %v2213 = vadd.f32 %v1995, %v2172
        %v2214 = vadd.f32 %v1996, %v2171
        %v2215 = vadd.f32 %v1997, %v2170
        %v2216 = vadd.f32 %v1998, %v2169
        %v2217 = vadd.f32 %v1999, %v2168
        %v2218 = vadd.f32 %v2000, %v2193
        %v2219 = vadd.f32 %v2001, %v2192
        %s2220 = scalar_lea.vmem %s444, 512
        %v2221 = vld [vmem:[%s2220] sm:$0xf]
        %v2222 = vld [vmem:[%s2220 + $0x4] sm:$0xf]
        %v2223 = vld [vmem:[%s2220 + $0x8] sm:$0xf]
        %v2224 = vld [vmem:[%s2220 + $0xc] sm:$0xf]
        %v2225 = vld [vmem:[%s2220 + $0x10] sm:$0xf]
        %v2226 = vld [vmem:[%s2220 + $0x14] sm:$0xf]
        %v2227 = vld [vmem:[%s2220 + $0x18] sm:$0xf]
        %v2228 = vld [vmem:[%s2220 + $0x1c] sm:$0xf]
        %v2229 = vld [vmem:[%s2220 + $0x20] sm:$0xf]
        %v2230 = vld [vmem:[%s2220 + $0x24] sm:$0xf]
        %v2231 = vld [vmem:[%s2220 + $0x28] sm:$0xf]
        %v2232 = vld [vmem:[%s2220 + $0x2c] sm:$0xf]
        %v2233 = vld [vmem:[%s2220 + $0x30] sm:$0xf]
        %v2234 = vld [vmem:[%s2220 + $0x34] sm:$0xf]
        %v2235 = vld [vmem:[%s2220 + $0x38] sm:$0xf]
        %v2236 = vld [vmem:[%s2220 + $0x3c] sm:$0xf]
        %v2253 = vunpack.c.l.b16 %v2221
        %v2254 = vunpack.c.l.b16 %v2222
        %v2255 = vunpack.c.l.b16 %v2223
        %v2256 = vunpack.c.l.b16 %v2224
        %v2257 = vunpack.c.l.b16 %v2225
        %v2258 = vunpack.c.l.b16 %v2226
        %v2259 = vunpack.c.l.b16 %v2227
        %v2260 = vunpack.c.l.b16 %v2228
        %v2261 = vunpack.c.l.b16 %v2229
        %v2262 = vunpack.c.l.b16 %v2230
        %v2263 = vunpack.c.l.b16 %v2231
        %v2264 = vunpack.c.l.b16 %v2232
        %v2265 = vunpack.c.l.b16 %v2233
        %v2266 = vunpack.c.l.b16 %v2234
        %v2267 = vunpack.c.l.b16 %v2235
        %v2268 = vunpack.c.l.b16 %v2236
        %v2269 = vpack.c.b16 %v2254, %v2253
        %v2270 = vpack.c.b16 %v2256, %v2255
        %v2271 = vpack.c.b16 %v2258, %v2257
        %v2272 = vpack.c.b16 %v2260, %v2259
        %v2273 = vpack.c.b16 %v2262, %v2261
        %v2274 = vpack.c.b16 %v2264, %v2263
        %v2275 = vpack.c.b16 %v2266, %v2265
        %v2276 = vpack.c.b16 %v2268, %v2267
        %2285 = vmatpush.bf16.msra.mxu0 %v2276
        %2286 = vmatpush.bf16.msra.mxu0 %v2275
        %2287 = vmatpush.bf16.msra.mxu0 %v2274
        %2288 = vmatpush.bf16.msra.mxu0 %v2273
        %2289 = vmatpush.bf16.msra.mxu0 %v2272
        %2290 = vmatpush.bf16.msra.mxu0 %v2271
        %2291 = vmatpush.bf16.msra.mxu0 %v2270
        %2292 = vmatpush.bf16.msra.mxu0 %v2269
        %2293 = vmatmul.bf16.gmra.mxu0 %v546
        %v2294 = vpop.f32.mrf.mxu0
        %v2295 = vadd.f32 0.0, %v2294
        %v2296 = vpop.f32.mrf.mxu0
        %v2297 = vadd.f32 0.0, %v2296
        %2298 = vmatmul.bf16.gmra.mxu0 %v547
        %v2299 = vpop.f32.mrf.mxu0
        %v2300 = vadd.f32 0.0, %v2299
        %v2301 = vpop.f32.mrf.mxu0
        %v2302 = vadd.f32 0.0, %v2301
        %2303 = vmatmul.bf16.gmra.mxu0 %v548
        %v2304 = vpop.f32.mrf.mxu0
        %v2305 = vadd.f32 0.0, %v2304
        %v2306 = vpop.f32.mrf.mxu0
        %v2307 = vadd.f32 0.0, %v2306
        %2308 = vmatmul.bf16.gmra.mxu0 %v549
        %v2309 = vpop.f32.mrf.mxu0
        %v2310 = vadd.f32 0.0, %v2309
        %v2311 = vpop.f32.mrf.mxu0
        %v2312 = vadd.f32 0.0, %v2311
        %2313 = vmatmul.bf16.gmra.mxu0 %v550
        %v2314 = vpop.f32.mrf.mxu0
        %v2315 = vadd.f32 0.0, %v2314
        %v2316 = vpop.f32.mrf.mxu0
        %v2317 = vadd.f32 0.0, %v2316
        %2318 = vmatmul.bf16.gmra.mxu0 %v551
        %v2319 = vpop.f32.mrf.mxu0
        %v2320 = vadd.f32 0.0, %v2319
        %v2321 = vpop.f32.mrf.mxu0
        %v2322 = vadd.f32 0.0, %v2321
        %2323 = vmatmul.bf16.gmra.mxu0 %v552
        %v2324 = vpop.f32.mrf.mxu0
        %v2325 = vadd.f32 0.0, %v2324
        %v2326 = vpop.f32.mrf.mxu0
        %v2327 = vadd.f32 0.0, %v2326
        %2328 = vmatmul.bf16.gmra.mxu0 %v553
        %v2329 = vpop.f32.mrf.mxu0
        %v2330 = vadd.f32 0.0, %v2329
        %v2331 = vpop.f32.mrf.mxu0
        %v2332 = vadd.f32 0.0, %v2331
        %2333 = vmatmul.bf16.gmra.mxu0 %v554
        %v2334 = vpop.f32.mrf.mxu0
        %v2335 = vadd.f32 0.0, %v2334
        %v2336 = vpop.f32.mrf.mxu0
        %v2337 = vadd.f32 0.0, %v2336
        %2338 = vmatmul.bf16.gmra.mxu0 %v555
        %v2339 = vpop.f32.mrf.mxu0
        %v2340 = vadd.f32 0.0, %v2339
        %v2341 = vpop.f32.mrf.mxu0
        %v2342 = vadd.f32 0.0, %v2341
        %2343 = vmatmul.bf16.gmra.mxu0 %v556
        %v2344 = vpop.f32.mrf.mxu0
        %v2345 = vadd.f32 0.0, %v2344
        %v2346 = vpop.f32.mrf.mxu0
        %v2347 = vadd.f32 0.0, %v2346
        %2348 = vmatmul.bf16.gmra.mxu0 %v557
        %v2349 = vpop.f32.mrf.mxu0
        %v2350 = vadd.f32 0.0, %v2349
        %v2351 = vpop.f32.mrf.mxu0
        %v2352 = vadd.f32 0.0, %v2351
        %2353 = vmatmul.bf16.gmra.mxu0 %v558
        %v2354 = vpop.f32.mrf.mxu0
        %v2355 = vadd.f32 0.0, %v2354
        %v2356 = vpop.f32.mrf.mxu0
        %v2357 = vadd.f32 0.0, %v2356
        %2358 = vdwg.mxu0
        %v2359 = vrot.slane %v2295, 3
        %v2360 = vrot.slane %v2297, 3
        %v2361 = vrot.slane %v2300, 3
        %v2362 = vrot.slane %v2302, 3
        %v2363 = vrot.slane %v2305, 3
        %v2364 = vrot.slane %v2307, 3
        %v2365 = vrot.slane %v2310, 3
        %v2366 = vrot.slane %v2312, 3
        %v2367 = vrot.slane %v2315, 3
        %v2368 = vrot.slane %v2317, 3
        %v2369 = vrot.slane %v2320, 3
        %v2370 = vrot.slane %v2322, 3
        %v2371 = vrot.slane %v2325, 3
        %v2372 = vrot.slane %v2327, 3
        %v2373 = vrot.slane %v2330, 3
        %v2374 = vrot.slane %v2332, 3
        %v2375 = vrot.slane %v2335, 3
        %v2376 = vrot.slane %v2337, 3
        %v2377 = vrot.slane %v2340, 3
        %v2378 = vrot.slane %v2342, 3
        %v2379 = vrot.slane %v2345, 3
        %v2380 = vrot.slane %v2347, 3
        %v2381 = vrot.slane %v2350, 3
        %v2382 = vrot.slane %v2352, 3
        %v2383 = vrot.slane %v2355, 3
        %v2384 = vrot.slane %v2357, 3
        %vm2385 = vcmp.lt.s32.totalorder %v721, 5
        %v2386 = vsel %vm2385, %v2383, %v2384
        %v2387 = vsel %vm2385, %v2382, %v2383
        %v2388 = vsel %vm2385, %v2381, %v2382
        %v2389 = vsel %vm2385, %v2380, %v2381
        %v2390 = vsel %vm2385, %v2379, %v2380
        %v2391 = vsel %vm2385, %v2378, %v2379
        %v2392 = vsel %vm2385, %v2377, %v2378
        %v2393 = vsel %vm2385, %v2376, %v2377
        %v2394 = vsel %vm2385, %v2375, %v2376
        %v2395 = vsel %vm2385, %v2374, %v2375
        %v2396 = vsel %vm2385, %v2373, %v2374
        %v2397 = vsel %vm2385, %v2372, %v2373
        %v2398 = vsel %vm2385, %v2371, %v2372
        %v2399 = vsel %vm2385, %v2370, %v2371
        %v2400 = vsel %vm2385, %v2369, %v2370
        %v2401 = vsel %vm2385, %v2368, %v2369
        %v2402 = vsel %vm2385, %v2367, %v2368
        %v2403 = vsel %vm2385, %v2366, %v2367
        %v2404 = vsel %vm2385, %v2365, %v2366
        %v2405 = vsel %vm2385, %v2364, %v2365
        %v2406 = vsel %vm2385, %v2363, %v2364
        %v2407 = vsel %vm2385, %v2362, %v2363
        %v2408 = vsel %vm2385, %v2361, %v2362
        %v2409 = vsel %vm2385, %v2360, %v2361
        %v2410 = vsel %vm2385, %v2359, %v2360
        %v2411 = vsel %vm2385, %v2384, %v2359
        %v2412 = vadd.f32 %v2194, %v2409
        %v2413 = vadd.f32 %v2195, %v2408
        %v2414 = vadd.f32 %v2196, %v2407
        %v2415 = vadd.f32 %v2197, %v2406
        %v2416 = vadd.f32 %v2198, %v2405
        %v2417 = vadd.f32 %v2199, %v2404
        %v2418 = vadd.f32 %v2200, %v2403
        %v2419 = vadd.f32 %v2201, %v2402
        %v2420 = vadd.f32 %v2202, %v2401
        %v2421 = vadd.f32 %v2203, %v2400
        %v2422 = vadd.f32 %v2204, %v2399
        %v2423 = vadd.f32 %v2205, %v2398
        %v2424 = vadd.f32 %v2206, %v2397
        %v2425 = vadd.f32 %v2207, %v2396
        %v2426 = vadd.f32 %v2208, %v2395
        %v2427 = vadd.f32 %v2209, %v2394
        %v2428 = vadd.f32 %v2210, %v2393
        %v2429 = vadd.f32 %v2211, %v2392
        %v2430 = vadd.f32 %v2212, %v2391
        %v2431 = vadd.f32 %v2213, %v2390
        %v2432 = vadd.f32 %v2214, %v2389
        %v2433 = vadd.f32 %v2215, %v2388
        %v2434 = vadd.f32 %v2216, %v2387
        %v2435 = vadd.f32 %v2217, %v2386
        %v2436 = vadd.f32 %v2218, %v2411
        %v2437 = vadd.f32 %v2219, %v2410
        %p2438 = scmp.eq.s32.totalorder %s23, 0
        // Predicated region
        $region82: #{scenet_forward.2} parent=76 // pred_check
          %p2439 = pneg %p2438
        $region83: #{scenet_forward.2} parent=76 // pred_check_branch
          %2441 = sbr.rel (%p2439) target = $region85
        $region84: #{scenet_forward.2} parent=76 // pred_region
          %2442 = vst [vmem:[#allocation2] sm:$0xff] %v2412
          %2443 = vst [vmem:[#allocation2 + $0x8] sm:$0xff] %v2413
          %2444 = vst [vmem:[#allocation2 + $0x10] sm:$0xff] %v2414
          %2445 = vst [vmem:[#allocation2 + $0x18] sm:$0xff] %v2415
          %2446 = vst [vmem:[#allocation2 + $0x20] sm:$0xff] %v2416
          %2447 = vst [vmem:[#allocation2 + $0x28] sm:$0xff] %v2417
          %2448 = vst [vmem:[#allocation2 + $0x30] sm:$0xff] %v2418
          %2449 = vst [vmem:[#allocation2 + $0x38] sm:$0xff] %v2419
          %2450 = vst [vmem:[#allocation2 + $0x40] sm:$0xff] %v2420
          %2451 = vst [vmem:[#allocation2 + $0x48] sm:$0xff] %v2421
          %2452 = vst [vmem:[#allocation2 + $0x50] sm:$0xff] %v2422
          %2453 = vst [vmem:[#allocation2 + $0x58] sm:$0xff] %v2423
          %2454 = vst [vmem:[#allocation2 + $0x60] sm:$0xff] %v2424
          %2455 = vst [vmem:[#allocation2 + $0x68] sm:$0xff] %v2425
          %2456 = vst [vmem:[#allocation2 + $0x70] sm:$0xff] %v2426
          %2457 = vst [vmem:[#allocation2 + $0x78] sm:$0xff] %v2427
          %2458 = vst [vmem:[#allocation2 + $0x80] sm:$0xff] %v2428
          %2459 = vst [vmem:[#allocation2 + $0x88] sm:$0xff] %v2429
          %2460 = vst [vmem:[#allocation2 + $0x90] sm:$0xff] %v2430
          %2461 = vst [vmem:[#allocation2 + $0x98] sm:$0xff] %v2431
          %2462 = vst [vmem:[#allocation2 + $0xa0] sm:$0xff] %v2432
          %2463 = vst [vmem:[#allocation2 + $0xa8] sm:$0xff] %v2433
          %2464 = vst [vmem:[#allocation2 + $0xb0] sm:$0xff] %v2434
          %2465 = vst [vmem:[#allocation2 + $0xb8] sm:$0xff] %v2435
          %2466 = vst [vmem:[#allocation2 + $0xc0] sm:$0xff] %v2436
          %2467 = vst [vmem:[#allocation2 + $0xc8] sm:$0xff] %v2437
        $region85: #{scenet_forward.2} parent=76 // pred_fallthru
          _
        %p2468 = scmp.gt.s32.totalorder %s23, 0
        // Predicated region
        $region86: #{scenet_forward.2} parent=76 // pred_check
          %p2469 = pneg %p2468
        $region87: #{scenet_forward.2} parent=76 // pred_check_branch
          %2471 = sbr.rel (%p2469) target = $region89
        $region88: #{scenet_forward.2} parent=76 // pred_region
          %v2472 = vld [vmem:[#allocation2] sm:$0xff]
          %v2473 = vld [vmem:[#allocation2 + $0x8] sm:$0xff]
          %v2474 = vld [vmem:[#allocation2 + $0x10] sm:$0xff]
          %v2475 = vld [vmem:[#allocation2 + $0x18] sm:$0xff]
          %v2476 = vld [vmem:[#allocation2 + $0x20] sm:$0xff]
          %v2477 = vld [vmem:[#allocation2 + $0x28] sm:$0xff]
          %v2478 = vld [vmem:[#allocation2 + $0x30] sm:$0xff]
          %v2479 = vld [vmem:[#allocation2 + $0x38] sm:$0xff]
          %v2480 = vld [vmem:[#allocation2 + $0x40] sm:$0xff]
          %v2481 = vld [vmem:[#allocation2 + $0x48] sm:$0xff]
          %v2482 = vld [vmem:[#allocation2 + $0x50] sm:$0xff]
          %v2483 = vld [vmem:[#allocation2 + $0x58] sm:$0xff]
          %v2484 = vld [vmem:[#allocation2 + $0x60] sm:$0xff]
          %v2485 = vld [vmem:[#allocation2 + $0x68] sm:$0xff]
          %v2486 = vld [vmem:[#allocation2 + $0x70] sm:$0xff]
          %v2487 = vld [vmem:[#allocation2 + $0x78] sm:$0xff]
          %v2488 = vld [vmem:[#allocation2 + $0x80] sm:$0xff]
          %v2489 = vld [vmem:[#allocation2 + $0x88] sm:$0xff]
          %v2490 = vld [vmem:[#allocation2 + $0x90] sm:$0xff]
          %v2491 = vld [vmem:[#allocation2 + $0x98] sm:$0xff]
          %v2492 = vld [vmem:[#allocation2 + $0xa0] sm:$0xff]
          %v2493 = vld [vmem:[#allocation2 + $0xa8] sm:$0xff]
          %v2494 = vld [vmem:[#allocation2 + $0xb0] sm:$0xff]
          %v2495 = vld [vmem:[#allocation2 + $0xb8] sm:$0xff]
          %v2496 = vld [vmem:[#allocation2 + $0xc0] sm:$0xff]
          %v2497 = vld [vmem:[#allocation2 + $0xc8] sm:$0xff]
          %v2498 = vadd.f32 %v2472, %v2412
          %v2499 = vadd.f32 %v2473, %v2413
          %v2500 = vadd.f32 %v2474, %v2414
          %v2501 = vadd.f32 %v2475, %v2415
          %v2502 = vadd.f32 %v2476, %v2416
          %v2503 = vadd.f32 %v2477, %v2417
          %v2504 = vadd.f32 %v2478, %v2418
          %v2505 = vadd.f32 %v2479, %v2419
          %v2506 = vadd.f32 %v2480, %v2420
          %v2507 = vadd.f32 %v2481, %v2421
          %v2508 = vadd.f32 %v2482, %v2422
          %v2509 = vadd.f32 %v2483, %v2423
          %v2510 = vadd.f32 %v2484, %v2424
          %v2511 = vadd.f32 %v2485, %v2425
          %v2512 = vadd.f32 %v2486, %v2426
          %v2513 = vadd.f32 %v2487, %v2427
          %v2514 = vadd.f32 %v2488, %v2428
          %v2515 = vadd.f32 %v2489, %v2429
          %v2516 = vadd.f32 %v2490, %v2430
          %v2517 = vadd.f32 %v2491, %v2431
          %v2518 = vadd.f32 %v2492, %v2432
          %v2519 = vadd.f32 %v2493, %v2433
          %v2520 = vadd.f32 %v2494, %v2434
          %v2521 = vadd.f32 %v2495, %v2435
          %v2522 = vadd.f32 %v2496, %v2436
          %v2523 = vadd.f32 %v2497, %v2437
          %2524 = vst [vmem:[#allocation2] sm:$0xff] %v2498
          %2525 = vst [vmem:[#allocation2 + $0x8] sm:$0xff] %v2499
          %2526 = vst [vmem:[#allocation2 + $0x10] sm:$0xff] %v2500
          %2527 = vst [vmem:[#allocation2 + $0x18] sm:$0xff] %v2501
          %2528 = vst [vmem:[#allocation2 + $0x20] sm:$0xff] %v2502
          %2529 = vst [vmem:[#allocation2 + $0x28] sm:$0xff] %v2503
          %2530 = vst [vmem:[#allocation2 + $0x30] sm:$0xff] %v2504
          %2531 = vst [vmem:[#allocation2 + $0x38] sm:$0xff] %v2505
          %2532 = vst [vmem:[#allocation2 + $0x40] sm:$0xff] %v2506
          %2533 = vst [vmem:[#allocation2 + $0x48] sm:$0xff] %v2507
          %2534 = vst [vmem:[#allocation2 + $0x50] sm:$0xff] %v2508
          %2535 = vst [vmem:[#allocation2 + $0x58] sm:$0xff] %v2509
          %2536 = vst [vmem:[#allocation2 + $0x60] sm:$0xff] %v2510
          %2537 = vst [vmem:[#allocation2 + $0x68] sm:$0xff] %v2511
          %2538 = vst [vmem:[#allocation2 + $0x70] sm:$0xff] %v2512
          %2539 = vst [vmem:[#allocation2 + $0x78] sm:$0xff] %v2513
          %2540 = vst [vmem:[#allocation2 + $0x80] sm:$0xff] %v2514
          %2541 = vst [vmem:[#allocation2 + $0x88] sm:$0xff] %v2515
          %2542 = vst [vmem:[#allocation2 + $0x90] sm:$0xff] %v2516
          %2543 = vst [vmem:[#allocation2 + $0x98] sm:$0xff] %v2517
          %2544 = vst [vmem:[#allocation2 + $0xa0] sm:$0xff] %v2518
          %2545 = vst [vmem:[#allocation2 + $0xa8] sm:$0xff] %v2519
          %2546 = vst [vmem:[#allocation2 + $0xb0] sm:$0xff] %v2520
          %2547 = vst [vmem:[#allocation2 + $0xb8] sm:$0xff] %v2521
          %2548 = vst [vmem:[#allocation2 + $0xc0] sm:$0xff] %v2522
          %2549 = vst [vmem:[#allocation2 + $0xc8] sm:$0xff] %v2523
        $region89: #{scenet_forward.2} parent=76 // pred_fallthru
          _
        %p2550 = scmp.eq.s32.totalorder %s23, 1
        // Predicated region
        $region90: #{scenet_forward.2} parent=76 // pred_check
          %p2551 = pneg %p2550
        $region91: #{scenet_forward.2} parent=76 // pred_check_branch
          %2553 = sbr.rel (%p2551) target = $region93
        $region92: #{scenet_forward.2} parent=76 // pred_region
          %v2554 = vld [vmem:[#allocation2] sm:$0xff]
          %v2555 = vld [vmem:[#allocation2 + $0x8] sm:$0xff]
          %v2556 = vld [vmem:[#allocation2 + $0x10] sm:$0xff]
          %v2557 = vld [vmem:[#allocation2 + $0x18] sm:$0xff]
          %v2558 = vld [vmem:[#allocation2 + $0x20] sm:$0xff]
          %v2559 = vld [vmem:[#allocation2 + $0x28] sm:$0xff]
          %v2560 = vld [vmem:[#allocation2 + $0x30] sm:$0xff]
          %v2561 = vld [vmem:[#allocation2 + $0x38] sm:$0xff]
          %v2562 = vld [vmem:[#allocation2 + $0x40] sm:$0xff]
          %v2563 = vld [vmem:[#allocation2 + $0x48] sm:$0xff]
          %v2564 = vld [vmem:[#allocation2 + $0x50] sm:$0xff]
          %v2565 = vld [vmem:[#allocation2 + $0x58] sm:$0xff]
          %v2566 = vld [vmem:[#allocation2 + $0x60] sm:$0xff]
          %v2567 = vld [vmem:[#allocation2 + $0x68] sm:$0xff]
          %v2568 = vld [vmem:[#allocation2 + $0x70] sm:$0xff]
          %v2569 = vld [vmem:[#allocation2 + $0x78] sm:$0xff]
          %v2570 = vld [vmem:[#allocation2 + $0x80] sm:$0xff]
          %v2571 = vld [vmem:[#allocation2 + $0x88] sm:$0xff]
          %v2572 = vld [vmem:[#allocation2 + $0x90] sm:$0xff]
          %v2573 = vld [vmem:[#allocation2 + $0x98] sm:$0xff]
          %v2574 = vld [vmem:[#allocation2 + $0xa0] sm:$0xff]
          %v2575 = vld [vmem:[#allocation2 + $0xa8] sm:$0xff]
          %v2576 = vld [vmem:[#allocation2 + $0xb0] sm:$0xff]
          %v2577 = vld [vmem:[#allocation2 + $0xb8] sm:$0xff]
          %v2578 = vld [vmem:[#allocation2 + $0xc0] sm:$0xff]
          %v2579 = vld [vmem:[#allocation2 + $0xc8] sm:$0xff]
          %v2580 = vld [vmem:[%s447] sm:$0x1]
          %v2582 = vperm.slane %v2580, 0
          %v2584 = vmul.f32 %v2554, %v2582
          %v2585 = vmul.f32 %v2555, %v2582
          %v2586 = vmul.f32 %v2556, %v2582
          %v2587 = vmul.f32 %v2557, %v2582
          %v2588 = vmul.f32 %v2558, %v2582
          %v2589 = vmul.f32 %v2559, %v2582
          %v2590 = vmul.f32 %v2560, %v2582
          %v2591 = vmul.f32 %v2561, %v2582
          %v2592 = vmul.f32 %v2562, %v2582
          %v2593 = vmul.f32 %v2563, %v2582
          %v2594 = vmul.f32 %v2564, %v2582
          %v2595 = vmul.f32 %v2565, %v2582
          %v2596 = vmul.f32 %v2566, %v2582
          %v2597 = vmul.f32 %v2567, %v2582
          %v2598 = vmul.f32 %v2568, %v2582
          %v2599 = vmul.f32 %v2569, %v2582
          %v2600 = vmul.f32 %v2570, %v2582
          %v2601 = vmul.f32 %v2571, %v2582
          %v2602 = vmul.f32 %v2572, %v2582
          %v2603 = vmul.f32 %v2573, %v2582
          %v2604 = vmul.f32 %v2574, %v2582
          %v2605 = vmul.f32 %v2575, %v2582
          %v2606 = vmul.f32 %v2576, %v2582
          %v2607 = vmul.f32 %v2577, %v2582
          %v2608 = vmul.f32 %v2578, %v2582
          %v2609 = vmul.f32 %v2579, %v2582
          %v2610 = vld [vmem:[%s450] sm:$0x1]
          %v2612 = vperm.slane %v2610, 0
          %v2614 = vadd.f32 %v2584, %v2612
          %v2615 = vadd.f32 %v2585, %v2612
          %v2616 = vadd.f32 %v2586, %v2612
          %v2617 = vadd.f32 %v2587, %v2612
          %v2618 = vadd.f32 %v2588, %v2612
          %v2619 = vadd.f32 %v2589, %v2612
          %v2620 = vadd.f32 %v2590, %v2612
          %v2621 = vadd.f32 %v2591, %v2612
          %v2622 = vadd.f32 %v2592, %v2612
          %v2623 = vadd.f32 %v2593, %v2612
          %v2624 = vadd.f32 %v2594, %v2612
          %v2625 = vadd.f32 %v2595, %v2612
          %v2626 = vadd.f32 %v2596, %v2612
          %v2627 = vadd.f32 %v2597, %v2612
          %v2628 = vadd.f32 %v2598, %v2612
          %v2629 = vadd.f32 %v2599, %v2612
          %v2630 = vadd.f32 %v2600, %v2612
          %v2631 = vadd.f32 %v2601, %v2612
          %v2632 = vadd.f32 %v2602, %v2612
          %v2633 = vadd.f32 %v2603, %v2612
          %v2634 = vadd.f32 %v2604, %v2612
          %v2635 = vadd.f32 %v2605, %v2612
          %v2636 = vadd.f32 %v2606, %v2612
          %v2637 = vadd.f32 %v2607, %v2612
          %v2638 = vadd.f32 %v2608, %v2612
          %v2639 = vadd.f32 %v2609, %v2612
          %v2640 = vmax.f32 %v2614, 0.0
          %v2641 = vmax.f32 %v2615, 0.0
          %v2642 = vmax.f32 %v2616, 0.0
          %v2643 = vmax.f32 %v2617, 0.0
          %v2644 = vmax.f32 %v2618, 0.0
          %v2645 = vmax.f32 %v2619, 0.0
          %v2646 = vmax.f32 %v2620, 0.0
          %v2647 = vmax.f32 %v2621, 0.0
          %v2648 = vmax.f32 %v2622, 0.0
          %v2649 = vmax.f32 %v2623, 0.0
          %v2650 = vmax.f32 %v2624, 0.0
          %v2651 = vmax.f32 %v2625, 0.0
          %v2652 = vmax.f32 %v2626, 0.0
          %v2653 = vmax.f32 %v2627, 0.0
          %v2654 = vmax.f32 %v2628, 0.0
          %v2655 = vmax.f32 %v2629, 0.0
          %v2656 = vmax.f32 %v2630, 0.0
          %v2657 = vmax.f32 %v2631, 0.0
          %v2658 = vmax.f32 %v2632, 0.0
          %v2659 = vmax.f32 %v2633, 0.0
          %v2660 = vmax.f32 %v2634, 0.0
          %v2661 = vmax.f32 %v2635, 0.0
          %v2662 = vmax.f32 %v2636, 0.0
          %v2663 = vmax.f32 %v2637, 0.0
          %v2664 = vmax.f32 %v2638, 0.0
          %v2665 = vmax.f32 %v2639, 0.0
          %v2666 = vld [vmem:[%s4] sm:$0xff]
          %v2667 = vld [vmem:[%s4 + $0x8] sm:$0xff]
          %v2668 = vld [vmem:[%s4 + $0x10] sm:$0xff]
          %v2669 = vld [vmem:[%s4 + $0x18] sm:$0xff]
          %v2670 = vld [vmem:[%s4 + $0x20] sm:$0xff]
          %v2671 = vld [vmem:[%s4 + $0x28] sm:$0xff]
          %v2672 = vld [vmem:[%s4 + $0x30] sm:$0xff]
          %v2673 = vld [vmem:[%s4 + $0x38] sm:$0xff]
          %v2674 = vld [vmem:[%s4 + $0x40] sm:$0xff]
          %v2675 = vld [vmem:[%s4 + $0x48] sm:$0xff]
          %v2676 = vld [vmem:[%s4 + $0x50] sm:$0xff]
          %v2677 = vld [vmem:[%s4 + $0x58] sm:$0xff]
          %v2678 = vld [vmem:[%s4 + $0x60] sm:$0xff]
          %2680 = vset.pattern.permute.xlu0 0
          %2681 = vperm.xlu0 %2680, %v2666
          %v2682 = vpop.permute.xlu0 %2681
          %2685 = vset.pattern.permute.xlu0 0
          %2686 = vperm.xlu0 %2685, %v2667
          %v2687 = vpop.permute.xlu0 %2686
          %2690 = vset.pattern.permute.xlu0 0
          %2691 = vperm.xlu0 %2690, %v2668
          %v2692 = vpop.permute.xlu0 %2691
          %2695 = vset.pattern.permute.xlu0 0
          %2696 = vperm.xlu0 %2695, %v2669
          %v2697 = vpop.permute.xlu0 %2696
          %2700 = vset.pattern.permute.xlu0 0
          %2701 = vperm.xlu0 %2700, %v2670
          %v2702 = vpop.permute.xlu0 %2701
          %2705 = vset.pattern.permute.xlu0 0
          %2706 = vperm.xlu0 %2705, %v2671
          %v2707 = vpop.permute.xlu0 %2706
          %2710 = vset.pattern.permute.xlu0 0
          %2711 = vperm.xlu0 %2710, %v2672
          %v2712 = vpop.permute.xlu0 %2711
          %2715 = vset.pattern.permute.xlu0 0
          %2716 = vperm.xlu0 %2715, %v2673
          %v2717 = vpop.permute.xlu0 %2716
          %2720 = vset.pattern.permute.xlu0 0
          %2721 = vperm.xlu0 %2720, %v2674
          %v2722 = vpop.permute.xlu0 %2721
          %2725 = vset.pattern.permute.xlu0 0
          %2726 = vperm.xlu0 %2725, %v2675
          %v2727 = vpop.permute.xlu0 %2726
          %2730 = vset.pattern.permute.xlu0 0
          %2731 = vperm.xlu0 %2730, %v2676
          %v2732 = vpop.permute.xlu0 %2731
          %2735 = vset.pattern.permute.xlu0 0
          %2736 = vperm.xlu0 %2735, %v2677
          %v2737 = vpop.permute.xlu0 %2736
          %2740 = vset.pattern.permute.xlu0 0
          %2741 = vperm.xlu0 %2740, %v2678
          %v2742 = vpop.permute.xlu0 %2741
          %v2744 = vmul.f32 %v2640, %v2682
          %v2745 = vmul.f32 %v2641, %v2687
          %v2746 = vmul.f32 %v2642, %v2692
          %v2747 = vmul.f32 %v2643, %v2697
          %v2748 = vmul.f32 %v2644, %v2702
          %v2749 = vmul.f32 %v2645, %v2707
          %v2750 = vmul.f32 %v2646, %v2712
          %v2751 = vmul.f32 %v2647, %v2717
          %v2752 = vmul.f32 %v2648, %v2722
          %v2753 = vmul.f32 %v2649, %v2727
          %v2754 = vmul.f32 %v2650, %v2732
          %v2755 = vmul.f32 %v2651, %v2737
          %v2756 = vmul.f32 %v2652, %v2742
          %v2757 = vmul.f32 %v2653, %v2682
          %v2758 = vmul.f32 %v2654, %v2687
          %v2759 = vmul.f32 %v2655, %v2692
          %v2760 = vmul.f32 %v2656, %v2697
          %v2761 = vmul.f32 %v2657, %v2702
          %v2762 = vmul.f32 %v2658, %v2707
          %v2763 = vmul.f32 %v2659, %v2712
          %v2764 = vmul.f32 %v2660, %v2717
          %v2765 = vmul.f32 %v2661, %v2722
          %v2766 = vmul.f32 %v2662, %v2727
          %v2767 = vmul.f32 %v2663, %v2732
          %v2768 = vmul.f32 %v2664, %v2737
          %v2769 = vmul.f32 %v2665, %v2742
          %v2770 = vpack.c.bf16 %v2744, %v2744
          %v2771 = vpack.c.bf16 %v2745, %v2745
          %v2772 = vpack.c.bf16 %v2746, %v2746
          %v2773 = vpack.c.bf16 %v2747, %v2747
          %v2774 = vpack.c.bf16 %v2748, %v2748
          %v2775 = vpack.c.bf16 %v2749, %v2749
          %v2776 = vpack.c.bf16 %v2750, %v2750
          %v2777 = vpack.c.bf16 %v2751, %v2751
          %v2778 = vpack.c.bf16 %v2752, %v2752
          %v2779 = vpack.c.bf16 %v2753, %v2753
          %v2780 = vpack.c.bf16 %v2754, %v2754
          %v2781 = vpack.c.bf16 %v2755, %v2755
          %v2782 = vpack.c.bf16 %v2756, %v2756
          %v2783 = vpack.c.bf16 %v2757, %v2757
          %v2784 = vpack.c.bf16 %v2758, %v2758
          %v2785 = vpack.c.bf16 %v2759, %v2759
          %v2786 = vpack.c.bf16 %v2760, %v2760
          %v2787 = vpack.c.bf16 %v2761, %v2761
          %v2788 = vpack.c.bf16 %v2762, %v2762
          %v2789 = vpack.c.bf16 %v2763, %v2763
          %v2790 = vpack.c.bf16 %v2764, %v2764
          %v2791 = vpack.c.bf16 %v2765, %v2765
          %v2792 = vpack.c.bf16 %v2766, %v2766
          %v2793 = vpack.c.bf16 %v2767, %v2767
          %v2794 = vpack.c.bf16 %v2768, %v2768
          %v2795 = vpack.c.bf16 %v2769, %v2769
          %2796 = vst [vmem:[%s434] sm:$0xf] %v2770
          %2797 = vst [vmem:[%s434 + $0x4] sm:$0xf] %v2771
          %2798 = vst [vmem:[%s434 + $0x8] sm:$0xf] %v2772
          %2799 = vst [vmem:[%s434 + $0xc] sm:$0xf] %v2773
          %2800 = vst [vmem:[%s434 + $0x10] sm:$0xf] %v2774
          %2801 = vst [vmem:[%s434 + $0x14] sm:$0xf] %v2775
          %2802 = vst [vmem:[%s434 + $0x18] sm:$0xf] %v2776
          %2803 = vst [vmem:[%s434 + $0x1c] sm:$0xf] %v2777
          %2804 = vst [vmem:[%s434 + $0x20] sm:$0xf] %v2778
          %2805 = vst [vmem:[%s434 + $0x24] sm:$0xf] %v2779
          %2806 = vst [vmem:[%s434 + $0x28] sm:$0xf] %v2780
          %2807 = vst [vmem:[%s434 + $0x2c] sm:$0xf] %v2781
          %2808 = vst [vmem:[%s434 + $0x30] sm:$0xf] %v2782
          %2809 = vst [vmem:[%s434 + $0x34] sm:$0xf] %v2783
          %2810 = vst [vmem:[%s434 + $0x38] sm:$0xf] %v2784
          %2811 = vst [vmem:[%s434 + $0x3c] sm:$0xf] %v2785
          %2812 = vst [vmem:[%s434 + $0x40] sm:$0xf] %v2786
          %2813 = vst [vmem:[%s434 + $0x44] sm:$0xf] %v2787
          %2814 = vst [vmem:[%s434 + $0x48] sm:$0xf] %v2788
          %2815 = vst [vmem:[%s434 + $0x4c] sm:$0xf] %v2789
          %2816 = vst [vmem:[%s434 + $0x50] sm:$0xf] %v2790
          %2817 = vst [vmem:[%s434 + $0x54] sm:$0xf] %v2791
          %2818 = vst [vmem:[%s434 + $0x58] sm:$0xf] %v2792
          %2819 = vst [vmem:[%s434 + $0x5c] sm:$0xf] %v2793
          %2820 = vst [vmem:[%s434 + $0x60] sm:$0xf] %v2794
          %2821 = vst [vmem:[%s434 + $0x64] sm:$0xf] %v2795
        $region93: #{scenet_forward.2} parent=76 // pred_fallthru
          _
        %s2822 = sand.u32 %s174, 1
        %s2823 = sand.u32 %s174, 1
        %s2824 = smul.addr %s2823, 104
        %s2825 = scalar_lea.vmem [#allocation4], %s2824
        // Predicated region
        $region94: #{scenet_forward.2} parent=76 // pred_check
          %p2826 = pneg %p184
        $region95: #{scenet_forward.2} parent=76 // pred_check_branch
          %2828 = sbr.rel (%p2826) target = $region97
        $region96: #{scenet_forward.2} parent=76 // pred_region
          %s2829 = smul.u32 2, %s22
          %s2830 = smul.addr %s2829, 26
          %s2831 = sadd.s32 %s21, %s2830
          %s2832 = smul.addr %s2831, 4
          %s2833 = scalar_lea.vmem %s5, %s2832
          // Predicated region
          $region98: #{scenet_forward.2} parent=96 // pred_check
            _
          $region99: #{scenet_forward.2} parent=96 // pred_check_branch
            %2835 = sbr.rel (0) target = $region101
          $region100: #{scenet_forward.2} parent=96 // pred_region
            // Predicated region
            $region102: #{scenet_forward.2} parent=100 // pred_check
              _
            $region103: #{scenet_forward.2} parent=100 // pred_check_branch
              %2837 = sbr.rel target = $region105
            $region104: #{scenet_forward.2} parent=100 // pred_region
              // Predicated region
              $region117: #{scenet_forward.2} parent=104 // pred_check
                _
              $region118: #{scenet_forward.2} parent=104 // pred_check_branch
                %2903 = sbr.rel (0) target = $region120
              $region119: #{scenet_forward.2} parent=104 // pred_region
                loop: start=0, step=1, limit=1
                $region121: #{scenet_forward.2} parent=119 // loop_pre_header
                  _
                $region122: #{scenet_forward.2} parent=119 // loop_header
                  %s2905 = sphi 0, %s2909
                  %p2906 = scmp.ge.s32.totalorder %s2905, 1
                  %s2910 = sphi %s2825, %s2825
                  %s2911 = sphi %s2833, %s2833
                $region123: #{scenet_forward.2} parent=119 // loop_header_branch
                  %2908 = sbr.rel (%p2906) target = $region127
                $region124: #{scenet_forward.2} parent=119 // loop_body
                  _
                $region125: #{scenet_forward.2} parent=119 // loop_footer
                  %s2909 = sadd.s32 1, %s2905
                $region126: #{scenet_forward.2} parent=119 // loop_footer_branch
                  %2904 = sbr.rel target = $region122
                $region127: #{scenet_forward.2} parent=119 // loop_exit
                  _
                %s2913 = ssub.s32 16, 1
                loop: start=0, step=1, limit=1
                $region128: #{scenet_forward.2} parent=119 // loop_pre_header
                  _
                $region129: #{scenet_forward.2} parent=119 // loop_header
                  %s2915 = sphi 0, %s2919
                  %p2916 = scmp.ge.s32.totalorder %s2915, 1
                  %s2920 = sphi %s2825, %s2825
                  %s2921 = sphi %s2833, %s2833
                $region130: #{scenet_forward.2} parent=119 // loop_header_branch
                  %2918 = sbr.rel (%p2916) target = $region134
                $region131: #{scenet_forward.2} parent=119 // loop_body
                  %v2922 = vld [vmem:[%s2920] sm:%s2913]
                  %2923 = vst [vmem:[%s2921] sm:%s2913] %v2922
                  %v2924 = vld [vmem:[%s2920 + $0x4] sm:%s2913]
                  %2925 = vst [vmem:[%s2921 + $0x8] sm:%s2913] %v2924
                  %v2926 = vld [vmem:[%s2920 + $0x8] sm:%s2913]
                  %2927 = vst [vmem:[%s2921 + $0x10] sm:%s2913] %v2926
                  %v2928 = vld [vmem:[%s2920 + $0xc] sm:%s2913]
                  %2929 = vst [vmem:[%s2921 + $0x18] sm:%s2913] %v2928
                  %v2930 = vld [vmem:[%s2920 + $0x10] sm:%s2913]
                  %2931 = vst [vmem:[%s2921 + $0x20] sm:%s2913] %v2930
                  %v2932 = vld [vmem:[%s2920 + $0x14] sm:%s2913]
                  %2933 = vst [vmem:[%s2921 + $0x28] sm:%s2913] %v2932
                  %v2934 = vld [vmem:[%s2920 + $0x18] sm:%s2913]
                  %2935 = vst [vmem:[%s2921 + $0x30] sm:%s2913] %v2934
                  %v2936 = vld [vmem:[%s2920 + $0x1c] sm:%s2913]
                  %2937 = vst [vmem:[%s2921 + $0x38] sm:%s2913] %v2936
                  %v2938 = vld [vmem:[%s2920 + $0x20] sm:%s2913]
                  %2939 = vst [vmem:[%s2921 + $0x40] sm:%s2913] %v2938
                  %v2940 = vld [vmem:[%s2920 + $0x24] sm:%s2913]
                  %2941 = vst [vmem:[%s2921 + $0x48] sm:%s2913] %v2940
                  %v2942 = vld [vmem:[%s2920 + $0x28] sm:%s2913]
                  %2943 = vst [vmem:[%s2921 + $0x50] sm:%s2913] %v2942
                  %v2944 = vld [vmem:[%s2920 + $0x2c] sm:%s2913]
                  %2945 = vst [vmem:[%s2921 + $0x58] sm:%s2913] %v2944
                  %v2946 = vld [vmem:[%s2920 + $0x30] sm:%s2913]
                  %2947 = vst [vmem:[%s2921 + $0x60] sm:%s2913] %v2946
                  %v2948 = vld [vmem:[%s2920 + $0x34] sm:%s2913]
                  %2949 = vst [vmem:[%s2921 + $0x68] sm:%s2913] %v2948
                  %v2950 = vld [vmem:[%s2920 + $0x38] sm:%s2913]
                  %2951 = vst [vmem:[%s2921 + $0x70] sm:%s2913] %v2950
                  %v2952 = vld [vmem:[%s2920 + $0x3c] sm:%s2913]
                  %2953 = vst [vmem:[%s2921 + $0x78] sm:%s2913] %v2952
                  %v2954 = vld [vmem:[%s2920 + $0x40] sm:%s2913]
                  %2955 = vst [vmem:[%s2921 + $0x80] sm:%s2913] %v2954
                  %v2956 = vld [vmem:[%s2920 + $0x44] sm:%s2913]
                  %2957 = vst [vmem:[%s2921 + $0x88] sm:%s2913] %v2956
                  %v2958 = vld [vmem:[%s2920 + $0x48] sm:%s2913]
                  %2959 = vst [vmem:[%s2921 + $0x90] sm:%s2913] %v2958
                  %v2960 = vld [vmem:[%s2920 + $0x4c] sm:%s2913]
                  %2961 = vst [vmem:[%s2921 + $0x98] sm:%s2913] %v2960
                  %v2962 = vld [vmem:[%s2920 + $0x50] sm:%s2913]
                  %2963 = vst [vmem:[%s2921 + $0xa0] sm:%s2913] %v2962
                  %v2964 = vld [vmem:[%s2920 + $0x54] sm:%s2913]
                  %2965 = vst [vmem:[%s2921 + $0xa8] sm:%s2913] %v2964
                  %v2966 = vld [vmem:[%s2920 + $0x58] sm:%s2913]
                  %2967 = vst [vmem:[%s2921 + $0xb0] sm:%s2913] %v2966
                  %v2968 = vld [vmem:[%s2920 + $0x5c] sm:%s2913]
                  %2969 = vst [vmem:[%s2921 + $0xb8] sm:%s2913] %v2968
                  %v2970 = vld [vmem:[%s2920 + $0x60] sm:%s2913]
                  %2971 = vst [vmem:[%s2921 + $0xc0] sm:%s2913] %v2970
                  %v2972 = vld [vmem:[%s2920 + $0x64] sm:%s2913]
                  %2973 = vst [vmem:[%s2921 + $0xc8] sm:%s2913] %v2972
                $region132: #{scenet_forward.2} parent=119 // loop_footer
                  %s2919 = sadd.s32 1, %s2915
                $region133: #{scenet_forward.2} parent=119 // loop_footer_branch
                  %2914 = sbr.rel target = $region129
                $region134: #{scenet_forward.2} parent=119 // loop_exit
                  _
              $region120: #{scenet_forward.2} parent=104 // pred_fallthru
                _
            $region105: #{scenet_forward.2} parent=100 // pred_fallthru
              _
            // Predicated region
            $region106: #{scenet_forward.2} parent=100 // pred_check
              _
            $region107: #{scenet_forward.2} parent=100 // pred_check_branch
              %2839 = sbr.rel (0) target = $region109
            $region108: #{scenet_forward.2} parent=100 // pred_region
              %s2841 = ssub.s32 16, 1
              loop: start=0, step=1, limit=1
              $region110: #{scenet_forward.2} parent=108 // loop_pre_header
                _
              $region111: #{scenet_forward.2} parent=108 // loop_header
                %s2843 = sphi 0, %s2847
                %p2844 = scmp.ge.s32.totalorder %s2843, 1
                %s2848 = sphi %s2825, %s2825
                %s2849 = sphi %s2833, %s2833
              $region112: #{scenet_forward.2} parent=108 // loop_header_branch
                %2846 = sbr.rel (%p2844) target = $region116
              $region113: #{scenet_forward.2} parent=108 // loop_body
                %v2850 = vld [vmem:[%s2848] sm:%s2841]
                %2851 = vst [vmem:[%s2849] sm:%s2841] %v2850
                %v2852 = vld [vmem:[%s2848 + $0x4] sm:%s2841]
                %2853 = vst [vmem:[%s2849 + $0x8] sm:%s2841] %v2852
                %v2854 = vld [vmem:[%s2848 + $0x8] sm:%s2841]
                %2855 = vst [vmem:[%s2849 + $0x10] sm:%s2841] %v2854
                %v2856 = vld [vmem:[%s2848 + $0xc] sm:%s2841]
                %2857 = vst [vmem:[%s2849 + $0x18] sm:%s2841] %v2856
                %v2858 = vld [vmem:[%s2848 + $0x10] sm:%s2841]
                %2859 = vst [vmem:[%s2849 + $0x20] sm:%s2841] %v2858
                %v2860 = vld [vmem:[%s2848 + $0x14] sm:%s2841]
                %2861 = vst [vmem:[%s2849 + $0x28] sm:%s2841] %v2860
                %v2862 = vld [vmem:[%s2848 + $0x18] sm:%s2841]
                %2863 = vst [vmem:[%s2849 + $0x30] sm:%s2841] %v2862
                %v2864 = vld [vmem:[%s2848 + $0x1c] sm:%s2841]
                %2865 = vst [vmem:[%s2849 + $0x38] sm:%s2841] %v2864
                %v2866 = vld [vmem:[%s2848 + $0x20] sm:%s2841]
                %2867 = vst [vmem:[%s2849 + $0x40] sm:%s2841] %v2866
                %v2868 = vld [vmem:[%s2848 + $0x24] sm:%s2841]
                %2869 = vst [vmem:[%s2849 + $0x48] sm:%s2841] %v2868
                %v2870 = vld [vmem:[%s2848 + $0x28] sm:%s2841]
                %2871 = vst [vmem:[%s2849 + $0x50] sm:%s2841] %v2870
                %v2872 = vld [vmem:[%s2848 + $0x2c] sm:%s2841]
                %2873 = vst [vmem:[%s2849 + $0x58] sm:%s2841] %v2872
                %v2874 = vld [vmem:[%s2848 + $0x30] sm:%s2841]
                %2875 = vst [vmem:[%s2849 + $0x60] sm:%s2841] %v2874
                %v2876 = vld [vmem:[%s2848 + $0x34] sm:%s2841]
                %2877 = vst [vmem:[%s2849 + $0x68] sm:%s2841] %v2876
                %v2878 = vld [vmem:[%s2848 + $0x38] sm:%s2841]
                %2879 = vst [vmem:[%s2849 + $0x70] sm:%s2841] %v2878
                %v2880 = vld [vmem:[%s2848 + $0x3c] sm:%s2841]
                %2881 = vst [vmem:[%s2849 + $0x78] sm:%s2841] %v2880
                %v2882 = vld [vmem:[%s2848 + $0x40] sm:%s2841]
                %2883 = vst [vmem:[%s2849 + $0x80] sm:%s2841] %v2882
                %v2884 = vld [vmem:[%s2848 + $0x44] sm:%s2841]
                %2885 = vst [vmem:[%s2849 + $0x88] sm:%s2841] %v2884
                %v2886 = vld [vmem:[%s2848 + $0x48] sm:%s2841]
                %2887 = vst [vmem:[%s2849 + $0x90] sm:%s2841] %v2886
                %v2888 = vld [vmem:[%s2848 + $0x4c] sm:%s2841]
                %2889 = vst [vmem:[%s2849 + $0x98] sm:%s2841] %v2888
                %v2890 = vld [vmem:[%s2848 + $0x50] sm:%s2841]
                %2891 = vst [vmem:[%s2849 + $0xa0] sm:%s2841] %v2890
                %v2892 = vld [vmem:[%s2848 + $0x54] sm:%s2841]
                %2893 = vst [vmem:[%s2849 + $0xa8] sm:%s2841] %v2892
                %v2894 = vld [vmem:[%s2848 + $0x58] sm:%s2841]
                %2895 = vst [vmem:[%s2849 + $0xb0] sm:%s2841] %v2894
                %v2896 = vld [vmem:[%s2848 + $0x5c] sm:%s2841]
                %2897 = vst [vmem:[%s2849 + $0xb8] sm:%s2841] %v2896
                %v2898 = vld [vmem:[%s2848 + $0x60] sm:%s2841]
                %2899 = vst [vmem:[%s2849 + $0xc0] sm:%s2841] %v2898
                %v2900 = vld [vmem:[%s2848 + $0x64] sm:%s2841]
                %2901 = vst [vmem:[%s2849 + $0xc8] sm:%s2841] %v2900
              $region114: #{scenet_forward.2} parent=108 // loop_footer
                %s2847 = sadd.s32 1, %s2843
              $region115: #{scenet_forward.2} parent=108 // loop_footer_branch
                %2842 = sbr.rel target = $region111
              $region116: #{scenet_forward.2} parent=108 // loop_exit
                _
            $region109: #{scenet_forward.2} parent=100 // pred_fallthru
              _
          $region101: #{scenet_forward.2} parent=96 // pred_fallthru
            _
          %2974 = vnop
        $region97: #{scenet_forward.2} parent=76 // pred_fallthru
          _
      $region77: #{scenet_forward.2} parent=5 // pred_fallthru
        _
      %p2975 = scmp.le.s32.totalorder 2, %s11
      // Predicated region
      $region135: #{scenet_forward.2} parent=5 // pred_check
        %p2976 = pneg %p2975
      $region136: #{scenet_forward.2} parent=5 // pred_check_branch
        %2978 = sbr.rel (%p2976) target = $region138
      $region137: #{scenet_forward.2} parent=5 // pred_region
        %s2979 = ssub.s32 %s11, 2
        // Predicated region
        $region139: #{scenet_forward.2} parent=137 // pred_check
          %p2980 = pneg %p190
        $region140: #{scenet_forward.2} parent=137 // pred_check_branch
          %2982 = sbr.rel (%p2980) target = $region142
        $region141: #{scenet_forward.2} parent=137 // pred_region
          %s2983 = sand.u32 %s175, 1
          %s2984 = sand.u32 %s175, 1
          %s2985 = smul.addr %s2984, 104
          %s2986 = scalar_lea.vmem [#allocation4], %s2985
        $region142: #{scenet_forward.2} parent=137 // pred_fallthru
          _
      $region138: #{scenet_forward.2} parent=5 // pred_fallthru
        _
    $region6: #{scenet_forward.2} parent=1 // loop_footer
      %s15 = sadd.s32 1, %s11
    $region7: #{scenet_forward.2} parent=1 // loop_footer_branch
      %10 = sbr.rel target = $region3
    $region8: #{scenet_forward.2} parent=1 // loop_exit
      _

// kernel: scenet_forward.3
$region0: #{scenet_forward.3}
  #allocation0 [shape = 'u32[]', space=smem, size = 0x4, offset = 0x4, fixed_abs, tag = 'smem constant byte address 0x4 - core index']
  #allocation1 [shape = 'u32[72,128]{1,0:T(1,128)}', space=vmem, size = 0x9000, scoped, tag = 'internal scratch']
  #allocation2 [shape = 'f32[208,128]{1,0:T(8,128)}', space=vmem, size = 0x1a000, scoped, tag = 'scratch operand']
  %s0 = inlined_call_operand.vmem [shape: bf16[2,104,256], index: 0, kind: input, shape index: {}]
  %s1 = inlined_call_operand.vmem [shape: bf16[2,2,9,128,128], index: 1, kind: input, shape index: {}]
  %s2 = inlined_call_operand.vmem [shape: f32[1,256], index: 2, kind: input, shape index: {}]
  %s3 = inlined_call_operand.vmem [shape: f32[1,256], index: 3, kind: input, shape index: {}]
  %s4 = inlined_call_operand.vmem [shape: f32[2,104,256], index: 4, kind: input, shape index: {}]
  %s5 = inlined_call_operand.vmem [shape: f32[104,1], index: 5, kind: input, shape index: {}]
  %s6 = inlined_call_operand.vmem [shape: f32[2,256], index: 6, kind: output, shape index: {}]
  %s7 = sld [smem:[#allocation0]]
  $region148: #{scenet_forward.3} parent=0
    _
  %s9 = ssub.s32 1, %s7
  %s10 = scalar_select 0, %s9, %s7
  $region1: #{scenet_forward.3} parent=0
    #allocation3 [shape = 'u8[106496]{0}', space=vmem, size = 0x1a000, scoped, tag = 'input window, operand 0']
    #allocation4 [shape = 'u8[212992]{0}', space=vmem, size = 0x34000, scoped, tag = 'input window, operand 4']
    loop: start=0, step=1, limit=6
    $region2: #{scenet_forward.3} parent=1 // loop_pre_header
      _
    $region3: #{scenet_forward.3} parent=1 // loop_header
      %s12 = sphi 0, %s16
      %p13 = scmp.ge.s32.totalorder %s12, 6
      %s19 = sphi 0, %s38
      %s20 = sphi 0, %s34
      %s21 = sphi 0, %s30
      %s22 = sphi 0, %s19
      %s23 = sphi 0, %s20
      %s24 = sphi 0, %s21
      %s25 = sphi 0, %s22
      %s26 = sphi 0, %s23
      %s27 = sphi 0, %s24
      %s43 = sphi 0, %s45
      %s46 = sphi 0, %s43
      %s47 = sphi 0, %s46
      %s63 = sphi 0, %s47
      %s71 = sphi 0, %s73
      %s74 = sphi 0, %s71
      %s75 = sphi 0, %s74
      %s91 = sphi 0, %s75
      %s97 = sphi 0, %s99
      %s100 = sphi 0, %s97
      %s101 = sphi 0, %s100
      %s117 = sphi 0, %s101
      %s123 = sphi 0, %s125
      %s126 = sphi 0, %s123
      %s127 = sphi 0, %s126
      %s143 = sphi 0, %s127
      %s151 = sphi 0, %s153
      %s154 = sphi 0, %s151
      %s155 = sphi 0, %s154
      %s171 = sphi 0, %s155
      %s175 = sphi 0, %s175
      %s177 = sphi 0, %s175
      %s178 = sphi 0, %s177
      %s192 = sphi 0, %s178
      %s200 = sphi 0, %s202
      %s203 = sphi 0, %s200
      %s204 = sphi 0, %s203
      %s220 = sphi 0, %s204
    $region4: #{scenet_forward.3} parent=1 // loop_header_branch
      %15 = sbr.rel (%p13) target = $region8
    $region5: #{scenet_forward.3} parent=1 // loop_body
      %s17 = ssub.s32 %s12, 1
      %s18 = ssub.s32 %s12, 2
      %s28 = sadd.s32 1, %s21
      %p29 = scmp.ge.s32.totalorder %s28, 2
      %s30 = scalar_select %p29, 0, %s28
      %s31 = sadd.s32 1, %s20
      %s32 = scalar_select %p29, %s31, %s20
      %p33 = scmp.ge.s32.totalorder %s32, 1
      %s34 = scalar_select %p33, 0, %s32
      %s35 = sadd.s32 1, %s19
      %s36 = scalar_select %p33, %s35, %s19
      %p37 = scmp.ge.s32.totalorder %s36, 2
      %s38 = scalar_select %p37, 0, %s36
      %s39 = ssub.s32 %s20, %s34
      %s40 = ssub.s32 %s21, %s30
      %s41 = sor.u32 %s39, %s40
      %p42 = scmp.eq.s32.totalorder %s41, 0
      %s44 = sadd.s32 %s43, 1
      %s45 = scalar_select %p42, %s43, %s44
      %p48 = pneg %p42
      %p49 = scmp.eq.s32.totalorder %s12, 3
      %p50 = por %p48, %p49
      %p51 = scmp.ne.s32.totalorder %s43, %s46
      %p52 = scmp.eq.s32.totalorder %s12, 0
      %p53 = por %p51, %p52
      %p54 = scmp.ne.s32.totalorder %s43, %s46
      %p55 = scmp.eq.s32.totalorder %s17, 3
      %p56 = por %p54, %p55
      %p57 = scmp.ne.s32.totalorder %s46, %s47
      %p58 = scmp.eq.s32.totalorder %s17, 0
      %p59 = por %p57, %p58
      %p60 = scmp.ne.s32.totalorder %s46, %s47
      %p61 = scmp.eq.s32.totalorder %s18, 3
      %p62 = por %p60, %p61
      %p64 = scmp.ne.s32.totalorder %s47, %s63
      %p65 = scmp.eq.s32.totalorder %s18, 0
      %p66 = por %p64, %p65
      %s67 = ssub.s32 %s21, %s30
      %s68 = ssub.s32 %s19, %s38
      %s69 = sor.u32 %s67, %s68
      %p70 = scmp.eq.s32.totalorder %s69, 0
      %s72 = sadd.s32 %s71, 1
      %s73 = scalar_select %p70, %s71, %s72
      %p76 = pneg %p70
      %p77 = scmp.eq.s32.totalorder %s12, 3
      %p78 = por %p76, %p77
      %p79 = scmp.ne.s32.totalorder %s71, %s74
      %p80 = scmp.eq.s32.totalorder %s12, 0
      %p81 = por %p79, %p80
      %p82 = scmp.ne.s32.totalorder %s71, %s74
      %p83 = scmp.eq.s32.totalorder %s17, 3
      %p84 = por %p82, %p83
      %p85 = scmp.ne.s32.totalorder %s74, %s75
      %p86 = scmp.eq.s32.totalorder %s17, 0
      %p87 = por %p85, %p86
      %p88 = scmp.ne.s32.totalorder %s74, %s75
      %p89 = scmp.eq.s32.totalorder %s18, 3
      %p90 = por %p88, %p89
      %p92 = scmp.ne.s32.totalorder %s75, %s91
      %p93 = scmp.eq.s32.totalorder %s18, 0
      %p94 = por %p92, %p93
      %s95 = ssub.s32 %s19, %s38
      %p96 = scmp.eq.s32.totalorder %s95, 0
      %s98 = sadd.s32 %s97, 1
      %s99 = scalar_select %p96, %s97, %s98
      %p102 = pneg %p96
      %p103 = scmp.eq.s32.totalorder %s12, 3
      %p104 = por %p102, %p103
      %p105 = scmp.ne.s32.totalorder %s97, %s100
      %p106 = scmp.eq.s32.totalorder %s12, 0
      %p107 = por %p105, %p106
      %p108 = scmp.ne.s32.totalorder %s97, %s100
      %p109 = scmp.eq.s32.totalorder %s17, 3
      %p110 = por %p108, %p109
      %p111 = scmp.ne.s32.totalorder %s100, %s101
      %p112 = scmp.eq.s32.totalorder %s17, 0
      %p113 = por %p111, %p112
      %p114 = scmp.ne.s32.totalorder %s100, %s101
      %p115 = scmp.eq.s32.totalorder %s18, 3
      %p116 = por %p114, %p115
      %p118 = scmp.ne.s32.totalorder %s101, %s117
      %p119 = scmp.eq.s32.totalorder %s18, 0
      %p120 = por %p118, %p119
      %s121 = ssub.s32 %s19, %s38
      %p122 = scmp.eq.s32.totalorder %s121, 0
      %s124 = sadd.s32 %s123, 1
      %s125 = scalar_select %p122, %s123, %s124
      %p128 = pneg %p122
      %p129 = scmp.eq.s32.totalorder %s12, 3
      %p130 = por %p128, %p129
      %p131 = scmp.ne.s32.totalorder %s123, %s126
      %p132 = scmp.eq.s32.totalorder %s12, 0
      %p133 = por %p131, %p132
      %p134 = scmp.ne.s32.totalorder %s123, %s126
      %p135 = scmp.eq.s32.totalorder %s17, 3
      %p136 = por %p134, %p135
      %p137 = scmp.ne.s32.totalorder %s126, %s127
      %p138 = scmp.eq.s32.totalorder %s17, 0
      %p139 = por %p137, %p138
      %p140 = scmp.ne.s32.totalorder %s126, %s127
      %p141 = scmp.eq.s32.totalorder %s18, 3
      %p142 = por %p140, %p141
      %p144 = scmp.ne.s32.totalorder %s127, %s143
      %p145 = scmp.eq.s32.totalorder %s18, 0
      %p146 = por %p144, %p145
      %s147 = ssub.s32 %s20, %s34
      %s148 = ssub.s32 %s19, %s38
      %s149 = sor.u32 %s147, %s148
      %p150 = scmp.eq.s32.totalorder %s149, 0
      %s152 = sadd.s32 %s151, 1
      %s153 = scalar_select %p150, %s151, %s152
      %p156 = pneg %p150
      %p157 = scmp.eq.s32.totalorder %s12, 3
      %p158 = por %p156, %p157
      %p159 = scmp.ne.s32.totalorder %s151, %s154
      %p160 = scmp.eq.s32.totalorder %s12, 0
      %p161 = por %p159, %p160
      %p162 = scmp.ne.s32.totalorder %s151, %s154
      %p163 = scmp.eq.s32.totalorder %s17, 3
      %p164 = por %p162, %p163
      %p165 = scmp.ne.s32.totalorder %s154, %s155
      %p166 = scmp.eq.s32.totalorder %s17, 0
      %p167 = por %p165, %p166
      %p168 = scmp.ne.s32.totalorder %s154, %s155
      %p169 = scmp.eq.s32.totalorder %s18, 3
      %p170 = por %p168, %p169
      %p172 = scmp.ne.s32.totalorder %s155, %s171
      %p173 = scmp.eq.s32.totalorder %s18, 0
      %p174 = por %p172, %p173
      %s176 = sadd.s32 %s175, 1
      %p179 = scmp.eq.s32.totalorder %s12, 3
      %p180 = scmp.ne.s32.totalorder %s175, %s177
      %p181 = scmp.eq.s32.totalorder %s12, 0
      %p182 = por %p180, %p181
      %p183 = scmp.ne.s32.totalorder %s175, %s177
      %p184 = scmp.eq.s32.totalorder %s17, 3
      %p185 = por %p183, %p184
      %p186 = scmp.ne.s32.totalorder %s177, %s178
      %p187 = scmp.eq.s32.totalorder %s17, 0
      %p188 = por %p186, %p187
      %p189 = scmp.ne.s32.totalorder %s177, %s178
      %p190 = scmp.eq.s32.totalorder %s18, 3
      %p191 = por %p189, %p190
      %p193 = scmp.ne.s32.totalorder %s178, %s192
      %p194 = scmp.eq.s32.totalorder %s18, 0
      %p195 = por %p193, %p194
      %s196 = ssub.s32 %s20, %s34
      %s197 = ssub.s32 %s19, %s38
      %s198 = sor.u32 %s196, %s197
      %p199 = scmp.eq.s32.totalorder %s198, 0
      %s201 = sadd.s32 %s200, 1
      %s202 = scalar_select %p199, %s200, %s201
      %p205 = pneg %p199
      %p206 = scmp.eq.s32.totalorder %s12, 3
      %p207 = por %p205, %p206
      %p208 = scmp.ne.s32.totalorder %s200, %s203
      %p209 = scmp.eq.s32.totalorder %s12, 0
      %p210 = por %p208, %p209
      %p211 = scmp.ne.s32.totalorder %s200, %s203
      %p212 = scmp.eq.s32.totalorder %s17, 3
      %p213 = por %p211, %p212
      %p214 = scmp.ne.s32.totalorder %s203, %s204
      %p215 = scmp.eq.s32.totalorder %s17, 0
      %p216 = por %p214, %p215
      %p217 = scmp.ne.s32.totalorder %s203, %s204
      %p218 = scmp.eq.s32.totalorder %s18, 3
      %p219 = por %p217, %p218
      %p221 = scmp.ne.s32.totalorder %s204, %s220
      %p222 = scmp.eq.s32.totalorder %s18, 0
      %p223 = por %p221, %p222
      %p224 = scmp.le.s32.totalorder 1, %s12
      %p225 = scmp.lt.s32.totalorder %s12, 5
      %p226 = pnand %p224, %p225
      %p227 = pneg %p226
      // Predicated region
      $region9: #{scenet_forward.3} parent=5 // pred_check
        _
      $region10: #{scenet_forward.3} parent=5 // pred_check_branch
        %229 = sbr.rel (%p226) target = $region12
      $region11: #{scenet_forward.3} parent=5 // pred_region
        %s230 = ssub.s32 %s12, 1
        // Predicated region
        $region13: #{scenet_forward.3} parent=11 // pred_check
          %p231 = pneg %p188
        $region14: #{scenet_forward.3} parent=11 // pred_check_branch
          %233 = sbr.rel (%p231) target = $region16
        $region15: #{scenet_forward.3} parent=11 // pred_region
          _
        $region16: #{scenet_forward.3} parent=11 // pred_fallthru
          _
      $region12: #{scenet_forward.3} parent=5 // pred_fallthru
        _
      %p234 = scmp.lt.s32.totalorder %s12, 4
      // Predicated region
      $region17: #{scenet_forward.3} parent=5 // pred_check
        %p235 = pneg %p234
      $region18: #{scenet_forward.3} parent=5 // pred_check_branch
        %237 = sbr.rel (%p235) target = $region20
      $region19: #{scenet_forward.3} parent=5 // pred_region
        // Predicated region
        $region21: #{scenet_forward.3} parent=19 // pred_check
          %p238 = pneg %p53
        $region22: #{scenet_forward.3} parent=19 // pred_check_branch
          %240 = sbr.rel (%p238) target = $region24
        $region23: #{scenet_forward.3} parent=19 // pred_region
          %s241 = sand.u32 %s43, 1
          %s242 = sand.u32 %s43, 1
          %s243 = smul.addr %s242, 104
          %s244 = scalar_lea.vmem [#allocation3], %s243
          %s245 = smul.u32 2, %s20
          %s246 = smul.addr %s245, 26
          %s247 = sadd.s32 %s21, %s246
          %s248 = smul.addr %s247, 4
          %s249 = scalar_lea.vmem %s0, %s248
          // Predicated region
          $region25: #{scenet_forward.3} parent=23 // pred_check
            _
          $region26: #{scenet_forward.3} parent=23 // pred_check_branch
            %251 = sbr.rel (0) target = $region28
          $region27: #{scenet_forward.3} parent=23 // pred_region
            // Predicated region
            $region29: #{scenet_forward.3} parent=27 // pred_check
              _
            $region30: #{scenet_forward.3} parent=27 // pred_check_branch
              %253 = sbr.rel target = $region32
            $region31: #{scenet_forward.3} parent=27 // pred_region
              // Predicated region
              $region44: #{scenet_forward.3} parent=31 // pred_check
                _
              $region45: #{scenet_forward.3} parent=31 // pred_check_branch
                %319 = sbr.rel (0) target = $region47
              $region46: #{scenet_forward.3} parent=31 // pred_region
                loop: start=0, step=1, limit=1
                $region48: #{scenet_forward.3} parent=46 // loop_pre_header
                  _
                $region49: #{scenet_forward.3} parent=46 // loop_header
                  %s321 = sphi 0, %s325
                  %p322 = scmp.ge.s32.totalorder %s321, 1
                  %s326 = sphi %s249, %s249
                  %s327 = sphi %s244, %s244
                $region50: #{scenet_forward.3} parent=46 // loop_header_branch
                  %324 = sbr.rel (%p322) target = $region54
                $region51: #{scenet_forward.3} parent=46 // loop_body
                  _
                $region52: #{scenet_forward.3} parent=46 // loop_footer
                  %s325 = sadd.s32 1, %s321
                $region53: #{scenet_forward.3} parent=46 // loop_footer_branch
                  %320 = sbr.rel target = $region49
                $region54: #{scenet_forward.3} parent=46 // loop_exit
                  _
                %s329 = ssub.s32 16, 1
                loop: start=0, step=1, limit=1
                $region55: #{scenet_forward.3} parent=46 // loop_pre_header
                  _
                $region56: #{scenet_forward.3} parent=46 // loop_header
                  %s331 = sphi 0, %s335
                  %p332 = scmp.ge.s32.totalorder %s331, 1
                  %s336 = sphi %s249, %s249
                  %s337 = sphi %s244, %s244
                $region57: #{scenet_forward.3} parent=46 // loop_header_branch
                  %334 = sbr.rel (%p332) target = $region61
                $region58: #{scenet_forward.3} parent=46 // loop_body
                  %v338 = vld [vmem:[%s336] sm:%s329]
                  %339 = vst [vmem:[%s337] sm:%s329] %v338
                  %v340 = vld [vmem:[%s336 + $0x8] sm:%s329]
                  %341 = vst [vmem:[%s337 + $0x4] sm:%s329] %v340
                  %v342 = vld [vmem:[%s336 + $0x10] sm:%s329]
                  %343 = vst [vmem:[%s337 + $0x8] sm:%s329] %v342
                  %v344 = vld [vmem:[%s336 + $0x18] sm:%s329]
                  %345 = vst [vmem:[%s337 + $0xc] sm:%s329] %v344
                  %v346 = vld [vmem:[%s336 + $0x20] sm:%s329]
                  %347 = vst [vmem:[%s337 + $0x10] sm:%s329] %v346
                  %v348 = vld [vmem:[%s336 + $0x28] sm:%s329]
                  %349 = vst [vmem:[%s337 + $0x14] sm:%s329] %v348
                  %v350 = vld [vmem:[%s336 + $0x30] sm:%s329]
                  %351 = vst [vmem:[%s337 + $0x18] sm:%s329] %v350
                  %v352 = vld [vmem:[%s336 + $0x38] sm:%s329]
                  %353 = vst [vmem:[%s337 + $0x1c] sm:%s329] %v352
                  %v354 = vld [vmem:[%s336 + $0x40] sm:%s329]
                  %355 = vst [vmem:[%s337 + $0x20] sm:%s329] %v354
                  %v356 = vld [vmem:[%s336 + $0x48] sm:%s329]
                  %357 = vst [vmem:[%s337 + $0x24] sm:%s329] %v356
                  %v358 = vld [vmem:[%s336 + $0x50] sm:%s329]
                  %359 = vst [vmem:[%s337 + $0x28] sm:%s329] %v358
                  %v360 = vld [vmem:[%s336 + $0x58] sm:%s329]
                  %361 = vst [vmem:[%s337 + $0x2c] sm:%s329] %v360
                  %v362 = vld [vmem:[%s336 + $0x60] sm:%s329]
                  %363 = vst [vmem:[%s337 + $0x30] sm:%s329] %v362
                  %v364 = vld [vmem:[%s336 + $0x68] sm:%s329]
                  %365 = vst [vmem:[%s337 + $0x34] sm:%s329] %v364
                  %v366 = vld [vmem:[%s336 + $0x70] sm:%s329]
                  %367 = vst [vmem:[%s337 + $0x38] sm:%s329] %v366
                  %v368 = vld [vmem:[%s336 + $0x78] sm:%s329]
                  %369 = vst [vmem:[%s337 + $0x3c] sm:%s329] %v368
                  %v370 = vld [vmem:[%s336 + $0x80] sm:%s329]
                  %371 = vst [vmem:[%s337 + $0x40] sm:%s329] %v370
                  %v372 = vld [vmem:[%s336 + $0x88] sm:%s329]
                  %373 = vst [vmem:[%s337 + $0x44] sm:%s329] %v372
                  %v374 = vld [vmem:[%s336 + $0x90] sm:%s329]
                  %375 = vst [vmem:[%s337 + $0x48] sm:%s329] %v374
                  %v376 = vld [vmem:[%s336 + $0x98] sm:%s329]
                  %377 = vst [vmem:[%s337 + $0x4c] sm:%s329] %v376
                  %v378 = vld [vmem:[%s336 + $0xa0] sm:%s329]
                  %379 = vst [vmem:[%s337 + $0x50] sm:%s329] %v378
                  %v380 = vld [vmem:[%s336 + $0xa8] sm:%s329]
                  %381 = vst [vmem:[%s337 + $0x54] sm:%s329] %v380
                  %v382 = vld [vmem:[%s336 + $0xb0] sm:%s329]
                  %383 = vst [vmem:[%s337 + $0x58] sm:%s329] %v382
                  %v384 = vld [vmem:[%s336 + $0xb8] sm:%s329]
                  %385 = vst [vmem:[%s337 + $0x5c] sm:%s329] %v384
                  %v386 = vld [vmem:[%s336 + $0xc0] sm:%s329]
                  %387 = vst [vmem:[%s337 + $0x60] sm:%s329] %v386
                  %v388 = vld [vmem:[%s336 + $0xc8] sm:%s329]
                  %389 = vst [vmem:[%s337 + $0x64] sm:%s329] %v388
                $region59: #{scenet_forward.3} parent=46 // loop_footer
                  %s335 = sadd.s32 1, %s331
                $region60: #{scenet_forward.3} parent=46 // loop_footer_branch
                  %330 = sbr.rel target = $region56
                $region61: #{scenet_forward.3} parent=46 // loop_exit
                  _
              $region47: #{scenet_forward.3} parent=31 // pred_fallthru
                _
            $region32: #{scenet_forward.3} parent=27 // pred_fallthru
              _
            // Predicated region
            $region33: #{scenet_forward.3} parent=27 // pred_check
              _
            $region34: #{scenet_forward.3} parent=27 // pred_check_branch
              %255 = sbr.rel (0) target = $region36
            $region35: #{scenet_forward.3} parent=27 // pred_region
              %s257 = ssub.s32 16, 1
              loop: start=0, step=1, limit=1
              $region37: #{scenet_forward.3} parent=35 // loop_pre_header
                _
              $region38: #{scenet_forward.3} parent=35 // loop_header
                %s259 = sphi 0, %s263
                %p260 = scmp.ge.s32.totalorder %s259, 1
                %s264 = sphi %s249, %s249
                %s265 = sphi %s244, %s244
              $region39: #{scenet_forward.3} parent=35 // loop_header_branch
                %262 = sbr.rel (%p260) target = $region43
              $region40: #{scenet_forward.3} parent=35 // loop_body
                %v266 = vld [vmem:[%s264] sm:%s257]
                %267 = vst [vmem:[%s265] sm:%s257] %v266
                %v268 = vld [vmem:[%s264 + $0x8] sm:%s257]
                %269 = vst [vmem:[%s265 + $0x4] sm:%s257] %v268
                %v270 = vld [vmem:[%s264 + $0x10] sm:%s257]
                %271 = vst [vmem:[%s265 + $0x8] sm:%s257] %v270
                %v272 = vld [vmem:[%s264 + $0x18] sm:%s257]
                %273 = vst [vmem:[%s265 + $0xc] sm:%s257] %v272
                %v274 = vld [vmem:[%s264 + $0x20] sm:%s257]
                %275 = vst [vmem:[%s265 + $0x10] sm:%s257] %v274
                %v276 = vld [vmem:[%s264 + $0x28] sm:%s257]
                %277 = vst [vmem:[%s265 + $0x14] sm:%s257] %v276
                %v278 = vld [vmem:[%s264 + $0x30] sm:%s257]
                %279 = vst [vmem:[%s265 + $0x18] sm:%s257] %v278
                %v280 = vld [vmem:[%s264 + $0x38] sm:%s257]
                %281 = vst [vmem:[%s265 + $0x1c] sm:%s257] %v280
                %v282 = vld [vmem:[%s264 + $0x40] sm:%s257]
                %283 = vst [vmem:[%s265 + $0x20] sm:%s257] %v282
                %v284 = vld [vmem:[%s264 + $0x48] sm:%s257]
                %285 = vst [vmem:[%s265 + $0x24] sm:%s257] %v284
                %v286 = vld [vmem:[%s264 + $0x50] sm:%s257]
                %287 = vst [vmem:[%s265 + $0x28] sm:%s257] %v286
                %v288 = vld [vmem:[%s264 + $0x58] sm:%s257]
                %289 = vst [vmem:[%s265 + $0x2c] sm:%s257] %v288
                %v290 = vld [vmem:[%s264 + $0x60] sm:%s257]
                %291 = vst [vmem:[%s265 + $0x30] sm:%s257] %v290
                %v292 = vld [vmem:[%s264 + $0x68] sm:%s257]
                %293 = vst [vmem:[%s265 + $0x34] sm:%s257] %v292
                %v294 = vld [vmem:[%s264 + $0x70] sm:%s257]
                %295 = vst [vmem:[%s265 + $0x38] sm:%s257] %v294
                %v296 = vld [vmem:[%s264 + $0x78] sm:%s257]
                %297 = vst [vmem:[%s265 + $0x3c] sm:%s257] %v296
                %v298 = vld [vmem:[%s264 + $0x80] sm:%s257]
                %299 = vst [vmem:[%s265 + $0x40] sm:%s257] %v298
                %v300 = vld [vmem:[%s264 + $0x88] sm:%s257]
                %301 = vst [vmem:[%s265 + $0x44] sm:%s257] %v300
                %v302 = vld [vmem:[%s264 + $0x90] sm:%s257]
                %303 = vst [vmem:[%s265 + $0x48] sm:%s257] %v302
                %v304 = vld [vmem:[%s264 + $0x98] sm:%s257]
                %305 = vst [vmem:[%s265 + $0x4c] sm:%s257] %v304
                %v306 = vld [vmem:[%s264 + $0xa0] sm:%s257]
                %307 = vst [vmem:[%s265 + $0x50] sm:%s257] %v306
                %v308 = vld [vmem:[%s264 + $0xa8] sm:%s257]
                %309 = vst [vmem:[%s265 + $0x54] sm:%s257] %v308
                %v310 = vld [vmem:[%s264 + $0xb0] sm:%s257]
                %311 = vst [vmem:[%s265 + $0x58] sm:%s257] %v310
                %v312 = vld [vmem:[%s264 + $0xb8] sm:%s257]
                %313 = vst [vmem:[%s265 + $0x5c] sm:%s257] %v312
                %v314 = vld [vmem:[%s264 + $0xc0] sm:%s257]
                %315 = vst [vmem:[%s265 + $0x60] sm:%s257] %v314
                %v316 = vld [vmem:[%s264 + $0xc8] sm:%s257]
                %317 = vst [vmem:[%s265 + $0x64] sm:%s257] %v316
              $region41: #{scenet_forward.3} parent=35 // loop_footer
                %s263 = sadd.s32 1, %s259
              $region42: #{scenet_forward.3} parent=35 // loop_footer_branch
                %258 = sbr.rel target = $region38
              $region43: #{scenet_forward.3} parent=35 // loop_exit
                _
            $region36: #{scenet_forward.3} parent=27 // pred_fallthru
              _
          $region28: #{scenet_forward.3} parent=23 // pred_fallthru
            _
          %390 = vnop
        $region24: #{scenet_forward.3} parent=19 // pred_fallthru
          _
        // Predicated region
        $region62: #{scenet_forward.3} parent=19 // pred_check
          %p391 = pneg %p81
        $region63: #{scenet_forward.3} parent=19 // pred_check_branch
          %393 = sbr.rel (%p391) target = $region65
        $region64: #{scenet_forward.3} parent=19 // pred_region
          %p394 = scmp.lt.s32.totalorder %s21, 1
          %s395 = scalar_select %p394, %s21, 1
          %p396 = scmp.lt.s32.totalorder %s19, 1
          %s397 = scalar_select %p396, %s19, 1
          %s398 = smul.addr %s397, 144
          %s399 = smul.addr %s395, 288
          %s400 = sadd.s32 %s398, %s399
          %s401 = smul.addr %s400, 4
          %s402 = scalar_lea.vmem %s1, %s401
        $region65: #{scenet_forward.3} parent=19 // pred_fallthru
          _
        // Predicated region
        $region66: #{scenet_forward.3} parent=19 // pred_check
          %p403 = pneg %p107
        $region67: #{scenet_forward.3} parent=19 // pred_check_branch
          %405 = sbr.rel (%p403) target = $region69
        $region68: #{scenet_forward.3} parent=19 // pred_region
          %p406 = scmp.lt.s32.totalorder %s19, 1
          %s407 = scalar_select %p406, %s19, 1
          %s408 = scalar_lea.vmem %s2, %s407
        $region69: #{scenet_forward.3} parent=19 // pred_fallthru
          _
        // Predicated region
        $region70: #{scenet_forward.3} parent=19 // pred_check
          %p409 = pneg %p133
        $region71: #{scenet_forward.3} parent=19 // pred_check_branch
          %411 = sbr.rel (%p409) target = $region73
        $region72: #{scenet_forward.3} parent=19 // pred_region
          %p412 = scmp.lt.s32.totalorder %s19, 1
          %s413 = scalar_select %p412, %s19, 1
          %s414 = scalar_lea.vmem %s3, %s413
        $region73: #{scenet_forward.3} parent=19 // pred_fallthru
          _
        // Predicated region
        $region74: #{scenet_forward.3} parent=19 // pred_check
          %p415 = pneg %p161
        $region75: #{scenet_forward.3} parent=19 // pred_check_branch
          %417 = sbr.rel (%p415) target = $region77
        $region76: #{scenet_forward.3} parent=19 // pred_region
          %s418 = sand.u32 %s151, 1
          %s419 = sand.u32 %s151, 1
          %s420 = smul.addr %s419, 208
          %s421 = scalar_lea.vmem [#allocation4], %s420
          %s422 = smul.u32 2, %s20
          %s423 = smul.addr %s422, 26
          %s424 = sadd.s32 %s19, %s423
          %s425 = smul.addr %s424, 8
          %s426 = scalar_lea.vmem %s4, %s425
          // Predicated region
          $region78: #{scenet_forward.3} parent=76 // pred_check
            _
          $region79: #{scenet_forward.3} parent=76 // pred_check_branch
            %428 = sbr.rel (0) target = $region81
          $region80: #{scenet_forward.3} parent=76 // pred_region
            // Predicated region
            $region82: #{scenet_forward.3} parent=80 // pred_check
              _
            $region83: #{scenet_forward.3} parent=80 // pred_check_branch
              %430 = sbr.rel (0) target = $region85
            $region84: #{scenet_forward.3} parent=80 // pred_region
              // Predicated region
              $region97: #{scenet_forward.3} parent=84 // pred_check
                _
              $region98: #{scenet_forward.3} parent=84 // pred_check_branch
                %496 = sbr.rel (0) target = $region100
              $region99: #{scenet_forward.3} parent=84 // pred_region
                loop: start=0, step=1, limit=1
                $region101: #{scenet_forward.3} parent=99 // loop_pre_header
                  _
                $region102: #{scenet_forward.3} parent=99 // loop_header
                  %s498 = sphi 0, %s502
                  %p499 = scmp.ge.s32.totalorder %s498, 1
                  %s503 = sphi %s426, %s426
                  %s504 = sphi %s421, %s421
                $region103: #{scenet_forward.3} parent=99 // loop_header_branch
                  %501 = sbr.rel (%p499) target = $region107
                $region104: #{scenet_forward.3} parent=99 // loop_body
                  %v505 = vld [vmem:[%s503] sm:$0xff]
                  %506 = vst [vmem:[%s504] sm:$0xff] %v505
                  %v507 = vld [vmem:[%s503 + $0x10] sm:$0xff]
                  %508 = vst [vmem:[%s504 + $0x8] sm:$0xff] %v507
                  %v509 = vld [vmem:[%s503 + $0x20] sm:$0xff]
                  %510 = vst [vmem:[%s504 + $0x10] sm:$0xff] %v509
                  %v511 = vld [vmem:[%s503 + $0x30] sm:$0xff]
                  %512 = vst [vmem:[%s504 + $0x18] sm:$0xff] %v511
                  %v513 = vld [vmem:[%s503 + $0x40] sm:$0xff]
                  %514 = vst [vmem:[%s504 + $0x20] sm:$0xff] %v513
                  %v515 = vld [vmem:[%s503 + $0x50] sm:$0xff]
                  %516 = vst [vmem:[%s504 + $0x28] sm:$0xff] %v515
                  %v517 = vld [vmem:[%s503 + $0x60] sm:$0xff]
                  %518 = vst [vmem:[%s504 + $0x30] sm:$0xff] %v517
                  %v519 = vld [vmem:[%s503 + $0x70] sm:$0xff]
                  %520 = vst [vmem:[%s504 + $0x38] sm:$0xff] %v519
                  %v521 = vld [vmem:[%s503 + $0x80] sm:$0xff]
                  %522 = vst [vmem:[%s504 + $0x40] sm:$0xff] %v521
                  %v523 = vld [vmem:[%s503 + $0x90] sm:$0xff]
                  %524 = vst [vmem:[%s504 + $0x48] sm:$0xff] %v523
                  %v525 = vld [vmem:[%s503 + $0xa0] sm:$0xff]
                  %526 = vst [vmem:[%s504 + $0x50] sm:$0xff] %v525
                  %v527 = vld [vmem:[%s503 + $0xb0] sm:$0xff]
                  %528 = vst [vmem:[%s504 + $0x58] sm:$0xff] %v527
                  %v529 = vld [vmem:[%s503 + $0xc0] sm:$0xff]
                  %530 = vst [vmem:[%s504 + $0x60] sm:$0xff] %v529
                  %v531 = vld [vmem:[%s503 + $0xd0] sm:$0xff]
                  %532 = vst [vmem:[%s504 + $0x68] sm:$0xff] %v531
                  %v533 = vld [vmem:[%s503 + $0xe0] sm:$0xff]
                  %534 = vst [vmem:[%s504 + $0x70] sm:$0xff] %v533
                  %v535 = vld [vmem:[%s503 + $0xf0] sm:$0xff]
                  %536 = vst [vmem:[%s504 + $0x78] sm:$0xff] %v535
                  %v537 = vld [vmem:[%s503 + $0x100] sm:$0xff]
                  %538 = vst [vmem:[%s504 + $0x80] sm:$0xff] %v537
                  %v539 = vld [vmem:[%s503 + $0x110] sm:$0xff]
                  %540 = vst [vmem:[%s504 + $0x88] sm:$0xff] %v539
                  %v541 = vld [vmem:[%s503 + $0x120] sm:$0xff]
                  %542 = vst [vmem:[%s504 + $0x90] sm:$0xff] %v541
                  %v543 = vld [vmem:[%s503 + $0x130] sm:$0xff]
                  %544 = vst [vmem:[%s504 + $0x98] sm:$0xff] %v543
                  %v545 = vld [vmem:[%s503 + $0x140] sm:$0xff]
                  %546 = vst [vmem:[%s504 + $0xa0] sm:$0xff] %v545
                  %v547 = vld [vmem:[%s503 + $0x150] sm:$0xff]
                  %548 = vst [vmem:[%s504 + $0xa8] sm:$0xff] %v547
                  %v549 = vld [vmem:[%s503 + $0x160] sm:$0xff]
                  %550 = vst [vmem:[%s504 + $0xb0] sm:$0xff] %v549
                  %v551 = vld [vmem:[%s503 + $0x170] sm:$0xff]
                  %552 = vst [vmem:[%s504 + $0xb8] sm:$0xff] %v551
                  %v553 = vld [vmem:[%s503 + $0x180] sm:$0xff]
                  %554 = vst [vmem:[%s504 + $0xc0] sm:$0xff] %v553
                  %v555 = vld [vmem:[%s503 + $0x190] sm:$0xff]
                  %556 = vst [vmem:[%s504 + $0xc8] sm:$0xff] %v555
                $region105: #{scenet_forward.3} parent=99 // loop_footer
                  %s502 = sadd.s32 1, %s498
                $region106: #{scenet_forward.3} parent=99 // loop_footer_branch
                  %497 = sbr.rel target = $region102
                $region107: #{scenet_forward.3} parent=99 // loop_exit
                  _
              $region100: #{scenet_forward.3} parent=84 // pred_fallthru
                _
              // Predicated region
              $region108: #{scenet_forward.3} parent=84 // pred_check
                _
              $region109: #{scenet_forward.3} parent=84 // pred_check_branch
                %558 = sbr.rel target = $region111
              $region110: #{scenet_forward.3} parent=84 // pred_region
                _
              $region111: #{scenet_forward.3} parent=84 // pred_fallthru
                _
            $region85: #{scenet_forward.3} parent=80 // pred_fallthru
              _
            // Predicated region
            $region86: #{scenet_forward.3} parent=80 // pred_check
              _
            $region87: #{scenet_forward.3} parent=80 // pred_check_branch
              %432 = sbr.rel target = $region89
            $region88: #{scenet_forward.3} parent=80 // pred_region
              %s434 = ssub.s32 256, 1
              loop: start=0, step=1, limit=1
              $region90: #{scenet_forward.3} parent=88 // loop_pre_header
                _
              $region91: #{scenet_forward.3} parent=88 // loop_header
                %s436 = sphi 0, %s440
                %p437 = scmp.ge.s32.totalorder %s436, 1
                %s441 = sphi %s426, %s426
                %s442 = sphi %s421, %s421
              $region92: #{scenet_forward.3} parent=88 // loop_header_branch
                %439 = sbr.rel (%p437) target = $region96
              $region93: #{scenet_forward.3} parent=88 // loop_body
                %v443 = vld [vmem:[%s441] sm:%s434]
                %444 = vst [vmem:[%s442] sm:%s434] %v443
                %v445 = vld [vmem:[%s441 + $0x10] sm:%s434]
                %446 = vst [vmem:[%s442 + $0x8] sm:%s434] %v445
                %v447 = vld [vmem:[%s441 + $0x20] sm:%s434]
                %448 = vst [vmem:[%s442 + $0x10] sm:%s434] %v447
                %v449 = vld [vmem:[%s441 + $0x30] sm:%s434]
                %450 = vst [vmem:[%s442 + $0x18] sm:%s434] %v449
                %v451 = vld [vmem:[%s441 + $0x40] sm:%s434]
                %452 = vst [vmem:[%s442 + $0x20] sm:%s434] %v451
                %v453 = vld [vmem:[%s441 + $0x50] sm:%s434]
                %454 = vst [vmem:[%s442 + $0x28] sm:%s434] %v453
                %v455 = vld [vmem:[%s441 + $0x60] sm:%s434]
                %456 = vst [vmem:[%s442 + $0x30] sm:%s434] %v455
                %v457 = vld [vmem:[%s441 + $0x70] sm:%s434]
                %458 = vst [vmem:[%s442 + $0x38] sm:%s434] %v457
                %v459 = vld [vmem:[%s441 + $0x80] sm:%s434]
                %460 = vst [vmem:[%s442 + $0x40] sm:%s434] %v459
                %v461 = vld [vmem:[%s441 + $0x90] sm:%s434]
                %462 = vst [vmem:[%s442 + $0x48] sm:%s434] %v461
                %v463 = vld [vmem:[%s441 + $0xa0] sm:%s434]
                %464 = vst [vmem:[%s442 + $0x50] sm:%s434] %v463
                %v465 = vld [vmem:[%s441 + $0xb0] sm:%s434]
                %466 = vst [vmem:[%s442 + $0x58] sm:%s434] %v465
                %v467 = vld [vmem:[%s441 + $0xc0] sm:%s434]
                %468 = vst [vmem:[%s442 + $0x60] sm:%s434] %v467
                %v469 = vld [vmem:[%s441 + $0xd0] sm:%s434]
                %470 = vst [vmem:[%s442 + $0x68] sm:%s434] %v469
                %v471 = vld [vmem:[%s441 + $0xe0] sm:%s434]
                %472 = vst [vmem:[%s442 + $0x70] sm:%s434] %v471
                %v473 = vld [vmem:[%s441 + $0xf0] sm:%s434]
                %474 = vst [vmem:[%s442 + $0x78] sm:%s434] %v473
                %v475 = vld [vmem:[%s441 + $0x100] sm:%s434]
                %476 = vst [vmem:[%s442 + $0x80] sm:%s434] %v475
                %v477 = vld [vmem:[%s441 + $0x110] sm:%s434]
                %478 = vst [vmem:[%s442 + $0x88] sm:%s434] %v477
                %v479 = vld [vmem:[%s441 + $0x120] sm:%s434]
                %480 = vst [vmem:[%s442 + $0x90] sm:%s434] %v479
                %v481 = vld [vmem:[%s441 + $0x130] sm:%s434]
                %482 = vst [vmem:[%s442 + $0x98] sm:%s434] %v481
                %v483 = vld [vmem:[%s441 + $0x140] sm:%s434]
                %484 = vst [vmem:[%s442 + $0xa0] sm:%s434] %v483
                %v485 = vld [vmem:[%s441 + $0x150] sm:%s434]
                %486 = vst [vmem:[%s442 + $0xa8] sm:%s434] %v485
                %v487 = vld [vmem:[%s441 + $0x160] sm:%s434]
                %488 = vst [vmem:[%s442 + $0xb0] sm:%s434] %v487
                %v489 = vld [vmem:[%s441 + $0x170] sm:%s434]
                %490 = vst [vmem:[%s442 + $0xb8] sm:%s434] %v489
                %v491 = vld [vmem:[%s441 + $0x180] sm:%s434]
                %492 = vst [vmem:[%s442 + $0xc0] sm:%s434] %v491
                %v493 = vld [vmem:[%s441 + $0x190] sm:%s434]
                %494 = vst [vmem:[%s442 + $0xc8] sm:%s434] %v493
              $region94: #{scenet_forward.3} parent=88 // loop_footer
                %s440 = sadd.s32 1, %s436
              $region95: #{scenet_forward.3} parent=88 // loop_footer_branch
                %435 = sbr.rel target = $region91
              $region96: #{scenet_forward.3} parent=88 // loop_exit
                _
            $region89: #{scenet_forward.3} parent=80 // pred_fallthru
              _
          $region81: #{scenet_forward.3} parent=76 // pred_fallthru
            _
          %559 = vnop
        $region77: #{scenet_forward.3} parent=19 // pred_fallthru
          _
      $region20: #{scenet_forward.3} parent=5 // pred_fallthru
        _
      %p560 = scmp.le.s32.totalorder 1, %s12
      %p561 = scmp.lt.s32.totalorder %s12, 5
      %p562 = pnand %p560, %p561
      %p563 = pneg %p562
      // Predicated region
      $region112: #{scenet_forward.3} parent=5 // pred_check
        _
      $region113: #{scenet_forward.3} parent=5 // pred_check_branch
        %565 = sbr.rel (%p562) target = $region115
      $region114: #{scenet_forward.3} parent=5 // pred_region
        %s566 = ssub.s32 %s12, 1
        %s567 = sand.u32 %s46, 1
        %s568 = sand.u32 %s46, 1
        %s569 = smul.addr %s568, 104
        %s570 = scalar_lea.vmem [#allocation3], %s569
        // Predicated region
        $region116: #{scenet_forward.3} parent=114 // pred_check
          %p571 = pneg %p59
        $region117: #{scenet_forward.3} parent=114 // pred_check_branch
          %573 = sbr.rel (%p571) target = $region119
        $region118: #{scenet_forward.3} parent=114 // pred_region
          _
        $region119: #{scenet_forward.3} parent=114 // pred_fallthru
          _
        %s574 = sand.u32 %s154, 1
        %s575 = sand.u32 %s154, 1
        %s576 = smul.addr %s575, 208
        %s577 = scalar_lea.vmem [#allocation4], %s576
        // Predicated region
        $region120: #{scenet_forward.3} parent=114 // pred_check
          %p578 = pneg %p167
        $region121: #{scenet_forward.3} parent=114 // pred_check_branch
          %580 = sbr.rel (%p578) target = $region123
        $region122: #{scenet_forward.3} parent=114 // pred_region
          _
        $region123: #{scenet_forward.3} parent=114 // pred_fallthru
          _
        %s581 = sand.u32 %s46, 1
        %s582 = sand.u32 %s46, 1
        %s583 = smul.addr %s582, 104
        %s584 = scalar_lea.vmem [#allocation3], %s583
        %p585 = pneg %p59
        %p586 = pneg %p56
        %p587 = scmp.lt.s32.totalorder %s24, 1
        %s588 = scalar_select %p587, %s24, 1
        %p589 = scmp.lt.s32.totalorder %s22, 1
        %s590 = scalar_select %p589, %s22, 1
        %s591 = smul.addr %s590, 144
        %s592 = smul.addr %s588, 288
        %s593 = sadd.s32 %s591, %s592
        %s594 = smul.addr %s593, 4
        %s595 = scalar_lea.vmem %s1, %s594
        %p596 = pneg %p87
        %p597 = pneg %p84
        %p598 = scmp.lt.s32.totalorder %s22, 1
        %s599 = scalar_select %p598, %s22, 1
        %s600 = scalar_lea.vmem %s2, %s599
        %p601 = pneg %p113
        %p602 = pneg %p110
        %p603 = scmp.lt.s32.totalorder %s22, 1
        %s604 = scalar_select %p603, %s22, 1
        %s605 = scalar_lea.vmem %s3, %s604
        %p606 = pneg %p139
        %p607 = pneg %p136
        %s608 = sand.u32 %s154, 1
        %s609 = sand.u32 %s154, 1
        %s610 = smul.addr %s609, 208
        %s611 = scalar_lea.vmem [#allocation4], %s610
        %p612 = pneg %p167
        %p613 = pneg %p164
        %p614 = pneg %p188
        %p615 = pneg %p185
        %p616 = pneg %p216
        %p617 = pneg %p213
        %p618 = scmp.lt.s32.totalorder %s23, 0
        %s619 = scalar_select %p618, %s23, 0
        %p620 = scmp.lt.s32.totalorder %s22, 1
        %s621 = scalar_select %p620, %s22, 1
        %s622 = smul.addr %s619, 2
        %s623 = sadd.s32 %s621, %s622
        %s624 = smul.addr %s623, 2
        %s625 = scalar_lea.vmem %s6, %s624
        %s626 = smul.u32 2, %s23
        %p627 = scmp.lt.s32.totalorder %s24, 1
        %s628 = scalar_select %p627, %s24, 1
        %p629 = scmp.lt.s32.totalorder %s22, 1
        %s630 = scalar_select %p629, %s22, 1
        %s631 = smul.addr %s630, 144
        %s632 = smul.addr %s628, 288
        %s633 = sadd.s32 %s631, %s632
        %s634 = smul.addr %s633, 4
        %s635 = scalar_lea.vmem %s1, %s634
        %p636 = scmp.lt.s32.totalorder %s22, 1
        %s637 = scalar_select %p636, %s22, 1
        %s638 = scalar_lea.vmem %s2, %s637
        %p639 = scmp.lt.s32.totalorder %s22, 1
        %s640 = scalar_select %p639, %s22, 1
        %s641 = scalar_lea.vmem %s3, %s640
        %s642 = smul.u32 2, %s23
        %p643 = scmp.lt.s32.totalorder %s23, 0
        %s644 = scalar_select %p643, %s23, 0
        %p645 = scmp.lt.s32.totalorder %s22, 1
        %s646 = scalar_select %p645, %s22, 1
        %s647 = smul.addr %s644, 2
        %s648 = sadd.s32 %s646, %s647
        %s649 = smul.addr %s648, 2
        %s650 = scalar_lea.vmem %s6, %s649
        %v651 = vld [vmem:[%s570] sm:$0xf]
        %v652 = vld [vmem:[%s570 + $0x4] sm:$0xf]
        %v653 = vld [vmem:[%s570 + $0x8] sm:$0xf]
        %v654 = vld [vmem:[%s570 + $0xc] sm:$0xf]
        %v655 = vld [vmem:[%s570 + $0x10] sm:$0xf]
        %v656 = vld [vmem:[%s570 + $0x14] sm:$0xf]
        %v657 = vld [vmem:[%s570 + $0x18] sm:$0xf]
        %v658 = vld [vmem:[%s570 + $0x1c] sm:$0xf]
        %v659 = vld [vmem:[%s570 + $0x20] sm:$0xf]
        %v660 = vld [vmem:[%s570 + $0x24] sm:$0xf]
        %v661 = vld [vmem:[%s570 + $0x28] sm:$0xf]
        %v662 = vld [vmem:[%s570 + $0x2c] sm:$0xf]
        %v663 = vld [vmem:[%s570 + $0x30] sm:$0xf]
        %v664 = vld [vmem:[%s570 + $0x34] sm:$0xf]
        %v665 = vld [vmem:[%s570 + $0x38] sm:$0xf]
        %v666 = vld [vmem:[%s570 + $0x3c] sm:$0xf]
        %v667 = vld [vmem:[%s570 + $0x40] sm:$0xf]
        %v668 = vld [vmem:[%s570 + $0x44] sm:$0xf]
        %v669 = vld [vmem:[%s570 + $0x48] sm:$0xf]
        %v670 = vld [vmem:[%s570 + $0x4c] sm:$0xf]
        %v671 = vld [vmem:[%s570 + $0x50] sm:$0xf]
        %v672 = vld [vmem:[%s570 + $0x54] sm:$0xf]
        %v673 = vld [vmem:[%s570 + $0x58] sm:$0xf]
        %v674 = vld [vmem:[%s570 + $0x5c] sm:$0xf]
        %v675 = vld [vmem:[%s570 + $0x60] sm:$0xf]
        %v676 = vld [vmem:[%s570 + $0x64] sm:$0xf]
        %v677 = vld [vmem:[%s635] sm:$0xf]
        %v678 = vld [vmem:[%s635 + $0x4] sm:$0xf]
        %v679 = vld [vmem:[%s635 + $0x8] sm:$0xf]
        %v680 = vld [vmem:[%s635 + $0xc] sm:$0xf]
        %v681 = vld [vmem:[%s635 + $0x10] sm:$0xf]
        %v682 = vld [vmem:[%s635 + $0x14] sm:$0xf]
        %v683 = vld [vmem:[%s635 + $0x18] sm:$0xf]
        %v684 = vld [vmem:[%s635 + $0x1c] sm:$0xf]
        %v685 = vld [vmem:[%s635 + $0x20] sm:$0xf]
        %v686 = vld [vmem:[%s635 + $0x24] sm:$0xf]
        %v687 = vld [vmem:[%s635 + $0x28] sm:$0xf]
        %v688 = vld [vmem:[%s635 + $0x2c] sm:$0xf]
        %v689 = vld [vmem:[%s635 + $0x30] sm:$0xf]
        %v690 = vld [vmem:[%s635 + $0x34] sm:$0xf]
        %v691 = vld [vmem:[%s635 + $0x38] sm:$0xf]
        %v692 = vld [vmem:[%s635 + $0x3c] sm:$0xf]
        %v719 = vunpack.c.l.b16 %v651
        %v720 = vunpack.c.l.b16 %v652
        %v721 = vunpack.c.l.b16 %v653
        %v722 = vunpack.c.l.b16 %v654
        %v723 = vunpack.c.l.b16 %v655
        %v724 = vunpack.c.l.b16 %v656
        %v725 = vunpack.c.l.b16 %v657
        %v726 = vunpack.c.l.b16 %v658
        %v727 = vunpack.c.l.b16 %v659
        %v728 = vunpack.c.l.b16 %v660
        %v729 = vunpack.c.l.b16 %v661
        %v730 = vunpack.c.l.b16 %v662
        %v731 = vunpack.c.l.b16 %v663
        %v732 = vunpack.c.l.b16 %v664
        %v733 = vunpack.c.l.b16 %v665
        %v734 = vunpack.c.l.b16 %v666
        %v735 = vunpack.c.l.b16 %v667
        %v736 = vunpack.c.l.b16 %v668
        %v737 = vunpack.c.l.b16 %v669
        %v738 = vunpack.c.l.b16 %v670
        %v739 = vunpack.c.l.b16 %v671
        %v740 = vunpack.c.l.b16 %v672
        %v741 = vunpack.c.l.b16 %v673
        %v742 = vunpack.c.l.b16 %v674
        %v743 = vunpack.c.l.b16 %v675
        %v744 = vunpack.c.l.b16 %v676
        %v745 = vpack.c.b16 %v720, %v719
        %v746 = vpack.c.b16 %v722, %v721
        %v747 = vpack.c.b16 %v724, %v723
        %v748 = vpack.c.b16 %v726, %v725
        %v749 = vpack.c.b16 %v728, %v727
        %v750 = vpack.c.b16 %v730, %v729
        %v751 = vpack.c.b16 %v732, %v731
        %v752 = vpack.c.b16 %v734, %v733
        %v753 = vpack.c.b16 %v736, %v735
        %v754 = vpack.c.b16 %v738, %v737
        %v755 = vpack.c.b16 %v740, %v739
        %v756 = vpack.c.b16 %v742, %v741
        %v757 = vpack.c.b16 %v744, %v743
        %v787 = vunpack.c.l.b16 %v677
        %v788 = vunpack.c.l.b16 %v678
        %v789 = vunpack.c.l.b16 %v679
        %v790 = vunpack.c.l.b16 %v680
        %v791 = vunpack.c.l.b16 %v681
        %v792 = vunpack.c.l.b16 %v682
        %v793 = vunpack.c.l.b16 %v683
        %v794 = vunpack.c.l.b16 %v684
        %v795 = vunpack.c.l.b16 %v685
        %v796 = vunpack.c.l.b16 %v686
        %v797 = vunpack.c.l.b16 %v687
        %v798 = vunpack.c.l.b16 %v688
        %v799 = vunpack.c.l.b16 %v689
        %v800 = vunpack.c.l.b16 %v690
        %v801 = vunpack.c.l.b16 %v691
        %v802 = vunpack.c.l.b16 %v692
        %v803 = vpack.c.b16 %v788, %v787
        %v804 = vpack.c.b16 %v790, %v789
        %v805 = vpack.c.b16 %v792, %v791
        %v806 = vpack.c.b16 %v794, %v793
        %v807 = vpack.c.b16 %v796, %v795
        %v808 = vpack.c.b16 %v798, %v797
        %v809 = vpack.c.b16 %v800, %v799
        %v810 = vpack.c.b16 %v802, %v801
        %819 = vmatpush.bf16.msra.mxu0 %v810
        %820 = vmatpush.bf16.msra.mxu0 %v809
        %821 = vmatpush.bf16.msra.mxu0 %v808
        %822 = vmatpush.bf16.msra.mxu0 %v807
        %823 = vmatpush.bf16.msra.mxu0 %v806
        %824 = vmatpush.bf16.msra.mxu0 %v805
        %825 = vmatpush.bf16.msra.mxu0 %v804
        %826 = vmatpush.bf16.msra.mxu0 %v803
        %827 = vmatmul.bf16.gmra.mxu0 %v745
        %v828 = vpop.f32.mrf.mxu0
        %v829 = vadd.f32 0.0, %v828
        %v830 = vpop.f32.mrf.mxu0
        %v831 = vadd.f32 0.0, %v830
        %832 = vmatmul.bf16.gmra.mxu0 %v746
        %v833 = vpop.f32.mrf.mxu0
        %v834 = vadd.f32 0.0, %v833
        %v835 = vpop.f32.mrf.mxu0
        %v836 = vadd.f32 0.0, %v835
        %837 = vmatmul.bf16.gmra.mxu0 %v747
        %v838 = vpop.f32.mrf.mxu0
        %v839 = vadd.f32 0.0, %v838
        %v840 = vpop.f32.mrf.mxu0
        %v841 = vadd.f32 0.0, %v840
        %842 = vmatmul.bf16.gmra.mxu0 %v748
        %v843 = vpop.f32.mrf.mxu0
        %v844 = vadd.f32 0.0, %v843
        %v845 = vpop.f32.mrf.mxu0
        %v846 = vadd.f32 0.0, %v845
        %847 = vmatmul.bf16.gmra.mxu0 %v749
        %v848 = vpop.f32.mrf.mxu0
        %v849 = vadd.f32 0.0, %v848
        %v850 = vpop.f32.mrf.mxu0
        %v851 = vadd.f32 0.0, %v850
        %852 = vmatmul.bf16.gmra.mxu0 %v750
        %v853 = vpop.f32.mrf.mxu0
        %v854 = vadd.f32 0.0, %v853
        %v855 = vpop.f32.mrf.mxu0
        %v856 = vadd.f32 0.0, %v855
        %857 = vmatmul.bf16.gmra.mxu0 %v751
        %v858 = vpop.f32.mrf.mxu0
        %v859 = vadd.f32 0.0, %v858
        %v860 = vpop.f32.mrf.mxu0
        %v861 = vadd.f32 0.0, %v860
        %862 = vmatmul.bf16.gmra.mxu0 %v752
        %v863 = vpop.f32.mrf.mxu0
        %v864 = vadd.f32 0.0, %v863
        %v865 = vpop.f32.mrf.mxu0
        %v866 = vadd.f32 0.0, %v865
        %867 = vmatmul.bf16.gmra.mxu0 %v753
        %v868 = vpop.f32.mrf.mxu0
        %v869 = vadd.f32 0.0, %v868
        %v870 = vpop.f32.mrf.mxu0
        %v871 = vadd.f32 0.0, %v870
        %872 = vmatmul.bf16.gmra.mxu0 %v754
        %v873 = vpop.f32.mrf.mxu0
        %v874 = vadd.f32 0.0, %v873
        %v875 = vpop.f32.mrf.mxu0
        %v876 = vadd.f32 0.0, %v875
        %877 = vmatmul.bf16.gmra.mxu0 %v755
        %v878 = vpop.f32.mrf.mxu0
        %v879 = vadd.f32 0.0, %v878
        %v880 = vpop.f32.mrf.mxu0
        %v881 = vadd.f32 0.0, %v880
        %882 = vmatmul.bf16.gmra.mxu0 %v756
        %v883 = vpop.f32.mrf.mxu0
        %v884 = vadd.f32 0.0, %v883
        %v885 = vpop.f32.mrf.mxu0
        %v886 = vadd.f32 0.0, %v885
        %887 = vmatmul.bf16.gmra.mxu0 %v757
        %v888 = vpop.f32.mrf.mxu0
        %v889 = vadd.f32 0.0, %v888
        %v890 = vpop.f32.mrf.mxu0
        %v891 = vadd.f32 0.0, %v890
        %892 = vdwg.mxu0
        %v893 = vrot.slane %v829, 5
        %v894 = vrot.slane %v831, 5
        %v895 = vrot.slane %v834, 5
        %v896 = vrot.slane %v836, 5
        %v897 = vrot.slane %v839, 5
        %v898 = vrot.slane %v841, 5
        %v899 = vrot.slane %v844, 5
        %v900 = vrot.slane %v846, 5
        %v901 = vrot.slane %v849, 5
        %v902 = vrot.slane %v851, 5
        %v903 = vrot.slane %v854, 5
        %v904 = vrot.slane %v856, 5
        %v905 = vrot.slane %v859, 5
        %v906 = vrot.slane %v861, 5
        %v907 = vrot.slane %v864, 5
        %v908 = vrot.slane %v866, 5
        %v909 = vrot.slane %v869, 5
        %v910 = vrot.slane %v871, 5
        %v911 = vrot.slane %v874, 5
        %v912 = vrot.slane %v876, 5
        %v913 = vrot.slane %v879, 5
        %v914 = vrot.slane %v881, 5
        %v915 = vrot.slane %v884, 5
        %v916 = vrot.slane %v886, 5
        %v917 = vrot.slane %v889, 5
        %v918 = vrot.slane %v891, 5
        %v919 = vlaneseq
        %v920 = vshrl.u32 %v919, 7
        %vm921 = vcmp.lt.s32.totalorder %v920, 3
        %v922 = vsel %vm921, %v917, %v918
        %v923 = vsel %vm921, %v916, %v917
        %v924 = vsel %vm921, %v915, %v916
        %v925 = vsel %vm921, %v914, %v915
        %v926 = vsel %vm921, %v913, %v914
        %v927 = vsel %vm921, %v912, %v913
        %v928 = vsel %vm921, %v911, %v912
        %v929 = vsel %vm921, %v910, %v911
        %v930 = vsel %vm921, %v909, %v910
        %v931 = vsel %vm921, %v908, %v909
        %v932 = vsel %vm921, %v907, %v908
        %v933 = vsel %vm921, %v906, %v907
        %v934 = vsel %vm921, %v905, %v906
        %v935 = vsel %vm921, %v904, %v905
        %v936 = vsel %vm921, %v903, %v904
        %v937 = vsel %vm921, %v902, %v903
        %v938 = vsel %vm921, %v901, %v902
        %v939 = vsel %vm921, %v900, %v901
        %v940 = vsel %vm921, %v899, %v900
        %v941 = vsel %vm921, %v898, %v899
        %v942 = vsel %vm921, %v897, %v898
        %v943 = vsel %vm921, %v896, %v897
        %v944 = vsel %vm921, %v895, %v896
        %v945 = vsel %vm921, %v894, %v895
        %v946 = vsel %vm921, %v893, %v894
        %v947 = vsel %vm921, %v918, %v893
        %s948 = scalar_lea.vmem %s635, 64
        %v949 = vld [vmem:[%s948] sm:$0xf]
        %v950 = vld [vmem:[%s948 + $0x4] sm:$0xf]
        %v951 = vld [vmem:[%s948 + $0x8] sm:$0xf]
        %v952 = vld [vmem:[%s948 + $0xc] sm:$0xf]
        %v953 = vld [vmem:[%s948 + $0x10] sm:$0xf]
        %v954 = vld [vmem:[%s948 + $0x14] sm:$0xf]
        %v955 = vld [vmem:[%s948 + $0x18] sm:$0xf]
        %v956 = vld [vmem:[%s948 + $0x1c] sm:$0xf]
        %v957 = vld [vmem:[%s948 + $0x20] sm:$0xf]
        %v958 = vld [vmem:[%s948 + $0x24] sm:$0xf]
        %v959 = vld [vmem:[%s948 + $0x28] sm:$0xf]
        %v960 = vld [vmem:[%s948 + $0x2c] sm:$0xf]
        %v961 = vld [vmem:[%s948 + $0x30] sm:$0xf]
        %v962 = vld [vmem:[%s948 + $0x34] sm:$0xf]
        %v963 = vld [vmem:[%s948 + $0x38] sm:$0xf]
        %v964 = vld [vmem:[%s948 + $0x3c] sm:$0xf]
        %v981 = vunpack.c.l.b16 %v949
        %v982 = vunpack.c.l.b16 %v950
        %v983 = vunpack.c.l.b16 %v951
        %v984 = vunpack.c.l.b16 %v952
        %v985 = vunpack.c.l.b16 %v953
        %v986 = vunpack.c.l.b16 %v954
        %v987 = vunpack.c.l.b16 %v955
        %v988 = vunpack.c.l.b16 %v956
        %v989 = vunpack.c.l.b16 %v957
        %v990 = vunpack.c.l.b16 %v958
        %v991 = vunpack.c.l.b16 %v959
        %v992 = vunpack.c.l.b16 %v960
        %v993 = vunpack.c.l.b16 %v961
        %v994 = vunpack.c.l.b16 %v962
        %v995 = vunpack.c.l.b16 %v963
        %v996 = vunpack.c.l.b16 %v964
        %v997 = vpack.c.b16 %v982, %v981
        %v998 = vpack.c.b16 %v984, %v983
        %v999 = vpack.c.b16 %v986, %v985
        %v1000 = vpack.c.b16 %v988, %v987
        %v1001 = vpack.c.b16 %v990, %v989
        %v1002 = vpack.c.b16 %v992, %v991
        %v1003 = vpack.c.b16 %v994, %v993
        %v1004 = vpack.c.b16 %v996, %v995
        %1013 = vmatpush.bf16.msra.mxu0 %v1004
        %1014 = vmatpush.bf16.msra.mxu0 %v1003
        %1015 = vmatpush.bf16.msra.mxu0 %v1002
        %1016 = vmatpush.bf16.msra.mxu0 %v1001
        %1017 = vmatpush.bf16.msra.mxu0 %v1000
        %1018 = vmatpush.bf16.msra.mxu0 %v999
        %1019 = vmatpush.bf16.msra.mxu0 %v998
        %1020 = vmatpush.bf16.msra.mxu0 %v997
        %1021 = vmatmul.bf16.gmra.mxu0 %v745
        %v1022 = vpop.f32.mrf.mxu0
        %v1023 = vadd.f32 0.0, %v1022
        %v1024 = vpop.f32.mrf.mxu0
        %v1025 = vadd.f32 0.0, %v1024
        %1026 = vmatmul.bf16.gmra.mxu0 %v746
        %v1027 = vpop.f32.mrf.mxu0
        %v1028 = vadd.f32 0.0, %v1027
        %v1029 = vpop.f32.mrf.mxu0
        %v1030 = vadd.f32 0.0, %v1029
        %1031 = vmatmul.bf16.gmra.mxu0 %v747
        %v1032 = vpop.f32.mrf.mxu0
        %v1033 = vadd.f32 0.0, %v1032
        %v1034 = vpop.f32.mrf.mxu0
        %v1035 = vadd.f32 0.0, %v1034
        %1036 = vmatmul.bf16.gmra.mxu0 %v748
        %v1037 = vpop.f32.mrf.mxu0
        %v1038 = vadd.f32 0.0, %v1037
        %v1039 = vpop.f32.mrf.mxu0
        %v1040 = vadd.f32 0.0, %v1039
        %1041 = vmatmul.bf16.gmra.mxu0 %v749
        %v1042 = vpop.f32.mrf.mxu0
        %v1043 = vadd.f32 0.0, %v1042
        %v1044 = vpop.f32.mrf.mxu0
        %v1045 = vadd.f32 0.0, %v1044
        %1046 = vmatmul.bf16.gmra.mxu0 %v750
        %v1047 = vpop.f32.mrf.mxu0
        %v1048 = vadd.f32 0.0, %v1047
        %v1049 = vpop.f32.mrf.mxu0
        %v1050 = vadd.f32 0.0, %v1049
        %1051 = vmatmul.bf16.gmra.mxu0 %v751
        %v1052 = vpop.f32.mrf.mxu0
        %v1053 = vadd.f32 0.0, %v1052
        %v1054 = vpop.f32.mrf.mxu0
        %v1055 = vadd.f32 0.0, %v1054
        %1056 = vmatmul.bf16.gmra.mxu0 %v752
        %v1057 = vpop.f32.mrf.mxu0
        %v1058 = vadd.f32 0.0, %v1057
        %v1059 = vpop.f32.mrf.mxu0
        %v1060 = vadd.f32 0.0, %v1059
        %1061 = vmatmul.bf16.gmra.mxu0 %v753
        %v1062 = vpop.f32.mrf.mxu0
        %v1063 = vadd.f32 0.0, %v1062
        %v1064 = vpop.f32.mrf.mxu0
        %v1065 = vadd.f32 0.0, %v1064
        %1066 = vmatmul.bf16.gmra.mxu0 %v754
        %v1067 = vpop.f32.mrf.mxu0
        %v1068 = vadd.f32 0.0, %v1067
        %v1069 = vpop.f32.mrf.mxu0
        %v1070 = vadd.f32 0.0, %v1069
        %1071 = vmatmul.bf16.gmra.mxu0 %v755
        %v1072 = vpop.f32.mrf.mxu0
        %v1073 = vadd.f32 0.0, %v1072
        %v1074 = vpop.f32.mrf.mxu0
        %v1075 = vadd.f32 0.0, %v1074
        %1076 = vmatmul.bf16.gmra.mxu0 %v756
        %v1077 = vpop.f32.mrf.mxu0
        %v1078 = vadd.f32 0.0, %v1077
        %v1079 = vpop.f32.mrf.mxu0
        %v1080 = vadd.f32 0.0, %v1079
        %1081 = vmatmul.bf16.gmra.mxu0 %v757
        %v1082 = vpop.f32.mrf.mxu0
        %v1083 = vadd.f32 0.0, %v1082
        %v1084 = vpop.f32.mrf.mxu0
        %v1085 = vadd.f32 0.0, %v1084
        %1086 = vdwg.mxu0
        %v1087 = vrot.slane %v1023, 6
        %v1088 = vrot.slane %v1025, 6
        %v1089 = vrot.slane %v1028, 6
        %v1090 = vrot.slane %v1030, 6
        %v1091 = vrot.slane %v1033, 6
        %v1092 = vrot.slane %v1035, 6
        %v1093 = vrot.slane %v1038, 6
        %v1094 = vrot.slane %v1040, 6
        %v1095 = vrot.slane %v1043, 6
        %v1096 = vrot.slane %v1045, 6
        %v1097 = vrot.slane %v1048, 6
        %v1098 = vrot.slane %v1050, 6
        %v1099 = vrot.slane %v1053, 6
        %v1100 = vrot.slane %v1055, 6
        %v1101 = vrot.slane %v1058, 6
        %v1102 = vrot.slane %v1060, 6
        %v1103 = vrot.slane %v1063, 6
        %v1104 = vrot.slane %v1065, 6
        %v1105 = vrot.slane %v1068, 6
        %v1106 = vrot.slane %v1070, 6
        %v1107 = vrot.slane %v1073, 6
        %v1108 = vrot.slane %v1075, 6
        %v1109 = vrot.slane %v1078, 6
        %v1110 = vrot.slane %v1080, 6
        %v1111 = vrot.slane %v1083, 6
        %v1112 = vrot.slane %v1085, 6
        %vm1113 = vcmp.lt.s32.totalorder %v920, 2
        %v1114 = vsel %vm1113, %v1111, %v1112
        %v1115 = vsel %vm1113, %v1110, %v1111
        %v1116 = vsel %vm1113, %v1109, %v1110
        %v1117 = vsel %vm1113, %v1108, %v1109
        %v1118 = vsel %vm1113, %v1107, %v1108
        %v1119 = vsel %vm1113, %v1106, %v1107
        %v1120 = vsel %vm1113, %v1105, %v1106
        %v1121 = vsel %vm1113, %v1104, %v1105
        %v1122 = vsel %vm1113, %v1103, %v1104
        %v1123 = vsel %vm1113, %v1102, %v1103
        %v1124 = vsel %vm1113, %v1101, %v1102
        %v1125 = vsel %vm1113, %v1100, %v1101
        %v1126 = vsel %vm1113, %v1099, %v1100
        %v1127 = vsel %vm1113, %v1098, %v1099
        %v1128 = vsel %vm1113, %v1097, %v1098
        %v1129 = vsel %vm1113, %v1096, %v1097
        %v1130 = vsel %vm1113, %v1095, %v1096
        %v1131 = vsel %vm1113, %v1094, %v1095
        %v1132 = vsel %vm1113, %v1093, %v1094
        %v1133 = vsel %vm1113, %v1092, %v1093
        %v1134 = vsel %vm1113, %v1091, %v1092
        %v1135 = vsel %vm1113, %v1090, %v1091
        %v1136 = vsel %vm1113, %v1089, %v1090
        %v1137 = vsel %vm1113, %v1088, %v1089
        %v1138 = vsel %vm1113, %v1087, %v1088
        %v1139 = vsel %vm1113, %v1112, %v1087
        %v1140 = vadd.f32 %v922, %v1114
        %v1141 = vadd.f32 %v947, %v1139
        %v1142 = vadd.f32 %v946, %v1138
        %v1143 = vadd.f32 %v945, %v1137
        %v1144 = vadd.f32 %v944, %v1136
        %v1145 = vadd.f32 %v943, %v1135
        %v1146 = vadd.f32 %v942, %v1134
        %v1147 = vadd.f32 %v941, %v1133
        %v1148 = vadd.f32 %v940, %v1132
        %v1149 = vadd.f32 %v939, %v1131
        %v1150 = vadd.f32 %v938, %v1130
        %v1151 = vadd.f32 %v937, %v1129
        %v1152 = vadd.f32 %v936, %v1128
        %v1153 = vadd.f32 %v935, %v1127
        %v1154 = vadd.f32 %v934, %v1126
        %v1155 = vadd.f32 %v933, %v1125
        %v1156 = vadd.f32 %v932, %v1124
        %v1157 = vadd.f32 %v931, %v1123
        %v1158 = vadd.f32 %v930, %v1122
        %v1159 = vadd.f32 %v929, %v1121
        %v1160 = vadd.f32 %v928, %v1120
        %v1161 = vadd.f32 %v927, %v1119
        %v1162 = vadd.f32 %v926, %v1118
        %v1163 = vadd.f32 %v925, %v1117
        %v1164 = vadd.f32 %v924, %v1116
        %v1165 = vadd.f32 %v923, %v1115
        %s1166 = scalar_lea.vmem %s635, 128
        %v1167 = vld [vmem:[%s1166] sm:$0xf]
        %v1168 = vld [vmem:[%s1166 + $0x4] sm:$0xf]
        %v1169 = vld [vmem:[%s1166 + $0x8] sm:$0xf]
        %v1170 = vld [vmem:[%s1166 + $0xc] sm:$0xf]
        %v1171 = vld [vmem:[%s1166 + $0x10] sm:$0xf]
        %v1172 = vld [vmem:[%s1166 + $0x14] sm:$0xf]
        %v1173 = vld [vmem:[%s1166 + $0x18] sm:$0xf]
        %v1174 = vld [vmem:[%s1166 + $0x1c] sm:$0xf]
        %v1175 = vld [vmem:[%s1166 + $0x20] sm:$0xf]
        %v1176 = vld [vmem:[%s1166 + $0x24] sm:$0xf]
        %v1177 = vld [vmem:[%s1166 + $0x28] sm:$0xf]
        %v1178 = vld [vmem:[%s1166 + $0x2c] sm:$0xf]
        %v1179 = vld [vmem:[%s1166 + $0x30] sm:$0xf]
        %v1180 = vld [vmem:[%s1166 + $0x34] sm:$0xf]
        %v1181 = vld [vmem:[%s1166 + $0x38] sm:$0xf]
        %v1182 = vld [vmem:[%s1166 + $0x3c] sm:$0xf]
        %v1199 = vunpack.c.l.b16 %v1167
        %v1200 = vunpack.c.l.b16 %v1168
        %v1201 = vunpack.c.l.b16 %v1169
        %v1202 = vunpack.c.l.b16 %v1170
        %v1203 = vunpack.c.l.b16 %v1171
        %v1204 = vunpack.c.l.b16 %v1172
        %v1205 = vunpack.c.l.b16 %v1173
        %v1206 = vunpack.c.l.b16 %v1174
        %v1207 = vunpack.c.l.b16 %v1175
        %v1208 = vunpack.c.l.b16 %v1176
        %v1209 = vunpack.c.l.b16 %v1177
        %v1210 = vunpack.c.l.b16 %v1178
        %v1211 = vunpack.c.l.b16 %v1179
        %v1212 = vunpack.c.l.b16 %v1180
        %v1213 = vunpack.c.l.b16 %v1181
        %v1214 = vunpack.c.l.b16 %v1182
        %v1215 = vpack.c.b16 %v1200, %v1199
        %v1216 = vpack.c.b16 %v1202, %v1201
        %v1217 = vpack.c.b16 %v1204, %v1203
        %v1218 = vpack.c.b16 %v1206, %v1205
        %v1219 = vpack.c.b16 %v1208, %v1207
        %v1220 = vpack.c.b16 %v1210, %v1209
        %v1221 = vpack.c.b16 %v1212, %v1211
        %v1222 = vpack.c.b16 %v1214, %v1213
        %1231 = vmatpush.bf16.msra.mxu0 %v1222
        %1232 = vmatpush.bf16.msra.mxu0 %v1221
        %1233 = vmatpush.bf16.msra.mxu0 %v1220
        %1234 = vmatpush.bf16.msra.mxu0 %v1219
        %1235 = vmatpush.bf16.msra.mxu0 %v1218
        %1236 = vmatpush.bf16.msra.mxu0 %v1217
        %1237 = vmatpush.bf16.msra.mxu0 %v1216
        %1238 = vmatpush.bf16.msra.mxu0 %v1215
        %1239 = vmatmul.bf16.gmra.mxu0 %v745
        %v1240 = vpop.f32.mrf.mxu0
        %v1241 = vadd.f32 0.0, %v1240
        %v1242 = vpop.f32.mrf.mxu0
        %v1243 = vadd.f32 0.0, %v1242
        %1244 = vmatmul.bf16.gmra.mxu0 %v746
        %v1245 = vpop.f32.mrf.mxu0
        %v1246 = vadd.f32 0.0, %v1245
        %v1247 = vpop.f32.mrf.mxu0
        %v1248 = vadd.f32 0.0, %v1247
        %1249 = vmatmul.bf16.gmra.mxu0 %v747
        %v1250 = vpop.f32.mrf.mxu0
        %v1251 = vadd.f32 0.0, %v1250
        %v1252 = vpop.f32.mrf.mxu0
        %v1253 = vadd.f32 0.0, %v1252
        %1254 = vmatmul.bf16.gmra.mxu0 %v748
        %v1255 = vpop.f32.mrf.mxu0
        %v1256 = vadd.f32 0.0, %v1255
        %v1257 = vpop.f32.mrf.mxu0
        %v1258 = vadd.f32 0.0, %v1257
        %1259 = vmatmul.bf16.gmra.mxu0 %v749
        %v1260 = vpop.f32.mrf.mxu0
        %v1261 = vadd.f32 0.0, %v1260
        %v1262 = vpop.f32.mrf.mxu0
        %v1263 = vadd.f32 0.0, %v1262
        %1264 = vmatmul.bf16.gmra.mxu0 %v750
        %v1265 = vpop.f32.mrf.mxu0
        %v1266 = vadd.f32 0.0, %v1265
        %v1267 = vpop.f32.mrf.mxu0
        %v1268 = vadd.f32 0.0, %v1267
        %1269 = vmatmul.bf16.gmra.mxu0 %v751
        %v1270 = vpop.f32.mrf.mxu0
        %v1271 = vadd.f32 0.0, %v1270
        %v1272 = vpop.f32.mrf.mxu0
        %v1273 = vadd.f32 0.0, %v1272
        %1274 = vmatmul.bf16.gmra.mxu0 %v752
        %v1275 = vpop.f32.mrf.mxu0
        %v1276 = vadd.f32 0.0, %v1275
        %v1277 = vpop.f32.mrf.mxu0
        %v1278 = vadd.f32 0.0, %v1277
        %1279 = vmatmul.bf16.gmra.mxu0 %v753
        %v1280 = vpop.f32.mrf.mxu0
        %v1281 = vadd.f32 0.0, %v1280
        %v1282 = vpop.f32.mrf.mxu0
        %v1283 = vadd.f32 0.0, %v1282
        %1284 = vmatmul.bf16.gmra.mxu0 %v754
        %v1285 = vpop.f32.mrf.mxu0
        %v1286 = vadd.f32 0.0, %v1285
        %v1287 = vpop.f32.mrf.mxu0
        %v1288 = vadd.f32 0.0, %v1287
        %1289 = vmatmul.bf16.gmra.mxu0 %v755
        %v1290 = vpop.f32.mrf.mxu0
        %v1291 = vadd.f32 0.0, %v1290
        %v1292 = vpop.f32.mrf.mxu0
        %v1293 = vadd.f32 0.0, %v1292
        %1294 = vmatmul.bf16.gmra.mxu0 %v756
        %v1295 = vpop.f32.mrf.mxu0
        %v1296 = vadd.f32 0.0, %v1295
        %v1297 = vpop.f32.mrf.mxu0
        %v1298 = vadd.f32 0.0, %v1297
        %1299 = vmatmul.bf16.gmra.mxu0 %v757
        %v1300 = vpop.f32.mrf.mxu0
        %v1301 = vadd.f32 0.0, %v1300
        %v1302 = vpop.f32.mrf.mxu0
        %v1303 = vadd.f32 0.0, %v1302
        %1304 = vdwg.mxu0
        %v1305 = vrot.slane %v1241, 7
        %v1306 = vrot.slane %v1243, 7
        %v1307 = vrot.slane %v1246, 7
        %v1308 = vrot.slane %v1248, 7
        %v1309 = vrot.slane %v1251, 7
        %v1310 = vrot.slane %v1253, 7
        %v1311 = vrot.slane %v1256, 7
        %v1312 = vrot.slane %v1258, 7
        %v1313 = vrot.slane %v1261, 7
        %v1314 = vrot.slane %v1263, 7
        %v1315 = vrot.slane %v1266, 7
        %v1316 = vrot.slane %v1268, 7
        %v1317 = vrot.slane %v1271, 7
        %v1318 = vrot.slane %v1273, 7
        %v1319 = vrot.slane %v1276, 7
        %v1320 = vrot.slane %v1278, 7
        %v1321 = vrot.slane %v1281, 7
        %v1322 = vrot.slane %v1283, 7
        %v1323 = vrot.slane %v1286, 7
        %v1324 = vrot.slane %v1288, 7
        %v1325 = vrot.slane %v1291, 7
        %v1326 = vrot.slane %v1293, 7
        %v1327 = vrot.slane %v1296, 7
        %v1328 = vrot.slane %v1298, 7
        %v1329 = vrot.slane %v1301, 7
        %v1330 = vrot.slane %v1303, 7
        %vm1331 = vcmp.lt.s32.totalorder %v920, 1
        %v1332 = vsel %vm1331, %v1329, %v1330
        %v1333 = vsel %vm1331, %v1328, %v1329
        %v1334 = vsel %vm1331, %v1327, %v1328
        %v1335 = vsel %vm1331, %v1326, %v1327
        %v1336 = vsel %vm1331, %v1325, %v1326
        %v1337 = vsel %vm1331, %v1324, %v1325
        %v1338 = vsel %vm1331, %v1323, %v1324
        %v1339 = vsel %vm1331, %v1322, %v1323
        %v1340 = vsel %vm1331, %v1321, %v1322
        %v1341 = vsel %vm1331, %v1320, %v1321
        %v1342 = vsel %vm1331, %v1319, %v1320
        %v1343 = vsel %vm1331, %v1318, %v1319
        %v1344 = vsel %vm1331, %v1317, %v1318
        %v1345 = vsel %vm1331, %v1316, %v1317
        %v1346 = vsel %vm1331, %v1315, %v1316
        %v1347 = vsel %vm1331, %v1314, %v1315
        %v1348 = vsel %vm1331, %v1313, %v1314
        %v1349 = vsel %vm1331, %v1312, %v1313
        %v1350 = vsel %vm1331, %v1311, %v1312
        %v1351 = vsel %vm1331, %v1310, %v1311
        %v1352 = vsel %vm1331, %v1309, %v1310
        %v1353 = vsel %vm1331, %v1308, %v1309
        %v1354 = vsel %vm1331, %v1307, %v1308
        %v1355 = vsel %vm1331, %v1306, %v1307
        %v1356 = vsel %vm1331, %v1305, %v1306
        %v1357 = vsel %vm1331, %v1330, %v1305
        %v1358 = vadd.f32 %v1140, %v1332
        %v1359 = vadd.f32 %v1141, %v1357
        %v1360 = vadd.f32 %v1142, %v1356
        %v1361 = vadd.f32 %v1143, %v1355
        %v1362 = vadd.f32 %v1144, %v1354
        %v1363 = vadd.f32 %v1145, %v1353
        %v1364 = vadd.f32 %v1146, %v1352
        %v1365 = vadd.f32 %v1147, %v1351
        %v1366 = vadd.f32 %v1148, %v1350
        %v1367 = vadd.f32 %v1149, %v1349
        %v1368 = vadd.f32 %v1150, %v1348
        %v1369 = vadd.f32 %v1151, %v1347
        %v1370 = vadd.f32 %v1152, %v1346
        %v1371 = vadd.f32 %v1153, %v1345
        %v1372 = vadd.f32 %v1154, %v1344
        %v1373 = vadd.f32 %v1155, %v1343
        %v1374 = vadd.f32 %v1156, %v1342
        %v1375 = vadd.f32 %v1157, %v1341
        %v1376 = vadd.f32 %v1158, %v1340
        %v1377 = vadd.f32 %v1159, %v1339
        %v1378 = vadd.f32 %v1160, %v1338
        %v1379 = vadd.f32 %v1161, %v1337
        %v1380 = vadd.f32 %v1162, %v1336
        %v1381 = vadd.f32 %v1163, %v1335
        %v1382 = vadd.f32 %v1164, %v1334
        %v1383 = vadd.f32 %v1165, %v1333
        %s1384 = scalar_lea.vmem %s635, 192
        %v1385 = vld [vmem:[%s1384] sm:$0xf]
        %v1386 = vld [vmem:[%s1384 + $0x4] sm:$0xf]
        %v1387 = vld [vmem:[%s1384 + $0x8] sm:$0xf]
        %v1388 = vld [vmem:[%s1384 + $0xc] sm:$0xf]
        %v1389 = vld [vmem:[%s1384 + $0x10] sm:$0xf]
        %v1390 = vld [vmem:[%s1384 + $0x14] sm:$0xf]
        %v1391 = vld [vmem:[%s1384 + $0x18] sm:$0xf]
        %v1392 = vld [vmem:[%s1384 + $0x1c] sm:$0xf]
        %v1393 = vld [vmem:[%s1384 + $0x20] sm:$0xf]
        %v1394 = vld [vmem:[%s1384 + $0x24] sm:$0xf]
        %v1395 = vld [vmem:[%s1384 + $0x28] sm:$0xf]
        %v1396 = vld [vmem:[%s1384 + $0x2c] sm:$0xf]
        %v1397 = vld [vmem:[%s1384 + $0x30] sm:$0xf]
        %v1398 = vld [vmem:[%s1384 + $0x34] sm:$0xf]
        %v1399 = vld [vmem:[%s1384 + $0x38] sm:$0xf]
        %v1400 = vld [vmem:[%s1384 + $0x3c] sm:$0xf]
        %v1417 = vunpack.c.l.b16 %v1385
        %v1418 = vunpack.c.l.b16 %v1386
        %v1419 = vunpack.c.l.b16 %v1387
        %v1420 = vunpack.c.l.b16 %v1388
        %v1421 = vunpack.c.l.b16 %v1389
        %v1422 = vunpack.c.l.b16 %v1390
        %v1423 = vunpack.c.l.b16 %v1391
        %v1424 = vunpack.c.l.b16 %v1392
        %v1425 = vunpack.c.l.b16 %v1393
        %v1426 = vunpack.c.l.b16 %v1394
        %v1427 = vunpack.c.l.b16 %v1395
        %v1428 = vunpack.c.l.b16 %v1396
        %v1429 = vunpack.c.l.b16 %v1397
        %v1430 = vunpack.c.l.b16 %v1398
        %v1431 = vunpack.c.l.b16 %v1399
        %v1432 = vunpack.c.l.b16 %v1400
        %v1433 = vpack.c.b16 %v1418, %v1417
        %v1434 = vpack.c.b16 %v1420, %v1419
        %v1435 = vpack.c.b16 %v1422, %v1421
        %v1436 = vpack.c.b16 %v1424, %v1423
        %v1437 = vpack.c.b16 %v1426, %v1425
        %v1438 = vpack.c.b16 %v1428, %v1427
        %v1439 = vpack.c.b16 %v1430, %v1429
        %v1440 = vpack.c.b16 %v1432, %v1431
        %1449 = vmatpush.bf16.msra.mxu0 %v1440
        %1450 = vmatpush.bf16.msra.mxu0 %v1439
        %1451 = vmatpush.bf16.msra.mxu0 %v1438
        %1452 = vmatpush.bf16.msra.mxu0 %v1437
        %1453 = vmatpush.bf16.msra.mxu0 %v1436
        %1454 = vmatpush.bf16.msra.mxu0 %v1435
        %1455 = vmatpush.bf16.msra.mxu0 %v1434
        %1456 = vmatpush.bf16.msra.mxu0 %v1433
        %1457 = vmatmul.bf16.gmra.mxu0 %v745
        %v1458 = vpop.f32.mrf.mxu0
        %v1459 = vadd.f32 0.0, %v1458
        %v1460 = vpop.f32.mrf.mxu0
        %v1461 = vadd.f32 0.0, %v1460
        %1462 = vmatmul.bf16.gmra.mxu0 %v746
        %v1463 = vpop.f32.mrf.mxu0
        %v1464 = vadd.f32 0.0, %v1463
        %v1465 = vpop.f32.mrf.mxu0
        %v1466 = vadd.f32 0.0, %v1465
        %1467 = vmatmul.bf16.gmra.mxu0 %v747
        %v1468 = vpop.f32.mrf.mxu0
        %v1469 = vadd.f32 0.0, %v1468
        %v1470 = vpop.f32.mrf.mxu0
        %v1471 = vadd.f32 0.0, %v1470
        %1472 = vmatmul.bf16.gmra.mxu0 %v748
        %v1473 = vpop.f32.mrf.mxu0
        %v1474 = vadd.f32 0.0, %v1473
        %v1475 = vpop.f32.mrf.mxu0
        %v1476 = vadd.f32 0.0, %v1475
        %1477 = vmatmul.bf16.gmra.mxu0 %v749
        %v1478 = vpop.f32.mrf.mxu0
        %v1479 = vadd.f32 0.0, %v1478
        %v1480 = vpop.f32.mrf.mxu0
        %v1481 = vadd.f32 0.0, %v1480
        %1482 = vmatmul.bf16.gmra.mxu0 %v750
        %v1483 = vpop.f32.mrf.mxu0
        %v1484 = vadd.f32 0.0, %v1483
        %v1485 = vpop.f32.mrf.mxu0
        %v1486 = vadd.f32 0.0, %v1485
        %1487 = vmatmul.bf16.gmra.mxu0 %v751
        %v1488 = vpop.f32.mrf.mxu0
        %v1489 = vadd.f32 0.0, %v1488
        %v1490 = vpop.f32.mrf.mxu0
        %v1491 = vadd.f32 0.0, %v1490
        %1492 = vmatmul.bf16.gmra.mxu0 %v752
        %v1493 = vpop.f32.mrf.mxu0
        %v1494 = vadd.f32 0.0, %v1493
        %v1495 = vpop.f32.mrf.mxu0
        %v1496 = vadd.f32 0.0, %v1495
        %1497 = vmatmul.bf16.gmra.mxu0 %v753
        %v1498 = vpop.f32.mrf.mxu0
        %v1499 = vadd.f32 0.0, %v1498
        %v1500 = vpop.f32.mrf.mxu0
        %v1501 = vadd.f32 0.0, %v1500
        %1502 = vmatmul.bf16.gmra.mxu0 %v754
        %v1503 = vpop.f32.mrf.mxu0
        %v1504 = vadd.f32 0.0, %v1503
        %v1505 = vpop.f32.mrf.mxu0
        %v1506 = vadd.f32 0.0, %v1505
        %1507 = vmatmul.bf16.gmra.mxu0 %v755
        %v1508 = vpop.f32.mrf.mxu0
        %v1509 = vadd.f32 0.0, %v1508
        %v1510 = vpop.f32.mrf.mxu0
        %v1511 = vadd.f32 0.0, %v1510
        %1512 = vmatmul.bf16.gmra.mxu0 %v756
        %v1513 = vpop.f32.mrf.mxu0
        %v1514 = vadd.f32 0.0, %v1513
        %v1515 = vpop.f32.mrf.mxu0
        %v1516 = vadd.f32 0.0, %v1515
        %1517 = vmatmul.bf16.gmra.mxu0 %v757
        %v1518 = vpop.f32.mrf.mxu0
        %v1519 = vadd.f32 0.0, %v1518
        %v1520 = vpop.f32.mrf.mxu0
        %v1521 = vadd.f32 0.0, %v1520
        %1522 = vdwg.mxu0
        %v1523 = vrot.slane %v1459, 7
        %v1524 = vrot.slane %v1461, 7
        %v1525 = vrot.slane %v1464, 7
        %v1526 = vrot.slane %v1466, 7
        %v1527 = vrot.slane %v1469, 7
        %v1528 = vrot.slane %v1471, 7
        %v1529 = vrot.slane %v1474, 7
        %v1530 = vrot.slane %v1476, 7
        %v1531 = vrot.slane %v1479, 7
        %v1532 = vrot.slane %v1481, 7
        %v1533 = vrot.slane %v1484, 7
        %v1534 = vrot.slane %v1486, 7
        %v1535 = vrot.slane %v1489, 7
        %v1536 = vrot.slane %v1491, 7
        %v1537 = vrot.slane %v1494, 7
        %v1538 = vrot.slane %v1496, 7
        %v1539 = vrot.slane %v1499, 7
        %v1540 = vrot.slane %v1501, 7
        %v1541 = vrot.slane %v1504, 7
        %v1542 = vrot.slane %v1506, 7
        %v1543 = vrot.slane %v1509, 7
        %v1544 = vrot.slane %v1511, 7
        %v1545 = vrot.slane %v1514, 7
        %v1546 = vrot.slane %v1516, 7
        %v1547 = vrot.slane %v1519, 7
        %v1548 = vrot.slane %v1521, 7
        %v1549 = vsel %vm1331, %v1547, %v1548
        %v1550 = vsel %vm1331, %v1546, %v1547
        %v1551 = vsel %vm1331, %v1545, %v1546
        %v1552 = vsel %vm1331, %v1544, %v1545
        %v1553 = vsel %vm1331, %v1543, %v1544
        %v1554 = vsel %vm1331, %v1542, %v1543
        %v1555 = vsel %vm1331, %v1541, %v1542
        %v1556 = vsel %vm1331, %v1540, %v1541
        %v1557 = vsel %vm1331, %v1539, %v1540
        %v1558 = vsel %vm1331, %v1538, %v1539
        %v1559 = vsel %vm1331, %v1537, %v1538
        %v1560 = vsel %vm1331, %v1536, %v1537
        %v1561 = vsel %vm1331, %v1535, %v1536
        %v1562 = vsel %vm1331, %v1534, %v1535
        %v1563 = vsel %vm1331, %v1533, %v1534
        %v1564 = vsel %vm1331, %v1532, %v1533
        %v1565 = vsel %vm1331, %v1531, %v1532
        %v1566 = vsel %vm1331, %v1530, %v1531
        %v1567 = vsel %vm1331, %v1529, %v1530
        %v1568 = vsel %vm1331, %v1528, %v1529
        %v1569 = vsel %vm1331, %v1527, %v1528
        %v1570 = vsel %vm1331, %v1526, %v1527
        %v1571 = vsel %vm1331, %v1525, %v1526
        %v1572 = vsel %vm1331, %v1524, %v1525
        %v1573 = vsel %vm1331, %v1523, %v1524
        %v1574 = vsel %vm1331, %v1548, %v1523
        %v1575 = vadd.f32 %v1358, %v1574
        %v1576 = vadd.f32 %v1359, %v1573
        %v1577 = vadd.f32 %v1360, %v1572
        %v1578 = vadd.f32 %v1361, %v1571
        %v1579 = vadd.f32 %v1362, %v1570
        %v1580 = vadd.f32 %v1363, %v1569
        %v1581 = vadd.f32 %v1364, %v1568
        %v1582 = vadd.f32 %v1365, %v1567
        %v1583 = vadd.f32 %v1366, %v1566
        %v1584 = vadd.f32 %v1367, %v1565
        %v1585 = vadd.f32 %v1368, %v1564
        %v1586 = vadd.f32 %v1369, %v1563
        %v1587 = vadd.f32 %v1370, %v1562
        %v1588 = vadd.f32 %v1371, %v1561
        %v1589 = vadd.f32 %v1372, %v1560
        %v1590 = vadd.f32 %v1373, %v1559
        %v1591 = vadd.f32 %v1374, %v1558
        %v1592 = vadd.f32 %v1375, %v1557
        %v1593 = vadd.f32 %v1376, %v1556
        %v1594 = vadd.f32 %v1377, %v1555
        %v1595 = vadd.f32 %v1378, %v1554
        %v1596 = vadd.f32 %v1379, %v1553
        %v1597 = vadd.f32 %v1380, %v1552
        %v1598 = vadd.f32 %v1381, %v1551
        %v1599 = vadd.f32 %v1382, %v1550
        %v1600 = vadd.f32 %v1383, %v1549
        %s1601 = scalar_lea.vmem %s635, 256
        %v1602 = vld [vmem:[%s1601] sm:$0xf]
        %v1603 = vld [vmem:[%s1601 + $0x4] sm:$0xf]
        %v1604 = vld [vmem:[%s1601 + $0x8] sm:$0xf]
        %v1605 = vld [vmem:[%s1601 + $0xc] sm:$0xf]
        %v1606 = vld [vmem:[%s1601 + $0x10] sm:$0xf]
        %v1607 = vld [vmem:[%s1601 + $0x14] sm:$0xf]
        %v1608 = vld [vmem:[%s1601 + $0x18] sm:$0xf]
        %v1609 = vld [vmem:[%s1601 + $0x1c] sm:$0xf]
        %v1610 = vld [vmem:[%s1601 + $0x20] sm:$0xf]
        %v1611 = vld [vmem:[%s1601 + $0x24] sm:$0xf]
        %v1612 = vld [vmem:[%s1601 + $0x28] sm:$0xf]
        %v1613 = vld [vmem:[%s1601 + $0x2c] sm:$0xf]
        %v1614 = vld [vmem:[%s1601 + $0x30] sm:$0xf]
        %v1615 = vld [vmem:[%s1601 + $0x34] sm:$0xf]
        %v1616 = vld [vmem:[%s1601 + $0x38] sm:$0xf]
        %v1617 = vld [vmem:[%s1601 + $0x3c] sm:$0xf]
        %v1634 = vunpack.c.l.b16 %v1602
        %v1635 = vunpack.c.l.b16 %v1603
        %v1636 = vunpack.c.l.b16 %v1604
        %v1637 = vunpack.c.l.b16 %v1605
        %v1638 = vunpack.c.l.b16 %v1606
        %v1639 = vunpack.c.l.b16 %v1607
        %v1640 = vunpack.c.l.b16 %v1608
        %v1641 = vunpack.c.l.b16 %v1609
        %v1642 = vunpack.c.l.b16 %v1610
        %v1643 = vunpack.c.l.b16 %v1611
        %v1644 = vunpack.c.l.b16 %v1612
        %v1645 = vunpack.c.l.b16 %v1613
        %v1646 = vunpack.c.l.b16 %v1614
        %v1647 = vunpack.c.l.b16 %v1615
        %v1648 = vunpack.c.l.b16 %v1616
        %v1649 = vunpack.c.l.b16 %v1617
        %v1650 = vpack.c.b16 %v1635, %v1634
        %v1651 = vpack.c.b16 %v1637, %v1636
        %v1652 = vpack.c.b16 %v1639, %v1638
        %v1653 = vpack.c.b16 %v1641, %v1640
        %v1654 = vpack.c.b16 %v1643, %v1642
        %v1655 = vpack.c.b16 %v1645, %v1644
        %v1656 = vpack.c.b16 %v1647, %v1646
        %v1657 = vpack.c.b16 %v1649, %v1648
        %1666 = vmatpush.bf16.msra.mxu0 %v1657
        %1667 = vmatpush.bf16.msra.mxu0 %v1656
        %1668 = vmatpush.bf16.msra.mxu0 %v1655
        %1669 = vmatpush.bf16.msra.mxu0 %v1654
        %1670 = vmatpush.bf16.msra.mxu0 %v1653
        %1671 = vmatpush.bf16.msra.mxu0 %v1652
        %1672 = vmatpush.bf16.msra.mxu0 %v1651
        %1673 = vmatpush.bf16.msra.mxu0 %v1650
        %1674 = vmatmul.bf16.gmra.mxu0 %v745
        %v1675 = vpop.f32.mrf.mxu0
        %v1676 = vadd.f32 0.0, %v1675
        %v1677 = vpop.f32.mrf.mxu0
        %v1678 = vadd.f32 0.0, %v1677
        %1679 = vmatmul.bf16.gmra.mxu0 %v746
        %v1680 = vpop.f32.mrf.mxu0
        %v1681 = vadd.f32 0.0, %v1680
        %v1682 = vpop.f32.mrf.mxu0
        %v1683 = vadd.f32 0.0, %v1682
        %1684 = vmatmul.bf16.gmra.mxu0 %v747
        %v1685 = vpop.f32.mrf.mxu0
        %v1686 = vadd.f32 0.0, %v1685
        %v1687 = vpop.f32.mrf.mxu0
        %v1688 = vadd.f32 0.0, %v1687
        %1689 = vmatmul.bf16.gmra.mxu0 %v748
        %v1690 = vpop.f32.mrf.mxu0
        %v1691 = vadd.f32 0.0, %v1690
        %v1692 = vpop.f32.mrf.mxu0
        %v1693 = vadd.f32 0.0, %v1692
        %1694 = vmatmul.bf16.gmra.mxu0 %v749
        %v1695 = vpop.f32.mrf.mxu0
        %v1696 = vadd.f32 0.0, %v1695
        %v1697 = vpop.f32.mrf.mxu0
        %v1698 = vadd.f32 0.0, %v1697
        %1699 = vmatmul.bf16.gmra.mxu0 %v750
        %v1700 = vpop.f32.mrf.mxu0
        %v1701 = vadd.f32 0.0, %v1700
        %v1702 = vpop.f32.mrf.mxu0
        %v1703 = vadd.f32 0.0, %v1702
        %1704 = vmatmul.bf16.gmra.mxu0 %v751
        %v1705 = vpop.f32.mrf.mxu0
        %v1706 = vadd.f32 0.0, %v1705
        %v1707 = vpop.f32.mrf.mxu0
        %v1708 = vadd.f32 0.0, %v1707
        %1709 = vmatmul.bf16.gmra.mxu0 %v752
        %v1710 = vpop.f32.mrf.mxu0
        %v1711 = vadd.f32 0.0, %v1710
        %v1712 = vpop.f32.mrf.mxu0
        %v1713 = vadd.f32 0.0, %v1712
        %1714 = vmatmul.bf16.gmra.mxu0 %v753
        %v1715 = vpop.f32.mrf.mxu0
        %v1716 = vadd.f32 0.0, %v1715
        %v1717 = vpop.f32.mrf.mxu0
        %v1718 = vadd.f32 0.0, %v1717
        %1719 = vmatmul.bf16.gmra.mxu0 %v754
        %v1720 = vpop.f32.mrf.mxu0
        %v1721 = vadd.f32 0.0, %v1720
        %v1722 = vpop.f32.mrf.mxu0
        %v1723 = vadd.f32 0.0, %v1722
        %1724 = vmatmul.bf16.gmra.mxu0 %v755
        %v1725 = vpop.f32.mrf.mxu0
        %v1726 = vadd.f32 0.0, %v1725
        %v1727 = vpop.f32.mrf.mxu0
        %v1728 = vadd.f32 0.0, %v1727
        %1729 = vmatmul.bf16.gmra.mxu0 %v756
        %v1730 = vpop.f32.mrf.mxu0
        %v1731 = vadd.f32 0.0, %v1730
        %v1732 = vpop.f32.mrf.mxu0
        %v1733 = vadd.f32 0.0, %v1732
        %1734 = vmatmul.bf16.gmra.mxu0 %v757
        %v1735 = vpop.f32.mrf.mxu0
        %v1736 = vadd.f32 0.0, %v1735
        %v1737 = vpop.f32.mrf.mxu0
        %v1738 = vadd.f32 0.0, %v1737
        %1739 = vdwg.mxu0
        %v1740 = vadd.f32 %v1575, %v1676
        %v1741 = vadd.f32 %v1576, %v1678
        %v1742 = vadd.f32 %v1577, %v1681
        %v1743 = vadd.f32 %v1578, %v1683
        %v1744 = vadd.f32 %v1579, %v1686
        %v1745 = vadd.f32 %v1580, %v1688
        %v1746 = vadd.f32 %v1581, %v1691
        %v1747 = vadd.f32 %v1582, %v1693
        %v1748 = vadd.f32 %v1583, %v1696
        %v1749 = vadd.f32 %v1584, %v1698
        %v1750 = vadd.f32 %v1585, %v1701
        %v1751 = vadd.f32 %v1586, %v1703
        %v1752 = vadd.f32 %v1587, %v1706
        %v1753 = vadd.f32 %v1588, %v1708
        %v1754 = vadd.f32 %v1589, %v1711
        %v1755 = vadd.f32 %v1590, %v1713
        %v1756 = vadd.f32 %v1591, %v1716
        %v1757 = vadd.f32 %v1592, %v1718
        %v1758 = vadd.f32 %v1593, %v1721
        %v1759 = vadd.f32 %v1594, %v1723
        %v1760 = vadd.f32 %v1595, %v1726
        %v1761 = vadd.f32 %v1596, %v1728
        %v1762 = vadd.f32 %v1597, %v1731
        %v1763 = vadd.f32 %v1598, %v1733
        %v1764 = vadd.f32 %v1599, %v1736
        %v1765 = vadd.f32 %v1600, %v1738
        %s1766 = scalar_lea.vmem %s635, 320
        %v1767 = vld [vmem:[%s1766] sm:$0xf]
        %v1768 = vld [vmem:[%s1766 + $0x4] sm:$0xf]
        %v1769 = vld [vmem:[%s1766 + $0x8] sm:$0xf]
        %v1770 = vld [vmem:[%s1766 + $0xc] sm:$0xf]
        %v1771 = vld [vmem:[%s1766 + $0x10] sm:$0xf]
        %v1772 = vld [vmem:[%s1766 + $0x14] sm:$0xf]
        %v1773 = vld [vmem:[%s1766 + $0x18] sm:$0xf]
        %v1774 = vld [vmem:[%s1766 + $0x1c] sm:$0xf]
        %v1775 = vld [vmem:[%s1766 + $0x20] sm:$0xf]
        %v1776 = vld [vmem:[%s1766 + $0x24] sm:$0xf]
        %v1777 = vld [vmem:[%s1766 + $0x28] sm:$0xf]
        %v1778 = vld [vmem:[%s1766 + $0x2c] sm:$0xf]
        %v1779 = vld [vmem:[%s1766 + $0x30] sm:$0xf]
        %v1780 = vld [vmem:[%s1766 + $0x34] sm:$0xf]
        %v1781 = vld [vmem:[%s1766 + $0x38] sm:$0xf]
        %v1782 = vld [vmem:[%s1766 + $0x3c] sm:$0xf]
        %v1799 = vunpack.c.l.b16 %v1767
        %v1800 = vunpack.c.l.b16 %v1768
        %v1801 = vunpack.c.l.b16 %v1769
        %v1802 = vunpack.c.l.b16 %v1770
        %v1803 = vunpack.c.l.b16 %v1771
        %v1804 = vunpack.c.l.b16 %v1772
        %v1805 = vunpack.c.l.b16 %v1773
        %v1806 = vunpack.c.l.b16 %v1774
        %v1807 = vunpack.c.l.b16 %v1775
        %v1808 = vunpack.c.l.b16 %v1776
        %v1809 = vunpack.c.l.b16 %v1777
        %v1810 = vunpack.c.l.b16 %v1778
        %v1811 = vunpack.c.l.b16 %v1779
        %v1812 = vunpack.c.l.b16 %v1780
        %v1813 = vunpack.c.l.b16 %v1781
        %v1814 = vunpack.c.l.b16 %v1782
        %v1815 = vpack.c.b16 %v1800, %v1799
        %v1816 = vpack.c.b16 %v1802, %v1801
        %v1817 = vpack.c.b16 %v1804, %v1803
        %v1818 = vpack.c.b16 %v1806, %v1805
        %v1819 = vpack.c.b16 %v1808, %v1807
        %v1820 = vpack.c.b16 %v1810, %v1809
        %v1821 = vpack.c.b16 %v1812, %v1811
        %v1822 = vpack.c.b16 %v1814, %v1813
        %1831 = vmatpush.bf16.msra.mxu0 %v1822
        %1832 = vmatpush.bf16.msra.mxu0 %v1821
        %1833 = vmatpush.bf16.msra.mxu0 %v1820
        %1834 = vmatpush.bf16.msra.mxu0 %v1819
        %1835 = vmatpush.bf16.msra.mxu0 %v1818
        %1836 = vmatpush.bf16.msra.mxu0 %v1817
        %1837 = vmatpush.bf16.msra.mxu0 %v1816
        %1838 = vmatpush.bf16.msra.mxu0 %v1815
        %1839 = vmatmul.bf16.gmra.mxu0 %v745
        %v1840 = vpop.f32.mrf.mxu0
        %v1841 = vadd.f32 0.0, %v1840
        %v1842 = vpop.f32.mrf.mxu0
        %v1843 = vadd.f32 0.0, %v1842
        %1844 = vmatmul.bf16.gmra.mxu0 %v746
        %v1845 = vpop.f32.mrf.mxu0
        %v1846 = vadd.f32 0.0, %v1845
        %v1847 = vpop.f32.mrf.mxu0
        %v1848 = vadd.f32 0.0, %v1847
        %1849 = vmatmul.bf16.gmra.mxu0 %v747
        %v1850 = vpop.f32.mrf.mxu0
        %v1851 = vadd.f32 0.0, %v1850
        %v1852 = vpop.f32.mrf.mxu0
        %v1853 = vadd.f32 0.0, %v1852
        %1854 = vmatmul.bf16.gmra.mxu0 %v748
        %v1855 = vpop.f32.mrf.mxu0
        %v1856 = vadd.f32 0.0, %v1855
        %v1857 = vpop.f32.mrf.mxu0
        %v1858 = vadd.f32 0.0, %v1857
        %1859 = vmatmul.bf16.gmra.mxu0 %v749
        %v1860 = vpop.f32.mrf.mxu0
        %v1861 = vadd.f32 0.0, %v1860
        %v1862 = vpop.f32.mrf.mxu0
        %v1863 = vadd.f32 0.0, %v1862
        %1864 = vmatmul.bf16.gmra.mxu0 %v750
        %v1865 = vpop.f32.mrf.mxu0
        %v1866 = vadd.f32 0.0, %v1865
        %v1867 = vpop.f32.mrf.mxu0
        %v1868 = vadd.f32 0.0, %v1867
        %1869 = vmatmul.bf16.gmra.mxu0 %v751
        %v1870 = vpop.f32.mrf.mxu0
        %v1871 = vadd.f32 0.0, %v1870
        %v1872 = vpop.f32.mrf.mxu0
        %v1873 = vadd.f32 0.0, %v1872
        %1874 = vmatmul.bf16.gmra.mxu0 %v752
        %v1875 = vpop.f32.mrf.mxu0
        %v1876 = vadd.f32 0.0, %v1875
        %v1877 = vpop.f32.mrf.mxu0
        %v1878 = vadd.f32 0.0, %v1877
        %1879 = vmatmul.bf16.gmra.mxu0 %v753
        %v1880 = vpop.f32.mrf.mxu0
        %v1881 = vadd.f32 0.0, %v1880
        %v1882 = vpop.f32.mrf.mxu0
        %v1883 = vadd.f32 0.0, %v1882
        %1884 = vmatmul.bf16.gmra.mxu0 %v754
        %v1885 = vpop.f32.mrf.mxu0
        %v1886 = vadd.f32 0.0, %v1885
        %v1887 = vpop.f32.mrf.mxu0
        %v1888 = vadd.f32 0.0, %v1887
        %1889 = vmatmul.bf16.gmra.mxu0 %v755
        %v1890 = vpop.f32.mrf.mxu0
        %v1891 = vadd.f32 0.0, %v1890
        %v1892 = vpop.f32.mrf.mxu0
        %v1893 = vadd.f32 0.0, %v1892
        %1894 = vmatmul.bf16.gmra.mxu0 %v756
        %v1895 = vpop.f32.mrf.mxu0
        %v1896 = vadd.f32 0.0, %v1895
        %v1897 = vpop.f32.mrf.mxu0
        %v1898 = vadd.f32 0.0, %v1897
        %1899 = vmatmul.bf16.gmra.mxu0 %v757
        %v1900 = vpop.f32.mrf.mxu0
        %v1901 = vadd.f32 0.0, %v1900
        %v1902 = vpop.f32.mrf.mxu0
        %v1903 = vadd.f32 0.0, %v1902
        %1904 = vdwg.mxu0
        %v1905 = vrot.slane %v1841, 1
        %v1906 = vrot.slane %v1843, 1
        %v1907 = vrot.slane %v1846, 1
        %v1908 = vrot.slane %v1848, 1
        %v1909 = vrot.slane %v1851, 1
        %v1910 = vrot.slane %v1853, 1
        %v1911 = vrot.slane %v1856, 1
        %v1912 = vrot.slane %v1858, 1
        %v1913 = vrot.slane %v1861, 1
        %v1914 = vrot.slane %v1863, 1
        %v1915 = vrot.slane %v1866, 1
        %v1916 = vrot.slane %v1868, 1
        %v1917 = vrot.slane %v1871, 1
        %v1918 = vrot.slane %v1873, 1
        %v1919 = vrot.slane %v1876, 1
        %v1920 = vrot.slane %v1878, 1
        %v1921 = vrot.slane %v1881, 1
        %v1922 = vrot.slane %v1883, 1
        %v1923 = vrot.slane %v1886, 1
        %v1924 = vrot.slane %v1888, 1
        %v1925 = vrot.slane %v1891, 1
        %v1926 = vrot.slane %v1893, 1
        %v1927 = vrot.slane %v1896, 1
        %v1928 = vrot.slane %v1898, 1
        %v1929 = vrot.slane %v1901, 1
        %v1930 = vrot.slane %v1903, 1
        %vm1931 = vcmp.lt.s32.totalorder %v920, 7
        %v1932 = vsel %vm1931, %v1929, %v1930
        %v1933 = vsel %vm1931, %v1928, %v1929
        %v1934 = vsel %vm1931, %v1927, %v1928
        %v1935 = vsel %vm1931, %v1926, %v1927
        %v1936 = vsel %vm1931, %v1925, %v1926
        %v1937 = vsel %vm1931, %v1924, %v1925
        %v1938 = vsel %vm1931, %v1923, %v1924
        %v1939 = vsel %vm1931, %v1922, %v1923
        %v1940 = vsel %vm1931, %v1921, %v1922
        %v1941 = vsel %vm1931, %v1920, %v1921
        %v1942 = vsel %vm1931, %v1919, %v1920
        %v1943 = vsel %vm1931, %v1918, %v1919
        %v1944 = vsel %vm1931, %v1917, %v1918
        %v1945 = vsel %vm1931, %v1916, %v1917
        %v1946 = vsel %vm1931, %v1915, %v1916
        %v1947 = vsel %vm1931, %v1914, %v1915
        %v1948 = vsel %vm1931, %v1913, %v1914
        %v1949 = vsel %vm1931, %v1912, %v1913
        %v1950 = vsel %vm1931, %v1911, %v1912
        %v1951 = vsel %vm1931, %v1910, %v1911
        %v1952 = vsel %vm1931, %v1909, %v1910
        %v1953 = vsel %vm1931, %v1908, %v1909
        %v1954 = vsel %vm1931, %v1907, %v1908
        %v1955 = vsel %vm1931, %v1906, %v1907
        %v1956 = vsel %vm1931, %v1905, %v1906
        %v1957 = vsel %vm1931, %v1930, %v1905
        %v1958 = vadd.f32 %v1740, %v1956
        %v1959 = vadd.f32 %v1741, %v1955
        %v1960 = vadd.f32 %v1742, %v1954
        %v1961 = vadd.f32 %v1743, %v1953
        %v1962 = vadd.f32 %v1744, %v1952
        %v1963 = vadd.f32 %v1745, %v1951
        %v1964 = vadd.f32 %v1746, %v1950
        %v1965 = vadd.f32 %v1747, %v1949
        %v1966 = vadd.f32 %v1748, %v1948
        %v1967 = vadd.f32 %v1749, %v1947
        %v1968 = vadd.f32 %v1750, %v1946
        %v1969 = vadd.f32 %v1751, %v1945
        %v1970 = vadd.f32 %v1752, %v1944
        %v1971 = vadd.f32 %v1753, %v1943
        %v1972 = vadd.f32 %v1754, %v1942
        %v1973 = vadd.f32 %v1755, %v1941
        %v1974 = vadd.f32 %v1756, %v1940
        %v1975 = vadd.f32 %v1757, %v1939
        %v1976 = vadd.f32 %v1758, %v1938
        %v1977 = vadd.f32 %v1759, %v1937
        %v1978 = vadd.f32 %v1760, %v1936
        %v1979 = vadd.f32 %v1761, %v1935
        %v1980 = vadd.f32 %v1762, %v1934
        %v1981 = vadd.f32 %v1763, %v1933
        %v1982 = vadd.f32 %v1764, %v1932
        %v1983 = vadd.f32 %v1765, %v1957
        %s1984 = scalar_lea.vmem %s635, 384
        %v1985 = vld [vmem:[%s1984] sm:$0xf]
        %v1986 = vld [vmem:[%s1984 + $0x4] sm:$0xf]
        %v1987 = vld [vmem:[%s1984 + $0x8] sm:$0xf]
        %v1988 = vld [vmem:[%s1984 + $0xc] sm:$0xf]
        %v1989 = vld [vmem:[%s1984 + $0x10] sm:$0xf]
        %v1990 = vld [vmem:[%s1984 + $0x14] sm:$0xf]
        %v1991 = vld [vmem:[%s1984 + $0x18] sm:$0xf]
        %v1992 = vld [vmem:[%s1984 + $0x1c] sm:$0xf]
        %v1993 = vld [vmem:[%s1984 + $0x20] sm:$0xf]
        %v1994 = vld [vmem:[%s1984 + $0x24] sm:$0xf]
        %v1995 = vld [vmem:[%s1984 + $0x28] sm:$0xf]
        %v1996 = vld [vmem:[%s1984 + $0x2c] sm:$0xf]
        %v1997 = vld [vmem:[%s1984 + $0x30] sm:$0xf]
        %v1998 = vld [vmem:[%s1984 + $0x34] sm:$0xf]
        %v1999 = vld [vmem:[%s1984 + $0x38] sm:$0xf]
        %v2000 = vld [vmem:[%s1984 + $0x3c] sm:$0xf]
        %v2017 = vunpack.c.l.b16 %v1985
        %v2018 = vunpack.c.l.b16 %v1986
        %v2019 = vunpack.c.l.b16 %v1987
        %v2020 = vunpack.c.l.b16 %v1988
        %v2021 = vunpack.c.l.b16 %v1989
        %v2022 = vunpack.c.l.b16 %v1990
        %v2023 = vunpack.c.l.b16 %v1991
        %v2024 = vunpack.c.l.b16 %v1992
        %v2025 = vunpack.c.l.b16 %v1993
        %v2026 = vunpack.c.l.b16 %v1994
        %v2027 = vunpack.c.l.b16 %v1995
        %v2028 = vunpack.c.l.b16 %v1996
        %v2029 = vunpack.c.l.b16 %v1997
        %v2030 = vunpack.c.l.b16 %v1998
        %v2031 = vunpack.c.l.b16 %v1999
        %v2032 = vunpack.c.l.b16 %v2000
        %v2033 = vpack.c.b16 %v2018, %v2017
        %v2034 = vpack.c.b16 %v2020, %v2019
        %v2035 = vpack.c.b16 %v2022, %v2021
        %v2036 = vpack.c.b16 %v2024, %v2023
        %v2037 = vpack.c.b16 %v2026, %v2025
        %v2038 = vpack.c.b16 %v2028, %v2027
        %v2039 = vpack.c.b16 %v2030, %v2029
        %v2040 = vpack.c.b16 %v2032, %v2031
        %2049 = vmatpush.bf16.msra.mxu0 %v2040
        %2050 = vmatpush.bf16.msra.mxu0 %v2039
        %2051 = vmatpush.bf16.msra.mxu0 %v2038
        %2052 = vmatpush.bf16.msra.mxu0 %v2037
        %2053 = vmatpush.bf16.msra.mxu0 %v2036
        %2054 = vmatpush.bf16.msra.mxu0 %v2035
        %2055 = vmatpush.bf16.msra.mxu0 %v2034
        %2056 = vmatpush.bf16.msra.mxu0 %v2033
        %2057 = vmatmul.bf16.gmra.mxu0 %v745
        %v2058 = vpop.f32.mrf.mxu0
        %v2059 = vadd.f32 0.0, %v2058
        %v2060 = vpop.f32.mrf.mxu0
        %v2061 = vadd.f32 0.0, %v2060
        %2062 = vmatmul.bf16.gmra.mxu0 %v746
        %v2063 = vpop.f32.mrf.mxu0
        %v2064 = vadd.f32 0.0, %v2063
        %v2065 = vpop.f32.mrf.mxu0
        %v2066 = vadd.f32 0.0, %v2065
        %2067 = vmatmul.bf16.gmra.mxu0 %v747
        %v2068 = vpop.f32.mrf.mxu0
        %v2069 = vadd.f32 0.0, %v2068
        %v2070 = vpop.f32.mrf.mxu0
        %v2071 = vadd.f32 0.0, %v2070
        %2072 = vmatmul.bf16.gmra.mxu0 %v748
        %v2073 = vpop.f32.mrf.mxu0
        %v2074 = vadd.f32 0.0, %v2073
        %v2075 = vpop.f32.mrf.mxu0
        %v2076 = vadd.f32 0.0, %v2075
        %2077 = vmatmul.bf16.gmra.mxu0 %v749
        %v2078 = vpop.f32.mrf.mxu0
        %v2079 = vadd.f32 0.0, %v2078
        %v2080 = vpop.f32.mrf.mxu0
        %v2081 = vadd.f32 0.0, %v2080
        %2082 = vmatmul.bf16.gmra.mxu0 %v750
        %v2083 = vpop.f32.mrf.mxu0
        %v2084 = vadd.f32 0.0, %v2083
        %v2085 = vpop.f32.mrf.mxu0
        %v2086 = vadd.f32 0.0, %v2085
        %2087 = vmatmul.bf16.gmra.mxu0 %v751
        %v2088 = vpop.f32.mrf.mxu0
        %v2089 = vadd.f32 0.0, %v2088
        %v2090 = vpop.f32.mrf.mxu0
        %v2091 = vadd.f32 0.0, %v2090
        %2092 = vmatmul.bf16.gmra.mxu0 %v752
        %v2093 = vpop.f32.mrf.mxu0
        %v2094 = vadd.f32 0.0, %v2093
        %v2095 = vpop.f32.mrf.mxu0
        %v2096 = vadd.f32 0.0, %v2095
        %2097 = vmatmul.bf16.gmra.mxu0 %v753
        %v2098 = vpop.f32.mrf.mxu0
        %v2099 = vadd.f32 0.0, %v2098
        %v2100 = vpop.f32.mrf.mxu0
        %v2101 = vadd.f32 0.0, %v2100
        %2102 = vmatmul.bf16.gmra.mxu0 %v754
        %v2103 = vpop.f32.mrf.mxu0
        %v2104 = vadd.f32 0.0, %v2103
        %v2105 = vpop.f32.mrf.mxu0
        %v2106 = vadd.f32 0.0, %v2105
        %2107 = vmatmul.bf16.gmra.mxu0 %v755
        %v2108 = vpop.f32.mrf.mxu0
        %v2109 = vadd.f32 0.0, %v2108
        %v2110 = vpop.f32.mrf.mxu0
        %v2111 = vadd.f32 0.0, %v2110
        %2112 = vmatmul.bf16.gmra.mxu0 %v756
        %v2113 = vpop.f32.mrf.mxu0
        %v2114 = vadd.f32 0.0, %v2113
        %v2115 = vpop.f32.mrf.mxu0
        %v2116 = vadd.f32 0.0, %v2115
        %2117 = vmatmul.bf16.gmra.mxu0 %v757
        %v2118 = vpop.f32.mrf.mxu0
        %v2119 = vadd.f32 0.0, %v2118
        %v2120 = vpop.f32.mrf.mxu0
        %v2121 = vadd.f32 0.0, %v2120
        %2122 = vdwg.mxu0
        %v2123 = vrot.slane %v2059, 1
        %v2124 = vrot.slane %v2061, 1
        %v2125 = vrot.slane %v2064, 1
        %v2126 = vrot.slane %v2066, 1
        %v2127 = vrot.slane %v2069, 1
        %v2128 = vrot.slane %v2071, 1
        %v2129 = vrot.slane %v2074, 1
        %v2130 = vrot.slane %v2076, 1
        %v2131 = vrot.slane %v2079, 1
        %v2132 = vrot.slane %v2081, 1
        %v2133 = vrot.slane %v2084, 1
        %v2134 = vrot.slane %v2086, 1
        %v2135 = vrot.slane %v2089, 1
        %v2136 = vrot.slane %v2091, 1
        %v2137 = vrot.slane %v2094, 1
        %v2138 = vrot.slane %v2096, 1
        %v2139 = vrot.slane %v2099, 1
        %v2140 = vrot.slane %v2101, 1
        %v2141 = vrot.slane %v2104, 1
        %v2142 = vrot.slane %v2106, 1
        %v2143 = vrot.slane %v2109, 1
        %v2144 = vrot.slane %v2111, 1
        %v2145 = vrot.slane %v2114, 1
        %v2146 = vrot.slane %v2116, 1
        %v2147 = vrot.slane %v2119, 1
        %v2148 = vrot.slane %v2121, 1
        %v2149 = vsel %vm1931, %v2147, %v2148
        %v2150 = vsel %vm1931, %v2146, %v2147
        %v2151 = vsel %vm1931, %v2145, %v2146
        %v2152 = vsel %vm1931, %v2144, %v2145
        %v2153 = vsel %vm1931, %v2143, %v2144
        %v2154 = vsel %vm1931, %v2142, %v2143
        %v2155 = vsel %vm1931, %v2141, %v2142
        %v2156 = vsel %vm1931, %v2140, %v2141
        %v2157 = vsel %vm1931, %v2139, %v2140
        %v2158 = vsel %vm1931, %v2138, %v2139
        %v2159 = vsel %vm1931, %v2137, %v2138
        %v2160 = vsel %vm1931, %v2136, %v2137
        %v2161 = vsel %vm1931, %v2135, %v2136
        %v2162 = vsel %vm1931, %v2134, %v2135
        %v2163 = vsel %vm1931, %v2133, %v2134
        %v2164 = vsel %vm1931, %v2132, %v2133
        %v2165 = vsel %vm1931, %v2131, %v2132
        %v2166 = vsel %vm1931, %v2130, %v2131
        %v2167 = vsel %vm1931, %v2129, %v2130
        %v2168 = vsel %vm1931, %v2128, %v2129
        %v2169 = vsel %vm1931, %v2127, %v2128
        %v2170 = vsel %vm1931, %v2126, %v2127
        %v2171 = vsel %vm1931, %v2125, %v2126
        %v2172 = vsel %vm1931, %v2124, %v2125
        %v2173 = vsel %vm1931, %v2123, %v2124
        %v2174 = vsel %vm1931, %v2148, %v2123
        %v2175 = vadd.f32 %v1958, %v2172
        %v2176 = vadd.f32 %v1959, %v2171
        %v2177 = vadd.f32 %v1960, %v2170
        %v2178 = vadd.f32 %v1961, %v2169
        %v2179 = vadd.f32 %v1962, %v2168
        %v2180 = vadd.f32 %v1963, %v2167
        %v2181 = vadd.f32 %v1964, %v2166
        %v2182 = vadd.f32 %v1965, %v2165
        %v2183 = vadd.f32 %v1966, %v2164
        %v2184 = vadd.f32 %v1967, %v2163
        %v2185 = vadd.f32 %v1968, %v2162
        %v2186 = vadd.f32 %v1969, %v2161
        %v2187 = vadd.f32 %v1970, %v2160
        %v2188 = vadd.f32 %v1971, %v2159
        %v2189 = vadd.f32 %v1972, %v2158
        %v2190 = vadd.f32 %v1973, %v2157
        %v2191 = vadd.f32 %v1974, %v2156
        %v2192 = vadd.f32 %v1975, %v2155
        %v2193 = vadd.f32 %v1976, %v2154
        %v2194 = vadd.f32 %v1977, %v2153
        %v2195 = vadd.f32 %v1978, %v2152
        %v2196 = vadd.f32 %v1979, %v2151
        %v2197 = vadd.f32 %v1980, %v2150
        %v2198 = vadd.f32 %v1981, %v2149
        %v2199 = vadd.f32 %v1982, %v2174
        %v2200 = vadd.f32 %v1983, %v2173
        %s2201 = scalar_lea.vmem %s635, 448
        %v2202 = vld [vmem:[%s2201] sm:$0xf]
        %v2203 = vld [vmem:[%s2201 + $0x4] sm:$0xf]
        %v2204 = vld [vmem:[%s2201 + $0x8] sm:$0xf]
        %v2205 = vld [vmem:[%s2201 + $0xc] sm:$0xf]
        %v2206 = vld [vmem:[%s2201 + $0x10] sm:$0xf]
        %v2207 = vld [vmem:[%s2201 + $0x14] sm:$0xf]
        %v2208 = vld [vmem:[%s2201 + $0x18] sm:$0xf]
        %v2209 = vld [vmem:[%s2201 + $0x1c] sm:$0xf]
        %v2210 = vld [vmem:[%s2201 + $0x20] sm:$0xf]
        %v2211 = vld [vmem:[%s2201 + $0x24] sm:$0xf]
        %v2212 = vld [vmem:[%s2201 + $0x28] sm:$0xf]
        %v2213 = vld [vmem:[%s2201 + $0x2c] sm:$0xf]
        %v2214 = vld [vmem:[%s2201 + $0x30] sm:$0xf]
        %v2215 = vld [vmem:[%s2201 + $0x34] sm:$0xf]
        %v2216 = vld [vmem:[%s2201 + $0x38] sm:$0xf]
        %v2217 = vld [vmem:[%s2201 + $0x3c] sm:$0xf]
        %v2234 = vunpack.c.l.b16 %v2202
        %v2235 = vunpack.c.l.b16 %v2203
        %v2236 = vunpack.c.l.b16 %v2204
        %v2237 = vunpack.c.l.b16 %v2205
        %v2238 = vunpack.c.l.b16 %v2206
        %v2239 = vunpack.c.l.b16 %v2207
        %v2240 = vunpack.c.l.b16 %v2208
        %v2241 = vunpack.c.l.b16 %v2209
        %v2242 = vunpack.c.l.b16 %v2210
        %v2243 = vunpack.c.l.b16 %v2211
        %v2244 = vunpack.c.l.b16 %v2212
        %v2245 = vunpack.c.l.b16 %v2213
        %v2246 = vunpack.c.l.b16 %v2214
        %v2247 = vunpack.c.l.b16 %v2215
        %v2248 = vunpack.c.l.b16 %v2216
        %v2249 = vunpack.c.l.b16 %v2217
        %v2250 = vpack.c.b16 %v2235, %v2234
        %v2251 = vpack.c.b16 %v2237, %v2236
        %v2252 = vpack.c.b16 %v2239, %v2238
        %v2253 = vpack.c.b16 %v2241, %v2240
        %v2254 = vpack.c.b16 %v2243, %v2242
        %v2255 = vpack.c.b16 %v2245, %v2244
        %v2256 = vpack.c.b16 %v2247, %v2246
        %v2257 = vpack.c.b16 %v2249, %v2248
        %2266 = vmatpush.bf16.msra.mxu0 %v2257
        %2267 = vmatpush.bf16.msra.mxu0 %v2256
        %2268 = vmatpush.bf16.msra.mxu0 %v2255
        %2269 = vmatpush.bf16.msra.mxu0 %v2254
        %2270 = vmatpush.bf16.msra.mxu0 %v2253
        %2271 = vmatpush.bf16.msra.mxu0 %v2252
        %2272 = vmatpush.bf16.msra.mxu0 %v2251
        %2273 = vmatpush.bf16.msra.mxu0 %v2250
        %2274 = vmatmul.bf16.gmra.mxu0 %v745
        %v2275 = vpop.f32.mrf.mxu0
        %v2276 = vadd.f32 0.0, %v2275
        %v2277 = vpop.f32.mrf.mxu0
        %v2278 = vadd.f32 0.0, %v2277
        %2279 = vmatmul.bf16.gmra.mxu0 %v746
        %v2280 = vpop.f32.mrf.mxu0
        %v2281 = vadd.f32 0.0, %v2280
        %v2282 = vpop.f32.mrf.mxu0
        %v2283 = vadd.f32 0.0, %v2282
        %2284 = vmatmul.bf16.gmra.mxu0 %v747
        %v2285 = vpop.f32.mrf.mxu0
        %v2286 = vadd.f32 0.0, %v2285
        %v2287 = vpop.f32.mrf.mxu0
        %v2288 = vadd.f32 0.0, %v2287
        %2289 = vmatmul.bf16.gmra.mxu0 %v748
        %v2290 = vpop.f32.mrf.mxu0
        %v2291 = vadd.f32 0.0, %v2290
        %v2292 = vpop.f32.mrf.mxu0
        %v2293 = vadd.f32 0.0, %v2292
        %2294 = vmatmul.bf16.gmra.mxu0 %v749
        %v2295 = vpop.f32.mrf.mxu0
        %v2296 = vadd.f32 0.0, %v2295
        %v2297 = vpop.f32.mrf.mxu0
        %v2298 = vadd.f32 0.0, %v2297
        %2299 = vmatmul.bf16.gmra.mxu0 %v750
        %v2300 = vpop.f32.mrf.mxu0
        %v2301 = vadd.f32 0.0, %v2300
        %v2302 = vpop.f32.mrf.mxu0
        %v2303 = vadd.f32 0.0, %v2302
        %2304 = vmatmul.bf16.gmra.mxu0 %v751
        %v2305 = vpop.f32.mrf.mxu0
        %v2306 = vadd.f32 0.0, %v2305
        %v2307 = vpop.f32.mrf.mxu0
        %v2308 = vadd.f32 0.0, %v2307
        %2309 = vmatmul.bf16.gmra.mxu0 %v752
        %v2310 = vpop.f32.mrf.mxu0
        %v2311 = vadd.f32 0.0, %v2310
        %v2312 = vpop.f32.mrf.mxu0
        %v2313 = vadd.f32 0.0, %v2312
        %2314 = vmatmul.bf16.gmra.mxu0 %v753
        %v2315 = vpop.f32.mrf.mxu0
        %v2316 = vadd.f32 0.0, %v2315
        %v2317 = vpop.f32.mrf.mxu0
        %v2318 = vadd.f32 0.0, %v2317
        %2319 = vmatmul.bf16.gmra.mxu0 %v754
        %v2320 = vpop.f32.mrf.mxu0
        %v2321 = vadd.f32 0.0, %v2320
        %v2322 = vpop.f32.mrf.mxu0
        %v2323 = vadd.f32 0.0, %v2322
        %2324 = vmatmul.bf16.gmra.mxu0 %v755
        %v2325 = vpop.f32.mrf.mxu0
        %v2326 = vadd.f32 0.0, %v2325
        %v2327 = vpop.f32.mrf.mxu0
        %v2328 = vadd.f32 0.0, %v2327
        %2329 = vmatmul.bf16.gmra.mxu0 %v756
        %v2330 = vpop.f32.mrf.mxu0
        %v2331 = vadd.f32 0.0, %v2330
        %v2332 = vpop.f32.mrf.mxu0
        %v2333 = vadd.f32 0.0, %v2332
        %2334 = vmatmul.bf16.gmra.mxu0 %v757
        %v2335 = vpop.f32.mrf.mxu0
        %v2336 = vadd.f32 0.0, %v2335
        %v2337 = vpop.f32.mrf.mxu0
        %v2338 = vadd.f32 0.0, %v2337
        %2339 = vdwg.mxu0
        %v2340 = vrot.slane %v2276, 2
        %v2341 = vrot.slane %v2278, 2
        %v2342 = vrot.slane %v2281, 2
        %v2343 = vrot.slane %v2283, 2
        %v2344 = vrot.slane %v2286, 2
        %v2345 = vrot.slane %v2288, 2
        %v2346 = vrot.slane %v2291, 2
        %v2347 = vrot.slane %v2293, 2
        %v2348 = vrot.slane %v2296, 2
        %v2349 = vrot.slane %v2298, 2
        %v2350 = vrot.slane %v2301, 2
        %v2351 = vrot.slane %v2303, 2
        %v2352 = vrot.slane %v2306, 2
        %v2353 = vrot.slane %v2308, 2
        %v2354 = vrot.slane %v2311, 2
        %v2355 = vrot.slane %v2313, 2
        %v2356 = vrot.slane %v2316, 2
        %v2357 = vrot.slane %v2318, 2
        %v2358 = vrot.slane %v2321, 2
        %v2359 = vrot.slane %v2323, 2
        %v2360 = vrot.slane %v2326, 2
        %v2361 = vrot.slane %v2328, 2
        %v2362 = vrot.slane %v2331, 2
        %v2363 = vrot.slane %v2333, 2
        %v2364 = vrot.slane %v2336, 2
        %v2365 = vrot.slane %v2338, 2
        %vm2366 = vcmp.lt.s32.totalorder %v920, 6
        %v2367 = vsel %vm2366, %v2364, %v2365
        %v2368 = vsel %vm2366, %v2363, %v2364
        %v2369 = vsel %vm2366, %v2362, %v2363
        %v2370 = vsel %vm2366, %v2361, %v2362
        %v2371 = vsel %vm2366, %v2360, %v2361
        %v2372 = vsel %vm2366, %v2359, %v2360
        %v2373 = vsel %vm2366, %v2358, %v2359
        %v2374 = vsel %vm2366, %v2357, %v2358
        %v2375 = vsel %vm2366, %v2356, %v2357
        %v2376 = vsel %vm2366, %v2355, %v2356
        %v2377 = vsel %vm2366, %v2354, %v2355
        %v2378 = vsel %vm2366, %v2353, %v2354
        %v2379 = vsel %vm2366, %v2352, %v2353
        %v2380 = vsel %vm2366, %v2351, %v2352
        %v2381 = vsel %vm2366, %v2350, %v2351
        %v2382 = vsel %vm2366, %v2349, %v2350
        %v2383 = vsel %vm2366, %v2348, %v2349
        %v2384 = vsel %vm2366, %v2347, %v2348
        %v2385 = vsel %vm2366, %v2346, %v2347
        %v2386 = vsel %vm2366, %v2345, %v2346
        %v2387 = vsel %vm2366, %v2344, %v2345
        %v2388 = vsel %vm2366, %v2343, %v2344
        %v2389 = vsel %vm2366, %v2342, %v2343
        %v2390 = vsel %vm2366, %v2341, %v2342
        %v2391 = vsel %vm2366, %v2340, %v2341
        %v2392 = vsel %vm2366, %v2365, %v2340
        %v2393 = vadd.f32 %v2175, %v2390
        %v2394 = vadd.f32 %v2176, %v2389
        %v2395 = vadd.f32 %v2177, %v2388
        %v2396 = vadd.f32 %v2178, %v2387
        %v2397 = vadd.f32 %v2179, %v2386
        %v2398 = vadd.f32 %v2180, %v2385
        %v2399 = vadd.f32 %v2181, %v2384
        %v2400 = vadd.f32 %v2182, %v2383
        %v2401 = vadd.f32 %v2183, %v2382
        %v2402 = vadd.f32 %v2184, %v2381
        %v2403 = vadd.f32 %v2185, %v2380
        %v2404 = vadd.f32 %v2186, %v2379
        %v2405 = vadd.f32 %v2187, %v2378
        %v2406 = vadd.f32 %v2188, %v2377
        %v2407 = vadd.f32 %v2189, %v2376
        %v2408 = vadd.f32 %v2190, %v2375
        %v2409 = vadd.f32 %v2191, %v2374
        %v2410 = vadd.f32 %v2192, %v2373
        %v2411 = vadd.f32 %v2193, %v2372
        %v2412 = vadd.f32 %v2194, %v2371
        %v2413 = vadd.f32 %v2195, %v2370
        %v2414 = vadd.f32 %v2196, %v2369
        %v2415 = vadd.f32 %v2197, %v2368
        %v2416 = vadd.f32 %v2198, %v2367
        %v2417 = vadd.f32 %v2199, %v2392
        %v2418 = vadd.f32 %v2200, %v2391
        %s2419 = scalar_lea.vmem %s635, 512
        %v2420 = vld [vmem:[%s2419] sm:$0xf]
        %v2421 = vld [vmem:[%s2419 + $0x4] sm:$0xf]
        %v2422 = vld [vmem:[%s2419 + $0x8] sm:$0xf]
        %v2423 = vld [vmem:[%s2419 + $0xc] sm:$0xf]
        %v2424 = vld [vmem:[%s2419 + $0x10] sm:$0xf]
        %v2425 = vld [vmem:[%s2419 + $0x14] sm:$0xf]
        %v2426 = vld [vmem:[%s2419 + $0x18] sm:$0xf]
        %v2427 = vld [vmem:[%s2419 + $0x1c] sm:$0xf]
        %v2428 = vld [vmem:[%s2419 + $0x20] sm:$0xf]
        %v2429 = vld [vmem:[%s2419 + $0x24] sm:$0xf]
        %v2430 = vld [vmem:[%s2419 + $0x28] sm:$0xf]
        %v2431 = vld [vmem:[%s2419 + $0x2c] sm:$0xf]
        %v2432 = vld [vmem:[%s2419 + $0x30] sm:$0xf]
        %v2433 = vld [vmem:[%s2419 + $0x34] sm:$0xf]
        %v2434 = vld [vmem:[%s2419 + $0x38] sm:$0xf]
        %v2435 = vld [vmem:[%s2419 + $0x3c] sm:$0xf]
        %v2452 = vunpack.c.l.b16 %v2420
        %v2453 = vunpack.c.l.b16 %v2421
        %v2454 = vunpack.c.l.b16 %v2422
        %v2455 = vunpack.c.l.b16 %v2423
        %v2456 = vunpack.c.l.b16 %v2424
        %v2457 = vunpack.c.l.b16 %v2425
        %v2458 = vunpack.c.l.b16 %v2426
        %v2459 = vunpack.c.l.b16 %v2427
        %v2460 = vunpack.c.l.b16 %v2428
        %v2461 = vunpack.c.l.b16 %v2429
        %v2462 = vunpack.c.l.b16 %v2430
        %v2463 = vunpack.c.l.b16 %v2431
        %v2464 = vunpack.c.l.b16 %v2432
        %v2465 = vunpack.c.l.b16 %v2433
        %v2466 = vunpack.c.l.b16 %v2434
        %v2467 = vunpack.c.l.b16 %v2435
        %v2468 = vpack.c.b16 %v2453, %v2452
        %v2469 = vpack.c.b16 %v2455, %v2454
        %v2470 = vpack.c.b16 %v2457, %v2456
        %v2471 = vpack.c.b16 %v2459, %v2458
        %v2472 = vpack.c.b16 %v2461, %v2460
        %v2473 = vpack.c.b16 %v2463, %v2462
        %v2474 = vpack.c.b16 %v2465, %v2464
        %v2475 = vpack.c.b16 %v2467, %v2466
        %2484 = vmatpush.bf16.msra.mxu0 %v2475
        %2485 = vmatpush.bf16.msra.mxu0 %v2474
        %2486 = vmatpush.bf16.msra.mxu0 %v2473
        %2487 = vmatpush.bf16.msra.mxu0 %v2472
        %2488 = vmatpush.bf16.msra.mxu0 %v2471
        %2489 = vmatpush.bf16.msra.mxu0 %v2470
        %2490 = vmatpush.bf16.msra.mxu0 %v2469
        %2491 = vmatpush.bf16.msra.mxu0 %v2468
        %2492 = vmatmul.bf16.gmra.mxu0 %v745
        %v2493 = vpop.f32.mrf.mxu0
        %v2494 = vadd.f32 0.0, %v2493
        %v2495 = vpop.f32.mrf.mxu0
        %v2496 = vadd.f32 0.0, %v2495
        %2497 = vmatmul.bf16.gmra.mxu0 %v746
        %v2498 = vpop.f32.mrf.mxu0
        %v2499 = vadd.f32 0.0, %v2498
        %v2500 = vpop.f32.mrf.mxu0
        %v2501 = vadd.f32 0.0, %v2500
        %2502 = vmatmul.bf16.gmra.mxu0 %v747
        %v2503 = vpop.f32.mrf.mxu0
        %v2504 = vadd.f32 0.0, %v2503
        %v2505 = vpop.f32.mrf.mxu0
        %v2506 = vadd.f32 0.0, %v2505
        %2507 = vmatmul.bf16.gmra.mxu0 %v748
        %v2508 = vpop.f32.mrf.mxu0
        %v2509 = vadd.f32 0.0, %v2508
        %v2510 = vpop.f32.mrf.mxu0
        %v2511 = vadd.f32 0.0, %v2510
        %2512 = vmatmul.bf16.gmra.mxu0 %v749
        %v2513 = vpop.f32.mrf.mxu0
        %v2514 = vadd.f32 0.0, %v2513
        %v2515 = vpop.f32.mrf.mxu0
        %v2516 = vadd.f32 0.0, %v2515
        %2517 = vmatmul.bf16.gmra.mxu0 %v750
        %v2518 = vpop.f32.mrf.mxu0
        %v2519 = vadd.f32 0.0, %v2518
        %v2520 = vpop.f32.mrf.mxu0
        %v2521 = vadd.f32 0.0, %v2520
        %2522 = vmatmul.bf16.gmra.mxu0 %v751
        %v2523 = vpop.f32.mrf.mxu0
        %v2524 = vadd.f32 0.0, %v2523
        %v2525 = vpop.f32.mrf.mxu0
        %v2526 = vadd.f32 0.0, %v2525
        %2527 = vmatmul.bf16.gmra.mxu0 %v752
        %v2528 = vpop.f32.mrf.mxu0
        %v2529 = vadd.f32 0.0, %v2528
        %v2530 = vpop.f32.mrf.mxu0
        %v2531 = vadd.f32 0.0, %v2530
        %2532 = vmatmul.bf16.gmra.mxu0 %v753
        %v2533 = vpop.f32.mrf.mxu0
        %v2534 = vadd.f32 0.0, %v2533
        %v2535 = vpop.f32.mrf.mxu0
        %v2536 = vadd.f32 0.0, %v2535
        %2537 = vmatmul.bf16.gmra.mxu0 %v754
        %v2538 = vpop.f32.mrf.mxu0
        %v2539 = vadd.f32 0.0, %v2538
        %v2540 = vpop.f32.mrf.mxu0
        %v2541 = vadd.f32 0.0, %v2540
        %2542 = vmatmul.bf16.gmra.mxu0 %v755
        %v2543 = vpop.f32.mrf.mxu0
        %v2544 = vadd.f32 0.0, %v2543
        %v2545 = vpop.f32.mrf.mxu0
        %v2546 = vadd.f32 0.0, %v2545
        %2547 = vmatmul.bf16.gmra.mxu0 %v756
        %v2548 = vpop.f32.mrf.mxu0
        %v2549 = vadd.f32 0.0, %v2548
        %v2550 = vpop.f32.mrf.mxu0
        %v2551 = vadd.f32 0.0, %v2550
        %2552 = vmatmul.bf16.gmra.mxu0 %v757
        %v2553 = vpop.f32.mrf.mxu0
        %v2554 = vadd.f32 0.0, %v2553
        %v2555 = vpop.f32.mrf.mxu0
        %v2556 = vadd.f32 0.0, %v2555
        %2557 = vdwg.mxu0
        %v2558 = vrot.slane %v2494, 3
        %v2559 = vrot.slane %v2496, 3
        %v2560 = vrot.slane %v2499, 3
        %v2561 = vrot.slane %v2501, 3
        %v2562 = vrot.slane %v2504, 3
        %v2563 = vrot.slane %v2506, 3
        %v2564 = vrot.slane %v2509, 3
        %v2565 = vrot.slane %v2511, 3
        %v2566 = vrot.slane %v2514, 3
        %v2567 = vrot.slane %v2516, 3
        %v2568 = vrot.slane %v2519, 3
        %v2569 = vrot.slane %v2521, 3
        %v2570 = vrot.slane %v2524, 3
        %v2571 = vrot.slane %v2526, 3
        %v2572 = vrot.slane %v2529, 3
        %v2573 = vrot.slane %v2531, 3
        %v2574 = vrot.slane %v2534, 3
        %v2575 = vrot.slane %v2536, 3
        %v2576 = vrot.slane %v2539, 3
        %v2577 = vrot.slane %v2541, 3
        %v2578 = vrot.slane %v2544, 3
        %v2579 = vrot.slane %v2546, 3
        %v2580 = vrot.slane %v2549, 3
        %v2581 = vrot.slane %v2551, 3
        %v2582 = vrot.slane %v2554, 3
        %v2583 = vrot.slane %v2556, 3
        %vm2584 = vcmp.lt.s32.totalorder %v920, 5
        %v2585 = vsel %vm2584, %v2582, %v2583
        %v2586 = vsel %vm2584, %v2581, %v2582
        %v2587 = vsel %vm2584, %v2580, %v2581
        %v2588 = vsel %vm2584, %v2579, %v2580
        %v2589 = vsel %vm2584, %v2578, %v2579
        %v2590 = vsel %vm2584, %v2577, %v2578
        %v2591 = vsel %vm2584, %v2576, %v2577
        %v2592 = vsel %vm2584, %v2575, %v2576
        %v2593 = vsel %vm2584, %v2574, %v2575
        %v2594 = vsel %vm2584, %v2573, %v2574
        %v2595 = vsel %vm2584, %v2572, %v2573
        %v2596 = vsel %vm2584, %v2571, %v2572
        %v2597 = vsel %vm2584, %v2570, %v2571
        %v2598 = vsel %vm2584, %v2569, %v2570
        %v2599 = vsel %vm2584, %v2568, %v2569
        %v2600 = vsel %vm2584, %v2567, %v2568
        %v2601 = vsel %vm2584, %v2566, %v2567
        %v2602 = vsel %vm2584, %v2565, %v2566
        %v2603 = vsel %vm2584, %v2564, %v2565
        %v2604 = vsel %vm2584, %v2563, %v2564
        %v2605 = vsel %vm2584, %v2562, %v2563
        %v2606 = vsel %vm2584, %v2561, %v2562
        %v2607 = vsel %vm2584, %v2560, %v2561
        %v2608 = vsel %vm2584, %v2559, %v2560
        %v2609 = vsel %vm2584, %v2558, %v2559
        %v2610 = vsel %vm2584, %v2583, %v2558
        %v2611 = vadd.f32 %v2393, %v2608
        %v2612 = vadd.f32 %v2394, %v2607
        %v2613 = vadd.f32 %v2395, %v2606
        %v2614 = vadd.f32 %v2396, %v2605
        %v2615 = vadd.f32 %v2397, %v2604
        %v2616 = vadd.f32 %v2398, %v2603
        %v2617 = vadd.f32 %v2399, %v2602
        %v2618 = vadd.f32 %v2400, %v2601
        %v2619 = vadd.f32 %v2401, %v2600
        %v2620 = vadd.f32 %v2402, %v2599
        %v2621 = vadd.f32 %v2403, %v2598
        %v2622 = vadd.f32 %v2404, %v2597
        %v2623 = vadd.f32 %v2405, %v2596
        %v2624 = vadd.f32 %v2406, %v2595
        %v2625 = vadd.f32 %v2407, %v2594
        %v2626 = vadd.f32 %v2408, %v2593
        %v2627 = vadd.f32 %v2409, %v2592
        %v2628 = vadd.f32 %v2410, %v2591
        %v2629 = vadd.f32 %v2411, %v2590
        %v2630 = vadd.f32 %v2412, %v2589
        %v2631 = vadd.f32 %v2413, %v2588
        %v2632 = vadd.f32 %v2414, %v2587
        %v2633 = vadd.f32 %v2415, %v2586
        %v2634 = vadd.f32 %v2416, %v2585
        %v2635 = vadd.f32 %v2417, %v2610
        %v2636 = vadd.f32 %v2418, %v2609
        %p2637 = scmp.eq.s32.totalorder %s24, 0
        // Predicated region
        $region124: #{scenet_forward.3} parent=114 // pred_check
          %p2638 = pneg %p2637
        $region125: #{scenet_forward.3} parent=114 // pred_check_branch
          %2640 = sbr.rel (%p2638) target = $region127
        $region126: #{scenet_forward.3} parent=114 // pred_region
          %2641 = vst [vmem:[#allocation2] sm:$0xff] %v2611
          %2642 = vst [vmem:[#allocation2 + $0x8] sm:$0xff] %v2612
          %2643 = vst [vmem:[#allocation2 + $0x10] sm:$0xff] %v2613
          %2644 = vst [vmem:[#allocation2 + $0x18] sm:$0xff] %v2614
          %2645 = vst [vmem:[#allocation2 + $0x20] sm:$0xff] %v2615
          %2646 = vst [vmem:[#allocation2 + $0x28] sm:$0xff] %v2616
          %2647 = vst [vmem:[#allocation2 + $0x30] sm:$0xff] %v2617
          %2648 = vst [vmem:[#allocation2 + $0x38] sm:$0xff] %v2618
          %2649 = vst [vmem:[#allocation2 + $0x40] sm:$0xff] %v2619
          %2650 = vst [vmem:[#allocation2 + $0x48] sm:$0xff] %v2620
          %2651 = vst [vmem:[#allocation2 + $0x50] sm:$0xff] %v2621
          %2652 = vst [vmem:[#allocation2 + $0x58] sm:$0xff] %v2622
          %2653 = vst [vmem:[#allocation2 + $0x60] sm:$0xff] %v2623
          %2654 = vst [vmem:[#allocation2 + $0x68] sm:$0xff] %v2624
          %2655 = vst [vmem:[#allocation2 + $0x70] sm:$0xff] %v2625
          %2656 = vst [vmem:[#allocation2 + $0x78] sm:$0xff] %v2626
          %2657 = vst [vmem:[#allocation2 + $0x80] sm:$0xff] %v2627
          %2658 = vst [vmem:[#allocation2 + $0x88] sm:$0xff] %v2628
          %2659 = vst [vmem:[#allocation2 + $0x90] sm:$0xff] %v2629
          %2660 = vst [vmem:[#allocation2 + $0x98] sm:$0xff] %v2630
          %2661 = vst [vmem:[#allocation2 + $0xa0] sm:$0xff] %v2631
          %2662 = vst [vmem:[#allocation2 + $0xa8] sm:$0xff] %v2632
          %2663 = vst [vmem:[#allocation2 + $0xb0] sm:$0xff] %v2633
          %2664 = vst [vmem:[#allocation2 + $0xb8] sm:$0xff] %v2634
          %2665 = vst [vmem:[#allocation2 + $0xc0] sm:$0xff] %v2635
          %2666 = vst [vmem:[#allocation2 + $0xc8] sm:$0xff] %v2636
        $region127: #{scenet_forward.3} parent=114 // pred_fallthru
          _
        %p2667 = scmp.gt.s32.totalorder %s24, 0
        // Predicated region
        $region128: #{scenet_forward.3} parent=114 // pred_check
          %p2668 = pneg %p2667
        $region129: #{scenet_forward.3} parent=114 // pred_check_branch
          %2670 = sbr.rel (%p2668) target = $region131
        $region130: #{scenet_forward.3} parent=114 // pred_region
          %v2671 = vld [vmem:[#allocation2] sm:$0xff]
          %v2672 = vld [vmem:[#allocation2 + $0x8] sm:$0xff]
          %v2673 = vld [vmem:[#allocation2 + $0x10] sm:$0xff]
          %v2674 = vld [vmem:[#allocation2 + $0x18] sm:$0xff]
          %v2675 = vld [vmem:[#allocation2 + $0x20] sm:$0xff]
          %v2676 = vld [vmem:[#allocation2 + $0x28] sm:$0xff]
          %v2677 = vld [vmem:[#allocation2 + $0x30] sm:$0xff]
          %v2678 = vld [vmem:[#allocation2 + $0x38] sm:$0xff]
          %v2679 = vld [vmem:[#allocation2 + $0x40] sm:$0xff]
          %v2680 = vld [vmem:[#allocation2 + $0x48] sm:$0xff]
          %v2681 = vld [vmem:[#allocation2 + $0x50] sm:$0xff]
          %v2682 = vld [vmem:[#allocation2 + $0x58] sm:$0xff]
          %v2683 = vld [vmem:[#allocation2 + $0x60] sm:$0xff]
          %v2684 = vld [vmem:[#allocation2 + $0x68] sm:$0xff]
          %v2685 = vld [vmem:[#allocation2 + $0x70] sm:$0xff]
          %v2686 = vld [vmem:[#allocation2 + $0x78] sm:$0xff]
          %v2687 = vld [vmem:[#allocation2 + $0x80] sm:$0xff]
          %v2688 = vld [vmem:[#allocation2 + $0x88] sm:$0xff]
          %v2689 = vld [vmem:[#allocation2 + $0x90] sm:$0xff]
          %v2690 = vld [vmem:[#allocation2 + $0x98] sm:$0xff]
          %v2691 = vld [vmem:[#allocation2 + $0xa0] sm:$0xff]
          %v2692 = vld [vmem:[#allocation2 + $0xa8] sm:$0xff]
          %v2693 = vld [vmem:[#allocation2 + $0xb0] sm:$0xff]
          %v2694 = vld [vmem:[#allocation2 + $0xb8] sm:$0xff]
          %v2695 = vld [vmem:[#allocation2 + $0xc0] sm:$0xff]
          %v2696 = vld [vmem:[#allocation2 + $0xc8] sm:$0xff]
          %v2697 = vadd.f32 %v2671, %v2611
          %v2698 = vadd.f32 %v2672, %v2612
          %v2699 = vadd.f32 %v2673, %v2613
          %v2700 = vadd.f32 %v2674, %v2614
          %v2701 = vadd.f32 %v2675, %v2615
          %v2702 = vadd.f32 %v2676, %v2616
          %v2703 = vadd.f32 %v2677, %v2617
          %v2704 = vadd.f32 %v2678, %v2618
          %v2705 = vadd.f32 %v2679, %v2619
          %v2706 = vadd.f32 %v2680, %v2620
          %v2707 = vadd.f32 %v2681, %v2621
          %v2708 = vadd.f32 %v2682, %v2622
          %v2709 = vadd.f32 %v2683, %v2623
          %v2710 = vadd.f32 %v2684, %v2624
          %v2711 = vadd.f32 %v2685, %v2625
          %v2712 = vadd.f32 %v2686, %v2626
          %v2713 = vadd.f32 %v2687, %v2627
          %v2714 = vadd.f32 %v2688, %v2628
          %v2715 = vadd.f32 %v2689, %v2629
          %v2716 = vadd.f32 %v2690, %v2630
          %v2717 = vadd.f32 %v2691, %v2631
          %v2718 = vadd.f32 %v2692, %v2632
          %v2719 = vadd.f32 %v2693, %v2633
          %v2720 = vadd.f32 %v2694, %v2634
          %v2721 = vadd.f32 %v2695, %v2635
          %v2722 = vadd.f32 %v2696, %v2636
          %2723 = vst [vmem:[#allocation2] sm:$0xff] %v2697
          %2724 = vst [vmem:[#allocation2 + $0x8] sm:$0xff] %v2698
          %2725 = vst [vmem:[#allocation2 + $0x10] sm:$0xff] %v2699
          %2726 = vst [vmem:[#allocation2 + $0x18] sm:$0xff] %v2700
          %2727 = vst [vmem:[#allocation2 + $0x20] sm:$0xff] %v2701
          %2728 = vst [vmem:[#allocation2 + $0x28] sm:$0xff] %v2702
          %2729 = vst [vmem:[#allocation2 + $0x30] sm:$0xff] %v2703
          %2730 = vst [vmem:[#allocation2 + $0x38] sm:$0xff] %v2704
          %2731 = vst [vmem:[#allocation2 + $0x40] sm:$0xff] %v2705
          %2732 = vst [vmem:[#allocation2 + $0x48] sm:$0xff] %v2706
          %2733 = vst [vmem:[#allocation2 + $0x50] sm:$0xff] %v2707
          %2734 = vst [vmem:[#allocation2 + $0x58] sm:$0xff] %v2708
          %2735 = vst [vmem:[#allocation2 + $0x60] sm:$0xff] %v2709
          %2736 = vst [vmem:[#allocation2 + $0x68] sm:$0xff] %v2710
          %2737 = vst [vmem:[#allocation2 + $0x70] sm:$0xff] %v2711
          %2738 = vst [vmem:[#allocation2 + $0x78] sm:$0xff] %v2712
          %2739 = vst [vmem:[#allocation2 + $0x80] sm:$0xff] %v2713
          %2740 = vst [vmem:[#allocation2 + $0x88] sm:$0xff] %v2714
          %2741 = vst [vmem:[#allocation2 + $0x90] sm:$0xff] %v2715
          %2742 = vst [vmem:[#allocation2 + $0x98] sm:$0xff] %v2716
          %2743 = vst [vmem:[#allocation2 + $0xa0] sm:$0xff] %v2717
          %2744 = vst [vmem:[#allocation2 + $0xa8] sm:$0xff] %v2718
          %2745 = vst [vmem:[#allocation2 + $0xb0] sm:$0xff] %v2719
          %2746 = vst [vmem:[#allocation2 + $0xb8] sm:$0xff] %v2720
          %2747 = vst [vmem:[#allocation2 + $0xc0] sm:$0xff] %v2721
          %2748 = vst [vmem:[#allocation2 + $0xc8] sm:$0xff] %v2722
        $region131: #{scenet_forward.3} parent=114 // pred_fallthru
          _
        %p2749 = scmp.eq.s32.totalorder %s24, 1
        // Predicated region
        $region132: #{scenet_forward.3} parent=114 // pred_check
          %p2750 = pneg %p2749
        $region133: #{scenet_forward.3} parent=114 // pred_check_branch
          %2752 = sbr.rel (%p2750) target = $region135
        $region134: #{scenet_forward.3} parent=114 // pred_region
          %v2753 = vld [vmem:[#allocation2] sm:$0xff]
          %v2754 = vld [vmem:[#allocation2 + $0x8] sm:$0xff]
          %v2755 = vld [vmem:[#allocation2 + $0x10] sm:$0xff]
          %v2756 = vld [vmem:[#allocation2 + $0x18] sm:$0xff]
          %v2757 = vld [vmem:[#allocation2 + $0x20] sm:$0xff]
          %v2758 = vld [vmem:[#allocation2 + $0x28] sm:$0xff]
          %v2759 = vld [vmem:[#allocation2 + $0x30] sm:$0xff]
          %v2760 = vld [vmem:[#allocation2 + $0x38] sm:$0xff]
          %v2761 = vld [vmem:[#allocation2 + $0x40] sm:$0xff]
          %v2762 = vld [vmem:[#allocation2 + $0x48] sm:$0xff]
          %v2763 = vld [vmem:[#allocation2 + $0x50] sm:$0xff]
          %v2764 = vld [vmem:[#allocation2 + $0x58] sm:$0xff]
          %v2765 = vld [vmem:[#allocation2 + $0x60] sm:$0xff]
          %v2766 = vld [vmem:[#allocation2 + $0x68] sm:$0xff]
          %v2767 = vld [vmem:[#allocation2 + $0x70] sm:$0xff]
          %v2768 = vld [vmem:[#allocation2 + $0x78] sm:$0xff]
          %v2769 = vld [vmem:[#allocation2 + $0x80] sm:$0xff]
          %v2770 = vld [vmem:[#allocation2 + $0x88] sm:$0xff]
          %v2771 = vld [vmem:[#allocation2 + $0x90] sm:$0xff]
          %v2772 = vld [vmem:[#allocation2 + $0x98] sm:$0xff]
          %v2773 = vld [vmem:[#allocation2 + $0xa0] sm:$0xff]
          %v2774 = vld [vmem:[#allocation2 + $0xa8] sm:$0xff]
          %v2775 = vld [vmem:[#allocation2 + $0xb0] sm:$0xff]
          %v2776 = vld [vmem:[#allocation2 + $0xb8] sm:$0xff]
          %v2777 = vld [vmem:[#allocation2 + $0xc0] sm:$0xff]
          %v2778 = vld [vmem:[#allocation2 + $0xc8] sm:$0xff]
          %v2779 = vld [vmem:[%s638] sm:$0x1]
          %v2781 = vperm.slane %v2779, 0
          %v2783 = vmul.f32 %v2753, %v2781
          %v2784 = vmul.f32 %v2754, %v2781
          %v2785 = vmul.f32 %v2755, %v2781
          %v2786 = vmul.f32 %v2756, %v2781
          %v2787 = vmul.f32 %v2757, %v2781
          %v2788 = vmul.f32 %v2758, %v2781
          %v2789 = vmul.f32 %v2759, %v2781
          %v2790 = vmul.f32 %v2760, %v2781
          %v2791 = vmul.f32 %v2761, %v2781
          %v2792 = vmul.f32 %v2762, %v2781
          %v2793 = vmul.f32 %v2763, %v2781
          %v2794 = vmul.f32 %v2764, %v2781
          %v2795 = vmul.f32 %v2765, %v2781
          %v2796 = vmul.f32 %v2766, %v2781
          %v2797 = vmul.f32 %v2767, %v2781
          %v2798 = vmul.f32 %v2768, %v2781
          %v2799 = vmul.f32 %v2769, %v2781
          %v2800 = vmul.f32 %v2770, %v2781
          %v2801 = vmul.f32 %v2771, %v2781
          %v2802 = vmul.f32 %v2772, %v2781
          %v2803 = vmul.f32 %v2773, %v2781
          %v2804 = vmul.f32 %v2774, %v2781
          %v2805 = vmul.f32 %v2775, %v2781
          %v2806 = vmul.f32 %v2776, %v2781
          %v2807 = vmul.f32 %v2777, %v2781
          %v2808 = vmul.f32 %v2778, %v2781
          %v2809 = vld [vmem:[%s641] sm:$0x1]
          %v2811 = vperm.slane %v2809, 0
          %v2813 = vadd.f32 %v2783, %v2811
          %v2814 = vadd.f32 %v2784, %v2811
          %v2815 = vadd.f32 %v2785, %v2811
          %v2816 = vadd.f32 %v2786, %v2811
          %v2817 = vadd.f32 %v2787, %v2811
          %v2818 = vadd.f32 %v2788, %v2811
          %v2819 = vadd.f32 %v2789, %v2811
          %v2820 = vadd.f32 %v2790, %v2811
          %v2821 = vadd.f32 %v2791, %v2811
          %v2822 = vadd.f32 %v2792, %v2811
          %v2823 = vadd.f32 %v2793, %v2811
          %v2824 = vadd.f32 %v2794, %v2811
          %v2825 = vadd.f32 %v2795, %v2811
          %v2826 = vadd.f32 %v2796, %v2811
          %v2827 = vadd.f32 %v2797, %v2811
          %v2828 = vadd.f32 %v2798, %v2811
          %v2829 = vadd.f32 %v2799, %v2811
          %v2830 = vadd.f32 %v2800, %v2811
          %v2831 = vadd.f32 %v2801, %v2811
          %v2832 = vadd.f32 %v2802, %v2811
          %v2833 = vadd.f32 %v2803, %v2811
          %v2834 = vadd.f32 %v2804, %v2811
          %v2835 = vadd.f32 %v2805, %v2811
          %v2836 = vadd.f32 %v2806, %v2811
          %v2837 = vadd.f32 %v2807, %v2811
          %v2838 = vadd.f32 %v2808, %v2811
          %v2839 = vld [vmem:[%s577] sm:$0xff]
          %v2840 = vld [vmem:[%s577 + $0x8] sm:$0xff]
          %v2841 = vld [vmem:[%s577 + $0x10] sm:$0xff]
          %v2842 = vld [vmem:[%s577 + $0x18] sm:$0xff]
          %v2843 = vld [vmem:[%s577 + $0x20] sm:$0xff]
          %v2844 = vld [vmem:[%s577 + $0x28] sm:$0xff]
          %v2845 = vld [vmem:[%s577 + $0x30] sm:$0xff]
          %v2846 = vld [vmem:[%s577 + $0x38] sm:$0xff]
          %v2847 = vld [vmem:[%s577 + $0x40] sm:$0xff]
          %v2848 = vld [vmem:[%s577 + $0x48] sm:$0xff]
          %v2849 = vld [vmem:[%s577 + $0x50] sm:$0xff]
          %v2850 = vld [vmem:[%s577 + $0x58] sm:$0xff]
          %v2851 = vld [vmem:[%s577 + $0x60] sm:$0xff]
          %v2852 = vld [vmem:[%s577 + $0x68] sm:$0xff]
          %v2853 = vld [vmem:[%s577 + $0x70] sm:$0xff]
          %v2854 = vld [vmem:[%s577 + $0x78] sm:$0xff]
          %v2855 = vld [vmem:[%s577 + $0x80] sm:$0xff]
          %v2856 = vld [vmem:[%s577 + $0x88] sm:$0xff]
          %v2857 = vld [vmem:[%s577 + $0x90] sm:$0xff]
          %v2858 = vld [vmem:[%s577 + $0x98] sm:$0xff]
          %v2859 = vld [vmem:[%s577 + $0xa0] sm:$0xff]
          %v2860 = vld [vmem:[%s577 + $0xa8] sm:$0xff]
          %v2861 = vld [vmem:[%s577 + $0xb0] sm:$0xff]
          %v2862 = vld [vmem:[%s577 + $0xb8] sm:$0xff]
          %v2863 = vld [vmem:[%s577 + $0xc0] sm:$0xff]
          %v2864 = vld [vmem:[%s577 + $0xc8] sm:$0xff]
          %v2865 = vadd.f32 %v2813, %v2839
          %v2866 = vadd.f32 %v2814, %v2840
          %v2867 = vadd.f32 %v2815, %v2841
          %v2868 = vadd.f32 %v2816, %v2842
          %v2869 = vadd.f32 %v2817, %v2843
          %v2870 = vadd.f32 %v2818, %v2844
          %v2871 = vadd.f32 %v2819, %v2845
          %v2872 = vadd.f32 %v2820, %v2846
          %v2873 = vadd.f32 %v2821, %v2847
          %v2874 = vadd.f32 %v2822, %v2848
          %v2875 = vadd.f32 %v2823, %v2849
          %v2876 = vadd.f32 %v2824, %v2850
          %v2877 = vadd.f32 %v2825, %v2851
          %v2878 = vadd.f32 %v2826, %v2852
          %v2879 = vadd.f32 %v2827, %v2853
          %v2880 = vadd.f32 %v2828, %v2854
          %v2881 = vadd.f32 %v2829, %v2855
          %v2882 = vadd.f32 %v2830, %v2856
          %v2883 = vadd.f32 %v2831, %v2857
          %v2884 = vadd.f32 %v2832, %v2858
          %v2885 = vadd.f32 %v2833, %v2859
          %v2886 = vadd.f32 %v2834, %v2860
          %v2887 = vadd.f32 %v2835, %v2861
          %v2888 = vadd.f32 %v2836, %v2862
          %v2889 = vadd.f32 %v2837, %v2863
          %v2890 = vadd.f32 %v2838, %v2864
          %v2891 = vmax.f32 %v2865, 0.0
          %v2892 = vmax.f32 %v2866, 0.0
          %v2893 = vmax.f32 %v2867, 0.0
          %v2894 = vmax.f32 %v2868, 0.0
          %v2895 = vmax.f32 %v2869, 0.0
          %v2896 = vmax.f32 %v2870, 0.0
          %v2897 = vmax.f32 %v2871, 0.0
          %v2898 = vmax.f32 %v2872, 0.0
          %v2899 = vmax.f32 %v2873, 0.0
          %v2900 = vmax.f32 %v2874, 0.0
          %v2901 = vmax.f32 %v2875, 0.0
          %v2902 = vmax.f32 %v2876, 0.0
          %v2903 = vmax.f32 %v2877, 0.0
          %v2904 = vmax.f32 %v2878, 0.0
          %v2905 = vmax.f32 %v2879, 0.0
          %v2906 = vmax.f32 %v2880, 0.0
          %v2907 = vmax.f32 %v2881, 0.0
          %v2908 = vmax.f32 %v2882, 0.0
          %v2909 = vmax.f32 %v2883, 0.0
          %v2910 = vmax.f32 %v2884, 0.0
          %v2911 = vmax.f32 %v2885, 0.0
          %v2912 = vmax.f32 %v2886, 0.0
          %v2913 = vmax.f32 %v2887, 0.0
          %v2914 = vmax.f32 %v2888, 0.0
          %v2915 = vmax.f32 %v2889, 0.0
          %v2916 = vmax.f32 %v2890, 0.0
          %v2917 = vld [vmem:[%s5] sm:$0xff]
          %v2918 = vld [vmem:[%s5 + $0x8] sm:$0xff]
          %v2919 = vld [vmem:[%s5 + $0x10] sm:$0xff]
          %v2920 = vld [vmem:[%s5 + $0x18] sm:$0xff]
          %v2921 = vld [vmem:[%s5 + $0x20] sm:$0xff]
          %v2922 = vld [vmem:[%s5 + $0x28] sm:$0xff]
          %v2923 = vld [vmem:[%s5 + $0x30] sm:$0xff]
          %v2924 = vld [vmem:[%s5 + $0x38] sm:$0xff]
          %v2925 = vld [vmem:[%s5 + $0x40] sm:$0xff]
          %v2926 = vld [vmem:[%s5 + $0x48] sm:$0xff]
          %v2927 = vld [vmem:[%s5 + $0x50] sm:$0xff]
          %v2928 = vld [vmem:[%s5 + $0x58] sm:$0xff]
          %v2929 = vld [vmem:[%s5 + $0x60] sm:$0xff]
          %2931 = vset.pattern.permute.xlu0 0
          %2932 = vperm.xlu0 %2931, %v2917
          %v2933 = vpop.permute.xlu0 %2932
          %2936 = vset.pattern.permute.xlu0 0
          %2937 = vperm.xlu0 %2936, %v2918
          %v2938 = vpop.permute.xlu0 %2937
          %2941 = vset.pattern.permute.xlu0 0
          %2942 = vperm.xlu0 %2941, %v2919
          %v2943 = vpop.permute.xlu0 %2942
          %2946 = vset.pattern.permute.xlu0 0
          %2947 = vperm.xlu0 %2946, %v2920
          %v2948 = vpop.permute.xlu0 %2947
          %2951 = vset.pattern.permute.xlu0 0
          %2952 = vperm.xlu0 %2951, %v2921
          %v2953 = vpop.permute.xlu0 %2952
          %2956 = vset.pattern.permute.xlu0 0
          %2957 = vperm.xlu0 %2956, %v2922
          %v2958 = vpop.permute.xlu0 %2957
          %2961 = vset.pattern.permute.xlu0 0
          %2962 = vperm.xlu0 %2961, %v2923
          %v2963 = vpop.permute.xlu0 %2962
          %2966 = vset.pattern.permute.xlu0 0
          %2967 = vperm.xlu0 %2966, %v2924
          %v2968 = vpop.permute.xlu0 %2967
          %2971 = vset.pattern.permute.xlu0 0
          %2972 = vperm.xlu0 %2971, %v2925
          %v2973 = vpop.permute.xlu0 %2972
          %2976 = vset.pattern.permute.xlu0 0
          %2977 = vperm.xlu0 %2976, %v2926
          %v2978 = vpop.permute.xlu0 %2977
          %2981 = vset.pattern.permute.xlu0 0
          %2982 = vperm.xlu0 %2981, %v2927
          %v2983 = vpop.permute.xlu0 %2982
          %2986 = vset.pattern.permute.xlu0 0
          %2987 = vperm.xlu0 %2986, %v2928
          %v2988 = vpop.permute.xlu0 %2987
          %2991 = vset.pattern.permute.xlu0 0
          %2992 = vperm.xlu0 %2991, %v2929
          %v2993 = vpop.permute.xlu0 %2992
          %v2995 = vmul.f32 %v2891, %v2933
          %v2996 = vmul.f32 %v2892, %v2938
          %v2997 = vmul.f32 %v2893, %v2943
          %v2998 = vmul.f32 %v2894, %v2948
          %v2999 = vmul.f32 %v2895, %v2953
          %v3000 = vmul.f32 %v2896, %v2958
          %v3001 = vmul.f32 %v2897, %v2963
          %v3002 = vmul.f32 %v2898, %v2968
          %v3003 = vmul.f32 %v2899, %v2973
          %v3004 = vmul.f32 %v2900, %v2978
          %v3005 = vmul.f32 %v2901, %v2983
          %v3006 = vmul.f32 %v2902, %v2988
          %v3007 = vmul.f32 %v2903, %v2993
          %v3008 = vmul.f32 %v2904, %v2933
          %v3009 = vmul.f32 %v2905, %v2938
          %v3010 = vmul.f32 %v2906, %v2943
          %v3011 = vmul.f32 %v2907, %v2948
          %v3012 = vmul.f32 %v2908, %v2953
          %v3013 = vmul.f32 %v2909, %v2958
          %v3014 = vmul.f32 %v2910, %v2963
          %v3015 = vmul.f32 %v2911, %v2968
          %v3016 = vmul.f32 %v2912, %v2973
          %v3017 = vmul.f32 %v2913, %v2978
          %v3018 = vmul.f32 %v2914, %v2983
          %v3019 = vmul.f32 %v2915, %v2988
          %v3020 = vmul.f32 %v2916, %v2993
          %v3021 = vadd.f32 %v2995, %v2996
          %v3022 = vadd.f32 %v3021, %v2997
          %v3023 = vadd.f32 %v3022, %v2998
          %v3024 = vadd.f32 %v3023, %v2999
          %v3025 = vadd.f32 %v3024, %v3000
          %v3026 = vadd.f32 %v3025, %v3001
          %v3027 = vadd.f32 %v3026, %v3002
          %v3028 = vadd.f32 %v3027, %v3003
          %v3029 = vadd.f32 %v3028, %v3004
          %v3030 = vadd.f32 %v3029, %v3005
          %v3031 = vadd.f32 %v3030, %v3006
          %v3032 = vadd.f32 %v3031, %v3007
          %v3033 = vrot.slane %v3032, 4
          %v3034 = vadd.f32 %v3032, %v3033
          %v3035 = vrot.slane %v3034, 2
          %v3036 = vadd.f32 %v3034, %v3035
          %v3037 = vrot.slane %v3036, 1
          %v3038 = vadd.f32 %v3036, %v3037
          %v3039 = vadd.f32 %v3008, %v3009
          %v3040 = vadd.f32 %v3039, %v3010
          %v3041 = vadd.f32 %v3040, %v3011
          %v3042 = vadd.f32 %v3041, %v3012
          %v3043 = vadd.f32 %v3042, %v3013
          %v3044 = vadd.f32 %v3043, %v3014
          %v3045 = vadd.f32 %v3044, %v3015
          %v3046 = vadd.f32 %v3045, %v3016
          %v3047 = vadd.f32 %v3046, %v3017
          %v3048 = vadd.f32 %v3047, %v3018
          %v3049 = vadd.f32 %v3048, %v3019
          %v3050 = vadd.f32 %v3049, %v3020
          %v3051 = vrot.slane %v3050, 4
          %v3052 = vadd.f32 %v3050, %v3051
          %v3053 = vrot.slane %v3052, 2
          %v3054 = vadd.f32 %v3052, %v3053
          %v3055 = vrot.slane %v3054, 1
          %v3056 = vadd.f32 %v3054, %v3055
          %v3057 = vmul.f32 %v3038, 0.015625
          %v3058 = vmul.f32 %v3056, 0.015625
          %vm3061 = vcmask 1041409
          %v3062 = vsel %vm3061, %v3058, %v3057
          %3064 = vst [vmem:[%s650] sm:$0x3] %v3062
        $region135: #{scenet_forward.3} parent=114 // pred_fallthru
          _
        %p3065 = scmp.lt.s32.totalorder %s23, 0
        %s3066 = scalar_select %p3065, %s23, 0
        %p3067 = scmp.lt.s32.totalorder %s22, 1
        %s3068 = scalar_select %p3067, %s22, 1
        %s3069 = smul.addr %s3066, 2
        %s3070 = sadd.s32 %s3068, %s3069
        %s3071 = smul.addr %s3070, 2
        %s3072 = scalar_lea.vmem %s6, %s3071
        // Predicated region
        $region136: #{scenet_forward.3} parent=114 // pred_check
          %p3073 = pneg %p213
        $region137: #{scenet_forward.3} parent=114 // pred_check_branch
          %3075 = sbr.rel (%p3073) target = $region139
        $region138: #{scenet_forward.3} parent=114 // pred_region
          _
        $region139: #{scenet_forward.3} parent=114 // pred_fallthru
          _
      $region115: #{scenet_forward.3} parent=5 // pred_fallthru
        _
      %p3076 = scmp.le.s32.totalorder 2, %s12
      // Predicated region
      $region140: #{scenet_forward.3} parent=5 // pred_check
        %p3077 = pneg %p3076
      $region141: #{scenet_forward.3} parent=5 // pred_check_branch
        %3079 = sbr.rel (%p3077) target = $region143
      $region142: #{scenet_forward.3} parent=5 // pred_region
        %s3080 = ssub.s32 %s12, 2
        // Predicated region
        $region144: #{scenet_forward.3} parent=142 // pred_check
          %p3081 = pneg %p219
        $region145: #{scenet_forward.3} parent=142 // pred_check_branch
          %3083 = sbr.rel (%p3081) target = $region147
        $region146: #{scenet_forward.3} parent=142 // pred_region
          %p3084 = scmp.lt.s32.totalorder %s26, 0
          %s3085 = scalar_select %p3084, %s26, 0
          %p3086 = scmp.lt.s32.totalorder %s25, 1
          %s3087 = scalar_select %p3086, %s25, 1
          %s3088 = smul.addr %s3085, 2
          %s3089 = sadd.s32 %s3087, %s3088
          %s3090 = smul.addr %s3089, 2
          %s3091 = scalar_lea.vmem %s6, %s3090
        $region147: #{scenet_forward.3} parent=142 // pred_fallthru
          _
      $region143: #{scenet_forward.3} parent=5 // pred_fallthru
        _
    $region6: #{scenet_forward.3} parent=1 // loop_footer
      %s16 = sadd.s32 1, %s12
    $region7: #{scenet_forward.3} parent=1 // loop_footer_branch
      %11 = sbr.rel target = $region3
    $region8: #{scenet_forward.3} parent=1 // loop_exit
      _

</llo_original>
